<compile_context>
chip_gen: v5e
topology: v5e:2x2
jax: 0.10.0
libtpu: 0.0.40
codegen_flags: <defaults>
</compile_context>

<pallas_src>
import functools

import numpy as np

import jax
import jax.numpy as jnp
from jax.experimental import pallas as pl
from jax.experimental.pallas import tpu as pltpu

KERNEL_SIZE = 3
PADDING = 1


# ----------------------------------------------------------------------------
# Fused kernel: runs the whole 11-conv stack for ONE batch element.
# ----------------------------------------------------------------------------
def _unet_fused_kernel(x_ref, w_ref, b_ref, m_ref, o_ref, patch_ref, *, W, C, acts):
    """x_ref     : (1, C, HW)      channel-major input (channel-padded), HW = H*W
    w_ref     : (L, C, 9*C)     per-layer weight matrices  (Cout, 9*Cin), padded
    b_ref     : (L, C, 1)       per-layer biases (padded)
    m_ref     : (9, C, HW)      per-tap boundary masks (1.0 valid / 0.0 pad)
    o_ref     : (1, C, HW)      last-layer output
    patch_ref : (9*C, HW)       VMEM scratch for the im2col patch matrix
    """
    HW = x_ref.shape[-1]
    n_layers = len(acts)

    # Current activation lives as a value (8 vregs), never round-trips VMEM/HBM.
    x = x_ref[0]                                         # (C, HW)

    for l, act in enumerate(acts):                       # fully unrolled, 11 layers
        # Build the (9*C, HW) patch matrix: one lane-roll + mask per tap,
        # stored at sublane-aligned 32-row offsets.
        for dy in range(KERNEL_SIZE):
            for dx in range(KERNEL_SIZE):
                t = dy * KERNEL_SIZE + dx
                s = (dy - 1) * W + (dx - 1)              # flattened spatial shift
                if s == 0:
                    tap = x                              # center tap: no roll, no mask
                else:
                    # tap[p] = x[(p + s) mod HW]; wrapped positions are zeroed
                    # by the boundary mask, matching zero padding exactly.
                    tap = pltpu.roll(x, shift=(-s) % HW, axis=1)
                    tap = tap * m_ref[t]
                patch_ref[t * C:(t + 1) * C, :] = tap

        # One MXU matmul per layer: (C, 9C) @ (9C, HW) -> (C, HW); lane dim = HW.
        y = jnp.dot(w_ref[l], patch_ref[...],
                    preferred_element_type=jnp.float32)
        y = y + b_ref[l]                                 # (C, 1) broadcast over lanes
        if act == "relu":
            y = jnp.maximum(y, 0.0)
        elif act == "sigmoid":
            y = jax.nn.sigmoid(y)
        # act == "none": linear

        if l == n_layers - 1:
            o_ref[0] = y.astype(o_ref.dtype)             # lane-dense store (HW = 256)
        else:
            x = y


# ----------------------------------------------------------------------------
# Parameter construction (same init distribution as nn.Conv2d defaults).
# Weights stored as (kh, kw, Cin, Cout) (HWIO); math identical to PyTorch.
# ----------------------------------------------------------------------------
def _init_conv(key, cin, cout):
    kw_key, kb_key = jax.random.split(key)
    fan_in = cin * KERNEL_SIZE * KERNEL_SIZE
    bound = 1.0 / jnp.sqrt(fan_in)
    w = jax.random.uniform(kw_key, (KERNEL_SIZE, KERNEL_SIZE, cin, cout),
                           minval=-bound, maxval=bound, dtype=jnp.float32)
    b = jax.random.uniform(kb_key, (cout,), minval=-bound, maxval=bound,
                           dtype=jnp.float32)
    return w, b


def init_unet_small_params(key, in_channels, num_classes, hidden_size):
    half = hidden_size // 2
    # (cin, cout, activation) for each of the 11 convs, in forward order.
    layer_defs = [
        # Encoder: Conv_Block(start) + 2x Conv_Block(mid)
        (in_channels, half, "relu"),
        (half, hidden_size, "relu"),
        (hidden_size, hidden_size, "relu"),
        (hidden_size, hidden_size, "relu"),
        (hidden_size, hidden_size, "relu"),
        (hidden_size, hidden_size, "relu"),
        # Decoder: Conv_Block(mid) + plain conv (no activation) + Conv_Block(end)
        (hidden_size, hidden_size, "relu"),
        (hidden_size, hidden_size, "relu"),
        (hidden_size, hidden_size, "none"),
        (hidden_size, half, "relu"),
        (half, num_classes, "sigmoid"),
    ]
    keys = jax.random.split(key, len(layer_defs))
    params = []
    for k, (cin, cout, act) in zip(keys, layer_defs):
        w, b = _init_conv(k, cin, cout)
        params.append((w, b, act))
    return params


def _pack_params(params, C):
    """Zero-pad every layer to C channels; weights packed as (Cout, 9*Cin).

    Row/col ordering matches the kernel's tap order t = dy*3 + dx and
    per-tap channel layout: W_mat[co, t*C + ci] = W_torch[co, ci, dy, dx].
    """
    L = len(params)
    w_all = jnp.zeros((L, C, KERNEL_SIZE * KERNEL_SIZE * C), jnp.float32)
    b_all = jnp.zeros((L, C, 1), jnp.float32)
    acts = []
    for l, (w, b, act) in enumerate(params):
        kh, kw, cin, cout = w.shape
        for dy in range(kh):
            for dx in range(kw):
                t = dy * kw + dx
                w_all = w_all.at[l, :cout, t * C:t * C + cin].set(
                    jnp.transpose(w[dy, dx]))            # (cin, cout) -> (cout, cin)
        b_all = b_all.at[l, :cout, 0].set(b)
        acts.append(act)
    return w_all, b_all, tuple(acts)


def _make_masks(H, W, C):
    """Per-tap validity masks over the flattened spatial axis, broadcast to C rows."""
    h = np.arange(H)[:, None]
    w = np.arange(W)[None, :]
    masks = []
    for dy in range(KERNEL_SIZE):
        for dx in range(KERNEL_SIZE):
            valid = ((h + dy - 1 >= 0) & (h + dy - 1 < H) &
                     (w + dx - 1 >= 0) & (w + dx - 1 < W))
            masks.append(np.broadcast_to(valid.reshape(1, H * W), (C, H * W)))
    return jnp.asarray(np.stack(masks).astype(np.float32))


# ----------------------------------------------------------------------------
# Forward wrapper (NCHW in / NCHW out, like the PyTorch module).
# ----------------------------------------------------------------------------
def unet_small_forward(params, x_nchw):
    N, cin, H, W = x_nchw.shape
    num_classes = params[-1][0].shape[-1]
    HW = H * W
    # TODO(synk): for H*W not a multiple of 128, pad the flattened spatial axis
    # (and masks) to the next multiple of 128; not needed at these shapes.
    assert HW % 128 == 0, "flattened spatial axis must be lane-aligned (mult of 128)"

    # One common channel width (multiple of 8) shared by every layer.
    C = max([cin] + [p[0].shape[-1] for p in params])
    C = ((C + 7) // 8) * 8

    w_all, b_all, acts = _pack_params(params, C)
    masks = _make_masks(H, W, C)
    L = w_all.shape[0]
    K9C = KERNEL_SIZE * KERNEL_SIZE * C

    # NCHW is already channel-major: zero-pad channels to C, flatten spatial.
    x = jnp.pad(x_nchw, ((0, 0), (0, C - cin), (0, 0), (0, 0))).reshape(N, C, HW)

    kernel = functools.partial(_unet_fused_kernel, W=W, C=C, acts=acts)

    out = pl.pallas_call(
        kernel,
        out_shape=jax.ShapeDtypeStruct((N, C, HW), jnp.float32),
        grid_spec=pltpu.PrefetchScalarGridSpec(
            num_scalar_prefetch=0,
            grid=(N,),  # one batch element per grid step; parallel across TCs
            in_specs=[
                pl.BlockSpec((1, C, HW), lambda n: (n, 0, 0)),
                pl.BlockSpec((L, C, K9C), lambda n: (0, 0, 0)),
                pl.BlockSpec((L, C, 1), lambda n: (0, 0, 0)),
                pl.BlockSpec((KERNEL_SIZE * KERNEL_SIZE, C, HW),
                             lambda n: (0, 0, 0)),
            ],
            out_specs=pl.BlockSpec((1, C, HW), lambda n: (n, 0, 0)),
            scratch_shapes=[
                pltpu.VMEM((K9C, HW), jnp.float32),   # im2col patch matrix
            ],
        ),
        compiler_params=pltpu.CompilerParams(
            dimension_semantics=("parallel",),
        ),
    )(x, w_all, b_all, masks)

    # Drop padded channels; layout is already NCHW.
    return out.reshape(N, C, H, W)[:, :num_classes]


# ----------------------------------------------------------------------------
# Pure-JAX reference (XLA conv) for validation.
# ----------------------------------------------------------------------------
def _reference_forward(params, x_nchw):
    x = jnp.transpose(x_nchw, (0, 2, 3, 1))
    for w, b, act in params:
        x = jax.lax.conv_general_dilated(
            x, w, window_strides=(1, 1),
            padding=((PADDING, PADDING), (PADDING, PADDING)),
            dimension_numbers=("NHWC", "HWIO", "NHWC"),
            precision=jax.lax.Precision.HIGHEST)
        x = x + b
        if act == "relu":
            x = jnp.maximum(x, 0.0)
        elif act == "sigmoid":
            x = jax.nn.sigmoid(x)
    return jnp.transpose(x, (0, 3, 1, 2))


if __name__ == "__main__":
    batch, in_channels, spatial = 2, 4, 16
    num_classes, hidden_size = 3, 32

    key = jax.random.PRNGKey(0)
    k_params, k_x = jax.random.split(key)

    params = init_unet_small_params(k_params, in_channels, num_classes, hidden_size)
    x = jax.random.normal(k_x, (batch, in_channels, spatial, spatial),
                          dtype=jnp.float32)

    fwd = jax.jit(functools.partial(unet_small_forward, params))
    out = fwd(x)
    jax.block_until_ready(out)

    assert out.shape == (batch, num_classes, spatial, spatial), out.shape
    assert bool(jnp.all(jnp.isfinite(out)))
    # Final block ends in Sigmoid, so outputs must lie in [0, 1].
    assert bool(jnp.all((out >= 0.0) & (out <= 1.0)))

    # Numerical check against the XLA conv reference.
    ref = _reference_forward(params, x)
    max_err = float(jnp.max(jnp.abs(out - ref)))
    assert max_err < 1e-2, f"max abs error vs reference: {max_err}"

    print("KERNEL_OK")
</pallas_src>

<mosaic_0001>
module attributes {stable_mosaic.version = 11 : i64} {
  func.func @_unet_fused_kernel(%arg0: i32, %arg1: memref<1x32x256xf32, #tpu.memory_space<vmem>>, %arg2: memref<11x32x288xf32, #tpu.memory_space<vmem>>, %arg3: memref<11x32x1xf32, #tpu.memory_space<vmem>>, %arg4: memref<9x32x256xf32, #tpu.memory_space<vmem>>, %arg5: memref<1x32x256xf32, #tpu.memory_space<vmem>>, %arg6: memref<288x256xf32, #tpu.memory_space<vmem>>) attributes {dimension_semantics = [#tpu.dimension_semantics<parallel>], iteration_bounds = array<i64: 2>, scalar_prefetch = 0 : i64, scratch_operands = 1 : i64, tpu.core_type = #tpu.core_type<tc>, window_params = [{transform_indices = @transform_0, window_bounds = array<i64: 1, 32, 256>}, {pipeline_mode = #tpu.pipeline_mode<synchronous>, transform_indices = @transform_1, window_bounds = array<i64: 11, 32, 288>}, {pipeline_mode = #tpu.pipeline_mode<synchronous>, transform_indices = @transform_2, window_bounds = array<i64: 11, 32, 1>}, {pipeline_mode = #tpu.pipeline_mode<synchronous>, transform_indices = @transform_3, window_bounds = array<i64: 9, 32, 256>}, {transform_indices = @transform_4, window_bounds = array<i64: 1, 32, 256>}]} {
    %c0 = arith.constant 0 : index
    %c0_0 = arith.constant 0 : index
    %c0_1 = arith.constant 0 : index
    %0 = vector.load %arg1[%c0, %c0_0, %c0_1] : memref<1x32x256xf32, #tpu.memory_space<vmem>>, vector<1x32x256xf32>
    %1 = vector.shape_cast %0 : vector<1x32x256xf32> to vector<32x256xf32>
    %c17_i32 = arith.constant 17 : i32
    %2 = tpu.dynamic_rotate %1 by %c17_i32 dim 1 : vector<32x256xf32>, i32 -> vector<32x256xf32>
    %c0_2 = arith.constant 0 : index
    %c0_3 = arith.constant 0 : index
    %c0_4 = arith.constant 0 : index
    %3 = vector.load %arg4[%c0_2, %c0_3, %c0_4] : memref<9x32x256xf32, #tpu.memory_space<vmem>>, vector<1x32x256xf32>
    %4 = vector.shape_cast %3 : vector<1x32x256xf32> to vector<32x256xf32>
    %5 = arith.mulf %2, %4 : vector<32x256xf32>
    %c0_5 = arith.constant 0 : index
    %c0_6 = arith.constant 0 : index
    %6 = vector.load %arg6[%c0_5, %c0_6] : memref<288x256xf32, #tpu.memory_space<vmem>>, vector<32x256xf32>
    tpu.vector_store %arg6[%c0_5, %c0_6], %5 {strides = array<i32>} : memref<288x256xf32, #tpu.memory_space<vmem>>, vector<32x256xf32>,
    %c16_i32 = arith.constant 16 : i32
    %7 = tpu.dynamic_rotate %1 by %c16_i32 dim 1 : vector<32x256xf32>, i32 -> vector<32x256xf32>
    %c1 = arith.constant 1 : index
    %c0_7 = arith.constant 0 : index
    %c0_8 = arith.constant 0 : index
    %8 = vector.load %arg4[%c1, %c0_7, %c0_8] : memref<9x32x256xf32, #tpu.memory_space<vmem>>, vector<1x32x256xf32>
    %9 = vector.shape_cast %8 : vector<1x32x256xf32> to vector<32x256xf32>
    %10 = arith.mulf %7, %9 : vector<32x256xf32>
    %c32 = arith.constant 32 : index
    %c0_9 = arith.constant 0 : index
    %11 = vector.load %arg6[%c32, %c0_9] : memref<288x256xf32, #tpu.memory_space<vmem>>, vector<32x256xf32>
    tpu.vector_store %arg6[%c32, %c0_9], %10 {strides = array<i32>} : memref<288x256xf32, #tpu.memory_space<vmem>>, vector<32x256xf32>,
    %c15_i32 = arith.constant 15 : i32
    %12 = tpu.dynamic_rotate %1 by %c15_i32 dim 1 : vector<32x256xf32>, i32 -> vector<32x256xf32>
    %c2 = arith.constant 2 : index
    %c0_10 = arith.constant 0 : index
    %c0_11 = arith.constant 0 : index
    %13 = vector.load %arg4[%c2, %c0_10, %c0_11] : memref<9x32x256xf32, #tpu.memory_space<vmem>>, vector<1x32x256xf32>
    %14 = vector.shape_cast %13 : vector<1x32x256xf32> to vector<32x256xf32>
    %15 = arith.mulf %12, %14 : vector<32x256xf32>
    %c64 = arith.constant 64 : index
    %c0_12 = arith.constant 0 : index
    %16 = vector.load %arg6[%c64, %c0_12] : memref<288x256xf32, #tpu.memory_space<vmem>>, vector<32x256xf32>
    tpu.vector_store %arg6[%c64, %c0_12], %15 {strides = array<i32>} : memref<288x256xf32, #tpu.memory_space<vmem>>, vector<32x256xf32>,
    %c1_i32 = arith.constant 1 : i32
    %17 = tpu.dynamic_rotate %1 by %c1_i32 dim 1 : vector<32x256xf32>, i32 -> vector<32x256xf32>
    %c3 = arith.constant 3 : index
    %c0_13 = arith.constant 0 : index
    %c0_14 = arith.constant 0 : index
    %18 = vector.load %arg4[%c3, %c0_13, %c0_14] : memref<9x32x256xf32, #tpu.memory_space<vmem>>, vector<1x32x256xf32>
    %19 = vector.shape_cast %18 : vector<1x32x256xf32> to vector<32x256xf32>
    %20 = arith.mulf %17, %19 : vector<32x256xf32>
    %c96 = arith.constant 96 : index
    %c0_15 = arith.constant 0 : index
    %21 = vector.load %arg6[%c96, %c0_15] : memref<288x256xf32, #tpu.memory_space<vmem>>, vector<32x256xf32>
    tpu.vector_store %arg6[%c96, %c0_15], %20 {strides = array<i32>} : memref<288x256xf32, #tpu.memory_space<vmem>>, vector<32x256xf32>,
    %c128 = arith.constant 128 : index
    %c0_16 = arith.constant 0 : index
    %22 = vector.load %arg6[%c128, %c0_16] : memref<288x256xf32, #tpu.memory_space<vmem>>, vector<32x256xf32>
    tpu.vector_store %arg6[%c128, %c0_16], %1 {strides = array<i32>} : memref<288x256xf32, #tpu.memory_space<vmem>>, vector<32x256xf32>,
    %c255_i32 = arith.constant 255 : i32
    %23 = tpu.dynamic_rotate %1 by %c255_i32 dim 1 : vector<32x256xf32>, i32 -> vector<32x256xf32>
    %c5 = arith.constant 5 : index
    %c0_17 = arith.constant 0 : index
    %c0_18 = arith.constant 0 : index
    %24 = vector.load %arg4[%c5, %c0_17, %c0_18] : memref<9x32x256xf32, #tpu.memory_space<vmem>>, vector<1x32x256xf32>
    %25 = vector.shape_cast %24 : vector<1x32x256xf32> to vector<32x256xf32>
    %26 = arith.mulf %23, %25 : vector<32x256xf32>
    %c160 = arith.constant 160 : index
    %c0_19 = arith.constant 0 : index
    %27 = vector.load %arg6[%c160, %c0_19] : memref<288x256xf32, #tpu.memory_space<vmem>>, vector<32x256xf32>
    tpu.vector_store %arg6[%c160, %c0_19], %26 {strides = array<i32>} : memref<288x256xf32, #tpu.memory_space<vmem>>, vector<32x256xf32>,
    %c241_i32 = arith.constant 241 : i32
    %28 = tpu.dynamic_rotate %1 by %c241_i32 dim 1 : vector<32x256xf32>, i32 -> vector<32x256xf32>
    %c6 = arith.constant 6 : index
    %c0_20 = arith.constant 0 : index
    %c0_21 = arith.constant 0 : index
    %29 = vector.load %arg4[%c6, %c0_20, %c0_21] : memref<9x32x256xf32, #tpu.memory_space<vmem>>, vector<1x32x256xf32>
    %30 = vector.shape_cast %29 : vector<1x32x256xf32> to vector<32x256xf32>
    %31 = arith.mulf %28, %30 : vector<32x256xf32>
    %c192 = arith.constant 192 : index
    %c0_22 = arith.constant 0 : index
    %32 = vector.load %arg6[%c192, %c0_22] : memref<288x256xf32, #tpu.memory_space<vmem>>, vector<32x256xf32>
    tpu.vector_store %arg6[%c192, %c0_22], %31 {strides = array<i32>} : memref<288x256xf32, #tpu.memory_space<vmem>>, vector<32x256xf32>,
    %c240_i32 = arith.constant 240 : i32
    %33 = tpu.dynamic_rotate %1 by %c240_i32 dim 1 : vector<32x256xf32>, i32 -> vector<32x256xf32>
    %c7 = arith.constant 7 : index
    %c0_23 = arith.constant 0 : index
    %c0_24 = arith.constant 0 : index
    %34 = vector.load %arg4[%c7, %c0_23, %c0_24] : memref<9x32x256xf32, #tpu.memory_space<vmem>>, vector<1x32x256xf32>
    %35 = vector.shape_cast %34 : vector<1x32x256xf32> to vector<32x256xf32>
    %36 = arith.mulf %33, %35 : vector<32x256xf32>
    %c224 = arith.constant 224 : index
    %c0_25 = arith.constant 0 : index
    %37 = vector.load %arg6[%c224, %c0_25] : memref<288x256xf32, #tpu.memory_space<vmem>>, vector<32x256xf32>
    tpu.vector_store %arg6[%c224, %c0_25], %36 {strides = array<i32>} : memref<288x256xf32, #tpu.memory_space<vmem>>, vector<32x256xf32>,
    %c239_i32 = arith.constant 239 : i32
    %38 = tpu.dynamic_rotate %1 by %c239_i32 dim 1 : vector<32x256xf32>, i32 -> vector<32x256xf32>
    %c8 = arith.constant 8 : index
    %c0_26 = arith.constant 0 : index
    %c0_27 = arith.constant 0 : index
    %39 = vector.load %arg4[%c8, %c0_26, %c0_27] : memref<9x32x256xf32, #tpu.memory_space<vmem>>, vector<1x32x256xf32>
    %40 = vector.shape_cast %39 : vector<1x32x256xf32> to vector<32x256xf32>
    %41 = arith.mulf %38, %40 : vector<32x256xf32>
    %c256 = arith.constant 256 : index
    %c0_28 = arith.constant 0 : index
    %42 = vector.load %arg6[%c256, %c0_28] : memref<288x256xf32, #tpu.memory_space<vmem>>, vector<32x256xf32>
    tpu.vector_store %arg6[%c256, %c0_28], %41 {strides = array<i32>} : memref<288x256xf32, #tpu.memory_space<vmem>>, vector<32x256xf32>,
    %c0_29 = arith.constant 0 : index
    %c0_30 = arith.constant 0 : index
    %c0_31 = arith.constant 0 : index
    %43 = vector.load %arg2[%c0_29, %c0_30, %c0_31] : memref<11x32x288xf32, #tpu.memory_space<vmem>>, vector<1x32x288xf32>
    %44 = vector.shape_cast %43 : vector<1x32x288xf32> to vector<32x288xf32>
    %c0_32 = arith.constant 0 : index
    %c0_33 = arith.constant 0 : index
    %45 = vector.load %arg6[%c0_32, %c0_33] : memref<288x256xf32, #tpu.memory_space<vmem>>, vector<288x256xf32>
    %cst = arith.constant dense<0.000000e+00> : vector<32x256xf32>
    %46 = tpu.matmul %44, %45, %cst {dimension_numbers = #tpu.dot_dimension_numbers<[1], [0], [0], [1], [0, 0, 1, 1], [], []>} : vector<32x288xf32>, vector<288x256xf32>, vector<32x256xf32> -> vector<32x256xf32>
    %c0_34 = arith.constant 0 : index
    %c0_35 = arith.constant 0 : index
    %c0_36 = arith.constant 0 : index
    %47 = vector.load %arg3[%c0_34, %c0_35, %c0_36] : memref<11x32x1xf32, #tpu.memory_space<vmem>>, vector<1x32x1xf32>
    %48 = vector.shape_cast %47 : vector<1x32x1xf32> to vector<32x1xf32>
    %49 = vector.broadcast %48 : vector<32x1xf32> to vector<32x256xf32>
    %50 = arith.addf %46, %49 : vector<32x256xf32>
    %cst_37 = arith.constant 0.000000e+00 : f32
    %51 = vector.broadcast %cst_37 : f32 to vector<32x256xf32>
    %52 = arith.maximumf %50, %51 : vector<32x256xf32>
    %c17_i32_38 = arith.constant 17 : i32
    %53 = tpu.dynamic_rotate %52 by %c17_i32_38 dim 1 : vector<32x256xf32>, i32 -> vector<32x256xf32>
    %c0_39 = arith.constant 0 : index
    %c0_40 = arith.constant 0 : index
    %c0_41 = arith.constant 0 : index
    %54 = vector.load %arg4[%c0_39, %c0_40, %c0_41] : memref<9x32x256xf32, #tpu.memory_space<vmem>>, vector<1x32x256xf32>
    %55 = vector.shape_cast %54 : vector<1x32x256xf32> to vector<32x256xf32>
    %56 = arith.mulf %53, %55 : vector<32x256xf32>
    %c0_42 = arith.constant 0 : index
    %c0_43 = arith.constant 0 : index
    %57 = vector.load %arg6[%c0_42, %c0_43] : memref<288x256xf32, #tpu.memory_space<vmem>>, vector<32x256xf32>
    tpu.vector_store %arg6[%c0_42, %c0_43], %56 {strides = array<i32>} : memref<288x256xf32, #tpu.memory_space<vmem>>, vector<32x256xf32>,
    %c16_i32_44 = arith.constant 16 : i32
    %58 = tpu.dynamic_rotate %52 by %c16_i32_44 dim 1 : vector<32x256xf32>, i32 -> vector<32x256xf32>
    %c1_45 = arith.constant 1 : index
    %c0_46 = arith.constant 0 : index
    %c0_47 = arith.constant 0 : index
    %59 = vector.load %arg4[%c1_45, %c0_46, %c0_47] : memref<9x32x256xf32, #tpu.memory_space<vmem>>, vector<1x32x256xf32>
    %60 = vector.shape_cast %59 : vector<1x32x256xf32> to vector<32x256xf32>
    %61 = arith.mulf %58, %60 : vector<32x256xf32>
    %c32_48 = arith.constant 32 : index
    %c0_49 = arith.constant 0 : index
    %62 = vector.load %arg6[%c32_48, %c0_49] : memref<288x256xf32, #tpu.memory_space<vmem>>, vector<32x256xf32>
    tpu.vector_store %arg6[%c32_48, %c0_49], %61 {strides = array<i32>} : memref<288x256xf32, #tpu.memory_space<vmem>>, vector<32x256xf32>,
    %c15_i32_50 = arith.constant 15 : i32
    %63 = tpu.dynamic_rotate %52 by %c15_i32_50 dim 1 : vector<32x256xf32>, i32 -> vector<32x256xf32>
    %c2_51 = arith.constant 2 : index
    %c0_52 = arith.constant 0 : index
    %c0_53 = arith.constant 0 : index
    %64 = vector.load %arg4[%c2_51, %c0_52, %c0_53] : memref<9x32x256xf32, #tpu.memory_space<vmem>>, vector<1x32x256xf32>
    %65 = vector.shape_cast %64 : vector<1x32x256xf32> to vector<32x256xf32>
    %66 = arith.mulf %63, %65 : vector<32x256xf32>
    %c64_54 = arith.constant 64 : index
    %c0_55 = arith.constant 0 : index
    %67 = vector.load %arg6[%c64_54, %c0_55] : memref<288x256xf32, #tpu.memory_space<vmem>>, vector<32x256xf32>
    tpu.vector_store %arg6[%c64_54, %c0_55], %66 {strides = array<i32>} : memref<288x256xf32, #tpu.memory_space<vmem>>, vector<32x256xf32>,
    %c1_i32_56 = arith.constant 1 : i32
    %68 = tpu.dynamic_rotate %52 by %c1_i32_56 dim 1 : vector<32x256xf32>, i32 -> vector<32x256xf32>
    %c3_57 = arith.constant 3 : index
    %c0_58 = arith.constant 0 : index
    %c0_59 = arith.constant 0 : index
    %69 = vector.load %arg4[%c3_57, %c0_58, %c0_59] : memref<9x32x256xf32, #tpu.memory_space<vmem>>, vector<1x32x256xf32>
    %70 = vector.shape_cast %69 : vector<1x32x256xf32> to vector<32x256xf32>
    %71 = arith.mulf %68, %70 : vector<32x256xf32>
    %c96_60 = arith.constant 96 : index
    %c0_61 = arith.constant 0 : index
    %72 = vector.load %arg6[%c96_60, %c0_61] : memref<288x256xf32, #tpu.memory_space<vmem>>, vector<32x256xf32>
    tpu.vector_store %arg6[%c96_60, %c0_61], %71 {strides = array<i32>} : memref<288x256xf32, #tpu.memory_space<vmem>>, vector<32x256xf32>,
    %c128_62 = arith.constant 128 : index
    %c0_63 = arith.constant 0 : index
    %73 = vector.load %arg6[%c128_62, %c0_63] : memref<288x256xf32, #tpu.memory_space<vmem>>, vector<32x256xf32>
    tpu.vector_store %arg6[%c128_62, %c0_63], %52 {strides = array<i32>} : memref<288x256xf32, #tpu.memory_space<vmem>>, vector<32x256xf32>,
    %c255_i32_64 = arith.constant 255 : i32
    %74 = tpu.dynamic_rotate %52 by %c255_i32_64 dim 1 : vector<32x256xf32>, i32 -> vector<32x256xf32>
    %c5_65 = arith.constant 5 : index
    %c0_66 = arith.constant 0 : index
    %c0_67 = arith.constant 0 : index
    %75 = vector.load %arg4[%c5_65, %c0_66, %c0_67] : memref<9x32x256xf32, #tpu.memory_space<vmem>>, vector<1x32x256xf32>
    %76 = vector.shape_cast %75 : vector<1x32x256xf32> to vector<32x256xf32>
    %77 = arith.mulf %74, %76 : vector<32x256xf32>
    %c160_68 = arith.constant 160 : index
    %c0_69 = arith.constant 0 : index
    %78 = vector.load %arg6[%c160_68, %c0_69] : memref<288x256xf32, #tpu.memory_space<vmem>>, vector<32x256xf32>
    tpu.vector_store %arg6[%c160_68, %c0_69], %77 {strides = array<i32>} : memref<288x256xf32, #tpu.memory_space<vmem>>, vector<32x256xf32>,
    %c241_i32_70 = arith.constant 241 : i32
    %79 = tpu.dynamic_rotate %52 by %c241_i32_70 dim 1 : vector<32x256xf32>, i32 -> vector<32x256xf32>
    %c6_71 = arith.constant 6 : index
    %c0_72 = arith.constant 0 : index
    %c0_73 = arith.constant 0 : index
    %80 = vector.load %arg4[%c6_71, %c0_72, %c0_73] : memref<9x32x256xf32, #tpu.memory_space<vmem>>, vector<1x32x256xf32>
    %81 = vector.shape_cast %80 : vector<1x32x256xf32> to vector<32x256xf32>
    %82 = arith.mulf %79, %81 : vector<32x256xf32>
    %c192_74 = arith.constant 192 : index
    %c0_75 = arith.constant 0 : index
    %83 = vector.load %arg6[%c192_74, %c0_75] : memref<288x256xf32, #tpu.memory_space<vmem>>, vector<32x256xf32>
    tpu.vector_store %arg6[%c192_74, %c0_75], %82 {strides = array<i32>} : memref<288x256xf32, #tpu.memory_space<vmem>>, vector<32x256xf32>,
    %c240_i32_76 = arith.constant 240 : i32
    %84 = tpu.dynamic_rotate %52 by %c240_i32_76 dim 1 : vector<32x256xf32>, i32 -> vector<32x256xf32>
    %c7_77 = arith.constant 7 : index
    %c0_78 = arith.constant 0 : index
    %c0_79 = arith.constant 0 : index
    %85 = vector.load %arg4[%c7_77, %c0_78, %c0_79] : memref<9x32x256xf32, #tpu.memory_space<vmem>>, vector<1x32x256xf32>
    %86 = vector.shape_cast %85 : vector<1x32x256xf32> to vector<32x256xf32>
    %87 = arith.mulf %84, %86 : vector<32x256xf32>
    %c224_80 = arith.constant 224 : index
    %c0_81 = arith.constant 0 : index
    %88 = vector.load %arg6[%c224_80, %c0_81] : memref<288x256xf32, #tpu.memory_space<vmem>>, vector<32x256xf32>
    tpu.vector_store %arg6[%c224_80, %c0_81], %87 {strides = array<i32>} : memref<288x256xf32, #tpu.memory_space<vmem>>, vector<32x256xf32>,
    %c239_i32_82 = arith.constant 239 : i32
    %89 = tpu.dynamic_rotate %52 by %c239_i32_82 dim 1 : vector<32x256xf32>, i32 -> vector<32x256xf32>
    %c8_83 = arith.constant 8 : index
    %c0_84 = arith.constant 0 : index
    %c0_85 = arith.constant 0 : index
    %90 = vector.load %arg4[%c8_83, %c0_84, %c0_85] : memref<9x32x256xf32, #tpu.memory_space<vmem>>, vector<1x32x256xf32>
    %91 = vector.shape_cast %90 : vector<1x32x256xf32> to vector<32x256xf32>
    %92 = arith.mulf %89, %91 : vector<32x256xf32>
    %c256_86 = arith.constant 256 : index
    %c0_87 = arith.constant 0 : index
    %93 = vector.load %arg6[%c256_86, %c0_87] : memref<288x256xf32, #tpu.memory_space<vmem>>, vector<32x256xf32>
    tpu.vector_store %arg6[%c256_86, %c0_87], %92 {strides = array<i32>} : memref<288x256xf32, #tpu.memory_space<vmem>>, vector<32x256xf32>,
    %c1_88 = arith.constant 1 : index
    %c0_89 = arith.constant 0 : index
    %c0_90 = arith.constant 0 : index
    %94 = vector.load %arg2[%c1_88, %c0_89, %c0_90] : memref<11x32x288xf32, #tpu.memory_space<vmem>>, vector<1x32x288xf32>
    %95 = vector.shape_cast %94 : vector<1x32x288xf32> to vector<32x288xf32>
    %c0_91 = arith.constant 0 : index
    %c0_92 = arith.constant 0 : index
    %96 = vector.load %arg6[%c0_91, %c0_92] : memref<288x256xf32, #tpu.memory_space<vmem>>, vector<288x256xf32>
    %cst_93 = arith.constant dense<0.000000e+00> : vector<32x256xf32>
    %97 = tpu.matmul %95, %96, %cst_93 {dimension_numbers = #tpu.dot_dimension_numbers<[1], [0], [0], [1], [0, 0, 1, 1], [], []>} : vector<32x288xf32>, vector<288x256xf32>, vector<32x256xf32> -> vector<32x256xf32>
    %c1_94 = arith.constant 1 : index
    %c0_95 = arith.constant 0 : index
    %c0_96 = arith.constant 0 : index
    %98 = vector.load %arg3[%c1_94, %c0_95, %c0_96] : memref<11x32x1xf32, #tpu.memory_space<vmem>>, vector<1x32x1xf32>
    %99 = vector.shape_cast %98 : vector<1x32x1xf32> to vector<32x1xf32>
    %100 = vector.broadcast %99 : vector<32x1xf32> to vector<32x256xf32>
    %101 = arith.addf %97, %100 : vector<32x256xf32>
    %cst_97 = arith.constant 0.000000e+00 : f32
    %102 = vector.broadcast %cst_97 : f32 to vector<32x256xf32>
    %103 = arith.maximumf %101, %102 : vector<32x256xf32>
    %c17_i32_98 = arith.constant 17 : i32
    %104 = tpu.dynamic_rotate %103 by %c17_i32_98 dim 1 : vector<32x256xf32>, i32 -> vector<32x256xf32>
    %c0_99 = arith.constant 0 : index
    %c0_100 = arith.constant 0 : index
    %c0_101 = arith.constant 0 : index
    %105 = vector.load %arg4[%c0_99, %c0_100, %c0_101] : memref<9x32x256xf32, #tpu.memory_space<vmem>>, vector<1x32x256xf32>
    %106 = vector.shape_cast %105 : vector<1x32x256xf32> to vector<32x256xf32>
    %107 = arith.mulf %104, %106 : vector<32x256xf32>
    %c0_102 = arith.constant 0 : index
    %c0_103 = arith.constant 0 : index
    %108 = vector.load %arg6[%c0_102, %c0_103] : memref<288x256xf32, #tpu.memory_space<vmem>>, vector<32x256xf32>
    tpu.vector_store %arg6[%c0_102, %c0_103], %107 {strides = array<i32>} : memref<288x256xf32, #tpu.memory_space<vmem>>, vector<32x256xf32>,
    %c16_i32_104 = arith.constant 16 : i32
    %109 = tpu.dynamic_rotate %103 by %c16_i32_104 dim 1 : vector<32x256xf32>, i32 -> vector<32x256xf32>
    %c1_105 = arith.constant 1 : index
    %c0_106 = arith.constant 0 : index
    %c0_107 = arith.constant 0 : index
    %110 = vector.load %arg4[%c1_105, %c0_106, %c0_107] : memref<9x32x256xf32, #tpu.memory_space<vmem>>, vector<1x32x256xf32>
    %111 = vector.shape_cast %110 : vector<1x32x256xf32> to vector<32x256xf32>
    %112 = arith.mulf %109, %111 : vector<32x256xf32>
    %c32_108 = arith.constant 32 : index
    %c0_109 = arith.constant 0 : index
    %113 = vector.load %arg6[%c32_108, %c0_109] : memref<288x256xf32, #tpu.memory_space<vmem>>, vector<32x256xf32>
    tpu.vector_store %arg6[%c32_108, %c0_109], %112 {strides = array<i32>} : memref<288x256xf32, #tpu.memory_space<vmem>>, vector<32x256xf32>,
    %c15_i32_110 = arith.constant 15 : i32
    %114 = tpu.dynamic_rotate %103 by %c15_i32_110 dim 1 : vector<32x256xf32>, i32 -> vector<32x256xf32>
    %c2_111 = arith.constant 2 : index
    %c0_112 = arith.constant 0 : index
    %c0_113 = arith.constant 0 : index
    %115 = vector.load %arg4[%c2_111, %c0_112, %c0_113] : memref<9x32x256xf32, #tpu.memory_space<vmem>>, vector<1x32x256xf32>
    %116 = vector.shape_cast %115 : vector<1x32x256xf32> to vector<32x256xf32>
    %117 = arith.mulf %114, %116 : vector<32x256xf32>
    %c64_114 = arith.constant 64 : index
    %c0_115 = arith.constant 0 : index
    %118 = vector.load %arg6[%c64_114, %c0_115] : memref<288x256xf32, #tpu.memory_space<vmem>>, vector<32x256xf32>
    tpu.vector_store %arg6[%c64_114, %c0_115], %117 {strides = array<i32>} : memref<288x256xf32, #tpu.memory_space<vmem>>, vector<32x256xf32>,
    %c1_i32_116 = arith.constant 1 : i32
    %119 = tpu.dynamic_rotate %103 by %c1_i32_116 dim 1 : vector<32x256xf32>, i32 -> vector<32x256xf32>
    %c3_117 = arith.constant 3 : index
    %c0_118 = arith.constant 0 : index
    %c0_119 = arith.constant 0 : index
    %120 = vector.load %arg4[%c3_117, %c0_118, %c0_119] : memref<9x32x256xf32, #tpu.memory_space<vmem>>, vector<1x32x256xf32>
    %121 = vector.shape_cast %120 : vector<1x32x256xf32> to vector<32x256xf32>
    %122 = arith.mulf %119, %121 : vector<32x256xf32>
    %c96_120 = arith.constant 96 : index
    %c0_121 = arith.constant 0 : index
    %123 = vector.load %arg6[%c96_120, %c0_121] : memref<288x256xf32, #tpu.memory_space<vmem>>, vector<32x256xf32>
    tpu.vector_store %arg6[%c96_120, %c0_121], %122 {strides = array<i32>} : memref<288x256xf32, #tpu.memory_space<vmem>>, vector<32x256xf32>,
    %c128_122 = arith.constant 128 : index
    %c0_123 = arith.constant 0 : index
    %124 = vector.load %arg6[%c128_122, %c0_123] : memref<288x256xf32, #tpu.memory_space<vmem>>, vector<32x256xf32>
    tpu.vector_store %arg6[%c128_122, %c0_123], %103 {strides = array<i32>} : memref<288x256xf32, #tpu.memory_space<vmem>>, vector<32x256xf32>,
    %c255_i32_124 = arith.constant 255 : i32
    %125 = tpu.dynamic_rotate %103 by %c255_i32_124 dim 1 : vector<32x256xf32>, i32 -> vector<32x256xf32>
    %c5_125 = arith.constant 5 : index
    %c0_126 = arith.constant 0 : index
    %c0_127 = arith.constant 0 : index
    %126 = vector.load %arg4[%c5_125, %c0_126, %c0_127] : memref<9x32x256xf32, #tpu.memory_space<vmem>>, vector<1x32x256xf32>
    %127 = vector.shape_cast %126 : vector<1x32x256xf32> to vector<32x256xf32>
    %128 = arith.mulf %125, %127 : vector<32x256xf32>
    %c160_128 = arith.constant 160 : index
    %c0_129 = arith.constant 0 : index
    %129 = vector.load %arg6[%c160_128, %c0_129] : memref<288x256xf32, #tpu.memory_space<vmem>>, vector<32x256xf32>
    tpu.vector_store %arg6[%c160_128, %c0_129], %128 {strides = array<i32>} : memref<288x256xf32, #tpu.memory_space<vmem>>, vector<32x256xf32>,
    %c241_i32_130 = arith.constant 241 : i32
    %130 = tpu.dynamic_rotate %103 by %c241_i32_130 dim 1 : vector<32x256xf32>, i32 -> vector<32x256xf32>
    %c6_131 = arith.constant 6 : index
    %c0_132 = arith.constant 0 : index
    %c0_133 = arith.constant 0 : index
    %131 = vector.load %arg4[%c6_131, %c0_132, %c0_133] : memref<9x32x256xf32, #tpu.memory_space<vmem>>, vector<1x32x256xf32>
    %132 = vector.shape_cast %131 : vector<1x32x256xf32> to vector<32x256xf32>
    %133 = arith.mulf %130, %132 : vector<32x256xf32>
    %c192_134 = arith.constant 192 : index
    %c0_135 = arith.constant 0 : index
    %134 = vector.load %arg6[%c192_134, %c0_135] : memref<288x256xf32, #tpu.memory_space<vmem>>, vector<32x256xf32>
    tpu.vector_store %arg6[%c192_134, %c0_135], %133 {strides = array<i32>} : memref<288x256xf32, #tpu.memory_space<vmem>>, vector<32x256xf32>,
    %c240_i32_136 = arith.constant 240 : i32
    %135 = tpu.dynamic_rotate %103 by %c240_i32_136 dim 1 : vector<32x256xf32>, i32 -> vector<32x256xf32>
    %c7_137 = arith.constant 7 : index
    %c0_138 = arith.constant 0 : index
    %c0_139 = arith.constant 0 : index
    %136 = vector.load %arg4[%c7_137, %c0_138, %c0_139] : memref<9x32x256xf32, #tpu.memory_space<vmem>>, vector<1x32x256xf32>
    %137 = vector.shape_cast %136 : vector<1x32x256xf32> to vector<32x256xf32>
    %138 = arith.mulf %135, %137 : vector<32x256xf32>
    %c224_140 = arith.constant 224 : index
    %c0_141 = arith.constant 0 : index
    %139 = vector.load %arg6[%c224_140, %c0_141] : memref<288x256xf32, #tpu.memory_space<vmem>>, vector<32x256xf32>
    tpu.vector_store %arg6[%c224_140, %c0_141], %138 {strides = array<i32>} : memref<288x256xf32, #tpu.memory_space<vmem>>, vector<32x256xf32>,
    %c239_i32_142 = arith.constant 239 : i32
    %140 = tpu.dynamic_rotate %103 by %c239_i32_142 dim 1 : vector<32x256xf32>, i32 -> vector<32x256xf32>
    %c8_143 = arith.constant 8 : index
    %c0_144 = arith.constant 0 : index
    %c0_145 = arith.constant 0 : index
    %141 = vector.load %arg4[%c8_143, %c0_144, %c0_145] : memref<9x32x256xf32, #tpu.memory_space<vmem>>, vector<1x32x256xf32>
    %142 = vector.shape_cast %141 : vector<1x32x256xf32> to vector<32x256xf32>
    %143 = arith.mulf %140, %142 : vector<32x256xf32>
    %c256_146 = arith.constant 256 : index
    %c0_147 = arith.constant 0 : index
    %144 = vector.load %arg6[%c256_146, %c0_147] : memref<288x256xf32, #tpu.memory_space<vmem>>, vector<32x256xf32>
    tpu.vector_store %arg6[%c256_146, %c0_147], %143 {strides = array<i32>} : memref<288x256xf32, #tpu.memory_space<vmem>>, vector<32x256xf32>,
    %c2_148 = arith.constant 2 : index
    %c0_149 = arith.constant 0 : index
    %c0_150 = arith.constant 0 : index
    %145 = vector.load %arg2[%c2_148, %c0_149, %c0_150] : memref<11x32x288xf32, #tpu.memory_space<vmem>>, vector<1x32x288xf32>
    %146 = vector.shape_cast %145 : vector<1x32x288xf32> to vector<32x288xf32>
    %c0_151 = arith.constant 0 : index
    %c0_152 = arith.constant 0 : index
    %147 = vector.load %arg6[%c0_151, %c0_152] : memref<288x256xf32, #tpu.memory_space<vmem>>, vector<288x256xf32>
    %cst_153 = arith.constant dense<0.000000e+00> : vector<32x256xf32>
    %148 = tpu.matmul %146, %147, %cst_153 {dimension_numbers = #tpu.dot_dimension_numbers<[1], [0], [0], [1], [0, 0, 1, 1], [], []>} : vector<32x288xf32>, vector<288x256xf32>, vector<32x256xf32> -> vector<32x256xf32>
    %c2_154 = arith.constant 2 : index
    %c0_155 = arith.constant 0 : index
    %c0_156 = arith.constant 0 : index
    %149 = vector.load %arg3[%c2_154, %c0_155, %c0_156] : memref<11x32x1xf32, #tpu.memory_space<vmem>>, vector<1x32x1xf32>
    %150 = vector.shape_cast %149 : vector<1x32x1xf32> to vector<32x1xf32>
    %151 = vector.broadcast %150 : vector<32x1xf32> to vector<32x256xf32>
    %152 = arith.addf %148, %151 : vector<32x256xf32>
    %cst_157 = arith.constant 0.000000e+00 : f32
    %153 = vector.broadcast %cst_157 : f32 to vector<32x256xf32>
    %154 = arith.maximumf %152, %153 : vector<32x256xf32>
    %c17_i32_158 = arith.constant 17 : i32
    %155 = tpu.dynamic_rotate %154 by %c17_i32_158 dim 1 : vector<32x256xf32>, i32 -> vector<32x256xf32>
    %c0_159 = arith.constant 0 : index
    %c0_160 = arith.constant 0 : index
    %c0_161 = arith.constant 0 : index
    %156 = vector.load %arg4[%c0_159, %c0_160, %c0_161] : memref<9x32x256xf32, #tpu.memory_space<vmem>>, vector<1x32x256xf32>
    %157 = vector.shape_cast %156 : vector<1x32x256xf32> to vector<32x256xf32>
    %158 = arith.mulf %155, %157 : vector<32x256xf32>
    %c0_162 = arith.constant 0 : index
    %c0_163 = arith.constant 0 : index
    %159 = vector.load %arg6[%c0_162, %c0_163] : memref<288x256xf32, #tpu.memory_space<vmem>>, vector<32x256xf32>
    tpu.vector_store %arg6[%c0_162, %c0_163], %158 {strides = array<i32>} : memref<288x256xf32, #tpu.memory_space<vmem>>, vector<32x256xf32>,
    %c16_i32_164 = arith.constant 16 : i32
    %160 = tpu.dynamic_rotate %154 by %c16_i32_164 dim 1 : vector<32x256xf32>, i32 -> vector<32x256xf32>
    %c1_165 = arith.constant 1 : index
    %c0_166 = arith.constant 0 : index
    %c0_167 = arith.constant 0 : index
    %161 = vector.load %arg4[%c1_165, %c0_166, %c0_167] : memref<9x32x256xf32, #tpu.memory_space<vmem>>, vector<1x32x256xf32>
    %162 = vector.shape_cast %161 : vector<1x32x256xf32> to vector<32x256xf32>
    %163 = arith.mulf %160, %162 : vector<32x256xf32>
    %c32_168 = arith.constant 32 : index
    %c0_169 = arith.constant 0 : index
    %164 = vector.load %arg6[%c32_168, %c0_169] : memref<288x256xf32, #tpu.memory_space<vmem>>, vector<32x256xf32>
    tpu.vector_store %arg6[%c32_168, %c0_169], %163 {strides = array<i32>} : memref<288x256xf32, #tpu.memory_space<vmem>>, vector<32x256xf32>,
    %c15_i32_170 = arith.constant 15 : i32
    %165 = tpu.dynamic_rotate %154 by %c15_i32_170 dim 1 : vector<32x256xf32>, i32 -> vector<32x256xf32>
    %c2_171 = arith.constant 2 : index
    %c0_172 = arith.constant 0 : index
    %c0_173 = arith.constant 0 : index
    %166 = vector.load %arg4[%c2_171, %c0_172, %c0_173] : memref<9x32x256xf32, #tpu.memory_space<vmem>>, vector<1x32x256xf32>
    %167 = vector.shape_cast %166 : vector<1x32x256xf32> to vector<32x256xf32>
    %168 = arith.mulf %165, %167 : vector<32x256xf32>
    %c64_174 = arith.constant 64 : index
    %c0_175 = arith.constant 0 : index
    %169 = vector.load %arg6[%c64_174, %c0_175] : memref<288x256xf32, #tpu.memory_space<vmem>>, vector<32x256xf32>
    tpu.vector_store %arg6[%c64_174, %c0_175], %168 {strides = array<i32>} : memref<288x256xf32, #tpu.memory_space<vmem>>, vector<32x256xf32>,
    %c1_i32_176 = arith.constant 1 : i32
    %170 = tpu.dynamic_rotate %154 by %c1_i32_176 dim 1 : vector<32x256xf32>, i32 -> vector<32x256xf32>
    %c3_177 = arith.constant 3 : index
    %c0_178 = arith.constant 0 : index
    %c0_179 = arith.constant 0 : index
    %171 = vector.load %arg4[%c3_177, %c0_178, %c0_179] : memref<9x32x256xf32, #tpu.memory_space<vmem>>, vector<1x32x256xf32>
    %172 = vector.shape_cast %171 : vector<1x32x256xf32> to vector<32x256xf32>
    %173 = arith.mulf %170, %172 : vector<32x256xf32>
    %c96_180 = arith.constant 96 : index
    %c0_181 = arith.constant 0 : index
    %174 = vector.load %arg6[%c96_180, %c0_181] : memref<288x256xf32, #tpu.memory_space<vmem>>, vector<32x256xf32>
    tpu.vector_store %arg6[%c96_180, %c0_181], %173 {strides = array<i32>} : memref<288x256xf32, #tpu.memory_space<vmem>>, vector<32x256xf32>,
    %c128_182 = arith.constant 128 : index
    %c0_183 = arith.constant 0 : index
    %175 = vector.load %arg6[%c128_182, %c0_183] : memref<288x256xf32, #tpu.memory_space<vmem>>, vector<32x256xf32>
    tpu.vector_store %arg6[%c128_182, %c0_183], %154 {strides = array<i32>} : memref<288x256xf32, #tpu.memory_space<vmem>>, vector<32x256xf32>,
    %c255_i32_184 = arith.constant 255 : i32
    %176 = tpu.dynamic_rotate %154 by %c255_i32_184 dim 1 : vector<32x256xf32>, i32 -> vector<32x256xf32>
    %c5_185 = arith.constant 5 : index
    %c0_186 = arith.constant 0 : index
    %c0_187 = arith.constant 0 : index
    %177 = vector.load %arg4[%c5_185, %c0_186, %c0_187] : memref<9x32x256xf32, #tpu.memory_space<vmem>>, vector<1x32x256xf32>
    %178 = vector.shape_cast %177 : vector<1x32x256xf32> to vector<32x256xf32>
    %179 = arith.mulf %176, %178 : vector<32x256xf32>
    %c160_188 = arith.constant 160 : index
    %c0_189 = arith.constant 0 : index
    %180 = vector.load %arg6[%c160_188, %c0_189] : memref<288x256xf32, #tpu.memory_space<vmem>>, vector<32x256xf32>
    tpu.vector_store %arg6[%c160_188, %c0_189], %179 {strides = array<i32>} : memref<288x256xf32, #tpu.memory_space<vmem>>, vector<32x256xf32>,
    %c241_i32_190 = arith.constant 241 : i32
    %181 = tpu.dynamic_rotate %154 by %c241_i32_190 dim 1 : vector<32x256xf32>, i32 -> vector<32x256xf32>
    %c6_191 = arith.constant 6 : index
    %c0_192 = arith.constant 0 : index
    %c0_193 = arith.constant 0 : index
    %182 = vector.load %arg4[%c6_191, %c0_192, %c0_193] : memref<9x32x256xf32, #tpu.memory_space<vmem>>, vector<1x32x256xf32>
    %183 = vector.shape_cast %182 : vector<1x32x256xf32> to vector<32x256xf32>
    %184 = arith.mulf %181, %183 : vector<32x256xf32>
    %c192_194 = arith.constant 192 : index
    %c0_195 = arith.constant 0 : index
    %185 = vector.load %arg6[%c192_194, %c0_195] : memref<288x256xf32, #tpu.memory_space<vmem>>, vector<32x256xf32>
    tpu.vector_store %arg6[%c192_194, %c0_195], %184 {strides = array<i32>} : memref<288x256xf32, #tpu.memory_space<vmem>>, vector<32x256xf32>,
    %c240_i32_196 = arith.constant 240 : i32
    %186 = tpu.dynamic_rotate %154 by %c240_i32_196 dim 1 : vector<32x256xf32>, i32 -> vector<32x256xf32>
    %c7_197 = arith.constant 7 : index
    %c0_198 = arith.constant 0 : index
    %c0_199 = arith.constant 0 : index
    %187 = vector.load %arg4[%c7_197, %c0_198, %c0_199] : memref<9x32x256xf32, #tpu.memory_space<vmem>>, vector<1x32x256xf32>
    %188 = vector.shape_cast %187 : vector<1x32x256xf32> to vector<32x256xf32>
    %189 = arith.mulf %186, %188 : vector<32x256xf32>
    %c224_200 = arith.constant 224 : index
    %c0_201 = arith.constant 0 : index
    %190 = vector.load %arg6[%c224_200, %c0_201] : memref<288x256xf32, #tpu.memory_space<vmem>>, vector<32x256xf32>
    tpu.vector_store %arg6[%c224_200, %c0_201], %189 {strides = array<i32>} : memref<288x256xf32, #tpu.memory_space<vmem>>, vector<32x256xf32>,
    %c239_i32_202 = arith.constant 239 : i32
    %191 = tpu.dynamic_rotate %154 by %c239_i32_202 dim 1 : vector<32x256xf32>, i32 -> vector<32x256xf32>
    %c8_203 = arith.constant 8 : index
    %c0_204 = arith.constant 0 : index
    %c0_205 = arith.constant 0 : index
    %192 = vector.load %arg4[%c8_203, %c0_204, %c0_205] : memref<9x32x256xf32, #tpu.memory_space<vmem>>, vector<1x32x256xf32>
    %193 = vector.shape_cast %192 : vector<1x32x256xf32> to vector<32x256xf32>
    %194 = arith.mulf %191, %193 : vector<32x256xf32>
    %c256_206 = arith.constant 256 : index
    %c0_207 = arith.constant 0 : index
    %195 = vector.load %arg6[%c256_206, %c0_207] : memref<288x256xf32, #tpu.memory_space<vmem>>, vector<32x256xf32>
    tpu.vector_store %arg6[%c256_206, %c0_207], %194 {strides = array<i32>} : memref<288x256xf32, #tpu.memory_space<vmem>>, vector<32x256xf32>,
    %c3_208 = arith.constant 3 : index
    %c0_209 = arith.constant 0 : index
    %c0_210 = arith.constant 0 : index
    %196 = vector.load %arg2[%c3_208, %c0_209, %c0_210] : memref<11x32x288xf32, #tpu.memory_space<vmem>>, vector<1x32x288xf32>
    %197 = vector.shape_cast %196 : vector<1x32x288xf32> to vector<32x288xf32>
    %c0_211 = arith.constant 0 : index
    %c0_212 = arith.constant 0 : index
    %198 = vector.load %arg6[%c0_211, %c0_212] : memref<288x256xf32, #tpu.memory_space<vmem>>, vector<288x256xf32>
    %cst_213 = arith.constant dense<0.000000e+00> : vector<32x256xf32>
    %199 = tpu.matmul %197, %198, %cst_213 {dimension_numbers = #tpu.dot_dimension_numbers<[1], [0], [0], [1], [0, 0, 1, 1], [], []>} : vector<32x288xf32>, vector<288x256xf32>, vector<32x256xf32> -> vector<32x256xf32>
    %c3_214 = arith.constant 3 : index
    %c0_215 = arith.constant 0 : index
    %c0_216 = arith.constant 0 : index
    %200 = vector.load %arg3[%c3_214, %c0_215, %c0_216] : memref<11x32x1xf32, #tpu.memory_space<vmem>>, vector<1x32x1xf32>
    %201 = vector.shape_cast %200 : vector<1x32x1xf32> to vector<32x1xf32>
    %202 = vector.broadcast %201 : vector<32x1xf32> to vector<32x256xf32>
    %203 = arith.addf %199, %202 : vector<32x256xf32>
    %cst_217 = arith.constant 0.000000e+00 : f32
    %204 = vector.broadcast %cst_217 : f32 to vector<32x256xf32>
    %205 = arith.maximumf %203, %204 : vector<32x256xf32>
    %c17_i32_218 = arith.constant 17 : i32
    %206 = tpu.dynamic_rotate %205 by %c17_i32_218 dim 1 : vector<32x256xf32>, i32 -> vector<32x256xf32>
    %c0_219 = arith.constant 0 : index
    %c0_220 = arith.constant 0 : index
    %c0_221 = arith.constant 0 : index
    %207 = vector.load %arg4[%c0_219, %c0_220, %c0_221] : memref<9x32x256xf32, #tpu.memory_space<vmem>>, vector<1x32x256xf32>
    %208 = vector.shape_cast %207 : vector<1x32x256xf32> to vector<32x256xf32>
    %209 = arith.mulf %206, %208 : vector<32x256xf32>
    %c0_222 = arith.constant 0 : index
    %c0_223 = arith.constant 0 : index
    %210 = vector.load %arg6[%c0_222, %c0_223] : memref<288x256xf32, #tpu.memory_space<vmem>>, vector<32x256xf32>
    tpu.vector_store %arg6[%c0_222, %c0_223], %209 {strides = array<i32>} : memref<288x256xf32, #tpu.memory_space<vmem>>, vector<32x256xf32>,
    %c16_i32_224 = arith.constant 16 : i32
    %211 = tpu.dynamic_rotate %205 by %c16_i32_224 dim 1 : vector<32x256xf32>, i32 -> vector<32x256xf32>
    %c1_225 = arith.constant 1 : index
    %c0_226 = arith.constant 0 : index
    %c0_227 = arith.constant 0 : index
    %212 = vector.load %arg4[%c1_225, %c0_226, %c0_227] : memref<9x32x256xf32, #tpu.memory_space<vmem>>, vector<1x32x256xf32>
    %213 = vector.shape_cast %212 : vector<1x32x256xf32> to vector<32x256xf32>
    %214 = arith.mulf %211, %213 : vector<32x256xf32>
    %c32_228 = arith.constant 32 : index
    %c0_229 = arith.constant 0 : index
    %215 = vector.load %arg6[%c32_228, %c0_229] : memref<288x256xf32, #tpu.memory_space<vmem>>, vector<32x256xf32>
    tpu.vector_store %arg6[%c32_228, %c0_229], %214 {strides = array<i32>} : memref<288x256xf32, #tpu.memory_space<vmem>>, vector<32x256xf32>,
    %c15_i32_230 = arith.constant 15 : i32
    %216 = tpu.dynamic_rotate %205 by %c15_i32_230 dim 1 : vector<32x256xf32>, i32 -> vector<32x256xf32>
    %c2_231 = arith.constant 2 : index
    %c0_232 = arith.constant 0 : index
    %c0_233 = arith.constant 0 : index
    %217 = vector.load %arg4[%c2_231, %c0_232, %c0_233] : memref<9x32x256xf32, #tpu.memory_space<vmem>>, vector<1x32x256xf32>
    %218 = vector.shape_cast %217 : vector<1x32x256xf32> to vector<32x256xf32>
    %219 = arith.mulf %216, %218 : vector<32x256xf32>
    %c64_234 = arith.constant 64 : index
    %c0_235 = arith.constant 0 : index
    %220 = vector.load %arg6[%c64_234, %c0_235] : memref<288x256xf32, #tpu.memory_space<vmem>>, vector<32x256xf32>
    tpu.vector_store %arg6[%c64_234, %c0_235], %219 {strides = array<i32>} : memref<288x256xf32, #tpu.memory_space<vmem>>, vector<32x256xf32>,
    %c1_i32_236 = arith.constant 1 : i32
    %221 = tpu.dynamic_rotate %205 by %c1_i32_236 dim 1 : vector<32x256xf32>, i32 -> vector<32x256xf32>
    %c3_237 = arith.constant 3 : index
    %c0_238 = arith.constant 0 : index
    %c0_239 = arith.constant 0 : index
    %222 = vector.load %arg4[%c3_237, %c0_238, %c0_239] : memref<9x32x256xf32, #tpu.memory_space<vmem>>, vector<1x32x256xf32>
    %223 = vector.shape_cast %222 : vector<1x32x256xf32> to vector<32x256xf32>
    %224 = arith.mulf %221, %223 : vector<32x256xf32>
    %c96_240 = arith.constant 96 : index
    %c0_241 = arith.constant 0 : index
    %225 = vector.load %arg6[%c96_240, %c0_241] : memref<288x256xf32, #tpu.memory_space<vmem>>, vector<32x256xf32>
    tpu.vector_store %arg6[%c96_240, %c0_241], %224 {strides = array<i32>} : memref<288x256xf32, #tpu.memory_space<vmem>>, vector<32x256xf32>,
    %c128_242 = arith.constant 128 : index
    %c0_243 = arith.constant 0 : index
    %226 = vector.load %arg6[%c128_242, %c0_243] : memref<288x256xf32, #tpu.memory_space<vmem>>, vector<32x256xf32>
    tpu.vector_store %arg6[%c128_242, %c0_243], %205 {strides = array<i32>} : memref<288x256xf32, #tpu.memory_space<vmem>>, vector<32x256xf32>,
    %c255_i32_244 = arith.constant 255 : i32
    %227 = tpu.dynamic_rotate %205 by %c255_i32_244 dim 1 : vector<32x256xf32>, i32 -> vector<32x256xf32>
    %c5_245 = arith.constant 5 : index
    %c0_246 = arith.constant 0 : index
    %c0_247 = arith.constant 0 : index
    %228 = vector.load %arg4[%c5_245, %c0_246, %c0_247] : memref<9x32x256xf32, #tpu.memory_space<vmem>>, vector<1x32x256xf32>
    %229 = vector.shape_cast %228 : vector<1x32x256xf32> to vector<32x256xf32>
    %230 = arith.mulf %227, %229 : vector<32x256xf32>
    %c160_248 = arith.constant 160 : index
    %c0_249 = arith.constant 0 : index
    %231 = vector.load %arg6[%c160_248, %c0_249] : memref<288x256xf32, #tpu.memory_space<vmem>>, vector<32x256xf32>
    tpu.vector_store %arg6[%c160_248, %c0_249], %230 {strides = array<i32>} : memref<288x256xf32, #tpu.memory_space<vmem>>, vector<32x256xf32>,
    %c241_i32_250 = arith.constant 241 : i32
    %232 = tpu.dynamic_rotate %205 by %c241_i32_250 dim 1 : vector<32x256xf32>, i32 -> vector<32x256xf32>
    %c6_251 = arith.constant 6 : index
    %c0_252 = arith.constant 0 : index
    %c0_253 = arith.constant 0 : index
    %233 = vector.load %arg4[%c6_251, %c0_252, %c0_253] : memref<9x32x256xf32, #tpu.memory_space<vmem>>, vector<1x32x256xf32>
    %234 = vector.shape_cast %233 : vector<1x32x256xf32> to vector<32x256xf32>
    %235 = arith.mulf %232, %234 : vector<32x256xf32>
    %c192_254 = arith.constant 192 : index
    %c0_255 = arith.constant 0 : index
    %236 = vector.load %arg6[%c192_254, %c0_255] : memref<288x256xf32, #tpu.memory_space<vmem>>, vector<32x256xf32>
    tpu.vector_store %arg6[%c192_254, %c0_255], %235 {strides = array<i32>} : memref<288x256xf32, #tpu.memory_space<vmem>>, vector<32x256xf32>,
    %c240_i32_256 = arith.constant 240 : i32
    %237 = tpu.dynamic_rotate %205 by %c240_i32_256 dim 1 : vector<32x256xf32>, i32 -> vector<32x256xf32>
    %c7_257 = arith.constant 7 : index
    %c0_258 = arith.constant 0 : index
    %c0_259 = arith.constant 0 : index
    %238 = vector.load %arg4[%c7_257, %c0_258, %c0_259] : memref<9x32x256xf32, #tpu.memory_space<vmem>>, vector<1x32x256xf32>
    %239 = vector.shape_cast %238 : vector<1x32x256xf32> to vector<32x256xf32>
    %240 = arith.mulf %237, %239 : vector<32x256xf32>
    %c224_260 = arith.constant 224 : index
    %c0_261 = arith.constant 0 : index
    %241 = vector.load %arg6[%c224_260, %c0_261] : memref<288x256xf32, #tpu.memory_space<vmem>>, vector<32x256xf32>
    tpu.vector_store %arg6[%c224_260, %c0_261], %240 {strides = array<i32>} : memref<288x256xf32, #tpu.memory_space<vmem>>, vector<32x256xf32>,
    %c239_i32_262 = arith.constant 239 : i32
    %242 = tpu.dynamic_rotate %205 by %c239_i32_262 dim 1 : vector<32x256xf32>, i32 -> vector<32x256xf32>
    %c8_263 = arith.constant 8 : index
    %c0_264 = arith.constant 0 : index
    %c0_265 = arith.constant 0 : index
    %243 = vector.load %arg4[%c8_263, %c0_264, %c0_265] : memref<9x32x256xf32, #tpu.memory_space<vmem>>, vector<1x32x256xf32>
    %244 = vector.shape_cast %243 : vector<1x32x256xf32> to vector<32x256xf32>
    %245 = arith.mulf %242, %244 : vector<32x256xf32>
    %c256_266 = arith.constant 256 : index
    %c0_267 = arith.constant 0 : index
    %246 = vector.load %arg6[%c256_266, %c0_267] : memref<288x256xf32, #tpu.memory_space<vmem>>, vector<32x256xf32>
    tpu.vector_store %arg6[%c256_266, %c0_267], %245 {strides = array<i32>} : memref<288x256xf32, #tpu.memory_space<vmem>>, vector<32x256xf32>,
    %c4 = arith.constant 4 : index
    %c0_268 = arith.constant 0 : index
    %c0_269 = arith.constant 0 : index
    %247 = vector.load %arg2[%c4, %c0_268, %c0_269] : memref<11x32x288xf32, #tpu.memory_space<vmem>>, vector<1x32x288xf32>
    %248 = vector.shape_cast %247 : vector<1x32x288xf32> to vector<32x288xf32>
    %c0_270 = arith.constant 0 : index
    %c0_271 = arith.constant 0 : index
    %249 = vector.load %arg6[%c0_270, %c0_271] : memref<288x256xf32, #tpu.memory_space<vmem>>, vector<288x256xf32>
    %cst_272 = arith.constant dense<0.000000e+00> : vector<32x256xf32>
    %250 = tpu.matmul %248, %249, %cst_272 {dimension_numbers = #tpu.dot_dimension_numbers<[1], [0], [0], [1], [0, 0, 1, 1], [], []>} : vector<32x288xf32>, vector<288x256xf32>, vector<32x256xf32> -> vector<32x256xf32>
    %c4_273 = arith.constant 4 : index
    %c0_274 = arith.constant 0 : index
    %c0_275 = arith.constant 0 : index
    %251 = vector.load %arg3[%c4_273, %c0_274, %c0_275] : memref<11x32x1xf32, #tpu.memory_space<vmem>>, vector<1x32x1xf32>
    %252 = vector.shape_cast %251 : vector<1x32x1xf32> to vector<32x1xf32>
    %253 = vector.broadcast %252 : vector<32x1xf32> to vector<32x256xf32>
    %254 = arith.addf %250, %253 : vector<32x256xf32>
    %cst_276 = arith.constant 0.000000e+00 : f32
    %255 = vector.broadcast %cst_276 : f32 to vector<32x256xf32>
    %256 = arith.maximumf %254, %255 : vector<32x256xf32>
    %c17_i32_277 = arith.constant 17 : i32
    %257 = tpu.dynamic_rotate %256 by %c17_i32_277 dim 1 : vector<32x256xf32>, i32 -> vector<32x256xf32>
    %c0_278 = arith.constant 0 : index
    %c0_279 = arith.constant 0 : index
    %c0_280 = arith.constant 0 : index
    %258 = vector.load %arg4[%c0_278, %c0_279, %c0_280] : memref<9x32x256xf32, #tpu.memory_space<vmem>>, vector<1x32x256xf32>
    %259 = vector.shape_cast %258 : vector<1x32x256xf32> to vector<32x256xf32>
    %260 = arith.mulf %257, %259 : vector<32x256xf32>
    %c0_281 = arith.constant 0 : index
    %c0_282 = arith.constant 0 : index
    %261 = vector.load %arg6[%c0_281, %c0_282] : memref<288x256xf32, #tpu.memory_space<vmem>>, vector<32x256xf32>
    tpu.vector_store %arg6[%c0_281, %c0_282], %260 {strides = array<i32>} : memref<288x256xf32, #tpu.memory_space<vmem>>, vector<32x256xf32>,
    %c16_i32_283 = arith.constant 16 : i32
    %262 = tpu.dynamic_rotate %256 by %c16_i32_283 dim 1 : vector<32x256xf32>, i32 -> vector<32x256xf32>
    %c1_284 = arith.constant 1 : index
    %c0_285 = arith.constant 0 : index
    %c0_286 = arith.constant 0 : index
    %263 = vector.load %arg4[%c1_284, %c0_285, %c0_286] : memref<9x32x256xf32, #tpu.memory_space<vmem>>, vector<1x32x256xf32>
    %264 = vector.shape_cast %263 : vector<1x32x256xf32> to vector<32x256xf32>
    %265 = arith.mulf %262, %264 : vector<32x256xf32>
    %c32_287 = arith.constant 32 : index
    %c0_288 = arith.constant 0 : index
    %266 = vector.load %arg6[%c32_287, %c0_288] : memref<288x256xf32, #tpu.memory_space<vmem>>, vector<32x256xf32>
    tpu.vector_store %arg6[%c32_287, %c0_288], %265 {strides = array<i32>} : memref<288x256xf32, #tpu.memory_space<vmem>>, vector<32x256xf32>,
    %c15_i32_289 = arith.constant 15 : i32
    %267 = tpu.dynamic_rotate %256 by %c15_i32_289 dim 1 : vector<32x256xf32>, i32 -> vector<32x256xf32>
    %c2_290 = arith.constant 2 : index
    %c0_291 = arith.constant 0 : index
    %c0_292 = arith.constant 0 : index
    %268 = vector.load %arg4[%c2_290, %c0_291, %c0_292] : memref<9x32x256xf32, #tpu.memory_space<vmem>>, vector<1x32x256xf32>
    %269 = vector.shape_cast %268 : vector<1x32x256xf32> to vector<32x256xf32>
    %270 = arith.mulf %267, %269 : vector<32x256xf32>
    %c64_293 = arith.constant 64 : index
    %c0_294 = arith.constant 0 : index
    %271 = vector.load %arg6[%c64_293, %c0_294] : memref<288x256xf32, #tpu.memory_space<vmem>>, vector<32x256xf32>
    tpu.vector_store %arg6[%c64_293, %c0_294], %270 {strides = array<i32>} : memref<288x256xf32, #tpu.memory_space<vmem>>, vector<32x256xf32>,
    %c1_i32_295 = arith.constant 1 : i32
    %272 = tpu.dynamic_rotate %256 by %c1_i32_295 dim 1 : vector<32x256xf32>, i32 -> vector<32x256xf32>
    %c3_296 = arith.constant 3 : index
    %c0_297 = arith.constant 0 : index
    %c0_298 = arith.constant 0 : index
    %273 = vector.load %arg4[%c3_296, %c0_297, %c0_298] : memref<9x32x256xf32, #tpu.memory_space<vmem>>, vector<1x32x256xf32>
    %274 = vector.shape_cast %273 : vector<1x32x256xf32> to vector<32x256xf32>
    %275 = arith.mulf %272, %274 : vector<32x256xf32>
    %c96_299 = arith.constant 96 : index
    %c0_300 = arith.constant 0 : index
    %276 = vector.load %arg6[%c96_299, %c0_300] : memref<288x256xf32, #tpu.memory_space<vmem>>, vector<32x256xf32>
    tpu.vector_store %arg6[%c96_299, %c0_300], %275 {strides = array<i32>} : memref<288x256xf32, #tpu.memory_space<vmem>>, vector<32x256xf32>,
    %c128_301 = arith.constant 128 : index
    %c0_302 = arith.constant 0 : index
    %277 = vector.load %arg6[%c128_301, %c0_302] : memref<288x256xf32, #tpu.memory_space<vmem>>, vector<32x256xf32>
    tpu.vector_store %arg6[%c128_301, %c0_302], %256 {strides = array<i32>} : memref<288x256xf32, #tpu.memory_space<vmem>>, vector<32x256xf32>,
    %c255_i32_303 = arith.constant 255 : i32
    %278 = tpu.dynamic_rotate %256 by %c255_i32_303 dim 1 : vector<32x256xf32>, i32 -> vector<32x256xf32>
    %c5_304 = arith.constant 5 : index
    %c0_305 = arith.constant 0 : index
    %c0_306 = arith.constant 0 : index
    %279 = vector.load %arg4[%c5_304, %c0_305, %c0_306] : memref<9x32x256xf32, #tpu.memory_space<vmem>>, vector<1x32x256xf32>
    %280 = vector.shape_cast %279 : vector<1x32x256xf32> to vector<32x256xf32>
    %281 = arith.mulf %278, %280 : vector<32x256xf32>
    %c160_307 = arith.constant 160 : index
    %c0_308 = arith.constant 0 : index
    %282 = vector.load %arg6[%c160_307, %c0_308] : memref<288x256xf32, #tpu.memory_space<vmem>>, vector<32x256xf32>
    tpu.vector_store %arg6[%c160_307, %c0_308], %281 {strides = array<i32>} : memref<288x256xf32, #tpu.memory_space<vmem>>, vector<32x256xf32>,
    %c241_i32_309 = arith.constant 241 : i32
    %283 = tpu.dynamic_rotate %256 by %c241_i32_309 dim 1 : vector<32x256xf32>, i32 -> vector<32x256xf32>
    %c6_310 = arith.constant 6 : index
    %c0_311 = arith.constant 0 : index
    %c0_312 = arith.constant 0 : index
    %284 = vector.load %arg4[%c6_310, %c0_311, %c0_312] : memref<9x32x256xf32, #tpu.memory_space<vmem>>, vector<1x32x256xf32>
    %285 = vector.shape_cast %284 : vector<1x32x256xf32> to vector<32x256xf32>
    %286 = arith.mulf %283, %285 : vector<32x256xf32>
    %c192_313 = arith.constant 192 : index
    %c0_314 = arith.constant 0 : index
    %287 = vector.load %arg6[%c192_313, %c0_314] : memref<288x256xf32, #tpu.memory_space<vmem>>, vector<32x256xf32>
    tpu.vector_store %arg6[%c192_313, %c0_314], %286 {strides = array<i32>} : memref<288x256xf32, #tpu.memory_space<vmem>>, vector<32x256xf32>,
    %c240_i32_315 = arith.constant 240 : i32
    %288 = tpu.dynamic_rotate %256 by %c240_i32_315 dim 1 : vector<32x256xf32>, i32 -> vector<32x256xf32>
    %c7_316 = arith.constant 7 : index
    %c0_317 = arith.constant 0 : index
    %c0_318 = arith.constant 0 : index
    %289 = vector.load %arg4[%c7_316, %c0_317, %c0_318] : memref<9x32x256xf32, #tpu.memory_space<vmem>>, vector<1x32x256xf32>
    %290 = vector.shape_cast %289 : vector<1x32x256xf32> to vector<32x256xf32>
    %291 = arith.mulf %288, %290 : vector<32x256xf32>
    %c224_319 = arith.constant 224 : index
    %c0_320 = arith.constant 0 : index
    %292 = vector.load %arg6[%c224_319, %c0_320] : memref<288x256xf32, #tpu.memory_space<vmem>>, vector<32x256xf32>
    tpu.vector_store %arg6[%c224_319, %c0_320], %291 {strides = array<i32>} : memref<288x256xf32, #tpu.memory_space<vmem>>, vector<32x256xf32>,
    %c239_i32_321 = arith.constant 239 : i32
    %293 = tpu.dynamic_rotate %256 by %c239_i32_321 dim 1 : vector<32x256xf32>, i32 -> vector<32x256xf32>
    %c8_322 = arith.constant 8 : index
    %c0_323 = arith.constant 0 : index
    %c0_324 = arith.constant 0 : index
    %294 = vector.load %arg4[%c8_322, %c0_323, %c0_324] : memref<9x32x256xf32, #tpu.memory_space<vmem>>, vector<1x32x256xf32>
    %295 = vector.shape_cast %294 : vector<1x32x256xf32> to vector<32x256xf32>
    %296 = arith.mulf %293, %295 : vector<32x256xf32>
    %c256_325 = arith.constant 256 : index
    %c0_326 = arith.constant 0 : index
    %297 = vector.load %arg6[%c256_325, %c0_326] : memref<288x256xf32, #tpu.memory_space<vmem>>, vector<32x256xf32>
    tpu.vector_store %arg6[%c256_325, %c0_326], %296 {strides = array<i32>} : memref<288x256xf32, #tpu.memory_space<vmem>>, vector<32x256xf32>,
    %c5_327 = arith.constant 5 : index
    %c0_328 = arith.constant 0 : index
    %c0_329 = arith.constant 0 : index
    %298 = vector.load %arg2[%c5_327, %c0_328, %c0_329] : memref<11x32x288xf32, #tpu.memory_space<vmem>>, vector<1x32x288xf32>
    %299 = vector.shape_cast %298 : vector<1x32x288xf32> to vector<32x288xf32>
    %c0_330 = arith.constant 0 : index
    %c0_331 = arith.constant 0 : index
    %300 = vector.load %arg6[%c0_330, %c0_331] : memref<288x256xf32, #tpu.memory_space<vmem>>, vector<288x256xf32>
    %cst_332 = arith.constant dense<0.000000e+00> : vector<32x256xf32>
    %301 = tpu.matmul %299, %300, %cst_332 {dimension_numbers = #tpu.dot_dimension_numbers<[1], [0], [0], [1], [0, 0, 1, 1], [], []>} : vector<32x288xf32>, vector<288x256xf32>, vector<32x256xf32> -> vector<32x256xf32>
    %c5_333 = arith.constant 5 : index
    %c0_334 = arith.constant 0 : index
    %c0_335 = arith.constant 0 : index
    %302 = vector.load %arg3[%c5_333, %c0_334, %c0_335] : memref<11x32x1xf32, #tpu.memory_space<vmem>>, vector<1x32x1xf32>
    %303 = vector.shape_cast %302 : vector<1x32x1xf32> to vector<32x1xf32>
    %304 = vector.broadcast %303 : vector<32x1xf32> to vector<32x256xf32>
    %305 = arith.addf %301, %304 : vector<32x256xf32>
    %cst_336 = arith.constant 0.000000e+00 : f32
    %306 = vector.broadcast %cst_336 : f32 to vector<32x256xf32>
    %307 = arith.maximumf %305, %306 : vector<32x256xf32>
    %c17_i32_337 = arith.constant 17 : i32
    %308 = tpu.dynamic_rotate %307 by %c17_i32_337 dim 1 : vector<32x256xf32>, i32 -> vector<32x256xf32>
    %c0_338 = arith.constant 0 : index
    %c0_339 = arith.constant 0 : index
    %c0_340 = arith.constant 0 : index
    %309 = vector.load %arg4[%c0_338, %c0_339, %c0_340] : memref<9x32x256xf32, #tpu.memory_space<vmem>>, vector<1x32x256xf32>
    %310 = vector.shape_cast %309 : vector<1x32x256xf32> to vector<32x256xf32>
    %311 = arith.mulf %308, %310 : vector<32x256xf32>
    %c0_341 = arith.constant 0 : index
    %c0_342 = arith.constant 0 : index
    %312 = vector.load %arg6[%c0_341, %c0_342] : memref<288x256xf32, #tpu.memory_space<vmem>>, vector<32x256xf32>
    tpu.vector_store %arg6[%c0_341, %c0_342], %311 {strides = array<i32>} : memref<288x256xf32, #tpu.memory_space<vmem>>, vector<32x256xf32>,
    %c16_i32_343 = arith.constant 16 : i32
    %313 = tpu.dynamic_rotate %307 by %c16_i32_343 dim 1 : vector<32x256xf32>, i32 -> vector<32x256xf32>
    %c1_344 = arith.constant 1 : index
    %c0_345 = arith.constant 0 : index
    %c0_346 = arith.constant 0 : index
    %314 = vector.load %arg4[%c1_344, %c0_345, %c0_346] : memref<9x32x256xf32, #tpu.memory_space<vmem>>, vector<1x32x256xf32>
    %315 = vector.shape_cast %314 : vector<1x32x256xf32> to vector<32x256xf32>
    %316 = arith.mulf %313, %315 : vector<32x256xf32>
    %c32_347 = arith.constant 32 : index
    %c0_348 = arith.constant 0 : index
    %317 = vector.load %arg6[%c32_347, %c0_348] : memref<288x256xf32, #tpu.memory_space<vmem>>, vector<32x256xf32>
    tpu.vector_store %arg6[%c32_347, %c0_348], %316 {strides = array<i32>} : memref<288x256xf32, #tpu.memory_space<vmem>>, vector<32x256xf32>,
    %c15_i32_349 = arith.constant 15 : i32
    %318 = tpu.dynamic_rotate %307 by %c15_i32_349 dim 1 : vector<32x256xf32>, i32 -> vector<32x256xf32>
    %c2_350 = arith.constant 2 : index
    %c0_351 = arith.constant 0 : index
    %c0_352 = arith.constant 0 : index
    %319 = vector.load %arg4[%c2_350, %c0_351, %c0_352] : memref<9x32x256xf32, #tpu.memory_space<vmem>>, vector<1x32x256xf32>
    %320 = vector.shape_cast %319 : vector<1x32x256xf32> to vector<32x256xf32>
    %321 = arith.mulf %318, %320 : vector<32x256xf32>
    %c64_353 = arith.constant 64 : index
    %c0_354 = arith.constant 0 : index
    %322 = vector.load %arg6[%c64_353, %c0_354] : memref<288x256xf32, #tpu.memory_space<vmem>>, vector<32x256xf32>
    tpu.vector_store %arg6[%c64_353, %c0_354], %321 {strides = array<i32>} : memref<288x256xf32, #tpu.memory_space<vmem>>, vector<32x256xf32>,
    %c1_i32_355 = arith.constant 1 : i32
    %323 = tpu.dynamic_rotate %307 by %c1_i32_355 dim 1 : vector<32x256xf32>, i32 -> vector<32x256xf32>
    %c3_356 = arith.constant 3 : index
    %c0_357 = arith.constant 0 : index
    %c0_358 = arith.constant 0 : index
    %324 = vector.load %arg4[%c3_356, %c0_357, %c0_358] : memref<9x32x256xf32, #tpu.memory_space<vmem>>, vector<1x32x256xf32>
    %325 = vector.shape_cast %324 : vector<1x32x256xf32> to vector<32x256xf32>
    %326 = arith.mulf %323, %325 : vector<32x256xf32>
    %c96_359 = arith.constant 96 : index
    %c0_360 = arith.constant 0 : index
    %327 = vector.load %arg6[%c96_359, %c0_360] : memref<288x256xf32, #tpu.memory_space<vmem>>, vector<32x256xf32>
    tpu.vector_store %arg6[%c96_359, %c0_360], %326 {strides = array<i32>} : memref<288x256xf32, #tpu.memory_space<vmem>>, vector<32x256xf32>,
    %c128_361 = arith.constant 128 : index
    %c0_362 = arith.constant 0 : index
    %328 = vector.load %arg6[%c128_361, %c0_362] : memref<288x256xf32, #tpu.memory_space<vmem>>, vector<32x256xf32>
    tpu.vector_store %arg6[%c128_361, %c0_362], %307 {strides = array<i32>} : memref<288x256xf32, #tpu.memory_space<vmem>>, vector<32x256xf32>,
    %c255_i32_363 = arith.constant 255 : i32
    %329 = tpu.dynamic_rotate %307 by %c255_i32_363 dim 1 : vector<32x256xf32>, i32 -> vector<32x256xf32>
    %c5_364 = arith.constant 5 : index
    %c0_365 = arith.constant 0 : index
    %c0_366 = arith.constant 0 : index
    %330 = vector.load %arg4[%c5_364, %c0_365, %c0_366] : memref<9x32x256xf32, #tpu.memory_space<vmem>>, vector<1x32x256xf32>
    %331 = vector.shape_cast %330 : vector<1x32x256xf32> to vector<32x256xf32>
    %332 = arith.mulf %329, %331 : vector<32x256xf32>
    %c160_367 = arith.constant 160 : index
    %c0_368 = arith.constant 0 : index
    %333 = vector.load %arg6[%c160_367, %c0_368] : memref<288x256xf32, #tpu.memory_space<vmem>>, vector<32x256xf32>
    tpu.vector_store %arg6[%c160_367, %c0_368], %332 {strides = array<i32>} : memref<288x256xf32, #tpu.memory_space<vmem>>, vector<32x256xf32>,
    %c241_i32_369 = arith.constant 241 : i32
    %334 = tpu.dynamic_rotate %307 by %c241_i32_369 dim 1 : vector<32x256xf32>, i32 -> vector<32x256xf32>
    %c6_370 = arith.constant 6 : index
    %c0_371 = arith.constant 0 : index
    %c0_372 = arith.constant 0 : index
    %335 = vector.load %arg4[%c6_370, %c0_371, %c0_372] : memref<9x32x256xf32, #tpu.memory_space<vmem>>, vector<1x32x256xf32>
    %336 = vector.shape_cast %335 : vector<1x32x256xf32> to vector<32x256xf32>
    %337 = arith.mulf %334, %336 : vector<32x256xf32>
    %c192_373 = arith.constant 192 : index
    %c0_374 = arith.constant 0 : index
    %338 = vector.load %arg6[%c192_373, %c0_374] : memref<288x256xf32, #tpu.memory_space<vmem>>, vector<32x256xf32>
    tpu.vector_store %arg6[%c192_373, %c0_374], %337 {strides = array<i32>} : memref<288x256xf32, #tpu.memory_space<vmem>>, vector<32x256xf32>,
    %c240_i32_375 = arith.constant 240 : i32
    %339 = tpu.dynamic_rotate %307 by %c240_i32_375 dim 1 : vector<32x256xf32>, i32 -> vector<32x256xf32>
    %c7_376 = arith.constant 7 : index
    %c0_377 = arith.constant 0 : index
    %c0_378 = arith.constant 0 : index
    %340 = vector.load %arg4[%c7_376, %c0_377, %c0_378] : memref<9x32x256xf32, #tpu.memory_space<vmem>>, vector<1x32x256xf32>
    %341 = vector.shape_cast %340 : vector<1x32x256xf32> to vector<32x256xf32>
    %342 = arith.mulf %339, %341 : vector<32x256xf32>
    %c224_379 = arith.constant 224 : index
    %c0_380 = arith.constant 0 : index
    %343 = vector.load %arg6[%c224_379, %c0_380] : memref<288x256xf32, #tpu.memory_space<vmem>>, vector<32x256xf32>
    tpu.vector_store %arg6[%c224_379, %c0_380], %342 {strides = array<i32>} : memref<288x256xf32, #tpu.memory_space<vmem>>, vector<32x256xf32>,
    %c239_i32_381 = arith.constant 239 : i32
    %344 = tpu.dynamic_rotate %307 by %c239_i32_381 dim 1 : vector<32x256xf32>, i32 -> vector<32x256xf32>
    %c8_382 = arith.constant 8 : index
    %c0_383 = arith.constant 0 : index
    %c0_384 = arith.constant 0 : index
    %345 = vector.load %arg4[%c8_382, %c0_383, %c0_384] : memref<9x32x256xf32, #tpu.memory_space<vmem>>, vector<1x32x256xf32>
    %346 = vector.shape_cast %345 : vector<1x32x256xf32> to vector<32x256xf32>
    %347 = arith.mulf %344, %346 : vector<32x256xf32>
    %c256_385 = arith.constant 256 : index
    %c0_386 = arith.constant 0 : index
    %348 = vector.load %arg6[%c256_385, %c0_386] : memref<288x256xf32, #tpu.memory_space<vmem>>, vector<32x256xf32>
    tpu.vector_store %arg6[%c256_385, %c0_386], %347 {strides = array<i32>} : memref<288x256xf32, #tpu.memory_space<vmem>>, vector<32x256xf32>,
    %c6_387 = arith.constant 6 : index
    %c0_388 = arith.constant 0 : index
    %c0_389 = arith.constant 0 : index
    %349 = vector.load %arg2[%c6_387, %c0_388, %c0_389] : memref<11x32x288xf32, #tpu.memory_space<vmem>>, vector<1x32x288xf32>
    %350 = vector.shape_cast %349 : vector<1x32x288xf32> to vector<32x288xf32>
    %c0_390 = arith.constant 0 : index
    %c0_391 = arith.constant 0 : index
    %351 = vector.load %arg6[%c0_390, %c0_391] : memref<288x256xf32, #tpu.memory_space<vmem>>, vector<288x256xf32>
    %cst_392 = arith.constant dense<0.000000e+00> : vector<32x256xf32>
    %352 = tpu.matmul %350, %351, %cst_392 {dimension_numbers = #tpu.dot_dimension_numbers<[1], [0], [0], [1], [0, 0, 1, 1], [], []>} : vector<32x288xf32>, vector<288x256xf32>, vector<32x256xf32> -> vector<32x256xf32>
    %c6_393 = arith.constant 6 : index
    %c0_394 = arith.constant 0 : index
    %c0_395 = arith.constant 0 : index
    %353 = vector.load %arg3[%c6_393, %c0_394, %c0_395] : memref<11x32x1xf32, #tpu.memory_space<vmem>>, vector<1x32x1xf32>
    %354 = vector.shape_cast %353 : vector<1x32x1xf32> to vector<32x1xf32>
    %355 = vector.broadcast %354 : vector<32x1xf32> to vector<32x256xf32>
    %356 = arith.addf %352, %355 : vector<32x256xf32>
    %cst_396 = arith.constant 0.000000e+00 : f32
    %357 = vector.broadcast %cst_396 : f32 to vector<32x256xf32>
    %358 = arith.maximumf %356, %357 : vector<32x256xf32>
    %c17_i32_397 = arith.constant 17 : i32
    %359 = tpu.dynamic_rotate %358 by %c17_i32_397 dim 1 : vector<32x256xf32>, i32 -> vector<32x256xf32>
    %c0_398 = arith.constant 0 : index
    %c0_399 = arith.constant 0 : index
    %c0_400 = arith.constant 0 : index
    %360 = vector.load %arg4[%c0_398, %c0_399, %c0_400] : memref<9x32x256xf32, #tpu.memory_space<vmem>>, vector<1x32x256xf32>
    %361 = vector.shape_cast %360 : vector<1x32x256xf32> to vector<32x256xf32>
    %362 = arith.mulf %359, %361 : vector<32x256xf32>
    %c0_401 = arith.constant 0 : index
    %c0_402 = arith.constant 0 : index
    %363 = vector.load %arg6[%c0_401, %c0_402] : memref<288x256xf32, #tpu.memory_space<vmem>>, vector<32x256xf32>
    tpu.vector_store %arg6[%c0_401, %c0_402], %362 {strides = array<i32>} : memref<288x256xf32, #tpu.memory_space<vmem>>, vector<32x256xf32>,
    %c16_i32_403 = arith.constant 16 : i32
    %364 = tpu.dynamic_rotate %358 by %c16_i32_403 dim 1 : vector<32x256xf32>, i32 -> vector<32x256xf32>
    %c1_404 = arith.constant 1 : index
    %c0_405 = arith.constant 0 : index
    %c0_406 = arith.constant 0 : index
    %365 = vector.load %arg4[%c1_404, %c0_405, %c0_406] : memref<9x32x256xf32, #tpu.memory_space<vmem>>, vector<1x32x256xf32>
    %366 = vector.shape_cast %365 : vector<1x32x256xf32> to vector<32x256xf32>
    %367 = arith.mulf %364, %366 : vector<32x256xf32>
    %c32_407 = arith.constant 32 : index
    %c0_408 = arith.constant 0 : index
    %368 = vector.load %arg6[%c32_407, %c0_408] : memref<288x256xf32, #tpu.memory_space<vmem>>, vector<32x256xf32>
    tpu.vector_store %arg6[%c32_407, %c0_408], %367 {strides = array<i32>} : memref<288x256xf32, #tpu.memory_space<vmem>>, vector<32x256xf32>,
    %c15_i32_409 = arith.constant 15 : i32
    %369 = tpu.dynamic_rotate %358 by %c15_i32_409 dim 1 : vector<32x256xf32>, i32 -> vector<32x256xf32>
    %c2_410 = arith.constant 2 : index
    %c0_411 = arith.constant 0 : index
    %c0_412 = arith.constant 0 : index
    %370 = vector.load %arg4[%c2_410, %c0_411, %c0_412] : memref<9x32x256xf32, #tpu.memory_space<vmem>>, vector<1x32x256xf32>
    %371 = vector.shape_cast %370 : vector<1x32x256xf32> to vector<32x256xf32>
    %372 = arith.mulf %369, %371 : vector<32x256xf32>
    %c64_413 = arith.constant 64 : index
    %c0_414 = arith.constant 0 : index
    %373 = vector.load %arg6[%c64_413, %c0_414] : memref<288x256xf32, #tpu.memory_space<vmem>>, vector<32x256xf32>
    tpu.vector_store %arg6[%c64_413, %c0_414], %372 {strides = array<i32>} : memref<288x256xf32, #tpu.memory_space<vmem>>, vector<32x256xf32>,
    %c1_i32_415 = arith.constant 1 : i32
    %374 = tpu.dynamic_rotate %358 by %c1_i32_415 dim 1 : vector<32x256xf32>, i32 -> vector<32x256xf32>
    %c3_416 = arith.constant 3 : index
    %c0_417 = arith.constant 0 : index
    %c0_418 = arith.constant 0 : index
    %375 = vector.load %arg4[%c3_416, %c0_417, %c0_418] : memref<9x32x256xf32, #tpu.memory_space<vmem>>, vector<1x32x256xf32>
    %376 = vector.shape_cast %375 : vector<1x32x256xf32> to vector<32x256xf32>
    %377 = arith.mulf %374, %376 : vector<32x256xf32>
    %c96_419 = arith.constant 96 : index
    %c0_420 = arith.constant 0 : index
    %378 = vector.load %arg6[%c96_419, %c0_420] : memref<288x256xf32, #tpu.memory_space<vmem>>, vector<32x256xf32>
    tpu.vector_store %arg6[%c96_419, %c0_420], %377 {strides = array<i32>} : memref<288x256xf32, #tpu.memory_space<vmem>>, vector<32x256xf32>,
    %c128_421 = arith.constant 128 : index
    %c0_422 = arith.constant 0 : index
    %379 = vector.load %arg6[%c128_421, %c0_422] : memref<288x256xf32, #tpu.memory_space<vmem>>, vector<32x256xf32>
    tpu.vector_store %arg6[%c128_421, %c0_422], %358 {strides = array<i32>} : memref<288x256xf32, #tpu.memory_space<vmem>>, vector<32x256xf32>,
    %c255_i32_423 = arith.constant 255 : i32
    %380 = tpu.dynamic_rotate %358 by %c255_i32_423 dim 1 : vector<32x256xf32>, i32 -> vector<32x256xf32>
    %c5_424 = arith.constant 5 : index
    %c0_425 = arith.constant 0 : index
    %c0_426 = arith.constant 0 : index
    %381 = vector.load %arg4[%c5_424, %c0_425, %c0_426] : memref<9x32x256xf32, #tpu.memory_space<vmem>>, vector<1x32x256xf32>
    %382 = vector.shape_cast %381 : vector<1x32x256xf32> to vector<32x256xf32>
    %383 = arith.mulf %380, %382 : vector<32x256xf32>
    %c160_427 = arith.constant 160 : index
    %c0_428 = arith.constant 0 : index
    %384 = vector.load %arg6[%c160_427, %c0_428] : memref<288x256xf32, #tpu.memory_space<vmem>>, vector<32x256xf32>
    tpu.vector_store %arg6[%c160_427, %c0_428], %383 {strides = array<i32>} : memref<288x256xf32, #tpu.memory_space<vmem>>, vector<32x256xf32>,
    %c241_i32_429 = arith.constant 241 : i32
    %385 = tpu.dynamic_rotate %358 by %c241_i32_429 dim 1 : vector<32x256xf32>, i32 -> vector<32x256xf32>
    %c6_430 = arith.constant 6 : index
    %c0_431 = arith.constant 0 : index
    %c0_432 = arith.constant 0 : index
    %386 = vector.load %arg4[%c6_430, %c0_431, %c0_432] : memref<9x32x256xf32, #tpu.memory_space<vmem>>, vector<1x32x256xf32>
    %387 = vector.shape_cast %386 : vector<1x32x256xf32> to vector<32x256xf32>
    %388 = arith.mulf %385, %387 : vector<32x256xf32>
    %c192_433 = arith.constant 192 : index
    %c0_434 = arith.constant 0 : index
    %389 = vector.load %arg6[%c192_433, %c0_434] : memref<288x256xf32, #tpu.memory_space<vmem>>, vector<32x256xf32>
    tpu.vector_store %arg6[%c192_433, %c0_434], %388 {strides = array<i32>} : memref<288x256xf32, #tpu.memory_space<vmem>>, vector<32x256xf32>,
    %c240_i32_435 = arith.constant 240 : i32
    %390 = tpu.dynamic_rotate %358 by %c240_i32_435 dim 1 : vector<32x256xf32>, i32 -> vector<32x256xf32>
    %c7_436 = arith.constant 7 : index
    %c0_437 = arith.constant 0 : index
    %c0_438 = arith.constant 0 : index
    %391 = vector.load %arg4[%c7_436, %c0_437, %c0_438] : memref<9x32x256xf32, #tpu.memory_space<vmem>>, vector<1x32x256xf32>
    %392 = vector.shape_cast %391 : vector<1x32x256xf32> to vector<32x256xf32>
    %393 = arith.mulf %390, %392 : vector<32x256xf32>
    %c224_439 = arith.constant 224 : index
    %c0_440 = arith.constant 0 : index
    %394 = vector.load %arg6[%c224_439, %c0_440] : memref<288x256xf32, #tpu.memory_space<vmem>>, vector<32x256xf32>
    tpu.vector_store %arg6[%c224_439, %c0_440], %393 {strides = array<i32>} : memref<288x256xf32, #tpu.memory_space<vmem>>, vector<32x256xf32>,
    %c239_i32_441 = arith.constant 239 : i32
    %395 = tpu.dynamic_rotate %358 by %c239_i32_441 dim 1 : vector<32x256xf32>, i32 -> vector<32x256xf32>
    %c8_442 = arith.constant 8 : index
    %c0_443 = arith.constant 0 : index
    %c0_444 = arith.constant 0 : index
    %396 = vector.load %arg4[%c8_442, %c0_443, %c0_444] : memref<9x32x256xf32, #tpu.memory_space<vmem>>, vector<1x32x256xf32>
    %397 = vector.shape_cast %396 : vector<1x32x256xf32> to vector<32x256xf32>
    %398 = arith.mulf %395, %397 : vector<32x256xf32>
    %c256_445 = arith.constant 256 : index
    %c0_446 = arith.constant 0 : index
    %399 = vector.load %arg6[%c256_445, %c0_446] : memref<288x256xf32, #tpu.memory_space<vmem>>, vector<32x256xf32>
    tpu.vector_store %arg6[%c256_445, %c0_446], %398 {strides = array<i32>} : memref<288x256xf32, #tpu.memory_space<vmem>>, vector<32x256xf32>,
    %c7_447 = arith.constant 7 : index
    %c0_448 = arith.constant 0 : index
    %c0_449 = arith.constant 0 : index
    %400 = vector.load %arg2[%c7_447, %c0_448, %c0_449] : memref<11x32x288xf32, #tpu.memory_space<vmem>>, vector<1x32x288xf32>
    %401 = vector.shape_cast %400 : vector<1x32x288xf32> to vector<32x288xf32>
    %c0_450 = arith.constant 0 : index
    %c0_451 = arith.constant 0 : index
    %402 = vector.load %arg6[%c0_450, %c0_451] : memref<288x256xf32, #tpu.memory_space<vmem>>, vector<288x256xf32>
    %cst_452 = arith.constant dense<0.000000e+00> : vector<32x256xf32>
    %403 = tpu.matmul %401, %402, %cst_452 {dimension_numbers = #tpu.dot_dimension_numbers<[1], [0], [0], [1], [0, 0, 1, 1], [], []>} : vector<32x288xf32>, vector<288x256xf32>, vector<32x256xf32> -> vector<32x256xf32>
    %c7_453 = arith.constant 7 : index
    %c0_454 = arith.constant 0 : index
    %c0_455 = arith.constant 0 : index
    %404 = vector.load %arg3[%c7_453, %c0_454, %c0_455] : memref<11x32x1xf32, #tpu.memory_space<vmem>>, vector<1x32x1xf32>
    %405 = vector.shape_cast %404 : vector<1x32x1xf32> to vector<32x1xf32>
    %406 = vector.broadcast %405 : vector<32x1xf32> to vector<32x256xf32>
    %407 = arith.addf %403, %406 : vector<32x256xf32>
    %cst_456 = arith.constant 0.000000e+00 : f32
    %408 = vector.broadcast %cst_456 : f32 to vector<32x256xf32>
    %409 = arith.maximumf %407, %408 : vector<32x256xf32>
    %c17_i32_457 = arith.constant 17 : i32
    %410 = tpu.dynamic_rotate %409 by %c17_i32_457 dim 1 : vector<32x256xf32>, i32 -> vector<32x256xf32>
    %c0_458 = arith.constant 0 : index
    %c0_459 = arith.constant 0 : index
    %c0_460 = arith.constant 0 : index
    %411 = vector.load %arg4[%c0_458, %c0_459, %c0_460] : memref<9x32x256xf32, #tpu.memory_space<vmem>>, vector<1x32x256xf32>
    %412 = vector.shape_cast %411 : vector<1x32x256xf32> to vector<32x256xf32>
    %413 = arith.mulf %410, %412 : vector<32x256xf32>
    %c0_461 = arith.constant 0 : index
    %c0_462 = arith.constant 0 : index
    %414 = vector.load %arg6[%c0_461, %c0_462] : memref<288x256xf32, #tpu.memory_space<vmem>>, vector<32x256xf32>
    tpu.vector_store %arg6[%c0_461, %c0_462], %413 {strides = array<i32>} : memref<288x256xf32, #tpu.memory_space<vmem>>, vector<32x256xf32>,
    %c16_i32_463 = arith.constant 16 : i32
    %415 = tpu.dynamic_rotate %409 by %c16_i32_463 dim 1 : vector<32x256xf32>, i32 -> vector<32x256xf32>
    %c1_464 = arith.constant 1 : index
    %c0_465 = arith.constant 0 : index
    %c0_466 = arith.constant 0 : index
    %416 = vector.load %arg4[%c1_464, %c0_465, %c0_466] : memref<9x32x256xf32, #tpu.memory_space<vmem>>, vector<1x32x256xf32>
    %417 = vector.shape_cast %416 : vector<1x32x256xf32> to vector<32x256xf32>
    %418 = arith.mulf %415, %417 : vector<32x256xf32>
    %c32_467 = arith.constant 32 : index
    %c0_468 = arith.constant 0 : index
    %419 = vector.load %arg6[%c32_467, %c0_468] : memref<288x256xf32, #tpu.memory_space<vmem>>, vector<32x256xf32>
    tpu.vector_store %arg6[%c32_467, %c0_468], %418 {strides = array<i32>} : memref<288x256xf32, #tpu.memory_space<vmem>>, vector<32x256xf32>,
    %c15_i32_469 = arith.constant 15 : i32
    %420 = tpu.dynamic_rotate %409 by %c15_i32_469 dim 1 : vector<32x256xf32>, i32 -> vector<32x256xf32>
    %c2_470 = arith.constant 2 : index
    %c0_471 = arith.constant 0 : index
    %c0_472 = arith.constant 0 : index
    %421 = vector.load %arg4[%c2_470, %c0_471, %c0_472] : memref<9x32x256xf32, #tpu.memory_space<vmem>>, vector<1x32x256xf32>
    %422 = vector.shape_cast %421 : vector<1x32x256xf32> to vector<32x256xf32>
    %423 = arith.mulf %420, %422 : vector<32x256xf32>
    %c64_473 = arith.constant 64 : index
    %c0_474 = arith.constant 0 : index
    %424 = vector.load %arg6[%c64_473, %c0_474] : memref<288x256xf32, #tpu.memory_space<vmem>>, vector<32x256xf32>
    tpu.vector_store %arg6[%c64_473, %c0_474], %423 {strides = array<i32>} : memref<288x256xf32, #tpu.memory_space<vmem>>, vector<32x256xf32>,
    %c1_i32_475 = arith.constant 1 : i32
    %425 = tpu.dynamic_rotate %409 by %c1_i32_475 dim 1 : vector<32x256xf32>, i32 -> vector<32x256xf32>
    %c3_476 = arith.constant 3 : index
    %c0_477 = arith.constant 0 : index
    %c0_478 = arith.constant 0 : index
    %426 = vector.load %arg4[%c3_476, %c0_477, %c0_478] : memref<9x32x256xf32, #tpu.memory_space<vmem>>, vector<1x32x256xf32>
    %427 = vector.shape_cast %426 : vector<1x32x256xf32> to vector<32x256xf32>
    %428 = arith.mulf %425, %427 : vector<32x256xf32>
    %c96_479 = arith.constant 96 : index
    %c0_480 = arith.constant 0 : index
    %429 = vector.load %arg6[%c96_479, %c0_480] : memref<288x256xf32, #tpu.memory_space<vmem>>, vector<32x256xf32>
    tpu.vector_store %arg6[%c96_479, %c0_480], %428 {strides = array<i32>} : memref<288x256xf32, #tpu.memory_space<vmem>>, vector<32x256xf32>,
    %c128_481 = arith.constant 128 : index
    %c0_482 = arith.constant 0 : index
    %430 = vector.load %arg6[%c128_481, %c0_482] : memref<288x256xf32, #tpu.memory_space<vmem>>, vector<32x256xf32>
    tpu.vector_store %arg6[%c128_481, %c0_482], %409 {strides = array<i32>} : memref<288x256xf32, #tpu.memory_space<vmem>>, vector<32x256xf32>,
    %c255_i32_483 = arith.constant 255 : i32
    %431 = tpu.dynamic_rotate %409 by %c255_i32_483 dim 1 : vector<32x256xf32>, i32 -> vector<32x256xf32>
    %c5_484 = arith.constant 5 : index
    %c0_485 = arith.constant 0 : index
    %c0_486 = arith.constant 0 : index
    %432 = vector.load %arg4[%c5_484, %c0_485, %c0_486] : memref<9x32x256xf32, #tpu.memory_space<vmem>>, vector<1x32x256xf32>
    %433 = vector.shape_cast %432 : vector<1x32x256xf32> to vector<32x256xf32>
    %434 = arith.mulf %431, %433 : vector<32x256xf32>
    %c160_487 = arith.constant 160 : index
    %c0_488 = arith.constant 0 : index
    %435 = vector.load %arg6[%c160_487, %c0_488] : memref<288x256xf32, #tpu.memory_space<vmem>>, vector<32x256xf32>
    tpu.vector_store %arg6[%c160_487, %c0_488], %434 {strides = array<i32>} : memref<288x256xf32, #tpu.memory_space<vmem>>, vector<32x256xf32>,
    %c241_i32_489 = arith.constant 241 : i32
    %436 = tpu.dynamic_rotate %409 by %c241_i32_489 dim 1 : vector<32x256xf32>, i32 -> vector<32x256xf32>
    %c6_490 = arith.constant 6 : index
    %c0_491 = arith.constant 0 : index
    %c0_492 = arith.constant 0 : index
    %437 = vector.load %arg4[%c6_490, %c0_491, %c0_492] : memref<9x32x256xf32, #tpu.memory_space<vmem>>, vector<1x32x256xf32>
    %438 = vector.shape_cast %437 : vector<1x32x256xf32> to vector<32x256xf32>
    %439 = arith.mulf %436, %438 : vector<32x256xf32>
    %c192_493 = arith.constant 192 : index
    %c0_494 = arith.constant 0 : index
    %440 = vector.load %arg6[%c192_493, %c0_494] : memref<288x256xf32, #tpu.memory_space<vmem>>, vector<32x256xf32>
    tpu.vector_store %arg6[%c192_493, %c0_494], %439 {strides = array<i32>} : memref<288x256xf32, #tpu.memory_space<vmem>>, vector<32x256xf32>,
    %c240_i32_495 = arith.constant 240 : i32
    %441 = tpu.dynamic_rotate %409 by %c240_i32_495 dim 1 : vector<32x256xf32>, i32 -> vector<32x256xf32>
    %c7_496 = arith.constant 7 : index
    %c0_497 = arith.constant 0 : index
    %c0_498 = arith.constant 0 : index
    %442 = vector.load %arg4[%c7_496, %c0_497, %c0_498] : memref<9x32x256xf32, #tpu.memory_space<vmem>>, vector<1x32x256xf32>
    %443 = vector.shape_cast %442 : vector<1x32x256xf32> to vector<32x256xf32>
    %444 = arith.mulf %441, %443 : vector<32x256xf32>
    %c224_499 = arith.constant 224 : index
    %c0_500 = arith.constant 0 : index
    %445 = vector.load %arg6[%c224_499, %c0_500] : memref<288x256xf32, #tpu.memory_space<vmem>>, vector<32x256xf32>
    tpu.vector_store %arg6[%c224_499, %c0_500], %444 {strides = array<i32>} : memref<288x256xf32, #tpu.memory_space<vmem>>, vector<32x256xf32>,
    %c239_i32_501 = arith.constant 239 : i32
    %446 = tpu.dynamic_rotate %409 by %c239_i32_501 dim 1 : vector<32x256xf32>, i32 -> vector<32x256xf32>
    %c8_502 = arith.constant 8 : index
    %c0_503 = arith.constant 0 : index
    %c0_504 = arith.constant 0 : index
    %447 = vector.load %arg4[%c8_502, %c0_503, %c0_504] : memref<9x32x256xf32, #tpu.memory_space<vmem>>, vector<1x32x256xf32>
    %448 = vector.shape_cast %447 : vector<1x32x256xf32> to vector<32x256xf32>
    %449 = arith.mulf %446, %448 : vector<32x256xf32>
    %c256_505 = arith.constant 256 : index
    %c0_506 = arith.constant 0 : index
    %450 = vector.load %arg6[%c256_505, %c0_506] : memref<288x256xf32, #tpu.memory_space<vmem>>, vector<32x256xf32>
    tpu.vector_store %arg6[%c256_505, %c0_506], %449 {strides = array<i32>} : memref<288x256xf32, #tpu.memory_space<vmem>>, vector<32x256xf32>,
    %c8_507 = arith.constant 8 : index
    %c0_508 = arith.constant 0 : index
    %c0_509 = arith.constant 0 : index
    %451 = vector.load %arg2[%c8_507, %c0_508, %c0_509] : memref<11x32x288xf32, #tpu.memory_space<vmem>>, vector<1x32x288xf32>
    %452 = vector.shape_cast %451 : vector<1x32x288xf32> to vector<32x288xf32>
    %c0_510 = arith.constant 0 : index
    %c0_511 = arith.constant 0 : index
    %453 = vector.load %arg6[%c0_510, %c0_511] : memref<288x256xf32, #tpu.memory_space<vmem>>, vector<288x256xf32>
    %cst_512 = arith.constant dense<0.000000e+00> : vector<32x256xf32>
    %454 = tpu.matmul %452, %453, %cst_512 {dimension_numbers = #tpu.dot_dimension_numbers<[1], [0], [0], [1], [0, 0, 1, 1], [], []>} : vector<32x288xf32>, vector<288x256xf32>, vector<32x256xf32> -> vector<32x256xf32>
    %c8_513 = arith.constant 8 : index
    %c0_514 = arith.constant 0 : index
    %c0_515 = arith.constant 0 : index
    %455 = vector.load %arg3[%c8_513, %c0_514, %c0_515] : memref<11x32x1xf32, #tpu.memory_space<vmem>>, vector<1x32x1xf32>
    %456 = vector.shape_cast %455 : vector<1x32x1xf32> to vector<32x1xf32>
    %457 = vector.broadcast %456 : vector<32x1xf32> to vector<32x256xf32>
    %458 = arith.addf %454, %457 : vector<32x256xf32>
    %c17_i32_516 = arith.constant 17 : i32
    %459 = tpu.dynamic_rotate %458 by %c17_i32_516 dim 1 : vector<32x256xf32>, i32 -> vector<32x256xf32>
    %c0_517 = arith.constant 0 : index
    %c0_518 = arith.constant 0 : index
    %c0_519 = arith.constant 0 : index
    %460 = vector.load %arg4[%c0_517, %c0_518, %c0_519] : memref<9x32x256xf32, #tpu.memory_space<vmem>>, vector<1x32x256xf32>
    %461 = vector.shape_cast %460 : vector<1x32x256xf32> to vector<32x256xf32>
    %462 = arith.mulf %459, %461 : vector<32x256xf32>
    %c0_520 = arith.constant 0 : index
    %c0_521 = arith.constant 0 : index
    %463 = vector.load %arg6[%c0_520, %c0_521] : memref<288x256xf32, #tpu.memory_space<vmem>>, vector<32x256xf32>
    tpu.vector_store %arg6[%c0_520, %c0_521], %462 {strides = array<i32>} : memref<288x256xf32, #tpu.memory_space<vmem>>, vector<32x256xf32>,
    %c16_i32_522 = arith.constant 16 : i32
    %464 = tpu.dynamic_rotate %458 by %c16_i32_522 dim 1 : vector<32x256xf32>, i32 -> vector<32x256xf32>
    %c1_523 = arith.constant 1 : index
    %c0_524 = arith.constant 0 : index
    %c0_525 = arith.constant 0 : index
    %465 = vector.load %arg4[%c1_523, %c0_524, %c0_525] : memref<9x32x256xf32, #tpu.memory_space<vmem>>, vector<1x32x256xf32>
    %466 = vector.shape_cast %465 : vector<1x32x256xf32> to vector<32x256xf32>
    %467 = arith.mulf %464, %466 : vector<32x256xf32>
    %c32_526 = arith.constant 32 : index
    %c0_527 = arith.constant 0 : index
    %468 = vector.load %arg6[%c32_526, %c0_527] : memref<288x256xf32, #tpu.memory_space<vmem>>, vector<32x256xf32>
    tpu.vector_store %arg6[%c32_526, %c0_527], %467 {strides = array<i32>} : memref<288x256xf32, #tpu.memory_space<vmem>>, vector<32x256xf32>,
    %c15_i32_528 = arith.constant 15 : i32
    %469 = tpu.dynamic_rotate %458 by %c15_i32_528 dim 1 : vector<32x256xf32>, i32 -> vector<32x256xf32>
    %c2_529 = arith.constant 2 : index
    %c0_530 = arith.constant 0 : index
    %c0_531 = arith.constant 0 : index
    %470 = vector.load %arg4[%c2_529, %c0_530, %c0_531] : memref<9x32x256xf32, #tpu.memory_space<vmem>>, vector<1x32x256xf32>
    %471 = vector.shape_cast %470 : vector<1x32x256xf32> to vector<32x256xf32>
    %472 = arith.mulf %469, %471 : vector<32x256xf32>
    %c64_532 = arith.constant 64 : index
    %c0_533 = arith.constant 0 : index
    %473 = vector.load %arg6[%c64_532, %c0_533] : memref<288x256xf32, #tpu.memory_space<vmem>>, vector<32x256xf32>
    tpu.vector_store %arg6[%c64_532, %c0_533], %472 {strides = array<i32>} : memref<288x256xf32, #tpu.memory_space<vmem>>, vector<32x256xf32>,
    %c1_i32_534 = arith.constant 1 : i32
    %474 = tpu.dynamic_rotate %458 by %c1_i32_534 dim 1 : vector<32x256xf32>, i32 -> vector<32x256xf32>
    %c3_535 = arith.constant 3 : index
    %c0_536 = arith.constant 0 : index
    %c0_537 = arith.constant 0 : index
    %475 = vector.load %arg4[%c3_535, %c0_536, %c0_537] : memref<9x32x256xf32, #tpu.memory_space<vmem>>, vector<1x32x256xf32>
    %476 = vector.shape_cast %475 : vector<1x32x256xf32> to vector<32x256xf32>
    %477 = arith.mulf %474, %476 : vector<32x256xf32>
    %c96_538 = arith.constant 96 : index
    %c0_539 = arith.constant 0 : index
    %478 = vector.load %arg6[%c96_538, %c0_539] : memref<288x256xf32, #tpu.memory_space<vmem>>, vector<32x256xf32>
    tpu.vector_store %arg6[%c96_538, %c0_539], %477 {strides = array<i32>} : memref<288x256xf32, #tpu.memory_space<vmem>>, vector<32x256xf32>,
    %c128_540 = arith.constant 128 : index
    %c0_541 = arith.constant 0 : index
    %479 = vector.load %arg6[%c128_540, %c0_541] : memref<288x256xf32, #tpu.memory_space<vmem>>, vector<32x256xf32>
    tpu.vector_store %arg6[%c128_540, %c0_541], %458 {strides = array<i32>} : memref<288x256xf32, #tpu.memory_space<vmem>>, vector<32x256xf32>,
    %c255_i32_542 = arith.constant 255 : i32
    %480 = tpu.dynamic_rotate %458 by %c255_i32_542 dim 1 : vector<32x256xf32>, i32 -> vector<32x256xf32>
    %c5_543 = arith.constant 5 : index
    %c0_544 = arith.constant 0 : index
    %c0_545 = arith.constant 0 : index
    %481 = vector.load %arg4[%c5_543, %c0_544, %c0_545] : memref<9x32x256xf32, #tpu.memory_space<vmem>>, vector<1x32x256xf32>
    %482 = vector.shape_cast %481 : vector<1x32x256xf32> to vector<32x256xf32>
    %483 = arith.mulf %480, %482 : vector<32x256xf32>
    %c160_546 = arith.constant 160 : index
    %c0_547 = arith.constant 0 : index
    %484 = vector.load %arg6[%c160_546, %c0_547] : memref<288x256xf32, #tpu.memory_space<vmem>>, vector<32x256xf32>
    tpu.vector_store %arg6[%c160_546, %c0_547], %483 {strides = array<i32>} : memref<288x256xf32, #tpu.memory_space<vmem>>, vector<32x256xf32>,
    %c241_i32_548 = arith.constant 241 : i32
    %485 = tpu.dynamic_rotate %458 by %c241_i32_548 dim 1 : vector<32x256xf32>, i32 -> vector<32x256xf32>
    %c6_549 = arith.constant 6 : index
    %c0_550 = arith.constant 0 : index
    %c0_551 = arith.constant 0 : index
    %486 = vector.load %arg4[%c6_549, %c0_550, %c0_551] : memref<9x32x256xf32, #tpu.memory_space<vmem>>, vector<1x32x256xf32>
    %487 = vector.shape_cast %486 : vector<1x32x256xf32> to vector<32x256xf32>
    %488 = arith.mulf %485, %487 : vector<32x256xf32>
    %c192_552 = arith.constant 192 : index
    %c0_553 = arith.constant 0 : index
    %489 = vector.load %arg6[%c192_552, %c0_553] : memref<288x256xf32, #tpu.memory_space<vmem>>, vector<32x256xf32>
    tpu.vector_store %arg6[%c192_552, %c0_553], %488 {strides = array<i32>} : memref<288x256xf32, #tpu.memory_space<vmem>>, vector<32x256xf32>,
    %c240_i32_554 = arith.constant 240 : i32
    %490 = tpu.dynamic_rotate %458 by %c240_i32_554 dim 1 : vector<32x256xf32>, i32 -> vector<32x256xf32>
    %c7_555 = arith.constant 7 : index
    %c0_556 = arith.constant 0 : index
    %c0_557 = arith.constant 0 : index
    %491 = vector.load %arg4[%c7_555, %c0_556, %c0_557] : memref<9x32x256xf32, #tpu.memory_space<vmem>>, vector<1x32x256xf32>
    %492 = vector.shape_cast %491 : vector<1x32x256xf32> to vector<32x256xf32>
    %493 = arith.mulf %490, %492 : vector<32x256xf32>
    %c224_558 = arith.constant 224 : index
    %c0_559 = arith.constant 0 : index
    %494 = vector.load %arg6[%c224_558, %c0_559] : memref<288x256xf32, #tpu.memory_space<vmem>>, vector<32x256xf32>
    tpu.vector_store %arg6[%c224_558, %c0_559], %493 {strides = array<i32>} : memref<288x256xf32, #tpu.memory_space<vmem>>, vector<32x256xf32>,
    %c239_i32_560 = arith.constant 239 : i32
    %495 = tpu.dynamic_rotate %458 by %c239_i32_560 dim 1 : vector<32x256xf32>, i32 -> vector<32x256xf32>
    %c8_561 = arith.constant 8 : index
    %c0_562 = arith.constant 0 : index
    %c0_563 = arith.constant 0 : index
    %496 = vector.load %arg4[%c8_561, %c0_562, %c0_563] : memref<9x32x256xf32, #tpu.memory_space<vmem>>, vector<1x32x256xf32>
    %497 = vector.shape_cast %496 : vector<1x32x256xf32> to vector<32x256xf32>
    %498 = arith.mulf %495, %497 : vector<32x256xf32>
    %c256_564 = arith.constant 256 : index
    %c0_565 = arith.constant 0 : index
    %499 = vector.load %arg6[%c256_564, %c0_565] : memref<288x256xf32, #tpu.memory_space<vmem>>, vector<32x256xf32>
    tpu.vector_store %arg6[%c256_564, %c0_565], %498 {strides = array<i32>} : memref<288x256xf32, #tpu.memory_space<vmem>>, vector<32x256xf32>,
    %c9 = arith.constant 9 : index
    %c0_566 = arith.constant 0 : index
    %c0_567 = arith.constant 0 : index
    %500 = vector.load %arg2[%c9, %c0_566, %c0_567] : memref<11x32x288xf32, #tpu.memory_space<vmem>>, vector<1x32x288xf32>
    %501 = vector.shape_cast %500 : vector<1x32x288xf32> to vector<32x288xf32>
    %c0_568 = arith.constant 0 : index
    %c0_569 = arith.constant 0 : index
    %502 = vector.load %arg6[%c0_568, %c0_569] : memref<288x256xf32, #tpu.memory_space<vmem>>, vector<288x256xf32>
    %cst_570 = arith.constant dense<0.000000e+00> : vector<32x256xf32>
    %503 = tpu.matmul %501, %502, %cst_570 {dimension_numbers = #tpu.dot_dimension_numbers<[1], [0], [0], [1], [0, 0, 1, 1], [], []>} : vector<32x288xf32>, vector<288x256xf32>, vector<32x256xf32> -> vector<32x256xf32>
    %c9_571 = arith.constant 9 : index
    %c0_572 = arith.constant 0 : index
    %c0_573 = arith.constant 0 : index
    %504 = vector.load %arg3[%c9_571, %c0_572, %c0_573] : memref<11x32x1xf32, #tpu.memory_space<vmem>>, vector<1x32x1xf32>
    %505 = vector.shape_cast %504 : vector<1x32x1xf32> to vector<32x1xf32>
    %506 = vector.broadcast %505 : vector<32x1xf32> to vector<32x256xf32>
    %507 = arith.addf %503, %506 : vector<32x256xf32>
    %cst_574 = arith.constant 0.000000e+00 : f32
    %508 = vector.broadcast %cst_574 : f32 to vector<32x256xf32>
    %509 = arith.maximumf %507, %508 : vector<32x256xf32>
    %c17_i32_575 = arith.constant 17 : i32
    %510 = tpu.dynamic_rotate %509 by %c17_i32_575 dim 1 : vector<32x256xf32>, i32 -> vector<32x256xf32>
    %c0_576 = arith.constant 0 : index
    %c0_577 = arith.constant 0 : index
    %c0_578 = arith.constant 0 : index
    %511 = vector.load %arg4[%c0_576, %c0_577, %c0_578] : memref<9x32x256xf32, #tpu.memory_space<vmem>>, vector<1x32x256xf32>
    %512 = vector.shape_cast %511 : vector<1x32x256xf32> to vector<32x256xf32>
    %513 = arith.mulf %510, %512 : vector<32x256xf32>
    %c0_579 = arith.constant 0 : index
    %c0_580 = arith.constant 0 : index
    %514 = vector.load %arg6[%c0_579, %c0_580] : memref<288x256xf32, #tpu.memory_space<vmem>>, vector<32x256xf32>
    tpu.vector_store %arg6[%c0_579, %c0_580], %513 {strides = array<i32>} : memref<288x256xf32, #tpu.memory_space<vmem>>, vector<32x256xf32>,
    %c16_i32_581 = arith.constant 16 : i32
    %515 = tpu.dynamic_rotate %509 by %c16_i32_581 dim 1 : vector<32x256xf32>, i32 -> vector<32x256xf32>
    %c1_582 = arith.constant 1 : index
    %c0_583 = arith.constant 0 : index
    %c0_584 = arith.constant 0 : index
    %516 = vector.load %arg4[%c1_582, %c0_583, %c0_584] : memref<9x32x256xf32, #tpu.memory_space<vmem>>, vector<1x32x256xf32>
    %517 = vector.shape_cast %516 : vector<1x32x256xf32> to vector<32x256xf32>
    %518 = arith.mulf %515, %517 : vector<32x256xf32>
    %c32_585 = arith.constant 32 : index
    %c0_586 = arith.constant 0 : index
    %519 = vector.load %arg6[%c32_585, %c0_586] : memref<288x256xf32, #tpu.memory_space<vmem>>, vector<32x256xf32>
    tpu.vector_store %arg6[%c32_585, %c0_586], %518 {strides = array<i32>} : memref<288x256xf32, #tpu.memory_space<vmem>>, vector<32x256xf32>,
    %c15_i32_587 = arith.constant 15 : i32
    %520 = tpu.dynamic_rotate %509 by %c15_i32_587 dim 1 : vector<32x256xf32>, i32 -> vector<32x256xf32>
    %c2_588 = arith.constant 2 : index
    %c0_589 = arith.constant 0 : index
    %c0_590 = arith.constant 0 : index
    %521 = vector.load %arg4[%c2_588, %c0_589, %c0_590] : memref<9x32x256xf32, #tpu.memory_space<vmem>>, vector<1x32x256xf32>
    %522 = vector.shape_cast %521 : vector<1x32x256xf32> to vector<32x256xf32>
    %523 = arith.mulf %520, %522 : vector<32x256xf32>
    %c64_591 = arith.constant 64 : index
    %c0_592 = arith.constant 0 : index
    %524 = vector.load %arg6[%c64_591, %c0_592] : memref<288x256xf32, #tpu.memory_space<vmem>>, vector<32x256xf32>
    tpu.vector_store %arg6[%c64_591, %c0_592], %523 {strides = array<i32>} : memref<288x256xf32, #tpu.memory_space<vmem>>, vector<32x256xf32>,
    %c1_i32_593 = arith.constant 1 : i32
    %525 = tpu.dynamic_rotate %509 by %c1_i32_593 dim 1 : vector<32x256xf32>, i32 -> vector<32x256xf32>
    %c3_594 = arith.constant 3 : index
    %c0_595 = arith.constant 0 : index
    %c0_596 = arith.constant 0 : index
    %526 = vector.load %arg4[%c3_594, %c0_595, %c0_596] : memref<9x32x256xf32, #tpu.memory_space<vmem>>, vector<1x32x256xf32>
    %527 = vector.shape_cast %526 : vector<1x32x256xf32> to vector<32x256xf32>
    %528 = arith.mulf %525, %527 : vector<32x256xf32>
    %c96_597 = arith.constant 96 : index
    %c0_598 = arith.constant 0 : index
    %529 = vector.load %arg6[%c96_597, %c0_598] : memref<288x256xf32, #tpu.memory_space<vmem>>, vector<32x256xf32>
    tpu.vector_store %arg6[%c96_597, %c0_598], %528 {strides = array<i32>} : memref<288x256xf32, #tpu.memory_space<vmem>>, vector<32x256xf32>,
    %c128_599 = arith.constant 128 : index
    %c0_600 = arith.constant 0 : index
    %530 = vector.load %arg6[%c128_599, %c0_600] : memref<288x256xf32, #tpu.memory_space<vmem>>, vector<32x256xf32>
    tpu.vector_store %arg6[%c128_599, %c0_600], %509 {strides = array<i32>} : memref<288x256xf32, #tpu.memory_space<vmem>>, vector<32x256xf32>,
    %c255_i32_601 = arith.constant 255 : i32
    %531 = tpu.dynamic_rotate %509 by %c255_i32_601 dim 1 : vector<32x256xf32>, i32 -> vector<32x256xf32>
    %c5_602 = arith.constant 5 : index
    %c0_603 = arith.constant 0 : index
    %c0_604 = arith.constant 0 : index
    %532 = vector.load %arg4[%c5_602, %c0_603, %c0_604] : memref<9x32x256xf32, #tpu.memory_space<vmem>>, vector<1x32x256xf32>
    %533 = vector.shape_cast %532 : vector<1x32x256xf32> to vector<32x256xf32>
    %534 = arith.mulf %531, %533 : vector<32x256xf32>
    %c160_605 = arith.constant 160 : index
    %c0_606 = arith.constant 0 : index
    %535 = vector.load %arg6[%c160_605, %c0_606] : memref<288x256xf32, #tpu.memory_space<vmem>>, vector<32x256xf32>
    tpu.vector_store %arg6[%c160_605, %c0_606], %534 {strides = array<i32>} : memref<288x256xf32, #tpu.memory_space<vmem>>, vector<32x256xf32>,
    %c241_i32_607 = arith.constant 241 : i32
    %536 = tpu.dynamic_rotate %509 by %c241_i32_607 dim 1 : vector<32x256xf32>, i32 -> vector<32x256xf32>
    %c6_608 = arith.constant 6 : index
    %c0_609 = arith.constant 0 : index
    %c0_610 = arith.constant 0 : index
    %537 = vector.load %arg4[%c6_608, %c0_609, %c0_610] : memref<9x32x256xf32, #tpu.memory_space<vmem>>, vector<1x32x256xf32>
    %538 = vector.shape_cast %537 : vector<1x32x256xf32> to vector<32x256xf32>
    %539 = arith.mulf %536, %538 : vector<32x256xf32>
    %c192_611 = arith.constant 192 : index
    %c0_612 = arith.constant 0 : index
    %540 = vector.load %arg6[%c192_611, %c0_612] : memref<288x256xf32, #tpu.memory_space<vmem>>, vector<32x256xf32>
    tpu.vector_store %arg6[%c192_611, %c0_612], %539 {strides = array<i32>} : memref<288x256xf32, #tpu.memory_space<vmem>>, vector<32x256xf32>,
    %c240_i32_613 = arith.constant 240 : i32
    %541 = tpu.dynamic_rotate %509 by %c240_i32_613 dim 1 : vector<32x256xf32>, i32 -> vector<32x256xf32>
    %c7_614 = arith.constant 7 : index
    %c0_615 = arith.constant 0 : index
    %c0_616 = arith.constant 0 : index
    %542 = vector.load %arg4[%c7_614, %c0_615, %c0_616] : memref<9x32x256xf32, #tpu.memory_space<vmem>>, vector<1x32x256xf32>
    %543 = vector.shape_cast %542 : vector<1x32x256xf32> to vector<32x256xf32>
    %544 = arith.mulf %541, %543 : vector<32x256xf32>
    %c224_617 = arith.constant 224 : index
    %c0_618 = arith.constant 0 : index
    %545 = vector.load %arg6[%c224_617, %c0_618] : memref<288x256xf32, #tpu.memory_space<vmem>>, vector<32x256xf32>
    tpu.vector_store %arg6[%c224_617, %c0_618], %544 {strides = array<i32>} : memref<288x256xf32, #tpu.memory_space<vmem>>, vector<32x256xf32>,
    %c239_i32_619 = arith.constant 239 : i32
    %546 = tpu.dynamic_rotate %509 by %c239_i32_619 dim 1 : vector<32x256xf32>, i32 -> vector<32x256xf32>
    %c8_620 = arith.constant 8 : index
    %c0_621 = arith.constant 0 : index
    %c0_622 = arith.constant 0 : index
    %547 = vector.load %arg4[%c8_620, %c0_621, %c0_622] : memref<9x32x256xf32, #tpu.memory_space<vmem>>, vector<1x32x256xf32>
    %548 = vector.shape_cast %547 : vector<1x32x256xf32> to vector<32x256xf32>
    %549 = arith.mulf %546, %548 : vector<32x256xf32>
    %c256_623 = arith.constant 256 : index
    %c0_624 = arith.constant 0 : index
    %550 = vector.load %arg6[%c256_623, %c0_624] : memref<288x256xf32, #tpu.memory_space<vmem>>, vector<32x256xf32>
    tpu.vector_store %arg6[%c256_623, %c0_624], %549 {strides = array<i32>} : memref<288x256xf32, #tpu.memory_space<vmem>>, vector<32x256xf32>,
    %c10 = arith.constant 10 : index
    %c0_625 = arith.constant 0 : index
    %c0_626 = arith.constant 0 : index
    %551 = vector.load %arg2[%c10, %c0_625, %c0_626] : memref<11x32x288xf32, #tpu.memory_space<vmem>>, vector<1x32x288xf32>
    %552 = vector.shape_cast %551 : vector<1x32x288xf32> to vector<32x288xf32>
    %c0_627 = arith.constant 0 : index
    %c0_628 = arith.constant 0 : index
    %553 = vector.load %arg6[%c0_627, %c0_628] : memref<288x256xf32, #tpu.memory_space<vmem>>, vector<288x256xf32>
    %cst_629 = arith.constant dense<0.000000e+00> : vector<32x256xf32>
    %554 = tpu.matmul %552, %553, %cst_629 {dimension_numbers = #tpu.dot_dimension_numbers<[1], [0], [0], [1], [0, 0, 1, 1], [], []>} : vector<32x288xf32>, vector<288x256xf32>, vector<32x256xf32> -> vector<32x256xf32>
    %c10_630 = arith.constant 10 : index
    %c0_631 = arith.constant 0 : index
    %c0_632 = arith.constant 0 : index
    %555 = vector.load %arg3[%c10_630, %c0_631, %c0_632] : memref<11x32x1xf32, #tpu.memory_space<vmem>>, vector<1x32x1xf32>
    %556 = vector.shape_cast %555 : vector<1x32x1xf32> to vector<32x1xf32>
    %557 = vector.broadcast %556 : vector<32x1xf32> to vector<32x256xf32>
    %558 = arith.addf %554, %557 : vector<32x256xf32>
    %559 = arith.negf %558 : vector<32x256xf32>
    %560 = math.exp %559 : vector<32x256xf32>
    %cst_633 = arith.constant 1.000000e+00 : f32
    %561 = vector.broadcast %cst_633 : f32 to vector<32x256xf32>
    %562 = arith.addf %561, %560 : vector<32x256xf32>
    %563 = arith.divf %561, %562 : vector<32x256xf32>
    %c0_634 = arith.constant 0 : index
    %c0_635 = arith.constant 0 : index
    %c0_636 = arith.constant 0 : index
    %564 = vector.load %arg5[%c0_634, %c0_635, %c0_636] : memref<1x32x256xf32, #tpu.memory_space<vmem>>, vector<1x32x256xf32>
    %565 = vector.shape_cast %564 : vector<1x32x256xf32> to vector<32x256xf32>
    %566 = vector.shape_cast %563 : vector<32x256xf32> to vector<1x32x256xf32>
    tpu.vector_store %arg5[%c0_634, %c0_635, %c0_636], %566 {strides = array<i32>} : memref<1x32x256xf32, #tpu.memory_space<vmem>>, vector<1x32x256xf32>,
    return
  }
  func.func @transform_0(%arg0: i32) -> (i32, i32, i32) {
    %c0_i32 = arith.constant 0 : i32
    %c0_i32_0 = arith.constant 0 : i32
    %c0_i32_1 = arith.constant 0 : i32
    return %arg0, %c0_i32, %c0_i32_0 : i32, i32, i32
  }
  func.func @transform_1(%arg0: i32) -> (i32, i32, i32) {
    %c0_i32 = arith.constant 0 : i32
    %c0_i32_0 = arith.constant 0 : i32
    %c0_i32_1 = arith.constant 0 : i32
    %c0_i32_2 = arith.constant 0 : i32
    return %c0_i32, %c0_i32_0, %c0_i32_1 : i32, i32, i32
  }
  func.func @transform_2(%arg0: i32) -> (i32, i32, i32) {
    %c0_i32 = arith.constant 0 : i32
    %c0_i32_0 = arith.constant 0 : i32
    %c0_i32_1 = arith.constant 0 : i32
    %c0_i32_2 = arith.constant 0 : i32
    return %c0_i32, %c0_i32_0, %c0_i32_1 : i32, i32, i32
  }
  func.func @transform_3(%arg0: i32) -> (i32, i32, i32) {
    %c0_i32 = arith.constant 0 : i32
    %c0_i32_0 = arith.constant 0 : i32
    %c0_i32_1 = arith.constant 0 : i32
    %c0_i32_2 = arith.constant 0 : i32
    return %c0_i32, %c0_i32_0, %c0_i32_1 : i32, i32, i32
  }
  func.func @transform_4(%arg0: i32) -> (i32, i32, i32) {
    %c0_i32 = arith.constant 0 : i32
    %c0_i32_0 = arith.constant 0 : i32
    %c0_i32_1 = arith.constant 0 : i32
    return %arg0, %c0_i32, %c0_i32_0 : i32, i32, i32
  }
}

</mosaic_0001>

<llo_original>
// kernel: unet_small_forward.1
$region0: #{unet_small_forward.1}
  #allocation0 [shape = 'u32[]', space=smem, size = 0x4, offset = 0x4, fixed_abs, tag = 'smem constant byte address 0x4 - core index']
  #allocation1 [shape = 'u32[72,128]{1,0:T(1,128)}', space=vmem, size = 0x9000, scoped, tag = 'internal scratch']
  #allocation2 [shape = 'f32[288,256]{1,0:T(8,128)}', space=vmem, size = 0x48000, scoped, tag = 'scratch operand']
  %s0 = inlined_call_operand.vmem [shape: f32[2,32,256], index: 0, kind: input, shape index: {}]
  %s1 = inlined_call_operand.vmem [shape: f32[11,32,288], index: 1, kind: input, shape index: {}]
  %s2 = inlined_call_operand.vmem [shape: f32[11,32,1], index: 2, kind: input, shape index: {}]
  %s3 = inlined_call_operand.vmem [shape: f32[9,32,256], index: 3, kind: input, shape index: {}]
  %s4 = inlined_call_operand.vmem [shape: f32[2,32,256], index: 4, kind: output, shape index: {}]
  %s5 = sld [smem:[#allocation0]]
  $region49: #{unet_small_forward.1} parent=0
    _
  %s7 = ssub.s32 1, %s5
  %s8 = scalar_select 0, %s7, %s5
  loop: start=0, step=1, limit=4
  $region2: #{unet_small_forward.1} parent=0 // loop_pre_header
    _
  $region3: #{unet_small_forward.1} parent=0 // loop_header
    %s10 = sphi 0, %s14
    %p11 = scmp.ge.s32.totalorder %s10, 4
    %s20 = sphi 0, %s22
    %s23 = sphi 0, %s20
    %s24 = sphi 0, %s23
    %s40 = sphi 0, %s24
    %s44 = sphi 0, %s44
    %s46 = sphi 0, %s44
    %s47 = sphi 0, %s46
    %s61 = sphi 0, %s47
    %s65 = sphi 0, %s65
    %s67 = sphi 0, %s65
    %s68 = sphi 0, %s67
    %s82 = sphi 0, %s68
    %s86 = sphi 0, %s86
    %s88 = sphi 0, %s86
    %s89 = sphi 0, %s88
    %s103 = sphi 0, %s89
    %s109 = sphi 0, %s111
    %s112 = sphi 0, %s109
    %s113 = sphi 0, %s112
    %s129 = sphi 0, %s113
  $region4: #{unet_small_forward.1} parent=0 // loop_header_branch
    %13 = sbr.rel (%p11) target = $region8
  $region5: #{unet_small_forward.1} parent=0 // loop_body
    %s15 = ssub.s32 %s10, 1
    %s16 = ssub.s32 %s10, 2
    %s17 = sadd.s32 %s10, 1
    %s18 = ssub.s32 %s10, %s17
    %p19 = scmp.eq.s32.totalorder %s18, 0
    %s21 = sadd.s32 %s20, 1
    %s22 = scalar_select %p19, %s20, %s21
    %p25 = pneg %p19
    %p26 = scmp.eq.s32.totalorder %s10, 1
    %p27 = por %p25, %p26
    %p28 = scmp.ne.s32.totalorder %s20, %s23
    %p29 = scmp.eq.s32.totalorder %s10, 0
    %p30 = por %p28, %p29
    %p31 = scmp.ne.s32.totalorder %s20, %s23
    %p32 = scmp.eq.s32.totalorder %s15, 1
    %p33 = por %p31, %p32
    %p34 = scmp.ne.s32.totalorder %s23, %s24
    %p35 = scmp.eq.s32.totalorder %s15, 0
    %p36 = por %p34, %p35
    %p37 = scmp.ne.s32.totalorder %s23, %s24
    %p38 = scmp.eq.s32.totalorder %s16, 1
    %p39 = por %p37, %p38
    %p41 = scmp.ne.s32.totalorder %s24, %s40
    %p42 = scmp.eq.s32.totalorder %s16, 0
    %p43 = por %p41, %p42
    %s45 = sadd.s32 %s44, 1
    %p48 = scmp.eq.s32.totalorder %s10, 1
    %p49 = scmp.ne.s32.totalorder %s44, %s46
    %p50 = scmp.eq.s32.totalorder %s10, 0
    %p51 = por %p49, %p50
    %p52 = scmp.ne.s32.totalorder %s44, %s46
    %p53 = scmp.eq.s32.totalorder %s15, 1
    %p54 = por %p52, %p53
    %p55 = scmp.ne.s32.totalorder %s46, %s47
    %p56 = scmp.eq.s32.totalorder %s15, 0
    %p57 = por %p55, %p56
    %p58 = scmp.ne.s32.totalorder %s46, %s47
    %p59 = scmp.eq.s32.totalorder %s16, 1
    %p60 = por %p58, %p59
    %p62 = scmp.ne.s32.totalorder %s47, %s61
    %p63 = scmp.eq.s32.totalorder %s16, 0
    %p64 = por %p62, %p63
    %s66 = sadd.s32 %s65, 1
    %p69 = scmp.eq.s32.totalorder %s10, 1
    %p70 = scmp.ne.s32.totalorder %s65, %s67
    %p71 = scmp.eq.s32.totalorder %s10, 0
    %p72 = por %p70, %p71
    %p73 = scmp.ne.s32.totalorder %s65, %s67
    %p74 = scmp.eq.s32.totalorder %s15, 1
    %p75 = por %p73, %p74
    %p76 = scmp.ne.s32.totalorder %s67, %s68
    %p77 = scmp.eq.s32.totalorder %s15, 0
    %p78 = por %p76, %p77
    %p79 = scmp.ne.s32.totalorder %s67, %s68
    %p80 = scmp.eq.s32.totalorder %s16, 1
    %p81 = por %p79, %p80
    %p83 = scmp.ne.s32.totalorder %s68, %s82
    %p84 = scmp.eq.s32.totalorder %s16, 0
    %p85 = por %p83, %p84
    %s87 = sadd.s32 %s86, 1
    %p90 = scmp.eq.s32.totalorder %s10, 1
    %p91 = scmp.ne.s32.totalorder %s86, %s88
    %p92 = scmp.eq.s32.totalorder %s10, 0
    %p93 = por %p91, %p92
    %p94 = scmp.ne.s32.totalorder %s86, %s88
    %p95 = scmp.eq.s32.totalorder %s15, 1
    %p96 = por %p94, %p95
    %p97 = scmp.ne.s32.totalorder %s88, %s89
    %p98 = scmp.eq.s32.totalorder %s15, 0
    %p99 = por %p97, %p98
    %p100 = scmp.ne.s32.totalorder %s88, %s89
    %p101 = scmp.eq.s32.totalorder %s16, 1
    %p102 = por %p100, %p101
    %p104 = scmp.ne.s32.totalorder %s89, %s103
    %p105 = scmp.eq.s32.totalorder %s16, 0
    %p106 = por %p104, %p105
    %s107 = ssub.s32 %s10, %s17
    %p108 = scmp.eq.s32.totalorder %s107, 0
    %s110 = sadd.s32 %s109, 1
    %s111 = scalar_select %p108, %s109, %s110
    %p114 = pneg %p108
    %p115 = scmp.eq.s32.totalorder %s10, 1
    %p116 = por %p114, %p115
    %p117 = scmp.ne.s32.totalorder %s109, %s112
    %p118 = scmp.eq.s32.totalorder %s10, 0
    %p119 = por %p117, %p118
    %p120 = scmp.ne.s32.totalorder %s109, %s112
    %p121 = scmp.eq.s32.totalorder %s15, 1
    %p122 = por %p120, %p121
    %p123 = scmp.ne.s32.totalorder %s112, %s113
    %p124 = scmp.eq.s32.totalorder %s15, 0
    %p125 = por %p123, %p124
    %p126 = scmp.ne.s32.totalorder %s112, %s113
    %p127 = scmp.eq.s32.totalorder %s16, 1
    %p128 = por %p126, %p127
    %p130 = scmp.ne.s32.totalorder %s113, %s129
    %p131 = scmp.eq.s32.totalorder %s16, 0
    %p132 = por %p130, %p131
    %p133 = scmp.le.s32.totalorder 1, %s10
    %p134 = scmp.lt.s32.totalorder %s10, 3
    %p135 = pnand %p133, %p134
    %p136 = pneg %p135
    // Predicated region
    $region9: #{unet_small_forward.1} parent=5 // pred_check
      _
    $region10: #{unet_small_forward.1} parent=5 // pred_check_branch
      %138 = sbr.rel (%p135) target = $region12
    $region11: #{unet_small_forward.1} parent=5 // pred_region
      %s139 = ssub.s32 %s10, 1
      // Predicated region
      $region13: #{unet_small_forward.1} parent=11 // pred_check
        %p140 = pneg %p57
      $region14: #{unet_small_forward.1} parent=11 // pred_check_branch
        %142 = sbr.rel (%p140) target = $region16
      $region15: #{unet_small_forward.1} parent=11 // pred_region
        _
      $region16: #{unet_small_forward.1} parent=11 // pred_fallthru
        _
      // Predicated region
      $region17: #{unet_small_forward.1} parent=11 // pred_check
        %p143 = pneg %p78
      $region18: #{unet_small_forward.1} parent=11 // pred_check_branch
        %145 = sbr.rel (%p143) target = $region20
      $region19: #{unet_small_forward.1} parent=11 // pred_region
        _
      $region20: #{unet_small_forward.1} parent=11 // pred_fallthru
        _
      // Predicated region
      $region21: #{unet_small_forward.1} parent=11 // pred_check
        %p146 = pneg %p99
      $region22: #{unet_small_forward.1} parent=11 // pred_check_branch
        %148 = sbr.rel (%p146) target = $region24
      $region23: #{unet_small_forward.1} parent=11 // pred_region
        _
      $region24: #{unet_small_forward.1} parent=11 // pred_fallthru
        _
    $region12: #{unet_small_forward.1} parent=5 // pred_fallthru
      _
    %p149 = scmp.lt.s32.totalorder %s10, 2
    // Predicated region
    $region25: #{unet_small_forward.1} parent=5 // pred_check
      %p150 = pneg %p149
    $region26: #{unet_small_forward.1} parent=5 // pred_check_branch
      %152 = sbr.rel (%p150) target = $region28
    $region27: #{unet_small_forward.1} parent=5 // pred_region
      // Predicated region
      $region29: #{unet_small_forward.1} parent=27 // pred_check
        %p153 = pneg %p30
      $region30: #{unet_small_forward.1} parent=27 // pred_check_branch
        %155 = sbr.rel (%p153) target = $region32
      $region31: #{unet_small_forward.1} parent=27 // pred_region
        %p156 = scmp.lt.s32.totalorder %s10, 1
        %s157 = scalar_select %p156, %s10, 1
        %s158 = smul.addr %s157, 8
        %s159 = smul.addr %s158, 8
        %s160 = scalar_lea.vmem %s0, %s159
      $region32: #{unet_small_forward.1} parent=27 // pred_fallthru
        _
    $region28: #{unet_small_forward.1} parent=5 // pred_fallthru
      _
    %p161 = scmp.le.s32.totalorder 1, %s10
    %p162 = scmp.lt.s32.totalorder %s10, 3
    %p163 = pnand %p161, %p162
    %p164 = pneg %p163
    // Predicated region
    $region33: #{unet_small_forward.1} parent=5 // pred_check
      _
    $region34: #{unet_small_forward.1} parent=5 // pred_check_branch
      %166 = sbr.rel (%p163) target = $region36
    $region35: #{unet_small_forward.1} parent=5 // pred_region
      %s167 = ssub.s32 %s10, 1
      %p168 = scmp.lt.s32.totalorder %s15, 1
      %s169 = scalar_select %p168, %s15, 1
      %s170 = smul.addr %s169, 8
      %s171 = smul.addr %s170, 8
      %s172 = scalar_lea.vmem %s0, %s171
      %p173 = pneg %p36
      %p174 = pneg %p33
      %p175 = pneg %p57
      %p176 = pneg %p54
      %p177 = pneg %p78
      %p178 = pneg %p75
      %p179 = pneg %p99
      %p180 = pneg %p96
      %p181 = pneg %p125
      %p182 = pneg %p122
      %p183 = scmp.lt.s32.totalorder %s15, 1
      %s184 = scalar_select %p183, %s15, 1
      %s185 = smul.addr %s184, 8
      %s186 = smul.addr %s185, 8
      %s187 = scalar_lea.vmem %s4, %s186
      %p188 = scmp.lt.s32.totalorder %s15, 1
      %s189 = scalar_select %p188, %s15, 1
      %s190 = smul.addr %s189, 8
      %s191 = smul.addr %s190, 8
      %s192 = scalar_lea.vmem %s0, %s191
      %p193 = scmp.lt.s32.totalorder %s15, 1
      %s194 = scalar_select %p193, %s15, 1
      %s195 = smul.addr %s194, 8
      %s196 = smul.addr %s195, 8
      %s197 = scalar_lea.vmem %s4, %s196
      %v198 = vld [vmem:[%s192] sm:$0xff]
      %v199 = vld [vmem:[%s192 + $0x8] sm:$0xff]
      %v200 = vld [vmem:[%s192 + $0x10] sm:$0xff]
      %v201 = vld [vmem:[%s192 + $0x18] sm:$0xff]
      %v202 = vld [vmem:[%s192 + $0x20] sm:$0xff]
      %v203 = vld [vmem:[%s192 + $0x28] sm:$0xff]
      %v204 = vld [vmem:[%s192 + $0x30] sm:$0xff]
      %v205 = vld [vmem:[%s192 + $0x38] sm:$0xff]
      %206 = vrot.lane.b32.xlu0 %v198, 17
      %v207 = vpop.permute.xlu0 %206
      %208 = vrot.lane.b32.xlu0 %v200, 17
      %v209 = vpop.permute.xlu0 %208
      %210 = vrot.lane.b32.xlu0 %v202, 17
      %v211 = vpop.permute.xlu0 %210
      %212 = vrot.lane.b32.xlu0 %v204, 17
      %v213 = vpop.permute.xlu0 %212
      %214 = vrot.lane.b32.xlu0 %v199, 17
      %v215 = vpop.permute.xlu0 %214
      %216 = vrot.lane.b32.xlu0 %v201, 17
      %v217 = vpop.permute.xlu0 %216
      %218 = vrot.lane.b32.xlu0 %v203, 17
      %v219 = vpop.permute.xlu0 %218
      %220 = vrot.lane.b32.xlu0 %v205, 17
      %v221 = vpop.permute.xlu0 %220
      %v222 = vlaneseq
      %v223 = vand.u32 %v222, 127
      %vm224 = vcmp.lt.s32.totalorder %v223, 17
      %v225 = vsel %vm224, %v207, %v215
      %v226 = vsel %vm224, %v209, %v217
      %v227 = vsel %vm224, %v211, %v219
      %v228 = vsel %vm224, %v213, %v221
      %v229 = vsel %vm224, %v215, %v207
      %v230 = vsel %vm224, %v217, %v209
      %v231 = vsel %vm224, %v219, %v211
      %v232 = vsel %vm224, %v221, %v213
      %v233 = vld [vmem:[%s3] sm:$0xff]
      %v234 = vld [vmem:[%s3 + $0x8] sm:$0xff]
      %v235 = vld [vmem:[%s3 + $0x10] sm:$0xff]
      %v236 = vld [vmem:[%s3 + $0x18] sm:$0xff]
      %v237 = vld [vmem:[%s3 + $0x20] sm:$0xff]
      %v238 = vld [vmem:[%s3 + $0x28] sm:$0xff]
      %v239 = vld [vmem:[%s3 + $0x30] sm:$0xff]
      %v240 = vld [vmem:[%s3 + $0x38] sm:$0xff]
      %v241 = vmul.f32 %v229, %v233
      %v242 = vmul.f32 %v225, %v234
      %v243 = vmul.f32 %v230, %v235
      %v244 = vmul.f32 %v226, %v236
      %v245 = vmul.f32 %v231, %v237
      %v246 = vmul.f32 %v227, %v238
      %v247 = vmul.f32 %v232, %v239
      %v248 = vmul.f32 %v228, %v240
      %249 = vst [vmem:[#allocation2] sm:$0xff] %v241
      %250 = vst [vmem:[#allocation2 + $0x8] sm:$0xff] %v242
      %251 = vst [vmem:[#allocation2 + $0x10] sm:$0xff] %v243
      %252 = vst [vmem:[#allocation2 + $0x18] sm:$0xff] %v244
      %253 = vst [vmem:[#allocation2 + $0x20] sm:$0xff] %v245
      %254 = vst [vmem:[#allocation2 + $0x28] sm:$0xff] %v246
      %255 = vst [vmem:[#allocation2 + $0x30] sm:$0xff] %v247
      %256 = vst [vmem:[#allocation2 + $0x38] sm:$0xff] %v248
      %257 = vrot.lane.b32.xlu0 %v198, 16
      %v258 = vpop.permute.xlu0 %257
      %259 = vrot.lane.b32.xlu0 %v200, 16
      %v260 = vpop.permute.xlu0 %259
      %261 = vrot.lane.b32.xlu0 %v202, 16
      %v262 = vpop.permute.xlu0 %261
      %263 = vrot.lane.b32.xlu0 %v204, 16
      %v264 = vpop.permute.xlu0 %263
      %265 = vrot.lane.b32.xlu0 %v199, 16
      %v266 = vpop.permute.xlu0 %265
      %267 = vrot.lane.b32.xlu0 %v201, 16
      %v268 = vpop.permute.xlu0 %267
      %269 = vrot.lane.b32.xlu0 %v203, 16
      %v270 = vpop.permute.xlu0 %269
      %271 = vrot.lane.b32.xlu0 %v205, 16
      %v272 = vpop.permute.xlu0 %271
      %vm273 = vcmp.lt.s32.totalorder %v223, 16
      %v274 = vsel %vm273, %v258, %v266
      %v275 = vsel %vm273, %v260, %v268
      %v276 = vsel %vm273, %v262, %v270
      %v277 = vsel %vm273, %v264, %v272
      %v278 = vsel %vm273, %v266, %v258
      %v279 = vsel %vm273, %v268, %v260
      %v280 = vsel %vm273, %v270, %v262
      %v281 = vsel %vm273, %v272, %v264
      %s282 = scalar_lea.vmem %s3, 64
      %v283 = vld [vmem:[%s282] sm:$0xff]
      %v284 = vld [vmem:[%s282 + $0x8] sm:$0xff]
      %v285 = vld [vmem:[%s282 + $0x10] sm:$0xff]
      %v286 = vld [vmem:[%s282 + $0x18] sm:$0xff]
      %v287 = vld [vmem:[%s282 + $0x20] sm:$0xff]
      %v288 = vld [vmem:[%s282 + $0x28] sm:$0xff]
      %v289 = vld [vmem:[%s282 + $0x30] sm:$0xff]
      %v290 = vld [vmem:[%s282 + $0x38] sm:$0xff]
      %v291 = vmul.f32 %v278, %v283
      %v292 = vmul.f32 %v274, %v284
      %v293 = vmul.f32 %v279, %v285
      %v294 = vmul.f32 %v275, %v286
      %v295 = vmul.f32 %v280, %v287
      %v296 = vmul.f32 %v276, %v288
      %v297 = vmul.f32 %v281, %v289
      %v298 = vmul.f32 %v277, %v290
      %299 = vst [vmem:[#allocation2 + $0x40] sm:$0xff] %v291
      %300 = vst [vmem:[#allocation2 + $0x48] sm:$0xff] %v292
      %301 = vst [vmem:[#allocation2 + $0x50] sm:$0xff] %v293
      %302 = vst [vmem:[#allocation2 + $0x58] sm:$0xff] %v294
      %303 = vst [vmem:[#allocation2 + $0x60] sm:$0xff] %v295
      %304 = vst [vmem:[#allocation2 + $0x68] sm:$0xff] %v296
      %305 = vst [vmem:[#allocation2 + $0x70] sm:$0xff] %v297
      %306 = vst [vmem:[#allocation2 + $0x78] sm:$0xff] %v298
      %307 = vrot.lane.b32.xlu0 %v198, 15
      %v308 = vpop.permute.xlu0 %307
      %309 = vrot.lane.b32.xlu0 %v200, 15
      %v310 = vpop.permute.xlu0 %309
      %311 = vrot.lane.b32.xlu0 %v202, 15
      %v312 = vpop.permute.xlu0 %311
      %313 = vrot.lane.b32.xlu0 %v204, 15
      %v314 = vpop.permute.xlu0 %313
      %315 = vrot.lane.b32.xlu0 %v199, 15
      %v316 = vpop.permute.xlu0 %315
      %317 = vrot.lane.b32.xlu0 %v201, 15
      %v318 = vpop.permute.xlu0 %317
      %319 = vrot.lane.b32.xlu0 %v203, 15
      %v320 = vpop.permute.xlu0 %319
      %321 = vrot.lane.b32.xlu0 %v205, 15
      %v322 = vpop.permute.xlu0 %321
      %vm323 = vcmp.lt.s32.totalorder %v223, 15
      %v324 = vsel %vm323, %v308, %v316
      %v325 = vsel %vm323, %v310, %v318
      %v326 = vsel %vm323, %v312, %v320
      %v327 = vsel %vm323, %v314, %v322
      %v328 = vsel %vm323, %v316, %v308
      %v329 = vsel %vm323, %v318, %v310
      %v330 = vsel %vm323, %v320, %v312
      %v331 = vsel %vm323, %v322, %v314
      %s332 = scalar_lea.vmem %s3, 128
      %v333 = vld [vmem:[%s332] sm:$0xff]
      %v334 = vld [vmem:[%s332 + $0x8] sm:$0xff]
      %v335 = vld [vmem:[%s332 + $0x10] sm:$0xff]
      %v336 = vld [vmem:[%s332 + $0x18] sm:$0xff]
      %v337 = vld [vmem:[%s332 + $0x20] sm:$0xff]
      %v338 = vld [vmem:[%s332 + $0x28] sm:$0xff]
      %v339 = vld [vmem:[%s332 + $0x30] sm:$0xff]
      %v340 = vld [vmem:[%s332 + $0x38] sm:$0xff]
      %v341 = vmul.f32 %v328, %v333
      %v342 = vmul.f32 %v324, %v334
      %v343 = vmul.f32 %v329, %v335
      %v344 = vmul.f32 %v325, %v336
      %v345 = vmul.f32 %v330, %v337
      %v346 = vmul.f32 %v326, %v338
      %v347 = vmul.f32 %v331, %v339
      %v348 = vmul.f32 %v327, %v340
      %349 = vst [vmem:[#allocation2 + $0x80] sm:$0xff] %v341
      %350 = vst [vmem:[#allocation2 + $0x88] sm:$0xff] %v342
      %351 = vst [vmem:[#allocation2 + $0x90] sm:$0xff] %v343
      %352 = vst [vmem:[#allocation2 + $0x98] sm:$0xff] %v344
      %353 = vst [vmem:[#allocation2 + $0xa0] sm:$0xff] %v345
      %354 = vst [vmem:[#allocation2 + $0xa8] sm:$0xff] %v346
      %355 = vst [vmem:[#allocation2 + $0xb0] sm:$0xff] %v347
      %356 = vst [vmem:[#allocation2 + $0xb8] sm:$0xff] %v348
      %357 = vrot.lane.b32.xlu0 %v198, 1
      %v358 = vpop.permute.xlu0 %357
      %359 = vrot.lane.b32.xlu0 %v200, 1
      %v360 = vpop.permute.xlu0 %359
      %361 = vrot.lane.b32.xlu0 %v202, 1
      %v362 = vpop.permute.xlu0 %361
      %363 = vrot.lane.b32.xlu0 %v204, 1
      %v364 = vpop.permute.xlu0 %363
      %365 = vrot.lane.b32.xlu0 %v199, 1
      %v366 = vpop.permute.xlu0 %365
      %367 = vrot.lane.b32.xlu0 %v201, 1
      %v368 = vpop.permute.xlu0 %367
      %369 = vrot.lane.b32.xlu0 %v203, 1
      %v370 = vpop.permute.xlu0 %369
      %371 = vrot.lane.b32.xlu0 %v205, 1
      %v372 = vpop.permute.xlu0 %371
      %vm373 = vcmp.lt.s32.totalorder %v223, 1
      %v374 = vsel %vm373, %v358, %v366
      %v375 = vsel %vm373, %v360, %v368
      %v376 = vsel %vm373, %v362, %v370
      %v377 = vsel %vm373, %v364, %v372
      %v378 = vsel %vm373, %v366, %v358
      %v379 = vsel %vm373, %v368, %v360
      %v380 = vsel %vm373, %v370, %v362
      %v381 = vsel %vm373, %v372, %v364
      %s382 = scalar_lea.vmem %s3, 192
      %v383 = vld [vmem:[%s382] sm:$0xff]
      %v384 = vld [vmem:[%s382 + $0x8] sm:$0xff]
      %v385 = vld [vmem:[%s382 + $0x10] sm:$0xff]
      %v386 = vld [vmem:[%s382 + $0x18] sm:$0xff]
      %v387 = vld [vmem:[%s382 + $0x20] sm:$0xff]
      %v388 = vld [vmem:[%s382 + $0x28] sm:$0xff]
      %v389 = vld [vmem:[%s382 + $0x30] sm:$0xff]
      %v390 = vld [vmem:[%s382 + $0x38] sm:$0xff]
      %v391 = vmul.f32 %v378, %v383
      %v392 = vmul.f32 %v374, %v384
      %v393 = vmul.f32 %v379, %v385
      %v394 = vmul.f32 %v375, %v386
      %v395 = vmul.f32 %v380, %v387
      %v396 = vmul.f32 %v376, %v388
      %v397 = vmul.f32 %v381, %v389
      %v398 = vmul.f32 %v377, %v390
      %399 = vst [vmem:[#allocation2 + $0xc0] sm:$0xff] %v391
      %400 = vst [vmem:[#allocation2 + $0xc8] sm:$0xff] %v392
      %401 = vst [vmem:[#allocation2 + $0xd0] sm:$0xff] %v393
      %402 = vst [vmem:[#allocation2 + $0xd8] sm:$0xff] %v394
      %403 = vst [vmem:[#allocation2 + $0xe0] sm:$0xff] %v395
      %404 = vst [vmem:[#allocation2 + $0xe8] sm:$0xff] %v396
      %405 = vst [vmem:[#allocation2 + $0xf0] sm:$0xff] %v397
      %406 = vst [vmem:[#allocation2 + $0xf8] sm:$0xff] %v398
      %407 = vst [vmem:[#allocation2 + $0x100] sm:$0xff] %v198
      %408 = vst [vmem:[#allocation2 + $0x108] sm:$0xff] %v199
      %409 = vst [vmem:[#allocation2 + $0x110] sm:$0xff] %v200
      %410 = vst [vmem:[#allocation2 + $0x118] sm:$0xff] %v201
      %411 = vst [vmem:[#allocation2 + $0x120] sm:$0xff] %v202
      %412 = vst [vmem:[#allocation2 + $0x128] sm:$0xff] %v203
      %413 = vst [vmem:[#allocation2 + $0x130] sm:$0xff] %v204
      %414 = vst [vmem:[#allocation2 + $0x138] sm:$0xff] %v205
      %415 = vrot.lane.b32.xlu0 %v198, 127
      %v416 = vpop.permute.xlu0 %415
      %417 = vrot.lane.b32.xlu0 %v200, 127
      %v418 = vpop.permute.xlu0 %417
      %419 = vrot.lane.b32.xlu0 %v202, 127
      %v420 = vpop.permute.xlu0 %419
      %421 = vrot.lane.b32.xlu0 %v204, 127
      %v422 = vpop.permute.xlu0 %421
      %423 = vrot.lane.b32.xlu0 %v199, 127
      %v424 = vpop.permute.xlu0 %423
      %425 = vrot.lane.b32.xlu0 %v201, 127
      %v426 = vpop.permute.xlu0 %425
      %427 = vrot.lane.b32.xlu0 %v203, 127
      %v428 = vpop.permute.xlu0 %427
      %429 = vrot.lane.b32.xlu0 %v205, 127
      %v430 = vpop.permute.xlu0 %429
      %vm431 = vcmp.lt.s32.totalorder %v223, 127
      %v432 = vsel %vm431, %v416, %v424
      %v433 = vsel %vm431, %v418, %v426
      %v434 = vsel %vm431, %v420, %v428
      %v435 = vsel %vm431, %v422, %v430
      %v436 = vsel %vm431, %v424, %v416
      %v437 = vsel %vm431, %v426, %v418
      %v438 = vsel %vm431, %v428, %v420
      %v439 = vsel %vm431, %v430, %v422
      %s440 = scalar_lea.vmem %s3, 320
      %v441 = vld [vmem:[%s440] sm:$0xff]
      %v442 = vld [vmem:[%s440 + $0x8] sm:$0xff]
      %v443 = vld [vmem:[%s440 + $0x10] sm:$0xff]
      %v444 = vld [vmem:[%s440 + $0x18] sm:$0xff]
      %v445 = vld [vmem:[%s440 + $0x20] sm:$0xff]
      %v446 = vld [vmem:[%s440 + $0x28] sm:$0xff]
      %v447 = vld [vmem:[%s440 + $0x30] sm:$0xff]
      %v448 = vld [vmem:[%s440 + $0x38] sm:$0xff]
      %v449 = vmul.f32 %v432, %v441
      %v450 = vmul.f32 %v436, %v442
      %v451 = vmul.f32 %v433, %v443
      %v452 = vmul.f32 %v437, %v444
      %v453 = vmul.f32 %v434, %v445
      %v454 = vmul.f32 %v438, %v446
      %v455 = vmul.f32 %v435, %v447
      %v456 = vmul.f32 %v439, %v448
      %457 = vst [vmem:[#allocation2 + $0x140] sm:$0xff] %v449
      %458 = vst [vmem:[#allocation2 + $0x148] sm:$0xff] %v450
      %459 = vst [vmem:[#allocation2 + $0x150] sm:$0xff] %v451
      %460 = vst [vmem:[#allocation2 + $0x158] sm:$0xff] %v452
      %461 = vst [vmem:[#allocation2 + $0x160] sm:$0xff] %v453
      %462 = vst [vmem:[#allocation2 + $0x168] sm:$0xff] %v454
      %463 = vst [vmem:[#allocation2 + $0x170] sm:$0xff] %v455
      %464 = vst [vmem:[#allocation2 + $0x178] sm:$0xff] %v456
      %465 = vrot.lane.b32.xlu0 %v198, 113
      %v466 = vpop.permute.xlu0 %465
      %467 = vrot.lane.b32.xlu0 %v200, 113
      %v468 = vpop.permute.xlu0 %467
      %469 = vrot.lane.b32.xlu0 %v202, 113
      %v470 = vpop.permute.xlu0 %469
      %471 = vrot.lane.b32.xlu0 %v204, 113
      %v472 = vpop.permute.xlu0 %471
      %473 = vrot.lane.b32.xlu0 %v199, 113
      %v474 = vpop.permute.xlu0 %473
      %475 = vrot.lane.b32.xlu0 %v201, 113
      %v476 = vpop.permute.xlu0 %475
      %477 = vrot.lane.b32.xlu0 %v203, 113
      %v478 = vpop.permute.xlu0 %477
      %479 = vrot.lane.b32.xlu0 %v205, 113
      %v480 = vpop.permute.xlu0 %479
      %vm481 = vcmp.lt.s32.totalorder %v223, 113
      %v482 = vsel %vm481, %v466, %v474
      %v483 = vsel %vm481, %v468, %v476
      %v484 = vsel %vm481, %v470, %v478
      %v485 = vsel %vm481, %v472, %v480
      %v486 = vsel %vm481, %v474, %v466
      %v487 = vsel %vm481, %v476, %v468
      %v488 = vsel %vm481, %v478, %v470
      %v489 = vsel %vm481, %v480, %v472
      %s490 = scalar_lea.vmem %s3, 384
      %v491 = vld [vmem:[%s490] sm:$0xff]
      %v492 = vld [vmem:[%s490 + $0x8] sm:$0xff]
      %v493 = vld [vmem:[%s490 + $0x10] sm:$0xff]
      %v494 = vld [vmem:[%s490 + $0x18] sm:$0xff]
      %v495 = vld [vmem:[%s490 + $0x20] sm:$0xff]
      %v496 = vld [vmem:[%s490 + $0x28] sm:$0xff]
      %v497 = vld [vmem:[%s490 + $0x30] sm:$0xff]
      %v498 = vld [vmem:[%s490 + $0x38] sm:$0xff]
      %v499 = vmul.f32 %v482, %v491
      %v500 = vmul.f32 %v486, %v492
      %v501 = vmul.f32 %v483, %v493
      %v502 = vmul.f32 %v487, %v494
      %v503 = vmul.f32 %v484, %v495
      %v504 = vmul.f32 %v488, %v496
      %v505 = vmul.f32 %v485, %v497
      %v506 = vmul.f32 %v489, %v498
      %507 = vst [vmem:[#allocation2 + $0x180] sm:$0xff] %v499
      %508 = vst [vmem:[#allocation2 + $0x188] sm:$0xff] %v500
      %509 = vst [vmem:[#allocation2 + $0x190] sm:$0xff] %v501
      %510 = vst [vmem:[#allocation2 + $0x198] sm:$0xff] %v502
      %511 = vst [vmem:[#allocation2 + $0x1a0] sm:$0xff] %v503
      %512 = vst [vmem:[#allocation2 + $0x1a8] sm:$0xff] %v504
      %513 = vst [vmem:[#allocation2 + $0x1b0] sm:$0xff] %v505
      %514 = vst [vmem:[#allocation2 + $0x1b8] sm:$0xff] %v506
      %515 = vrot.lane.b32.xlu0 %v198, 112
      %v516 = vpop.permute.xlu0 %515
      %517 = vrot.lane.b32.xlu0 %v200, 112
      %v518 = vpop.permute.xlu0 %517
      %519 = vrot.lane.b32.xlu0 %v202, 112
      %v520 = vpop.permute.xlu0 %519
      %521 = vrot.lane.b32.xlu0 %v204, 112
      %v522 = vpop.permute.xlu0 %521
      %523 = vrot.lane.b32.xlu0 %v199, 112
      %v524 = vpop.permute.xlu0 %523
      %525 = vrot.lane.b32.xlu0 %v201, 112
      %v526 = vpop.permute.xlu0 %525
      %527 = vrot.lane.b32.xlu0 %v203, 112
      %v528 = vpop.permute.xlu0 %527
      %529 = vrot.lane.b32.xlu0 %v205, 112
      %v530 = vpop.permute.xlu0 %529
      %vm531 = vcmp.lt.s32.totalorder %v223, 112
      %v532 = vsel %vm531, %v516, %v524
      %v533 = vsel %vm531, %v518, %v526
      %v534 = vsel %vm531, %v520, %v528
      %v535 = vsel %vm531, %v522, %v530
      %v536 = vsel %vm531, %v524, %v516
      %v537 = vsel %vm531, %v526, %v518
      %v538 = vsel %vm531, %v528, %v520
      %v539 = vsel %vm531, %v530, %v522
      %s540 = scalar_lea.vmem %s3, 448
      %v541 = vld [vmem:[%s540] sm:$0xff]
      %v542 = vld [vmem:[%s540 + $0x8] sm:$0xff]
      %v543 = vld [vmem:[%s540 + $0x10] sm:$0xff]
      %v544 = vld [vmem:[%s540 + $0x18] sm:$0xff]
      %v545 = vld [vmem:[%s540 + $0x20] sm:$0xff]
      %v546 = vld [vmem:[%s540 + $0x28] sm:$0xff]
      %v547 = vld [vmem:[%s540 + $0x30] sm:$0xff]
      %v548 = vld [vmem:[%s540 + $0x38] sm:$0xff]
      %v549 = vmul.f32 %v532, %v541
      %v550 = vmul.f32 %v536, %v542
      %v551 = vmul.f32 %v533, %v543
      %v552 = vmul.f32 %v537, %v544
      %v553 = vmul.f32 %v534, %v545
      %v554 = vmul.f32 %v538, %v546
      %v555 = vmul.f32 %v535, %v547
      %v556 = vmul.f32 %v539, %v548
      %557 = vst [vmem:[#allocation2 + $0x1c0] sm:$0xff] %v549
      %558 = vst [vmem:[#allocation2 + $0x1c8] sm:$0xff] %v550
      %559 = vst [vmem:[#allocation2 + $0x1d0] sm:$0xff] %v551
      %560 = vst [vmem:[#allocation2 + $0x1d8] sm:$0xff] %v552
      %561 = vst [vmem:[#allocation2 + $0x1e0] sm:$0xff] %v553
      %562 = vst [vmem:[#allocation2 + $0x1e8] sm:$0xff] %v554
      %563 = vst [vmem:[#allocation2 + $0x1f0] sm:$0xff] %v555
      %564 = vst [vmem:[#allocation2 + $0x1f8] sm:$0xff] %v556
      %565 = vrot.lane.b32.xlu0 %v198, 111
      %v566 = vpop.permute.xlu0 %565
      %567 = vrot.lane.b32.xlu0 %v200, 111
      %v568 = vpop.permute.xlu0 %567
      %569 = vrot.lane.b32.xlu0 %v202, 111
      %v570 = vpop.permute.xlu0 %569
      %571 = vrot.lane.b32.xlu0 %v204, 111
      %v572 = vpop.permute.xlu0 %571
      %573 = vrot.lane.b32.xlu0 %v199, 111
      %v574 = vpop.permute.xlu0 %573
      %575 = vrot.lane.b32.xlu0 %v201, 111
      %v576 = vpop.permute.xlu0 %575
      %577 = vrot.lane.b32.xlu0 %v203, 111
      %v578 = vpop.permute.xlu0 %577
      %579 = vrot.lane.b32.xlu0 %v205, 111
      %v580 = vpop.permute.xlu0 %579
      %vm581 = vcmp.lt.s32.totalorder %v223, 111
      %v582 = vsel %vm581, %v566, %v574
      %v583 = vsel %vm581, %v568, %v576
      %v584 = vsel %vm581, %v570, %v578
      %v585 = vsel %vm581, %v572, %v580
      %v586 = vsel %vm581, %v574, %v566
      %v587 = vsel %vm581, %v576, %v568
      %v588 = vsel %vm581, %v578, %v570
      %v589 = vsel %vm581, %v580, %v572
      %s590 = scalar_lea.vmem %s3, 512
      %v591 = vld [vmem:[%s590] sm:$0xff]
      %v592 = vld [vmem:[%s590 + $0x8] sm:$0xff]
      %v593 = vld [vmem:[%s590 + $0x10] sm:$0xff]
      %v594 = vld [vmem:[%s590 + $0x18] sm:$0xff]
      %v595 = vld [vmem:[%s590 + $0x20] sm:$0xff]
      %v596 = vld [vmem:[%s590 + $0x28] sm:$0xff]
      %v597 = vld [vmem:[%s590 + $0x30] sm:$0xff]
      %v598 = vld [vmem:[%s590 + $0x38] sm:$0xff]
      %v599 = vmul.f32 %v582, %v591
      %v600 = vmul.f32 %v586, %v592
      %v601 = vmul.f32 %v583, %v593
      %v602 = vmul.f32 %v587, %v594
      %v603 = vmul.f32 %v584, %v595
      %v604 = vmul.f32 %v588, %v596
      %v605 = vmul.f32 %v585, %v597
      %v606 = vmul.f32 %v589, %v598
      %607 = vst [vmem:[#allocation2 + $0x200] sm:$0xff] %v599
      %608 = vst [vmem:[#allocation2 + $0x208] sm:$0xff] %v600
      %609 = vst [vmem:[#allocation2 + $0x210] sm:$0xff] %v601
      %610 = vst [vmem:[#allocation2 + $0x218] sm:$0xff] %v602
      %611 = vst [vmem:[#allocation2 + $0x220] sm:$0xff] %v603
      %612 = vst [vmem:[#allocation2 + $0x228] sm:$0xff] %v604
      %613 = vst [vmem:[#allocation2 + $0x230] sm:$0xff] %v605
      %614 = vst [vmem:[#allocation2 + $0x238] sm:$0xff] %v606
      %v615 = vld [vmem:[%s1] sm:$0xff]
      %v616 = vld [vmem:[%s1 + $0x8] sm:$0xff]
      %v617 = vld [vmem:[%s1 + $0x10] sm:$0xff]
      %v618 = vld [vmem:[%s1 + $0x18] sm:$0xff]
      %v619 = vld [vmem:[%s1 + $0x20] sm:$0xff]
      %v620 = vld [vmem:[%s1 + $0x28] sm:$0xff]
      %v621 = vld [vmem:[%s1 + $0x30] sm:$0xff]
      %v622 = vld [vmem:[%s1 + $0x38] sm:$0xff]
      %v623 = vld [vmem:[%s1 + $0x40] sm:$0xff]
      %v624 = vld [vmem:[%s1 + $0x48] sm:$0xff]
      %v625 = vld [vmem:[%s1 + $0x50] sm:$0xff]
      %v626 = vld [vmem:[%s1 + $0x58] sm:$0xff]
      %v627 = vld [vmem:[#allocation2] sm:$0xff]
      %v628 = vld [vmem:[#allocation2 + $0x8] sm:$0xff]
      %v629 = vld [vmem:[#allocation2 + $0x10] sm:$0xff]
      %v630 = vld [vmem:[#allocation2 + $0x18] sm:$0xff]
      %v631 = vld [vmem:[#allocation2 + $0x20] sm:$0xff]
      %v632 = vld [vmem:[#allocation2 + $0x28] sm:$0xff]
      %v633 = vld [vmem:[#allocation2 + $0x30] sm:$0xff]
      %v634 = vld [vmem:[#allocation2 + $0x38] sm:$0xff]
      %v635 = vld [vmem:[#allocation2 + $0x40] sm:$0xff]
      %v636 = vld [vmem:[#allocation2 + $0x48] sm:$0xff]
      %v637 = vld [vmem:[#allocation2 + $0x50] sm:$0xff]
      %v638 = vld [vmem:[#allocation2 + $0x58] sm:$0xff]
      %v639 = vld [vmem:[#allocation2 + $0x60] sm:$0xff]
      %v640 = vld [vmem:[#allocation2 + $0x68] sm:$0xff]
      %v641 = vld [vmem:[#allocation2 + $0x70] sm:$0xff]
      %v642 = vld [vmem:[#allocation2 + $0x78] sm:$0xff]
      %v643 = vld [vmem:[#allocation2 + $0x80] sm:$0xff]
      %v644 = vld [vmem:[#allocation2 + $0x88] sm:$0xff]
      %v645 = vld [vmem:[#allocation2 + $0x90] sm:$0xff]
      %v646 = vld [vmem:[#allocation2 + $0x98] sm:$0xff]
      %v647 = vld [vmem:[#allocation2 + $0xa0] sm:$0xff]
      %v648 = vld [vmem:[#allocation2 + $0xa8] sm:$0xff]
      %v649 = vld [vmem:[#allocation2 + $0xb0] sm:$0xff]
      %v650 = vld [vmem:[#allocation2 + $0xb8] sm:$0xff]
      %v651 = vld [vmem:[#allocation2 + $0xc0] sm:$0xff]
      %v652 = vld [vmem:[#allocation2 + $0xc8] sm:$0xff]
      %v653 = vld [vmem:[#allocation2 + $0xd0] sm:$0xff]
      %v654 = vld [vmem:[#allocation2 + $0xd8] sm:$0xff]
      %v655 = vld [vmem:[#allocation2 + $0xe0] sm:$0xff]
      %v656 = vld [vmem:[#allocation2 + $0xe8] sm:$0xff]
      %v657 = vld [vmem:[#allocation2 + $0xf0] sm:$0xff]
      %v658 = vld [vmem:[#allocation2 + $0xf8] sm:$0xff]
      %v659 = vld [vmem:[#allocation2 + $0x100] sm:$0xff]
      %v660 = vld [vmem:[#allocation2 + $0x108] sm:$0xff]
      %v661 = vld [vmem:[#allocation2 + $0x110] sm:$0xff]
      %v662 = vld [vmem:[#allocation2 + $0x118] sm:$0xff]
      %v663 = vld [vmem:[#allocation2 + $0x120] sm:$0xff]
      %v664 = vld [vmem:[#allocation2 + $0x128] sm:$0xff]
      %v665 = vld [vmem:[#allocation2 + $0x130] sm:$0xff]
      %v666 = vld [vmem:[#allocation2 + $0x138] sm:$0xff]
      %v667 = vld [vmem:[#allocation2 + $0x140] sm:$0xff]
      %v668 = vld [vmem:[#allocation2 + $0x148] sm:$0xff]
      %v669 = vld [vmem:[#allocation2 + $0x150] sm:$0xff]
      %v670 = vld [vmem:[#allocation2 + $0x158] sm:$0xff]
      %v671 = vld [vmem:[#allocation2 + $0x160] sm:$0xff]
      %v672 = vld [vmem:[#allocation2 + $0x168] sm:$0xff]
      %v673 = vld [vmem:[#allocation2 + $0x170] sm:$0xff]
      %v674 = vld [vmem:[#allocation2 + $0x178] sm:$0xff]
      %v675 = vld [vmem:[#allocation2 + $0x180] sm:$0xff]
      %v676 = vld [vmem:[#allocation2 + $0x188] sm:$0xff]
      %v677 = vld [vmem:[#allocation2 + $0x190] sm:$0xff]
      %v678 = vld [vmem:[#allocation2 + $0x198] sm:$0xff]
      %v679 = vld [vmem:[#allocation2 + $0x1a0] sm:$0xff]
      %v680 = vld [vmem:[#allocation2 + $0x1a8] sm:$0xff]
      %v681 = vld [vmem:[#allocation2 + $0x1b0] sm:$0xff]
      %v682 = vld [vmem:[#allocation2 + $0x1b8] sm:$0xff]
      %v683 = vld [vmem:[#allocation2 + $0x1c0] sm:$0xff]
      %v684 = vld [vmem:[#allocation2 + $0x1c8] sm:$0xff]
      %v685 = vld [vmem:[#allocation2 + $0x1d0] sm:$0xff]
      %v686 = vld [vmem:[#allocation2 + $0x1d8] sm:$0xff]
      %v687 = vld [vmem:[#allocation2 + $0x1e0] sm:$0xff]
      %v688 = vld [vmem:[#allocation2 + $0x1e8] sm:$0xff]
      %v689 = vld [vmem:[#allocation2 + $0x1f0] sm:$0xff]
      %v690 = vld [vmem:[#allocation2 + $0x1f8] sm:$0xff]
      %v691 = vld [vmem:[#allocation2 + $0x200] sm:$0xff]
      %v692 = vld [vmem:[#allocation2 + $0x208] sm:$0xff]
      %v693 = vld [vmem:[#allocation2 + $0x210] sm:$0xff]
      %v694 = vld [vmem:[#allocation2 + $0x218] sm:$0xff]
      %v695 = vld [vmem:[#allocation2 + $0x220] sm:$0xff]
      %v696 = vld [vmem:[#allocation2 + $0x228] sm:$0xff]
      %v697 = vld [vmem:[#allocation2 + $0x230] sm:$0xff]
      %v698 = vld [vmem:[#allocation2 + $0x238] sm:$0xff]
      %v699 = vld [vmem:[%s2] sm:$0xff]
      %v700 = vld [vmem:[%s2 + $0x8] sm:$0xff]
      %v701 = vld [vmem:[%s2 + $0x10] sm:$0xff]
      %v702 = vld [vmem:[%s2 + $0x18] sm:$0xff]
      %704 = vset.pattern.permute.xlu0 0
      %705 = vperm.xlu0 %704, %v699
      %v706 = vpop.permute.xlu0 %705
      %709 = vset.pattern.permute.xlu0 0
      %710 = vperm.xlu0 %709, %v700
      %v711 = vpop.permute.xlu0 %710
      %714 = vset.pattern.permute.xlu0 0
      %715 = vperm.xlu0 %714, %v701
      %v716 = vpop.permute.xlu0 %715
      %719 = vset.pattern.permute.xlu0 0
      %720 = vperm.xlu0 %719, %v702
      %v721 = vpop.permute.xlu0 %720
      %vm723 = vcmask 261120
      %v725 = vsel %vm723, %v617, 0
      %v728 = vsel %vm723, %v620, 0
      %v731 = vsel %vm723, %v623, 0
      %v734 = vsel %vm723, %v626, 0
      %736 = vmatpush.msra.mxu0 %v657
      %737 = vmatpush.msra.mxu0 %v655
      %738 = vmatpush.msra.mxu0 %v653
      %739 = vmatpush.msra.mxu0 %v651
      %740 = vmatpush.msra.mxu0 %v649
      %741 = vmatpush.msra.mxu0 %v647
      %742 = vmatpush.msra.mxu0 %v645
      %743 = vmatpush.msra.mxu0 %v643
      %744 = vmatpush.msra.mxu0 %v641
      %745 = vmatpush.msra.mxu0 %v639
      %746 = vmatpush.msra.mxu0 %v637
      %747 = vmatpush.msra.mxu0 %v635
      %748 = vmatpush.msra.mxu0 %v633
      %749 = vmatpush.msra.mxu0 %v631
      %750 = vmatpush.msra.mxu0 %v629
      %751 = vmatpush.msra.mxu0 %v627
      %752 = vmatmul.f32.gmra.mxu0 %v615
      %v753 = vpop.f32.mrf.mxu0
      %v754 = vadd.f32 %v706, %v753
      %755 = vmatmul.f32.gmra.mxu0 %v618
      %v756 = vpop.f32.mrf.mxu0
      %v757 = vadd.f32 %v711, %v756
      %758 = vmatmul.f32.gmra.mxu0 %v621
      %v759 = vpop.f32.mrf.mxu0
      %v760 = vadd.f32 %v716, %v759
      %761 = vmatmul.f32.gmra.mxu0 %v624
      %v762 = vpop.f32.mrf.mxu0
      %v763 = vadd.f32 %v721, %v762
      %764 = vdwg.mxu0
      %765 = vmatpush.msra.mxu0 %v689
      %766 = vmatpush.msra.mxu0 %v687
      %767 = vmatpush.msra.mxu0 %v685
      %768 = vmatpush.msra.mxu0 %v683
      %769 = vmatpush.msra.mxu0 %v681
      %770 = vmatpush.msra.mxu0 %v679
      %771 = vmatpush.msra.mxu0 %v677
      %772 = vmatpush.msra.mxu0 %v675
      %773 = vmatpush.msra.mxu0 %v673
      %774 = vmatpush.msra.mxu0 %v671
      %775 = vmatpush.msra.mxu0 %v669
      %776 = vmatpush.msra.mxu0 %v667
      %777 = vmatpush.msra.mxu0 %v665
      %778 = vmatpush.msra.mxu0 %v663
      %779 = vmatpush.msra.mxu0 %v661
      %780 = vmatpush.msra.mxu0 %v659
      %781 = vmatmul.f32.gmra.mxu0 %v616
      %v782 = vpop.f32.mrf.mxu0
      %v783 = vadd.f32 %v754, %v782
      %784 = vmatmul.f32.gmra.mxu0 %v619
      %v785 = vpop.f32.mrf.mxu0
      %v786 = vadd.f32 %v757, %v785
      %787 = vmatmul.f32.gmra.mxu0 %v622
      %v788 = vpop.f32.mrf.mxu0
      %v789 = vadd.f32 %v760, %v788
      %790 = vmatmul.f32.gmra.mxu0 %v625
      %v791 = vpop.f32.mrf.mxu0
      %v792 = vadd.f32 %v763, %v791
      %793 = vdwg.mxu0
      %794 = vmatpush.msra.mxu0 0.0
      %795 = vmatpush.msra.mxu0 0.0
      %796 = vmatpush.msra.mxu0 0.0
      %797 = vmatpush.msra.mxu0 0.0
      %798 = vmatpush.msra.mxu0 0.0
      %799 = vmatpush.msra.mxu0 0.0
      %800 = vmatpush.msra.mxu0 0.0
      %801 = vmatpush.msra.mxu0 0.0
      %802 = vmatpush.msra.mxu0 0.0
      %803 = vmatpush.msra.mxu0 0.0
      %804 = vmatpush.msra.mxu0 0.0
      %805 = vmatpush.msra.mxu0 0.0
      %806 = vmatpush.msra.mxu0 %v697
      %807 = vmatpush.msra.mxu0 %v695
      %808 = vmatpush.msra.mxu0 %v693
      %809 = vmatpush.msra.mxu0 %v691
      %810 = vmatmul.f32.gmra.mxu0 %v725
      %v811 = vpop.f32.mrf.mxu0
      %v812 = vadd.f32 %v783, %v811
      %813 = vmatmul.f32.gmra.mxu0 %v728
      %v814 = vpop.f32.mrf.mxu0
      %v815 = vadd.f32 %v786, %v814
      %816 = vmatmul.f32.gmra.mxu0 %v731
      %v817 = vpop.f32.mrf.mxu0
      %v818 = vadd.f32 %v789, %v817
      %819 = vmatmul.f32.gmra.mxu0 %v734
      %v820 = vpop.f32.mrf.mxu0
      %v821 = vadd.f32 %v792, %v820
      %822 = vdwg.mxu0
      %823 = vmatpush.msra.mxu0 %v658
      %824 = vmatpush.msra.mxu0 %v656
      %825 = vmatpush.msra.mxu0 %v654
      %826 = vmatpush.msra.mxu0 %v652
      %827 = vmatpush.msra.mxu0 %v650
      %828 = vmatpush.msra.mxu0 %v648
      %829 = vmatpush.msra.mxu0 %v646
      %830 = vmatpush.msra.mxu0 %v644
      %831 = vmatpush.msra.mxu0 %v642
      %832 = vmatpush.msra.mxu0 %v640
      %833 = vmatpush.msra.mxu0 %v638
      %834 = vmatpush.msra.mxu0 %v636
      %835 = vmatpush.msra.mxu0 %v634
      %836 = vmatpush.msra.mxu0 %v632
      %837 = vmatpush.msra.mxu0 %v630
      %838 = vmatpush.msra.mxu0 %v628
      %839 = vmatmul.f32.gmra.mxu0 %v615
      %v840 = vpop.f32.mrf.mxu0
      %v841 = vadd.f32 %v706, %v840
      %842 = vmatmul.f32.gmra.mxu0 %v618
      %v843 = vpop.f32.mrf.mxu0
      %v844 = vadd.f32 %v711, %v843
      %845 = vmatmul.f32.gmra.mxu0 %v621
      %v846 = vpop.f32.mrf.mxu0
      %v847 = vadd.f32 %v716, %v846
      %848 = vmatmul.f32.gmra.mxu0 %v624
      %v849 = vpop.f32.mrf.mxu0
      %v850 = vadd.f32 %v721, %v849
      %851 = vdwg.mxu0
      %852 = vmatpush.msra.mxu0 %v690
      %853 = vmatpush.msra.mxu0 %v688
      %854 = vmatpush.msra.mxu0 %v686
      %855 = vmatpush.msra.mxu0 %v684
      %856 = vmatpush.msra.mxu0 %v682
      %857 = vmatpush.msra.mxu0 %v680
      %858 = vmatpush.msra.mxu0 %v678
      %859 = vmatpush.msra.mxu0 %v676
      %860 = vmatpush.msra.mxu0 %v674
      %861 = vmatpush.msra.mxu0 %v672
      %862 = vmatpush.msra.mxu0 %v670
      %863 = vmatpush.msra.mxu0 %v668
      %864 = vmatpush.msra.mxu0 %v666
      %865 = vmatpush.msra.mxu0 %v664
      %866 = vmatpush.msra.mxu0 %v662
      %867 = vmatpush.msra.mxu0 %v660
      %868 = vmatmul.f32.gmra.mxu0 %v616
      %v869 = vpop.f32.mrf.mxu0
      %v870 = vadd.f32 %v841, %v869
      %871 = vmatmul.f32.gmra.mxu0 %v619
      %v872 = vpop.f32.mrf.mxu0
      %v873 = vadd.f32 %v844, %v872
      %874 = vmatmul.f32.gmra.mxu0 %v622
      %v875 = vpop.f32.mrf.mxu0
      %v876 = vadd.f32 %v847, %v875
      %877 = vmatmul.f32.gmra.mxu0 %v625
      %v878 = vpop.f32.mrf.mxu0
      %v879 = vadd.f32 %v850, %v878
      %880 = vdwg.mxu0
      %881 = vmatpush.msra.mxu0 0.0
      %882 = vmatpush.msra.mxu0 0.0
      %883 = vmatpush.msra.mxu0 0.0
      %884 = vmatpush.msra.mxu0 0.0
      %885 = vmatpush.msra.mxu0 0.0
      %886 = vmatpush.msra.mxu0 0.0
      %887 = vmatpush.msra.mxu0 0.0
      %888 = vmatpush.msra.mxu0 0.0
      %889 = vmatpush.msra.mxu0 0.0
      %890 = vmatpush.msra.mxu0 0.0
      %891 = vmatpush.msra.mxu0 0.0
      %892 = vmatpush.msra.mxu0 0.0
      %893 = vmatpush.msra.mxu0 %v698
      %894 = vmatpush.msra.mxu0 %v696
      %895 = vmatpush.msra.mxu0 %v694
      %896 = vmatpush.msra.mxu0 %v692
      %897 = vmatmul.f32.gmra.mxu0 %v725
      %v898 = vpop.f32.mrf.mxu0
      %v899 = vadd.f32 %v870, %v898
      %900 = vmatmul.f32.gmra.mxu0 %v728
      %v901 = vpop.f32.mrf.mxu0
      %v902 = vadd.f32 %v873, %v901
      %903 = vmatmul.f32.gmra.mxu0 %v731
      %v904 = vpop.f32.mrf.mxu0
      %v905 = vadd.f32 %v876, %v904
      %906 = vmatmul.f32.gmra.mxu0 %v734
      %v907 = vpop.f32.mrf.mxu0
      %v908 = vadd.f32 %v879, %v907
      %909 = vdwg.mxu0
      %v910 = vmax.f32 %v812, 0.0
      %v911 = vmax.f32 %v899, 0.0
      %v912 = vmax.f32 %v815, 0.0
      %v913 = vmax.f32 %v902, 0.0
      %v914 = vmax.f32 %v818, 0.0
      %v915 = vmax.f32 %v905, 0.0
      %v916 = vmax.f32 %v821, 0.0
      %v917 = vmax.f32 %v908, 0.0
      %918 = vrot.lane.b32.xlu0 %v910, 17
      %v919 = vpop.permute.xlu0 %918
      %920 = vrot.lane.b32.xlu0 %v912, 17
      %v921 = vpop.permute.xlu0 %920
      %922 = vrot.lane.b32.xlu0 %v914, 17
      %v923 = vpop.permute.xlu0 %922
      %924 = vrot.lane.b32.xlu0 %v916, 17
      %v925 = vpop.permute.xlu0 %924
      %926 = vrot.lane.b32.xlu0 %v911, 17
      %v927 = vpop.permute.xlu0 %926
      %928 = vrot.lane.b32.xlu0 %v913, 17
      %v929 = vpop.permute.xlu0 %928
      %930 = vrot.lane.b32.xlu0 %v915, 17
      %v931 = vpop.permute.xlu0 %930
      %932 = vrot.lane.b32.xlu0 %v917, 17
      %v933 = vpop.permute.xlu0 %932
      %v934 = vsel %vm224, %v919, %v927
      %v935 = vsel %vm224, %v921, %v929
      %v936 = vsel %vm224, %v923, %v931
      %v937 = vsel %vm224, %v925, %v933
      %v938 = vsel %vm224, %v927, %v919
      %v939 = vsel %vm224, %v929, %v921
      %v940 = vsel %vm224, %v931, %v923
      %v941 = vsel %vm224, %v933, %v925
      %v942 = vld [vmem:[%s3] sm:$0xff]
      %v943 = vld [vmem:[%s3 + $0x8] sm:$0xff]
      %v944 = vld [vmem:[%s3 + $0x10] sm:$0xff]
      %v945 = vld [vmem:[%s3 + $0x18] sm:$0xff]
      %v946 = vld [vmem:[%s3 + $0x20] sm:$0xff]
      %v947 = vld [vmem:[%s3 + $0x28] sm:$0xff]
      %v948 = vld [vmem:[%s3 + $0x30] sm:$0xff]
      %v949 = vld [vmem:[%s3 + $0x38] sm:$0xff]
      %v950 = vmul.f32 %v938, %v942
      %v951 = vmul.f32 %v934, %v943
      %v952 = vmul.f32 %v939, %v944
      %v953 = vmul.f32 %v935, %v945
      %v954 = vmul.f32 %v940, %v946
      %v955 = vmul.f32 %v936, %v947
      %v956 = vmul.f32 %v941, %v948
      %v957 = vmul.f32 %v937, %v949
      %958 = vst [vmem:[#allocation2] sm:$0xff] %v950
      %959 = vst [vmem:[#allocation2 + $0x8] sm:$0xff] %v951
      %960 = vst [vmem:[#allocation2 + $0x10] sm:$0xff] %v952
      %961 = vst [vmem:[#allocation2 + $0x18] sm:$0xff] %v953
      %962 = vst [vmem:[#allocation2 + $0x20] sm:$0xff] %v954
      %963 = vst [vmem:[#allocation2 + $0x28] sm:$0xff] %v955
      %964 = vst [vmem:[#allocation2 + $0x30] sm:$0xff] %v956
      %965 = vst [vmem:[#allocation2 + $0x38] sm:$0xff] %v957
      %966 = vrot.lane.b32.xlu0 %v910, 16
      %v967 = vpop.permute.xlu0 %966
      %968 = vrot.lane.b32.xlu0 %v912, 16
      %v969 = vpop.permute.xlu0 %968
      %970 = vrot.lane.b32.xlu0 %v914, 16
      %v971 = vpop.permute.xlu0 %970
      %972 = vrot.lane.b32.xlu0 %v916, 16
      %v973 = vpop.permute.xlu0 %972
      %974 = vrot.lane.b32.xlu0 %v911, 16
      %v975 = vpop.permute.xlu0 %974
      %976 = vrot.lane.b32.xlu0 %v913, 16
      %v977 = vpop.permute.xlu0 %976
      %978 = vrot.lane.b32.xlu0 %v915, 16
      %v979 = vpop.permute.xlu0 %978
      %980 = vrot.lane.b32.xlu0 %v917, 16
      %v981 = vpop.permute.xlu0 %980
      %v982 = vsel %vm273, %v967, %v975
      %v983 = vsel %vm273, %v969, %v977
      %v984 = vsel %vm273, %v971, %v979
      %v985 = vsel %vm273, %v973, %v981
      %v986 = vsel %vm273, %v975, %v967
      %v987 = vsel %vm273, %v977, %v969
      %v988 = vsel %vm273, %v979, %v971
      %v989 = vsel %vm273, %v981, %v973
      %v990 = vld [vmem:[%s282] sm:$0xff]
      %v991 = vld [vmem:[%s282 + $0x8] sm:$0xff]
      %v992 = vld [vmem:[%s282 + $0x10] sm:$0xff]
      %v993 = vld [vmem:[%s282 + $0x18] sm:$0xff]
      %v994 = vld [vmem:[%s282 + $0x20] sm:$0xff]
      %v995 = vld [vmem:[%s282 + $0x28] sm:$0xff]
      %v996 = vld [vmem:[%s282 + $0x30] sm:$0xff]
      %v997 = vld [vmem:[%s282 + $0x38] sm:$0xff]
      %v998 = vmul.f32 %v986, %v990
      %v999 = vmul.f32 %v982, %v991
      %v1000 = vmul.f32 %v987, %v992
      %v1001 = vmul.f32 %v983, %v993
      %v1002 = vmul.f32 %v988, %v994
      %v1003 = vmul.f32 %v984, %v995
      %v1004 = vmul.f32 %v989, %v996
      %v1005 = vmul.f32 %v985, %v997
      %1006 = vst [vmem:[#allocation2 + $0x40] sm:$0xff] %v998
      %1007 = vst [vmem:[#allocation2 + $0x48] sm:$0xff] %v999
      %1008 = vst [vmem:[#allocation2 + $0x50] sm:$0xff] %v1000
      %1009 = vst [vmem:[#allocation2 + $0x58] sm:$0xff] %v1001
      %1010 = vst [vmem:[#allocation2 + $0x60] sm:$0xff] %v1002
      %1011 = vst [vmem:[#allocation2 + $0x68] sm:$0xff] %v1003
      %1012 = vst [vmem:[#allocation2 + $0x70] sm:$0xff] %v1004
      %1013 = vst [vmem:[#allocation2 + $0x78] sm:$0xff] %v1005
      %1014 = vrot.lane.b32.xlu0 %v910, 15
      %v1015 = vpop.permute.xlu0 %1014
      %1016 = vrot.lane.b32.xlu0 %v912, 15
      %v1017 = vpop.permute.xlu0 %1016
      %1018 = vrot.lane.b32.xlu0 %v914, 15
      %v1019 = vpop.permute.xlu0 %1018
      %1020 = vrot.lane.b32.xlu0 %v916, 15
      %v1021 = vpop.permute.xlu0 %1020
      %1022 = vrot.lane.b32.xlu0 %v911, 15
      %v1023 = vpop.permute.xlu0 %1022
      %1024 = vrot.lane.b32.xlu0 %v913, 15
      %v1025 = vpop.permute.xlu0 %1024
      %1026 = vrot.lane.b32.xlu0 %v915, 15
      %v1027 = vpop.permute.xlu0 %1026
      %1028 = vrot.lane.b32.xlu0 %v917, 15
      %v1029 = vpop.permute.xlu0 %1028
      %v1030 = vsel %vm323, %v1015, %v1023
      %v1031 = vsel %vm323, %v1017, %v1025
      %v1032 = vsel %vm323, %v1019, %v1027
      %v1033 = vsel %vm323, %v1021, %v1029
      %v1034 = vsel %vm323, %v1023, %v1015
      %v1035 = vsel %vm323, %v1025, %v1017
      %v1036 = vsel %vm323, %v1027, %v1019
      %v1037 = vsel %vm323, %v1029, %v1021
      %v1038 = vld [vmem:[%s332] sm:$0xff]
      %v1039 = vld [vmem:[%s332 + $0x8] sm:$0xff]
      %v1040 = vld [vmem:[%s332 + $0x10] sm:$0xff]
      %v1041 = vld [vmem:[%s332 + $0x18] sm:$0xff]
      %v1042 = vld [vmem:[%s332 + $0x20] sm:$0xff]
      %v1043 = vld [vmem:[%s332 + $0x28] sm:$0xff]
      %v1044 = vld [vmem:[%s332 + $0x30] sm:$0xff]
      %v1045 = vld [vmem:[%s332 + $0x38] sm:$0xff]
      %v1046 = vmul.f32 %v1034, %v1038
      %v1047 = vmul.f32 %v1030, %v1039
      %v1048 = vmul.f32 %v1035, %v1040
      %v1049 = vmul.f32 %v1031, %v1041
      %v1050 = vmul.f32 %v1036, %v1042
      %v1051 = vmul.f32 %v1032, %v1043
      %v1052 = vmul.f32 %v1037, %v1044
      %v1053 = vmul.f32 %v1033, %v1045
      %1054 = vst [vmem:[#allocation2 + $0x80] sm:$0xff] %v1046
      %1055 = vst [vmem:[#allocation2 + $0x88] sm:$0xff] %v1047
      %1056 = vst [vmem:[#allocation2 + $0x90] sm:$0xff] %v1048
      %1057 = vst [vmem:[#allocation2 + $0x98] sm:$0xff] %v1049
      %1058 = vst [vmem:[#allocation2 + $0xa0] sm:$0xff] %v1050
      %1059 = vst [vmem:[#allocation2 + $0xa8] sm:$0xff] %v1051
      %1060 = vst [vmem:[#allocation2 + $0xb0] sm:$0xff] %v1052
      %1061 = vst [vmem:[#allocation2 + $0xb8] sm:$0xff] %v1053
      %1062 = vrot.lane.b32.xlu0 %v910, 1
      %v1063 = vpop.permute.xlu0 %1062
      %1064 = vrot.lane.b32.xlu0 %v912, 1
      %v1065 = vpop.permute.xlu0 %1064
      %1066 = vrot.lane.b32.xlu0 %v914, 1
      %v1067 = vpop.permute.xlu0 %1066
      %1068 = vrot.lane.b32.xlu0 %v916, 1
      %v1069 = vpop.permute.xlu0 %1068
      %1070 = vrot.lane.b32.xlu0 %v911, 1
      %v1071 = vpop.permute.xlu0 %1070
      %1072 = vrot.lane.b32.xlu0 %v913, 1
      %v1073 = vpop.permute.xlu0 %1072
      %1074 = vrot.lane.b32.xlu0 %v915, 1
      %v1075 = vpop.permute.xlu0 %1074
      %1076 = vrot.lane.b32.xlu0 %v917, 1
      %v1077 = vpop.permute.xlu0 %1076
      %v1078 = vsel %vm373, %v1063, %v1071
      %v1079 = vsel %vm373, %v1065, %v1073
      %v1080 = vsel %vm373, %v1067, %v1075
      %v1081 = vsel %vm373, %v1069, %v1077
      %v1082 = vsel %vm373, %v1071, %v1063
      %v1083 = vsel %vm373, %v1073, %v1065
      %v1084 = vsel %vm373, %v1075, %v1067
      %v1085 = vsel %vm373, %v1077, %v1069
      %v1086 = vld [vmem:[%s382] sm:$0xff]
      %v1087 = vld [vmem:[%s382 + $0x8] sm:$0xff]
      %v1088 = vld [vmem:[%s382 + $0x10] sm:$0xff]
      %v1089 = vld [vmem:[%s382 + $0x18] sm:$0xff]
      %v1090 = vld [vmem:[%s382 + $0x20] sm:$0xff]
      %v1091 = vld [vmem:[%s382 + $0x28] sm:$0xff]
      %v1092 = vld [vmem:[%s382 + $0x30] sm:$0xff]
      %v1093 = vld [vmem:[%s382 + $0x38] sm:$0xff]
      %v1094 = vmul.f32 %v1082, %v1086
      %v1095 = vmul.f32 %v1078, %v1087
      %v1096 = vmul.f32 %v1083, %v1088
      %v1097 = vmul.f32 %v1079, %v1089
      %v1098 = vmul.f32 %v1084, %v1090
      %v1099 = vmul.f32 %v1080, %v1091
      %v1100 = vmul.f32 %v1085, %v1092
      %v1101 = vmul.f32 %v1081, %v1093
      %1102 = vst [vmem:[#allocation2 + $0xc0] sm:$0xff] %v1094
      %1103 = vst [vmem:[#allocation2 + $0xc8] sm:$0xff] %v1095
      %1104 = vst [vmem:[#allocation2 + $0xd0] sm:$0xff] %v1096
      %1105 = vst [vmem:[#allocation2 + $0xd8] sm:$0xff] %v1097
      %1106 = vst [vmem:[#allocation2 + $0xe0] sm:$0xff] %v1098
      %1107 = vst [vmem:[#allocation2 + $0xe8] sm:$0xff] %v1099
      %1108 = vst [vmem:[#allocation2 + $0xf0] sm:$0xff] %v1100
      %1109 = vst [vmem:[#allocation2 + $0xf8] sm:$0xff] %v1101
      %1110 = vst [vmem:[#allocation2 + $0x100] sm:$0xff] %v910
      %1111 = vst [vmem:[#allocation2 + $0x108] sm:$0xff] %v911
      %1112 = vst [vmem:[#allocation2 + $0x110] sm:$0xff] %v912
      %1113 = vst [vmem:[#allocation2 + $0x118] sm:$0xff] %v913
      %1114 = vst [vmem:[#allocation2 + $0x120] sm:$0xff] %v914
      %1115 = vst [vmem:[#allocation2 + $0x128] sm:$0xff] %v915
      %1116 = vst [vmem:[#allocation2 + $0x130] sm:$0xff] %v916
      %1117 = vst [vmem:[#allocation2 + $0x138] sm:$0xff] %v917
      %1118 = vrot.lane.b32.xlu0 %v910, 127
      %v1119 = vpop.permute.xlu0 %1118
      %1120 = vrot.lane.b32.xlu0 %v912, 127
      %v1121 = vpop.permute.xlu0 %1120
      %1122 = vrot.lane.b32.xlu0 %v914, 127
      %v1123 = vpop.permute.xlu0 %1122
      %1124 = vrot.lane.b32.xlu0 %v916, 127
      %v1125 = vpop.permute.xlu0 %1124
      %1126 = vrot.lane.b32.xlu0 %v911, 127
      %v1127 = vpop.permute.xlu0 %1126
      %1128 = vrot.lane.b32.xlu0 %v913, 127
      %v1129 = vpop.permute.xlu0 %1128
      %1130 = vrot.lane.b32.xlu0 %v915, 127
      %v1131 = vpop.permute.xlu0 %1130
      %1132 = vrot.lane.b32.xlu0 %v917, 127
      %v1133 = vpop.permute.xlu0 %1132
      %v1134 = vsel %vm431, %v1119, %v1127
      %v1135 = vsel %vm431, %v1121, %v1129
      %v1136 = vsel %vm431, %v1123, %v1131
      %v1137 = vsel %vm431, %v1125, %v1133
      %v1138 = vsel %vm431, %v1127, %v1119
      %v1139 = vsel %vm431, %v1129, %v1121
      %v1140 = vsel %vm431, %v1131, %v1123
      %v1141 = vsel %vm431, %v1133, %v1125
      %v1142 = vld [vmem:[%s440] sm:$0xff]
      %v1143 = vld [vmem:[%s440 + $0x8] sm:$0xff]
      %v1144 = vld [vmem:[%s440 + $0x10] sm:$0xff]
      %v1145 = vld [vmem:[%s440 + $0x18] sm:$0xff]
      %v1146 = vld [vmem:[%s440 + $0x20] sm:$0xff]
      %v1147 = vld [vmem:[%s440 + $0x28] sm:$0xff]
      %v1148 = vld [vmem:[%s440 + $0x30] sm:$0xff]
      %v1149 = vld [vmem:[%s440 + $0x38] sm:$0xff]
      %v1150 = vmul.f32 %v1134, %v1142
      %v1151 = vmul.f32 %v1138, %v1143
      %v1152 = vmul.f32 %v1135, %v1144
      %v1153 = vmul.f32 %v1139, %v1145
      %v1154 = vmul.f32 %v1136, %v1146
      %v1155 = vmul.f32 %v1140, %v1147
      %v1156 = vmul.f32 %v1137, %v1148
      %v1157 = vmul.f32 %v1141, %v1149
      %1158 = vst [vmem:[#allocation2 + $0x140] sm:$0xff] %v1150
      %1159 = vst [vmem:[#allocation2 + $0x148] sm:$0xff] %v1151
      %1160 = vst [vmem:[#allocation2 + $0x150] sm:$0xff] %v1152
      %1161 = vst [vmem:[#allocation2 + $0x158] sm:$0xff] %v1153
      %1162 = vst [vmem:[#allocation2 + $0x160] sm:$0xff] %v1154
      %1163 = vst [vmem:[#allocation2 + $0x168] sm:$0xff] %v1155
      %1164 = vst [vmem:[#allocation2 + $0x170] sm:$0xff] %v1156
      %1165 = vst [vmem:[#allocation2 + $0x178] sm:$0xff] %v1157
      %1166 = vrot.lane.b32.xlu0 %v910, 113
      %v1167 = vpop.permute.xlu0 %1166
      %1168 = vrot.lane.b32.xlu0 %v912, 113
      %v1169 = vpop.permute.xlu0 %1168
      %1170 = vrot.lane.b32.xlu0 %v914, 113
      %v1171 = vpop.permute.xlu0 %1170
      %1172 = vrot.lane.b32.xlu0 %v916, 113
      %v1173 = vpop.permute.xlu0 %1172
      %1174 = vrot.lane.b32.xlu0 %v911, 113
      %v1175 = vpop.permute.xlu0 %1174
      %1176 = vrot.lane.b32.xlu0 %v913, 113
      %v1177 = vpop.permute.xlu0 %1176
      %1178 = vrot.lane.b32.xlu0 %v915, 113
      %v1179 = vpop.permute.xlu0 %1178
      %1180 = vrot.lane.b32.xlu0 %v917, 113
      %v1181 = vpop.permute.xlu0 %1180
      %v1182 = vsel %vm481, %v1167, %v1175
      %v1183 = vsel %vm481, %v1169, %v1177
      %v1184 = vsel %vm481, %v1171, %v1179
      %v1185 = vsel %vm481, %v1173, %v1181
      %v1186 = vsel %vm481, %v1175, %v1167
      %v1187 = vsel %vm481, %v1177, %v1169
      %v1188 = vsel %vm481, %v1179, %v1171
      %v1189 = vsel %vm481, %v1181, %v1173
      %v1190 = vld [vmem:[%s490] sm:$0xff]
      %v1191 = vld [vmem:[%s490 + $0x8] sm:$0xff]
      %v1192 = vld [vmem:[%s490 + $0x10] sm:$0xff]
      %v1193 = vld [vmem:[%s490 + $0x18] sm:$0xff]
      %v1194 = vld [vmem:[%s490 + $0x20] sm:$0xff]
      %v1195 = vld [vmem:[%s490 + $0x28] sm:$0xff]
      %v1196 = vld [vmem:[%s490 + $0x30] sm:$0xff]
      %v1197 = vld [vmem:[%s490 + $0x38] sm:$0xff]
      %v1198 = vmul.f32 %v1182, %v1190
      %v1199 = vmul.f32 %v1186, %v1191
      %v1200 = vmul.f32 %v1183, %v1192
      %v1201 = vmul.f32 %v1187, %v1193
      %v1202 = vmul.f32 %v1184, %v1194
      %v1203 = vmul.f32 %v1188, %v1195
      %v1204 = vmul.f32 %v1185, %v1196
      %v1205 = vmul.f32 %v1189, %v1197
      %1206 = vst [vmem:[#allocation2 + $0x180] sm:$0xff] %v1198
      %1207 = vst [vmem:[#allocation2 + $0x188] sm:$0xff] %v1199
      %1208 = vst [vmem:[#allocation2 + $0x190] sm:$0xff] %v1200
      %1209 = vst [vmem:[#allocation2 + $0x198] sm:$0xff] %v1201
      %1210 = vst [vmem:[#allocation2 + $0x1a0] sm:$0xff] %v1202
      %1211 = vst [vmem:[#allocation2 + $0x1a8] sm:$0xff] %v1203
      %1212 = vst [vmem:[#allocation2 + $0x1b0] sm:$0xff] %v1204
      %1213 = vst [vmem:[#allocation2 + $0x1b8] sm:$0xff] %v1205
      %1214 = vrot.lane.b32.xlu0 %v910, 112
      %v1215 = vpop.permute.xlu0 %1214
      %1216 = vrot.lane.b32.xlu0 %v912, 112
      %v1217 = vpop.permute.xlu0 %1216
      %1218 = vrot.lane.b32.xlu0 %v914, 112
      %v1219 = vpop.permute.xlu0 %1218
      %1220 = vrot.lane.b32.xlu0 %v916, 112
      %v1221 = vpop.permute.xlu0 %1220
      %1222 = vrot.lane.b32.xlu0 %v911, 112
      %v1223 = vpop.permute.xlu0 %1222
      %1224 = vrot.lane.b32.xlu0 %v913, 112
      %v1225 = vpop.permute.xlu0 %1224
      %1226 = vrot.lane.b32.xlu0 %v915, 112
      %v1227 = vpop.permute.xlu0 %1226
      %1228 = vrot.lane.b32.xlu0 %v917, 112
      %v1229 = vpop.permute.xlu0 %1228
      %v1230 = vsel %vm531, %v1215, %v1223
      %v1231 = vsel %vm531, %v1217, %v1225
      %v1232 = vsel %vm531, %v1219, %v1227
      %v1233 = vsel %vm531, %v1221, %v1229
      %v1234 = vsel %vm531, %v1223, %v1215
      %v1235 = vsel %vm531, %v1225, %v1217
      %v1236 = vsel %vm531, %v1227, %v1219
      %v1237 = vsel %vm531, %v1229, %v1221
      %v1238 = vld [vmem:[%s540] sm:$0xff]
      %v1239 = vld [vmem:[%s540 + $0x8] sm:$0xff]
      %v1240 = vld [vmem:[%s540 + $0x10] sm:$0xff]
      %v1241 = vld [vmem:[%s540 + $0x18] sm:$0xff]
      %v1242 = vld [vmem:[%s540 + $0x20] sm:$0xff]
      %v1243 = vld [vmem:[%s540 + $0x28] sm:$0xff]
      %v1244 = vld [vmem:[%s540 + $0x30] sm:$0xff]
      %v1245 = vld [vmem:[%s540 + $0x38] sm:$0xff]
      %v1246 = vmul.f32 %v1230, %v1238
      %v1247 = vmul.f32 %v1234, %v1239
      %v1248 = vmul.f32 %v1231, %v1240
      %v1249 = vmul.f32 %v1235, %v1241
      %v1250 = vmul.f32 %v1232, %v1242
      %v1251 = vmul.f32 %v1236, %v1243
      %v1252 = vmul.f32 %v1233, %v1244
      %v1253 = vmul.f32 %v1237, %v1245
      %1254 = vst [vmem:[#allocation2 + $0x1c0] sm:$0xff] %v1246
      %1255 = vst [vmem:[#allocation2 + $0x1c8] sm:$0xff] %v1247
      %1256 = vst [vmem:[#allocation2 + $0x1d0] sm:$0xff] %v1248
      %1257 = vst [vmem:[#allocation2 + $0x1d8] sm:$0xff] %v1249
      %1258 = vst [vmem:[#allocation2 + $0x1e0] sm:$0xff] %v1250
      %1259 = vst [vmem:[#allocation2 + $0x1e8] sm:$0xff] %v1251
      %1260 = vst [vmem:[#allocation2 + $0x1f0] sm:$0xff] %v1252
      %1261 = vst [vmem:[#allocation2 + $0x1f8] sm:$0xff] %v1253
      %1262 = vrot.lane.b32.xlu0 %v910, 111
      %v1263 = vpop.permute.xlu0 %1262
      %1264 = vrot.lane.b32.xlu0 %v912, 111
      %v1265 = vpop.permute.xlu0 %1264
      %1266 = vrot.lane.b32.xlu0 %v914, 111
      %v1267 = vpop.permute.xlu0 %1266
      %1268 = vrot.lane.b32.xlu0 %v916, 111
      %v1269 = vpop.permute.xlu0 %1268
      %1270 = vrot.lane.b32.xlu0 %v911, 111
      %v1271 = vpop.permute.xlu0 %1270
      %1272 = vrot.lane.b32.xlu0 %v913, 111
      %v1273 = vpop.permute.xlu0 %1272
      %1274 = vrot.lane.b32.xlu0 %v915, 111
      %v1275 = vpop.permute.xlu0 %1274
      %1276 = vrot.lane.b32.xlu0 %v917, 111
      %v1277 = vpop.permute.xlu0 %1276
      %v1278 = vsel %vm581, %v1263, %v1271
      %v1279 = vsel %vm581, %v1265, %v1273
      %v1280 = vsel %vm581, %v1267, %v1275
      %v1281 = vsel %vm581, %v1269, %v1277
      %v1282 = vsel %vm581, %v1271, %v1263
      %v1283 = vsel %vm581, %v1273, %v1265
      %v1284 = vsel %vm581, %v1275, %v1267
      %v1285 = vsel %vm581, %v1277, %v1269
      %v1286 = vld [vmem:[%s590] sm:$0xff]
      %v1287 = vld [vmem:[%s590 + $0x8] sm:$0xff]
      %v1288 = vld [vmem:[%s590 + $0x10] sm:$0xff]
      %v1289 = vld [vmem:[%s590 + $0x18] sm:$0xff]
      %v1290 = vld [vmem:[%s590 + $0x20] sm:$0xff]
      %v1291 = vld [vmem:[%s590 + $0x28] sm:$0xff]
      %v1292 = vld [vmem:[%s590 + $0x30] sm:$0xff]
      %v1293 = vld [vmem:[%s590 + $0x38] sm:$0xff]
      %v1294 = vmul.f32 %v1278, %v1286
      %v1295 = vmul.f32 %v1282, %v1287
      %v1296 = vmul.f32 %v1279, %v1288
      %v1297 = vmul.f32 %v1283, %v1289
      %v1298 = vmul.f32 %v1280, %v1290
      %v1299 = vmul.f32 %v1284, %v1291
      %v1300 = vmul.f32 %v1281, %v1292
      %v1301 = vmul.f32 %v1285, %v1293
      %1302 = vst [vmem:[#allocation2 + $0x200] sm:$0xff] %v1294
      %1303 = vst [vmem:[#allocation2 + $0x208] sm:$0xff] %v1295
      %1304 = vst [vmem:[#allocation2 + $0x210] sm:$0xff] %v1296
      %1305 = vst [vmem:[#allocation2 + $0x218] sm:$0xff] %v1297
      %1306 = vst [vmem:[#allocation2 + $0x220] sm:$0xff] %v1298
      %1307 = vst [vmem:[#allocation2 + $0x228] sm:$0xff] %v1299
      %1308 = vst [vmem:[#allocation2 + $0x230] sm:$0xff] %v1300
      %1309 = vst [vmem:[#allocation2 + $0x238] sm:$0xff] %v1301
      %s1310 = scalar_lea.vmem %s1, 96
      %v1311 = vld [vmem:[%s1310] sm:$0xff]
      %v1312 = vld [vmem:[%s1310 + $0x8] sm:$0xff]
      %v1313 = vld [vmem:[%s1310 + $0x10] sm:$0xff]
      %v1314 = vld [vmem:[%s1310 + $0x18] sm:$0xff]
      %v1315 = vld [vmem:[%s1310 + $0x20] sm:$0xff]
      %v1316 = vld [vmem:[%s1310 + $0x28] sm:$0xff]
      %v1317 = vld [vmem:[%s1310 + $0x30] sm:$0xff]
      %v1318 = vld [vmem:[%s1310 + $0x38] sm:$0xff]
      %v1319 = vld [vmem:[%s1310 + $0x40] sm:$0xff]
      %v1320 = vld [vmem:[%s1310 + $0x48] sm:$0xff]
      %v1321 = vld [vmem:[%s1310 + $0x50] sm:$0xff]
      %v1322 = vld [vmem:[%s1310 + $0x58] sm:$0xff]
      %v1323 = vld [vmem:[#allocation2] sm:$0xff]
      %v1324 = vld [vmem:[#allocation2 + $0x8] sm:$0xff]
      %v1325 = vld [vmem:[#allocation2 + $0x10] sm:$0xff]
      %v1326 = vld [vmem:[#allocation2 + $0x18] sm:$0xff]
      %v1327 = vld [vmem:[#allocation2 + $0x20] sm:$0xff]
      %v1328 = vld [vmem:[#allocation2 + $0x28] sm:$0xff]
      %v1329 = vld [vmem:[#allocation2 + $0x30] sm:$0xff]
      %v1330 = vld [vmem:[#allocation2 + $0x38] sm:$0xff]
      %v1331 = vld [vmem:[#allocation2 + $0x40] sm:$0xff]
      %v1332 = vld [vmem:[#allocation2 + $0x48] sm:$0xff]
      %v1333 = vld [vmem:[#allocation2 + $0x50] sm:$0xff]
      %v1334 = vld [vmem:[#allocation2 + $0x58] sm:$0xff]
      %v1335 = vld [vmem:[#allocation2 + $0x60] sm:$0xff]
      %v1336 = vld [vmem:[#allocation2 + $0x68] sm:$0xff]
      %v1337 = vld [vmem:[#allocation2 + $0x70] sm:$0xff]
      %v1338 = vld [vmem:[#allocation2 + $0x78] sm:$0xff]
      %v1339 = vld [vmem:[#allocation2 + $0x80] sm:$0xff]
      %v1340 = vld [vmem:[#allocation2 + $0x88] sm:$0xff]
      %v1341 = vld [vmem:[#allocation2 + $0x90] sm:$0xff]
      %v1342 = vld [vmem:[#allocation2 + $0x98] sm:$0xff]
      %v1343 = vld [vmem:[#allocation2 + $0xa0] sm:$0xff]
      %v1344 = vld [vmem:[#allocation2 + $0xa8] sm:$0xff]
      %v1345 = vld [vmem:[#allocation2 + $0xb0] sm:$0xff]
      %v1346 = vld [vmem:[#allocation2 + $0xb8] sm:$0xff]
      %v1347 = vld [vmem:[#allocation2 + $0xc0] sm:$0xff]
      %v1348 = vld [vmem:[#allocation2 + $0xc8] sm:$0xff]
      %v1349 = vld [vmem:[#allocation2 + $0xd0] sm:$0xff]
      %v1350 = vld [vmem:[#allocation2 + $0xd8] sm:$0xff]
      %v1351 = vld [vmem:[#allocation2 + $0xe0] sm:$0xff]
      %v1352 = vld [vmem:[#allocation2 + $0xe8] sm:$0xff]
      %v1353 = vld [vmem:[#allocation2 + $0xf0] sm:$0xff]
      %v1354 = vld [vmem:[#allocation2 + $0xf8] sm:$0xff]
      %v1355 = vld [vmem:[#allocation2 + $0x100] sm:$0xff]
      %v1356 = vld [vmem:[#allocation2 + $0x108] sm:$0xff]
      %v1357 = vld [vmem:[#allocation2 + $0x110] sm:$0xff]
      %v1358 = vld [vmem:[#allocation2 + $0x118] sm:$0xff]
      %v1359 = vld [vmem:[#allocation2 + $0x120] sm:$0xff]
      %v1360 = vld [vmem:[#allocation2 + $0x128] sm:$0xff]
      %v1361 = vld [vmem:[#allocation2 + $0x130] sm:$0xff]
      %v1362 = vld [vmem:[#allocation2 + $0x138] sm:$0xff]
      %v1363 = vld [vmem:[#allocation2 + $0x140] sm:$0xff]
      %v1364 = vld [vmem:[#allocation2 + $0x148] sm:$0xff]
      %v1365 = vld [vmem:[#allocation2 + $0x150] sm:$0xff]
      %v1366 = vld [vmem:[#allocation2 + $0x158] sm:$0xff]
      %v1367 = vld [vmem:[#allocation2 + $0x160] sm:$0xff]
      %v1368 = vld [vmem:[#allocation2 + $0x168] sm:$0xff]
      %v1369 = vld [vmem:[#allocation2 + $0x170] sm:$0xff]
      %v1370 = vld [vmem:[#allocation2 + $0x178] sm:$0xff]
      %v1371 = vld [vmem:[#allocation2 + $0x180] sm:$0xff]
      %v1372 = vld [vmem:[#allocation2 + $0x188] sm:$0xff]
      %v1373 = vld [vmem:[#allocation2 + $0x190] sm:$0xff]
      %v1374 = vld [vmem:[#allocation2 + $0x198] sm:$0xff]
      %v1375 = vld [vmem:[#allocation2 + $0x1a0] sm:$0xff]
      %v1376 = vld [vmem:[#allocation2 + $0x1a8] sm:$0xff]
      %v1377 = vld [vmem:[#allocation2 + $0x1b0] sm:$0xff]
      %v1378 = vld [vmem:[#allocation2 + $0x1b8] sm:$0xff]
      %v1379 = vld [vmem:[#allocation2 + $0x1c0] sm:$0xff]
      %v1380 = vld [vmem:[#allocation2 + $0x1c8] sm:$0xff]
      %v1381 = vld [vmem:[#allocation2 + $0x1d0] sm:$0xff]
      %v1382 = vld [vmem:[#allocation2 + $0x1d8] sm:$0xff]
      %v1383 = vld [vmem:[#allocation2 + $0x1e0] sm:$0xff]
      %v1384 = vld [vmem:[#allocation2 + $0x1e8] sm:$0xff]
      %v1385 = vld [vmem:[#allocation2 + $0x1f0] sm:$0xff]
      %v1386 = vld [vmem:[#allocation2 + $0x1f8] sm:$0xff]
      %v1387 = vld [vmem:[#allocation2 + $0x200] sm:$0xff]
      %v1388 = vld [vmem:[#allocation2 + $0x208] sm:$0xff]
      %v1389 = vld [vmem:[#allocation2 + $0x210] sm:$0xff]
      %v1390 = vld [vmem:[#allocation2 + $0x218] sm:$0xff]
      %v1391 = vld [vmem:[#allocation2 + $0x220] sm:$0xff]
      %v1392 = vld [vmem:[#allocation2 + $0x228] sm:$0xff]
      %v1393 = vld [vmem:[#allocation2 + $0x230] sm:$0xff]
      %v1394 = vld [vmem:[#allocation2 + $0x238] sm:$0xff]
      %s1395 = scalar_lea.vmem %s2, 32
      %v1396 = vld [vmem:[%s1395] sm:$0xff]
      %v1397 = vld [vmem:[%s1395 + $0x8] sm:$0xff]
      %v1398 = vld [vmem:[%s1395 + $0x10] sm:$0xff]
      %v1399 = vld [vmem:[%s1395 + $0x18] sm:$0xff]
      %1401 = vset.pattern.permute.xlu0 0
      %1402 = vperm.xlu0 %1401, %v1396
      %v1403 = vpop.permute.xlu0 %1402
      %1406 = vset.pattern.permute.xlu0 0
      %1407 = vperm.xlu0 %1406, %v1397
      %v1408 = vpop.permute.xlu0 %1407
      %1411 = vset.pattern.permute.xlu0 0
      %1412 = vperm.xlu0 %1411, %v1398
      %v1413 = vpop.permute.xlu0 %1412
      %1416 = vset.pattern.permute.xlu0 0
      %1417 = vperm.xlu0 %1416, %v1399
      %v1418 = vpop.permute.xlu0 %1417
      %v1421 = vsel %vm723, %v1313, 0
      %v1424 = vsel %vm723, %v1316, 0
      %v1427 = vsel %vm723, %v1319, 0
      %v1430 = vsel %vm723, %v1322, 0
      %1432 = vmatpush.msra.mxu0 %v1353
      %1433 = vmatpush.msra.mxu0 %v1351
      %1434 = vmatpush.msra.mxu0 %v1349
      %1435 = vmatpush.msra.mxu0 %v1347
      %1436 = vmatpush.msra.mxu0 %v1345
      %1437 = vmatpush.msra.mxu0 %v1343
      %1438 = vmatpush.msra.mxu0 %v1341
      %1439 = vmatpush.msra.mxu0 %v1339
      %1440 = vmatpush.msra.mxu0 %v1337
      %1441 = vmatpush.msra.mxu0 %v1335
      %1442 = vmatpush.msra.mxu0 %v1333
      %1443 = vmatpush.msra.mxu0 %v1331
      %1444 = vmatpush.msra.mxu0 %v1329
      %1445 = vmatpush.msra.mxu0 %v1327
      %1446 = vmatpush.msra.mxu0 %v1325
      %1447 = vmatpush.msra.mxu0 %v1323
      %1448 = vmatmul.f32.gmra.mxu0 %v1311
      %v1449 = vpop.f32.mrf.mxu0
      %v1450 = vadd.f32 %v1403, %v1449
      %1451 = vmatmul.f32.gmra.mxu0 %v1314
      %v1452 = vpop.f32.mrf.mxu0
      %v1453 = vadd.f32 %v1408, %v1452
      %1454 = vmatmul.f32.gmra.mxu0 %v1317
      %v1455 = vpop.f32.mrf.mxu0
      %v1456 = vadd.f32 %v1413, %v1455
      %1457 = vmatmul.f32.gmra.mxu0 %v1320
      %v1458 = vpop.f32.mrf.mxu0
      %v1459 = vadd.f32 %v1418, %v1458
      %1460 = vdwg.mxu0
      %1461 = vmatpush.msra.mxu0 %v1385
      %1462 = vmatpush.msra.mxu0 %v1383
      %1463 = vmatpush.msra.mxu0 %v1381
      %1464 = vmatpush.msra.mxu0 %v1379
      %1465 = vmatpush.msra.mxu0 %v1377
      %1466 = vmatpush.msra.mxu0 %v1375
      %1467 = vmatpush.msra.mxu0 %v1373
      %1468 = vmatpush.msra.mxu0 %v1371
      %1469 = vmatpush.msra.mxu0 %v1369
      %1470 = vmatpush.msra.mxu0 %v1367
      %1471 = vmatpush.msra.mxu0 %v1365
      %1472 = vmatpush.msra.mxu0 %v1363
      %1473 = vmatpush.msra.mxu0 %v1361
      %1474 = vmatpush.msra.mxu0 %v1359
      %1475 = vmatpush.msra.mxu0 %v1357
      %1476 = vmatpush.msra.mxu0 %v1355
      %1477 = vmatmul.f32.gmra.mxu0 %v1312
      %v1478 = vpop.f32.mrf.mxu0
      %v1479 = vadd.f32 %v1450, %v1478
      %1480 = vmatmul.f32.gmra.mxu0 %v1315
      %v1481 = vpop.f32.mrf.mxu0
      %v1482 = vadd.f32 %v1453, %v1481
      %1483 = vmatmul.f32.gmra.mxu0 %v1318
      %v1484 = vpop.f32.mrf.mxu0
      %v1485 = vadd.f32 %v1456, %v1484
      %1486 = vmatmul.f32.gmra.mxu0 %v1321
      %v1487 = vpop.f32.mrf.mxu0
      %v1488 = vadd.f32 %v1459, %v1487
      %1489 = vdwg.mxu0
      %1490 = vmatpush.msra.mxu0 0.0
      %1491 = vmatpush.msra.mxu0 0.0
      %1492 = vmatpush.msra.mxu0 0.0
      %1493 = vmatpush.msra.mxu0 0.0
      %1494 = vmatpush.msra.mxu0 0.0
      %1495 = vmatpush.msra.mxu0 0.0
      %1496 = vmatpush.msra.mxu0 0.0
      %1497 = vmatpush.msra.mxu0 0.0
      %1498 = vmatpush.msra.mxu0 0.0
      %1499 = vmatpush.msra.mxu0 0.0
      %1500 = vmatpush.msra.mxu0 0.0
      %1501 = vmatpush.msra.mxu0 0.0
      %1502 = vmatpush.msra.mxu0 %v1393
      %1503 = vmatpush.msra.mxu0 %v1391
      %1504 = vmatpush.msra.mxu0 %v1389
      %1505 = vmatpush.msra.mxu0 %v1387
      %1506 = vmatmul.f32.gmra.mxu0 %v1421
      %v1507 = vpop.f32.mrf.mxu0
      %v1508 = vadd.f32 %v1479, %v1507
      %1509 = vmatmul.f32.gmra.mxu0 %v1424
      %v1510 = vpop.f32.mrf.mxu0
      %v1511 = vadd.f32 %v1482, %v1510
      %1512 = vmatmul.f32.gmra.mxu0 %v1427
      %v1513 = vpop.f32.mrf.mxu0
      %v1514 = vadd.f32 %v1485, %v1513
      %1515 = vmatmul.f32.gmra.mxu0 %v1430
      %v1516 = vpop.f32.mrf.mxu0
      %v1517 = vadd.f32 %v1488, %v1516
      %1518 = vdwg.mxu0
      %1519 = vmatpush.msra.mxu0 %v1354
      %1520 = vmatpush.msra.mxu0 %v1352
      %1521 = vmatpush.msra.mxu0 %v1350
      %1522 = vmatpush.msra.mxu0 %v1348
      %1523 = vmatpush.msra.mxu0 %v1346
      %1524 = vmatpush.msra.mxu0 %v1344
      %1525 = vmatpush.msra.mxu0 %v1342
      %1526 = vmatpush.msra.mxu0 %v1340
      %1527 = vmatpush.msra.mxu0 %v1338
      %1528 = vmatpush.msra.mxu0 %v1336
      %1529 = vmatpush.msra.mxu0 %v1334
      %1530 = vmatpush.msra.mxu0 %v1332
      %1531 = vmatpush.msra.mxu0 %v1330
      %1532 = vmatpush.msra.mxu0 %v1328
      %1533 = vmatpush.msra.mxu0 %v1326
      %1534 = vmatpush.msra.mxu0 %v1324
      %1535 = vmatmul.f32.gmra.mxu0 %v1311
      %v1536 = vpop.f32.mrf.mxu0
      %v1537 = vadd.f32 %v1403, %v1536
      %1538 = vmatmul.f32.gmra.mxu0 %v1314
      %v1539 = vpop.f32.mrf.mxu0
      %v1540 = vadd.f32 %v1408, %v1539
      %1541 = vmatmul.f32.gmra.mxu0 %v1317
      %v1542 = vpop.f32.mrf.mxu0
      %v1543 = vadd.f32 %v1413, %v1542
      %1544 = vmatmul.f32.gmra.mxu0 %v1320
      %v1545 = vpop.f32.mrf.mxu0
      %v1546 = vadd.f32 %v1418, %v1545
      %1547 = vdwg.mxu0
      %1548 = vmatpush.msra.mxu0 %v1386
      %1549 = vmatpush.msra.mxu0 %v1384
      %1550 = vmatpush.msra.mxu0 %v1382
      %1551 = vmatpush.msra.mxu0 %v1380
      %1552 = vmatpush.msra.mxu0 %v1378
      %1553 = vmatpush.msra.mxu0 %v1376
      %1554 = vmatpush.msra.mxu0 %v1374
      %1555 = vmatpush.msra.mxu0 %v1372
      %1556 = vmatpush.msra.mxu0 %v1370
      %1557 = vmatpush.msra.mxu0 %v1368
      %1558 = vmatpush.msra.mxu0 %v1366
      %1559 = vmatpush.msra.mxu0 %v1364
      %1560 = vmatpush.msra.mxu0 %v1362
      %1561 = vmatpush.msra.mxu0 %v1360
      %1562 = vmatpush.msra.mxu0 %v1358
      %1563 = vmatpush.msra.mxu0 %v1356
      %1564 = vmatmul.f32.gmra.mxu0 %v1312
      %v1565 = vpop.f32.mrf.mxu0
      %v1566 = vadd.f32 %v1537, %v1565
      %1567 = vmatmul.f32.gmra.mxu0 %v1315
      %v1568 = vpop.f32.mrf.mxu0
      %v1569 = vadd.f32 %v1540, %v1568
      %1570 = vmatmul.f32.gmra.mxu0 %v1318
      %v1571 = vpop.f32.mrf.mxu0
      %v1572 = vadd.f32 %v1543, %v1571
      %1573 = vmatmul.f32.gmra.mxu0 %v1321
      %v1574 = vpop.f32.mrf.mxu0
      %v1575 = vadd.f32 %v1546, %v1574
      %1576 = vdwg.mxu0
      %1577 = vmatpush.msra.mxu0 0.0
      %1578 = vmatpush.msra.mxu0 0.0
      %1579 = vmatpush.msra.mxu0 0.0
      %1580 = vmatpush.msra.mxu0 0.0
      %1581 = vmatpush.msra.mxu0 0.0
      %1582 = vmatpush.msra.mxu0 0.0
      %1583 = vmatpush.msra.mxu0 0.0
      %1584 = vmatpush.msra.mxu0 0.0
      %1585 = vmatpush.msra.mxu0 0.0
      %1586 = vmatpush.msra.mxu0 0.0
      %1587 = vmatpush.msra.mxu0 0.0
      %1588 = vmatpush.msra.mxu0 0.0
      %1589 = vmatpush.msra.mxu0 %v1394
      %1590 = vmatpush.msra.mxu0 %v1392
      %1591 = vmatpush.msra.mxu0 %v1390
      %1592 = vmatpush.msra.mxu0 %v1388
      %1593 = vmatmul.f32.gmra.mxu0 %v1421
      %v1594 = vpop.f32.mrf.mxu0
      %v1595 = vadd.f32 %v1566, %v1594
      %1596 = vmatmul.f32.gmra.mxu0 %v1424
      %v1597 = vpop.f32.mrf.mxu0
      %v1598 = vadd.f32 %v1569, %v1597
      %1599 = vmatmul.f32.gmra.mxu0 %v1427
      %v1600 = vpop.f32.mrf.mxu0
      %v1601 = vadd.f32 %v1572, %v1600
      %1602 = vmatmul.f32.gmra.mxu0 %v1430
      %v1603 = vpop.f32.mrf.mxu0
      %v1604 = vadd.f32 %v1575, %v1603
      %1605 = vdwg.mxu0
      %v1606 = vmax.f32 %v1508, 0.0
      %v1607 = vmax.f32 %v1595, 0.0
      %v1608 = vmax.f32 %v1511, 0.0
      %v1609 = vmax.f32 %v1598, 0.0
      %v1610 = vmax.f32 %v1514, 0.0
      %v1611 = vmax.f32 %v1601, 0.0
      %v1612 = vmax.f32 %v1517, 0.0
      %v1613 = vmax.f32 %v1604, 0.0
      %1614 = vrot.lane.b32.xlu0 %v1606, 17
      %v1615 = vpop.permute.xlu0 %1614
      %1616 = vrot.lane.b32.xlu0 %v1608, 17
      %v1617 = vpop.permute.xlu0 %1616
      %1618 = vrot.lane.b32.xlu0 %v1610, 17
      %v1619 = vpop.permute.xlu0 %1618
      %1620 = vrot.lane.b32.xlu0 %v1612, 17
      %v1621 = vpop.permute.xlu0 %1620
      %1622 = vrot.lane.b32.xlu0 %v1607, 17
      %v1623 = vpop.permute.xlu0 %1622
      %1624 = vrot.lane.b32.xlu0 %v1609, 17
      %v1625 = vpop.permute.xlu0 %1624
      %1626 = vrot.lane.b32.xlu0 %v1611, 17
      %v1627 = vpop.permute.xlu0 %1626
      %1628 = vrot.lane.b32.xlu0 %v1613, 17
      %v1629 = vpop.permute.xlu0 %1628
      %v1630 = vsel %vm224, %v1615, %v1623
      %v1631 = vsel %vm224, %v1617, %v1625
      %v1632 = vsel %vm224, %v1619, %v1627
      %v1633 = vsel %vm224, %v1621, %v1629
      %v1634 = vsel %vm224, %v1623, %v1615
      %v1635 = vsel %vm224, %v1625, %v1617
      %v1636 = vsel %vm224, %v1627, %v1619
      %v1637 = vsel %vm224, %v1629, %v1621
      %v1638 = vld [vmem:[%s3] sm:$0xff]
      %v1639 = vld [vmem:[%s3 + $0x8] sm:$0xff]
      %v1640 = vld [vmem:[%s3 + $0x10] sm:$0xff]
      %v1641 = vld [vmem:[%s3 + $0x18] sm:$0xff]
      %v1642 = vld [vmem:[%s3 + $0x20] sm:$0xff]
      %v1643 = vld [vmem:[%s3 + $0x28] sm:$0xff]
      %v1644 = vld [vmem:[%s3 + $0x30] sm:$0xff]
      %v1645 = vld [vmem:[%s3 + $0x38] sm:$0xff]
      %v1646 = vmul.f32 %v1634, %v1638
      %v1647 = vmul.f32 %v1630, %v1639
      %v1648 = vmul.f32 %v1635, %v1640
      %v1649 = vmul.f32 %v1631, %v1641
      %v1650 = vmul.f32 %v1636, %v1642
      %v1651 = vmul.f32 %v1632, %v1643
      %v1652 = vmul.f32 %v1637, %v1644
      %v1653 = vmul.f32 %v1633, %v1645
      %1654 = vst [vmem:[#allocation2] sm:$0xff] %v1646
      %1655 = vst [vmem:[#allocation2 + $0x8] sm:$0xff] %v1647
      %1656 = vst [vmem:[#allocation2 + $0x10] sm:$0xff] %v1648
      %1657 = vst [vmem:[#allocation2 + $0x18] sm:$0xff] %v1649
      %1658 = vst [vmem:[#allocation2 + $0x20] sm:$0xff] %v1650
      %1659 = vst [vmem:[#allocation2 + $0x28] sm:$0xff] %v1651
      %1660 = vst [vmem:[#allocation2 + $0x30] sm:$0xff] %v1652
      %1661 = vst [vmem:[#allocation2 + $0x38] sm:$0xff] %v1653
      %1662 = vrot.lane.b32.xlu0 %v1606, 16
      %v1663 = vpop.permute.xlu0 %1662
      %1664 = vrot.lane.b32.xlu0 %v1608, 16
      %v1665 = vpop.permute.xlu0 %1664
      %1666 = vrot.lane.b32.xlu0 %v1610, 16
      %v1667 = vpop.permute.xlu0 %1666
      %1668 = vrot.lane.b32.xlu0 %v1612, 16
      %v1669 = vpop.permute.xlu0 %1668
      %1670 = vrot.lane.b32.xlu0 %v1607, 16
      %v1671 = vpop.permute.xlu0 %1670
      %1672 = vrot.lane.b32.xlu0 %v1609, 16
      %v1673 = vpop.permute.xlu0 %1672
      %1674 = vrot.lane.b32.xlu0 %v1611, 16
      %v1675 = vpop.permute.xlu0 %1674
      %1676 = vrot.lane.b32.xlu0 %v1613, 16
      %v1677 = vpop.permute.xlu0 %1676
      %v1678 = vsel %vm273, %v1663, %v1671
      %v1679 = vsel %vm273, %v1665, %v1673
      %v1680 = vsel %vm273, %v1667, %v1675
      %v1681 = vsel %vm273, %v1669, %v1677
      %v1682 = vsel %vm273, %v1671, %v1663
      %v1683 = vsel %vm273, %v1673, %v1665
      %v1684 = vsel %vm273, %v1675, %v1667
      %v1685 = vsel %vm273, %v1677, %v1669
      %v1686 = vld [vmem:[%s282] sm:$0xff]
      %v1687 = vld [vmem:[%s282 + $0x8] sm:$0xff]
      %v1688 = vld [vmem:[%s282 + $0x10] sm:$0xff]
      %v1689 = vld [vmem:[%s282 + $0x18] sm:$0xff]
      %v1690 = vld [vmem:[%s282 + $0x20] sm:$0xff]
      %v1691 = vld [vmem:[%s282 + $0x28] sm:$0xff]
      %v1692 = vld [vmem:[%s282 + $0x30] sm:$0xff]
      %v1693 = vld [vmem:[%s282 + $0x38] sm:$0xff]
      %v1694 = vmul.f32 %v1682, %v1686
      %v1695 = vmul.f32 %v1678, %v1687
      %v1696 = vmul.f32 %v1683, %v1688
      %v1697 = vmul.f32 %v1679, %v1689
      %v1698 = vmul.f32 %v1684, %v1690
      %v1699 = vmul.f32 %v1680, %v1691
      %v1700 = vmul.f32 %v1685, %v1692
      %v1701 = vmul.f32 %v1681, %v1693
      %1702 = vst [vmem:[#allocation2 + $0x40] sm:$0xff] %v1694
      %1703 = vst [vmem:[#allocation2 + $0x48] sm:$0xff] %v1695
      %1704 = vst [vmem:[#allocation2 + $0x50] sm:$0xff] %v1696
      %1705 = vst [vmem:[#allocation2 + $0x58] sm:$0xff] %v1697
      %1706 = vst [vmem:[#allocation2 + $0x60] sm:$0xff] %v1698
      %1707 = vst [vmem:[#allocation2 + $0x68] sm:$0xff] %v1699
      %1708 = vst [vmem:[#allocation2 + $0x70] sm:$0xff] %v1700
      %1709 = vst [vmem:[#allocation2 + $0x78] sm:$0xff] %v1701
      %1710 = vrot.lane.b32.xlu0 %v1606, 15
      %v1711 = vpop.permute.xlu0 %1710
      %1712 = vrot.lane.b32.xlu0 %v1608, 15
      %v1713 = vpop.permute.xlu0 %1712
      %1714 = vrot.lane.b32.xlu0 %v1610, 15
      %v1715 = vpop.permute.xlu0 %1714
      %1716 = vrot.lane.b32.xlu0 %v1612, 15
      %v1717 = vpop.permute.xlu0 %1716
      %1718 = vrot.lane.b32.xlu0 %v1607, 15
      %v1719 = vpop.permute.xlu0 %1718
      %1720 = vrot.lane.b32.xlu0 %v1609, 15
      %v1721 = vpop.permute.xlu0 %1720
      %1722 = vrot.lane.b32.xlu0 %v1611, 15
      %v1723 = vpop.permute.xlu0 %1722
      %1724 = vrot.lane.b32.xlu0 %v1613, 15
      %v1725 = vpop.permute.xlu0 %1724
      %v1726 = vsel %vm323, %v1711, %v1719
      %v1727 = vsel %vm323, %v1713, %v1721
      %v1728 = vsel %vm323, %v1715, %v1723
      %v1729 = vsel %vm323, %v1717, %v1725
      %v1730 = vsel %vm323, %v1719, %v1711
      %v1731 = vsel %vm323, %v1721, %v1713
      %v1732 = vsel %vm323, %v1723, %v1715
      %v1733 = vsel %vm323, %v1725, %v1717
      %v1734 = vld [vmem:[%s332] sm:$0xff]
      %v1735 = vld [vmem:[%s332 + $0x8] sm:$0xff]
      %v1736 = vld [vmem:[%s332 + $0x10] sm:$0xff]
      %v1737 = vld [vmem:[%s332 + $0x18] sm:$0xff]
      %v1738 = vld [vmem:[%s332 + $0x20] sm:$0xff]
      %v1739 = vld [vmem:[%s332 + $0x28] sm:$0xff]
      %v1740 = vld [vmem:[%s332 + $0x30] sm:$0xff]
      %v1741 = vld [vmem:[%s332 + $0x38] sm:$0xff]
      %v1742 = vmul.f32 %v1730, %v1734
      %v1743 = vmul.f32 %v1726, %v1735
      %v1744 = vmul.f32 %v1731, %v1736
      %v1745 = vmul.f32 %v1727, %v1737
      %v1746 = vmul.f32 %v1732, %v1738
      %v1747 = vmul.f32 %v1728, %v1739
      %v1748 = vmul.f32 %v1733, %v1740
      %v1749 = vmul.f32 %v1729, %v1741
      %1750 = vst [vmem:[#allocation2 + $0x80] sm:$0xff] %v1742
      %1751 = vst [vmem:[#allocation2 + $0x88] sm:$0xff] %v1743
      %1752 = vst [vmem:[#allocation2 + $0x90] sm:$0xff] %v1744
      %1753 = vst [vmem:[#allocation2 + $0x98] sm:$0xff] %v1745
      %1754 = vst [vmem:[#allocation2 + $0xa0] sm:$0xff] %v1746
      %1755 = vst [vmem:[#allocation2 + $0xa8] sm:$0xff] %v1747
      %1756 = vst [vmem:[#allocation2 + $0xb0] sm:$0xff] %v1748
      %1757 = vst [vmem:[#allocation2 + $0xb8] sm:$0xff] %v1749
      %1758 = vrot.lane.b32.xlu0 %v1606, 1
      %v1759 = vpop.permute.xlu0 %1758
      %1760 = vrot.lane.b32.xlu0 %v1608, 1
      %v1761 = vpop.permute.xlu0 %1760
      %1762 = vrot.lane.b32.xlu0 %v1610, 1
      %v1763 = vpop.permute.xlu0 %1762
      %1764 = vrot.lane.b32.xlu0 %v1612, 1
      %v1765 = vpop.permute.xlu0 %1764
      %1766 = vrot.lane.b32.xlu0 %v1607, 1
      %v1767 = vpop.permute.xlu0 %1766
      %1768 = vrot.lane.b32.xlu0 %v1609, 1
      %v1769 = vpop.permute.xlu0 %1768
      %1770 = vrot.lane.b32.xlu0 %v1611, 1
      %v1771 = vpop.permute.xlu0 %1770
      %1772 = vrot.lane.b32.xlu0 %v1613, 1
      %v1773 = vpop.permute.xlu0 %1772
      %v1774 = vsel %vm373, %v1759, %v1767
      %v1775 = vsel %vm373, %v1761, %v1769
      %v1776 = vsel %vm373, %v1763, %v1771
      %v1777 = vsel %vm373, %v1765, %v1773
      %v1778 = vsel %vm373, %v1767, %v1759
      %v1779 = vsel %vm373, %v1769, %v1761
      %v1780 = vsel %vm373, %v1771, %v1763
      %v1781 = vsel %vm373, %v1773, %v1765
      %v1782 = vld [vmem:[%s382] sm:$0xff]
      %v1783 = vld [vmem:[%s382 + $0x8] sm:$0xff]
      %v1784 = vld [vmem:[%s382 + $0x10] sm:$0xff]
      %v1785 = vld [vmem:[%s382 + $0x18] sm:$0xff]
      %v1786 = vld [vmem:[%s382 + $0x20] sm:$0xff]
      %v1787 = vld [vmem:[%s382 + $0x28] sm:$0xff]
      %v1788 = vld [vmem:[%s382 + $0x30] sm:$0xff]
      %v1789 = vld [vmem:[%s382 + $0x38] sm:$0xff]
      %v1790 = vmul.f32 %v1778, %v1782
      %v1791 = vmul.f32 %v1774, %v1783
      %v1792 = vmul.f32 %v1779, %v1784
      %v1793 = vmul.f32 %v1775, %v1785
      %v1794 = vmul.f32 %v1780, %v1786
      %v1795 = vmul.f32 %v1776, %v1787
      %v1796 = vmul.f32 %v1781, %v1788
      %v1797 = vmul.f32 %v1777, %v1789
      %1798 = vst [vmem:[#allocation2 + $0xc0] sm:$0xff] %v1790
      %1799 = vst [vmem:[#allocation2 + $0xc8] sm:$0xff] %v1791
      %1800 = vst [vmem:[#allocation2 + $0xd0] sm:$0xff] %v1792
      %1801 = vst [vmem:[#allocation2 + $0xd8] sm:$0xff] %v1793
      %1802 = vst [vmem:[#allocation2 + $0xe0] sm:$0xff] %v1794
      %1803 = vst [vmem:[#allocation2 + $0xe8] sm:$0xff] %v1795
      %1804 = vst [vmem:[#allocation2 + $0xf0] sm:$0xff] %v1796
      %1805 = vst [vmem:[#allocation2 + $0xf8] sm:$0xff] %v1797
      %1806 = vst [vmem:[#allocation2 + $0x100] sm:$0xff] %v1606
      %1807 = vst [vmem:[#allocation2 + $0x108] sm:$0xff] %v1607
      %1808 = vst [vmem:[#allocation2 + $0x110] sm:$0xff] %v1608
      %1809 = vst [vmem:[#allocation2 + $0x118] sm:$0xff] %v1609
      %1810 = vst [vmem:[#allocation2 + $0x120] sm:$0xff] %v1610
      %1811 = vst [vmem:[#allocation2 + $0x128] sm:$0xff] %v1611
      %1812 = vst [vmem:[#allocation2 + $0x130] sm:$0xff] %v1612
      %1813 = vst [vmem:[#allocation2 + $0x138] sm:$0xff] %v1613
      %1814 = vrot.lane.b32.xlu0 %v1606, 127
      %v1815 = vpop.permute.xlu0 %1814
      %1816 = vrot.lane.b32.xlu0 %v1608, 127
      %v1817 = vpop.permute.xlu0 %1816
      %1818 = vrot.lane.b32.xlu0 %v1610, 127
      %v1819 = vpop.permute.xlu0 %1818
      %1820 = vrot.lane.b32.xlu0 %v1612, 127
      %v1821 = vpop.permute.xlu0 %1820
      %1822 = vrot.lane.b32.xlu0 %v1607, 127
      %v1823 = vpop.permute.xlu0 %1822
      %1824 = vrot.lane.b32.xlu0 %v1609, 127
      %v1825 = vpop.permute.xlu0 %1824
      %1826 = vrot.lane.b32.xlu0 %v1611, 127
      %v1827 = vpop.permute.xlu0 %1826
      %1828 = vrot.lane.b32.xlu0 %v1613, 127
      %v1829 = vpop.permute.xlu0 %1828
      %v1830 = vsel %vm431, %v1815, %v1823
      %v1831 = vsel %vm431, %v1817, %v1825
      %v1832 = vsel %vm431, %v1819, %v1827
      %v1833 = vsel %vm431, %v1821, %v1829
      %v1834 = vsel %vm431, %v1823, %v1815
      %v1835 = vsel %vm431, %v1825, %v1817
      %v1836 = vsel %vm431, %v1827, %v1819
      %v1837 = vsel %vm431, %v1829, %v1821
      %v1838 = vld [vmem:[%s440] sm:$0xff]
      %v1839 = vld [vmem:[%s440 + $0x8] sm:$0xff]
      %v1840 = vld [vmem:[%s440 + $0x10] sm:$0xff]
      %v1841 = vld [vmem:[%s440 + $0x18] sm:$0xff]
      %v1842 = vld [vmem:[%s440 + $0x20] sm:$0xff]
      %v1843 = vld [vmem:[%s440 + $0x28] sm:$0xff]
      %v1844 = vld [vmem:[%s440 + $0x30] sm:$0xff]
      %v1845 = vld [vmem:[%s440 + $0x38] sm:$0xff]
      %v1846 = vmul.f32 %v1830, %v1838
      %v1847 = vmul.f32 %v1834, %v1839
      %v1848 = vmul.f32 %v1831, %v1840
      %v1849 = vmul.f32 %v1835, %v1841
      %v1850 = vmul.f32 %v1832, %v1842
      %v1851 = vmul.f32 %v1836, %v1843
      %v1852 = vmul.f32 %v1833, %v1844
      %v1853 = vmul.f32 %v1837, %v1845
      %1854 = vst [vmem:[#allocation2 + $0x140] sm:$0xff] %v1846
      %1855 = vst [vmem:[#allocation2 + $0x148] sm:$0xff] %v1847
      %1856 = vst [vmem:[#allocation2 + $0x150] sm:$0xff] %v1848
      %1857 = vst [vmem:[#allocation2 + $0x158] sm:$0xff] %v1849
      %1858 = vst [vmem:[#allocation2 + $0x160] sm:$0xff] %v1850
      %1859 = vst [vmem:[#allocation2 + $0x168] sm:$0xff] %v1851
      %1860 = vst [vmem:[#allocation2 + $0x170] sm:$0xff] %v1852
      %1861 = vst [vmem:[#allocation2 + $0x178] sm:$0xff] %v1853
      %1862 = vrot.lane.b32.xlu0 %v1606, 113
      %v1863 = vpop.permute.xlu0 %1862
      %1864 = vrot.lane.b32.xlu0 %v1608, 113
      %v1865 = vpop.permute.xlu0 %1864
      %1866 = vrot.lane.b32.xlu0 %v1610, 113
      %v1867 = vpop.permute.xlu0 %1866
      %1868 = vrot.lane.b32.xlu0 %v1612, 113
      %v1869 = vpop.permute.xlu0 %1868
      %1870 = vrot.lane.b32.xlu0 %v1607, 113
      %v1871 = vpop.permute.xlu0 %1870
      %1872 = vrot.lane.b32.xlu0 %v1609, 113
      %v1873 = vpop.permute.xlu0 %1872
      %1874 = vrot.lane.b32.xlu0 %v1611, 113
      %v1875 = vpop.permute.xlu0 %1874
      %1876 = vrot.lane.b32.xlu0 %v1613, 113
      %v1877 = vpop.permute.xlu0 %1876
      %v1878 = vsel %vm481, %v1863, %v1871
      %v1879 = vsel %vm481, %v1865, %v1873
      %v1880 = vsel %vm481, %v1867, %v1875
      %v1881 = vsel %vm481, %v1869, %v1877
      %v1882 = vsel %vm481, %v1871, %v1863
      %v1883 = vsel %vm481, %v1873, %v1865
      %v1884 = vsel %vm481, %v1875, %v1867
      %v1885 = vsel %vm481, %v1877, %v1869
      %v1886 = vld [vmem:[%s490] sm:$0xff]
      %v1887 = vld [vmem:[%s490 + $0x8] sm:$0xff]
      %v1888 = vld [vmem:[%s490 + $0x10] sm:$0xff]
      %v1889 = vld [vmem:[%s490 + $0x18] sm:$0xff]
      %v1890 = vld [vmem:[%s490 + $0x20] sm:$0xff]
      %v1891 = vld [vmem:[%s490 + $0x28] sm:$0xff]
      %v1892 = vld [vmem:[%s490 + $0x30] sm:$0xff]
      %v1893 = vld [vmem:[%s490 + $0x38] sm:$0xff]
      %v1894 = vmul.f32 %v1878, %v1886
      %v1895 = vmul.f32 %v1882, %v1887
      %v1896 = vmul.f32 %v1879, %v1888
      %v1897 = vmul.f32 %v1883, %v1889
      %v1898 = vmul.f32 %v1880, %v1890
      %v1899 = vmul.f32 %v1884, %v1891
      %v1900 = vmul.f32 %v1881, %v1892
      %v1901 = vmul.f32 %v1885, %v1893
      %1902 = vst [vmem:[#allocation2 + $0x180] sm:$0xff] %v1894
      %1903 = vst [vmem:[#allocation2 + $0x188] sm:$0xff] %v1895
      %1904 = vst [vmem:[#allocation2 + $0x190] sm:$0xff] %v1896
      %1905 = vst [vmem:[#allocation2 + $0x198] sm:$0xff] %v1897
      %1906 = vst [vmem:[#allocation2 + $0x1a0] sm:$0xff] %v1898
      %1907 = vst [vmem:[#allocation2 + $0x1a8] sm:$0xff] %v1899
      %1908 = vst [vmem:[#allocation2 + $0x1b0] sm:$0xff] %v1900
      %1909 = vst [vmem:[#allocation2 + $0x1b8] sm:$0xff] %v1901
      %1910 = vrot.lane.b32.xlu0 %v1606, 112
      %v1911 = vpop.permute.xlu0 %1910
      %1912 = vrot.lane.b32.xlu0 %v1608, 112
      %v1913 = vpop.permute.xlu0 %1912
      %1914 = vrot.lane.b32.xlu0 %v1610, 112
      %v1915 = vpop.permute.xlu0 %1914
      %1916 = vrot.lane.b32.xlu0 %v1612, 112
      %v1917 = vpop.permute.xlu0 %1916
      %1918 = vrot.lane.b32.xlu0 %v1607, 112
      %v1919 = vpop.permute.xlu0 %1918
      %1920 = vrot.lane.b32.xlu0 %v1609, 112
      %v1921 = vpop.permute.xlu0 %1920
      %1922 = vrot.lane.b32.xlu0 %v1611, 112
      %v1923 = vpop.permute.xlu0 %1922
      %1924 = vrot.lane.b32.xlu0 %v1613, 112
      %v1925 = vpop.permute.xlu0 %1924
      %v1926 = vsel %vm531, %v1911, %v1919
      %v1927 = vsel %vm531, %v1913, %v1921
      %v1928 = vsel %vm531, %v1915, %v1923
      %v1929 = vsel %vm531, %v1917, %v1925
      %v1930 = vsel %vm531, %v1919, %v1911
      %v1931 = vsel %vm531, %v1921, %v1913
      %v1932 = vsel %vm531, %v1923, %v1915
      %v1933 = vsel %vm531, %v1925, %v1917
      %v1934 = vld [vmem:[%s540] sm:$0xff]
      %v1935 = vld [vmem:[%s540 + $0x8] sm:$0xff]
      %v1936 = vld [vmem:[%s540 + $0x10] sm:$0xff]
      %v1937 = vld [vmem:[%s540 + $0x18] sm:$0xff]
      %v1938 = vld [vmem:[%s540 + $0x20] sm:$0xff]
      %v1939 = vld [vmem:[%s540 + $0x28] sm:$0xff]
      %v1940 = vld [vmem:[%s540 + $0x30] sm:$0xff]
      %v1941 = vld [vmem:[%s540 + $0x38] sm:$0xff]
      %v1942 = vmul.f32 %v1926, %v1934
      %v1943 = vmul.f32 %v1930, %v1935
      %v1944 = vmul.f32 %v1927, %v1936
      %v1945 = vmul.f32 %v1931, %v1937
      %v1946 = vmul.f32 %v1928, %v1938
      %v1947 = vmul.f32 %v1932, %v1939
      %v1948 = vmul.f32 %v1929, %v1940
      %v1949 = vmul.f32 %v1933, %v1941
      %1950 = vst [vmem:[#allocation2 + $0x1c0] sm:$0xff] %v1942
      %1951 = vst [vmem:[#allocation2 + $0x1c8] sm:$0xff] %v1943
      %1952 = vst [vmem:[#allocation2 + $0x1d0] sm:$0xff] %v1944
      %1953 = vst [vmem:[#allocation2 + $0x1d8] sm:$0xff] %v1945
      %1954 = vst [vmem:[#allocation2 + $0x1e0] sm:$0xff] %v1946
      %1955 = vst [vmem:[#allocation2 + $0x1e8] sm:$0xff] %v1947
      %1956 = vst [vmem:[#allocation2 + $0x1f0] sm:$0xff] %v1948
      %1957 = vst [vmem:[#allocation2 + $0x1f8] sm:$0xff] %v1949
      %1958 = vrot.lane.b32.xlu0 %v1606, 111
      %v1959 = vpop.permute.xlu0 %1958
      %1960 = vrot.lane.b32.xlu0 %v1608, 111
      %v1961 = vpop.permute.xlu0 %1960
      %1962 = vrot.lane.b32.xlu0 %v1610, 111
      %v1963 = vpop.permute.xlu0 %1962
      %1964 = vrot.lane.b32.xlu0 %v1612, 111
      %v1965 = vpop.permute.xlu0 %1964
      %1966 = vrot.lane.b32.xlu0 %v1607, 111
      %v1967 = vpop.permute.xlu0 %1966
      %1968 = vrot.lane.b32.xlu0 %v1609, 111
      %v1969 = vpop.permute.xlu0 %1968
      %1970 = vrot.lane.b32.xlu0 %v1611, 111
      %v1971 = vpop.permute.xlu0 %1970
      %1972 = vrot.lane.b32.xlu0 %v1613, 111
      %v1973 = vpop.permute.xlu0 %1972
      %v1974 = vsel %vm581, %v1959, %v1967
      %v1975 = vsel %vm581, %v1961, %v1969
      %v1976 = vsel %vm581, %v1963, %v1971
      %v1977 = vsel %vm581, %v1965, %v1973
      %v1978 = vsel %vm581, %v1967, %v1959
      %v1979 = vsel %vm581, %v1969, %v1961
      %v1980 = vsel %vm581, %v1971, %v1963
      %v1981 = vsel %vm581, %v1973, %v1965
      %v1982 = vld [vmem:[%s590] sm:$0xff]
      %v1983 = vld [vmem:[%s590 + $0x8] sm:$0xff]
      %v1984 = vld [vmem:[%s590 + $0x10] sm:$0xff]
      %v1985 = vld [vmem:[%s590 + $0x18] sm:$0xff]
      %v1986 = vld [vmem:[%s590 + $0x20] sm:$0xff]
      %v1987 = vld [vmem:[%s590 + $0x28] sm:$0xff]
      %v1988 = vld [vmem:[%s590 + $0x30] sm:$0xff]
      %v1989 = vld [vmem:[%s590 + $0x38] sm:$0xff]
      %v1990 = vmul.f32 %v1974, %v1982
      %v1991 = vmul.f32 %v1978, %v1983
      %v1992 = vmul.f32 %v1975, %v1984
      %v1993 = vmul.f32 %v1979, %v1985
      %v1994 = vmul.f32 %v1976, %v1986
      %v1995 = vmul.f32 %v1980, %v1987
      %v1996 = vmul.f32 %v1977, %v1988
      %v1997 = vmul.f32 %v1981, %v1989
      %1998 = vst [vmem:[#allocation2 + $0x200] sm:$0xff] %v1990
      %1999 = vst [vmem:[#allocation2 + $0x208] sm:$0xff] %v1991
      %2000 = vst [vmem:[#allocation2 + $0x210] sm:$0xff] %v1992
      %2001 = vst [vmem:[#allocation2 + $0x218] sm:$0xff] %v1993
      %2002 = vst [vmem:[#allocation2 + $0x220] sm:$0xff] %v1994
      %2003 = vst [vmem:[#allocation2 + $0x228] sm:$0xff] %v1995
      %2004 = vst [vmem:[#allocation2 + $0x230] sm:$0xff] %v1996
      %2005 = vst [vmem:[#allocation2 + $0x238] sm:$0xff] %v1997
      %s2006 = scalar_lea.vmem %s1, 192
      %v2007 = vld [vmem:[%s2006] sm:$0xff]
      %v2008 = vld [vmem:[%s2006 + $0x8] sm:$0xff]
      %v2009 = vld [vmem:[%s2006 + $0x10] sm:$0xff]
      %v2010 = vld [vmem:[%s2006 + $0x18] sm:$0xff]
      %v2011 = vld [vmem:[%s2006 + $0x20] sm:$0xff]
      %v2012 = vld [vmem:[%s2006 + $0x28] sm:$0xff]
      %v2013 = vld [vmem:[%s2006 + $0x30] sm:$0xff]
      %v2014 = vld [vmem:[%s2006 + $0x38] sm:$0xff]
      %v2015 = vld [vmem:[%s2006 + $0x40] sm:$0xff]
      %v2016 = vld [vmem:[%s2006 + $0x48] sm:$0xff]
      %v2017 = vld [vmem:[%s2006 + $0x50] sm:$0xff]
      %v2018 = vld [vmem:[%s2006 + $0x58] sm:$0xff]
      %v2019 = vld [vmem:[#allocation2] sm:$0xff]
      %v2020 = vld [vmem:[#allocation2 + $0x8] sm:$0xff]
      %v2021 = vld [vmem:[#allocation2 + $0x10] sm:$0xff]
      %v2022 = vld [vmem:[#allocation2 + $0x18] sm:$0xff]
      %v2023 = vld [vmem:[#allocation2 + $0x20] sm:$0xff]
      %v2024 = vld [vmem:[#allocation2 + $0x28] sm:$0xff]
      %v2025 = vld [vmem:[#allocation2 + $0x30] sm:$0xff]
      %v2026 = vld [vmem:[#allocation2 + $0x38] sm:$0xff]
      %v2027 = vld [vmem:[#allocation2 + $0x40] sm:$0xff]
      %v2028 = vld [vmem:[#allocation2 + $0x48] sm:$0xff]
      %v2029 = vld [vmem:[#allocation2 + $0x50] sm:$0xff]
      %v2030 = vld [vmem:[#allocation2 + $0x58] sm:$0xff]
      %v2031 = vld [vmem:[#allocation2 + $0x60] sm:$0xff]
      %v2032 = vld [vmem:[#allocation2 + $0x68] sm:$0xff]
      %v2033 = vld [vmem:[#allocation2 + $0x70] sm:$0xff]
      %v2034 = vld [vmem:[#allocation2 + $0x78] sm:$0xff]
      %v2035 = vld [vmem:[#allocation2 + $0x80] sm:$0xff]
      %v2036 = vld [vmem:[#allocation2 + $0x88] sm:$0xff]
      %v2037 = vld [vmem:[#allocation2 + $0x90] sm:$0xff]
      %v2038 = vld [vmem:[#allocation2 + $0x98] sm:$0xff]
      %v2039 = vld [vmem:[#allocation2 + $0xa0] sm:$0xff]
      %v2040 = vld [vmem:[#allocation2 + $0xa8] sm:$0xff]
      %v2041 = vld [vmem:[#allocation2 + $0xb0] sm:$0xff]
      %v2042 = vld [vmem:[#allocation2 + $0xb8] sm:$0xff]
      %v2043 = vld [vmem:[#allocation2 + $0xc0] sm:$0xff]
      %v2044 = vld [vmem:[#allocation2 + $0xc8] sm:$0xff]
      %v2045 = vld [vmem:[#allocation2 + $0xd0] sm:$0xff]
      %v2046 = vld [vmem:[#allocation2 + $0xd8] sm:$0xff]
      %v2047 = vld [vmem:[#allocation2 + $0xe0] sm:$0xff]
      %v2048 = vld [vmem:[#allocation2 + $0xe8] sm:$0xff]
      %v2049 = vld [vmem:[#allocation2 + $0xf0] sm:$0xff]
      %v2050 = vld [vmem:[#allocation2 + $0xf8] sm:$0xff]
      %v2051 = vld [vmem:[#allocation2 + $0x100] sm:$0xff]
      %v2052 = vld [vmem:[#allocation2 + $0x108] sm:$0xff]
      %v2053 = vld [vmem:[#allocation2 + $0x110] sm:$0xff]
      %v2054 = vld [vmem:[#allocation2 + $0x118] sm:$0xff]
      %v2055 = vld [vmem:[#allocation2 + $0x120] sm:$0xff]
      %v2056 = vld [vmem:[#allocation2 + $0x128] sm:$0xff]
      %v2057 = vld [vmem:[#allocation2 + $0x130] sm:$0xff]
      %v2058 = vld [vmem:[#allocation2 + $0x138] sm:$0xff]
      %v2059 = vld [vmem:[#allocation2 + $0x140] sm:$0xff]
      %v2060 = vld [vmem:[#allocation2 + $0x148] sm:$0xff]
      %v2061 = vld [vmem:[#allocation2 + $0x150] sm:$0xff]
      %v2062 = vld [vmem:[#allocation2 + $0x158] sm:$0xff]
      %v2063 = vld [vmem:[#allocation2 + $0x160] sm:$0xff]
      %v2064 = vld [vmem:[#allocation2 + $0x168] sm:$0xff]
      %v2065 = vld [vmem:[#allocation2 + $0x170] sm:$0xff]
      %v2066 = vld [vmem:[#allocation2 + $0x178] sm:$0xff]
      %v2067 = vld [vmem:[#allocation2 + $0x180] sm:$0xff]
      %v2068 = vld [vmem:[#allocation2 + $0x188] sm:$0xff]
      %v2069 = vld [vmem:[#allocation2 + $0x190] sm:$0xff]
      %v2070 = vld [vmem:[#allocation2 + $0x198] sm:$0xff]
      %v2071 = vld [vmem:[#allocation2 + $0x1a0] sm:$0xff]
      %v2072 = vld [vmem:[#allocation2 + $0x1a8] sm:$0xff]
      %v2073 = vld [vmem:[#allocation2 + $0x1b0] sm:$0xff]
      %v2074 = vld [vmem:[#allocation2 + $0x1b8] sm:$0xff]
      %v2075 = vld [vmem:[#allocation2 + $0x1c0] sm:$0xff]
      %v2076 = vld [vmem:[#allocation2 + $0x1c8] sm:$0xff]
      %v2077 = vld [vmem:[#allocation2 + $0x1d0] sm:$0xff]
      %v2078 = vld [vmem:[#allocation2 + $0x1d8] sm:$0xff]
      %v2079 = vld [vmem:[#allocation2 + $0x1e0] sm:$0xff]
      %v2080 = vld [vmem:[#allocation2 + $0x1e8] sm:$0xff]
      %v2081 = vld [vmem:[#allocation2 + $0x1f0] sm:$0xff]
      %v2082 = vld [vmem:[#allocation2 + $0x1f8] sm:$0xff]
      %v2083 = vld [vmem:[#allocation2 + $0x200] sm:$0xff]
      %v2084 = vld [vmem:[#allocation2 + $0x208] sm:$0xff]
      %v2085 = vld [vmem:[#allocation2 + $0x210] sm:$0xff]
      %v2086 = vld [vmem:[#allocation2 + $0x218] sm:$0xff]
      %v2087 = vld [vmem:[#allocation2 + $0x220] sm:$0xff]
      %v2088 = vld [vmem:[#allocation2 + $0x228] sm:$0xff]
      %v2089 = vld [vmem:[#allocation2 + $0x230] sm:$0xff]
      %v2090 = vld [vmem:[#allocation2 + $0x238] sm:$0xff]
      %s2091 = scalar_lea.vmem %s2, 64
      %v2092 = vld [vmem:[%s2091] sm:$0xff]
      %v2093 = vld [vmem:[%s2091 + $0x8] sm:$0xff]
      %v2094 = vld [vmem:[%s2091 + $0x10] sm:$0xff]
      %v2095 = vld [vmem:[%s2091 + $0x18] sm:$0xff]
      %2097 = vset.pattern.permute.xlu0 0
      %2098 = vperm.xlu0 %2097, %v2092
      %v2099 = vpop.permute.xlu0 %2098
      %2102 = vset.pattern.permute.xlu0 0
      %2103 = vperm.xlu0 %2102, %v2093
      %v2104 = vpop.permute.xlu0 %2103
      %2107 = vset.pattern.permute.xlu0 0
      %2108 = vperm.xlu0 %2107, %v2094
      %v2109 = vpop.permute.xlu0 %2108
      %2112 = vset.pattern.permute.xlu0 0
      %2113 = vperm.xlu0 %2112, %v2095
      %v2114 = vpop.permute.xlu0 %2113
      %v2117 = vsel %vm723, %v2009, 0
      %v2120 = vsel %vm723, %v2012, 0
      %v2123 = vsel %vm723, %v2015, 0
      %v2126 = vsel %vm723, %v2018, 0
      %2128 = vmatpush.msra.mxu0 %v2049
      %2129 = vmatpush.msra.mxu0 %v2047
      %2130 = vmatpush.msra.mxu0 %v2045
      %2131 = vmatpush.msra.mxu0 %v2043
      %2132 = vmatpush.msra.mxu0 %v2041
      %2133 = vmatpush.msra.mxu0 %v2039
      %2134 = vmatpush.msra.mxu0 %v2037
      %2135 = vmatpush.msra.mxu0 %v2035
      %2136 = vmatpush.msra.mxu0 %v2033
      %2137 = vmatpush.msra.mxu0 %v2031
      %2138 = vmatpush.msra.mxu0 %v2029
      %2139 = vmatpush.msra.mxu0 %v2027
      %2140 = vmatpush.msra.mxu0 %v2025
      %2141 = vmatpush.msra.mxu0 %v2023
      %2142 = vmatpush.msra.mxu0 %v2021
      %2143 = vmatpush.msra.mxu0 %v2019
      %2144 = vmatmul.f32.gmra.mxu0 %v2007
      %v2145 = vpop.f32.mrf.mxu0
      %v2146 = vadd.f32 %v2099, %v2145
      %2147 = vmatmul.f32.gmra.mxu0 %v2010
      %v2148 = vpop.f32.mrf.mxu0
      %v2149 = vadd.f32 %v2104, %v2148
      %2150 = vmatmul.f32.gmra.mxu0 %v2013
      %v2151 = vpop.f32.mrf.mxu0
      %v2152 = vadd.f32 %v2109, %v2151
      %2153 = vmatmul.f32.gmra.mxu0 %v2016
      %v2154 = vpop.f32.mrf.mxu0
      %v2155 = vadd.f32 %v2114, %v2154
      %2156 = vdwg.mxu0
      %2157 = vmatpush.msra.mxu0 %v2081
      %2158 = vmatpush.msra.mxu0 %v2079
      %2159 = vmatpush.msra.mxu0 %v2077
      %2160 = vmatpush.msra.mxu0 %v2075
      %2161 = vmatpush.msra.mxu0 %v2073
      %2162 = vmatpush.msra.mxu0 %v2071
      %2163 = vmatpush.msra.mxu0 %v2069
      %2164 = vmatpush.msra.mxu0 %v2067
      %2165 = vmatpush.msra.mxu0 %v2065
      %2166 = vmatpush.msra.mxu0 %v2063
      %2167 = vmatpush.msra.mxu0 %v2061
      %2168 = vmatpush.msra.mxu0 %v2059
      %2169 = vmatpush.msra.mxu0 %v2057
      %2170 = vmatpush.msra.mxu0 %v2055
      %2171 = vmatpush.msra.mxu0 %v2053
      %2172 = vmatpush.msra.mxu0 %v2051
      %2173 = vmatmul.f32.gmra.mxu0 %v2008
      %v2174 = vpop.f32.mrf.mxu0
      %v2175 = vadd.f32 %v2146, %v2174
      %2176 = vmatmul.f32.gmra.mxu0 %v2011
      %v2177 = vpop.f32.mrf.mxu0
      %v2178 = vadd.f32 %v2149, %v2177
      %2179 = vmatmul.f32.gmra.mxu0 %v2014
      %v2180 = vpop.f32.mrf.mxu0
      %v2181 = vadd.f32 %v2152, %v2180
      %2182 = vmatmul.f32.gmra.mxu0 %v2017
      %v2183 = vpop.f32.mrf.mxu0
      %v2184 = vadd.f32 %v2155, %v2183
      %2185 = vdwg.mxu0
      %2186 = vmatpush.msra.mxu0 0.0
      %2187 = vmatpush.msra.mxu0 0.0
      %2188 = vmatpush.msra.mxu0 0.0
      %2189 = vmatpush.msra.mxu0 0.0
      %2190 = vmatpush.msra.mxu0 0.0
      %2191 = vmatpush.msra.mxu0 0.0
      %2192 = vmatpush.msra.mxu0 0.0
      %2193 = vmatpush.msra.mxu0 0.0
      %2194 = vmatpush.msra.mxu0 0.0
      %2195 = vmatpush.msra.mxu0 0.0
      %2196 = vmatpush.msra.mxu0 0.0
      %2197 = vmatpush.msra.mxu0 0.0
      %2198 = vmatpush.msra.mxu0 %v2089
      %2199 = vmatpush.msra.mxu0 %v2087
      %2200 = vmatpush.msra.mxu0 %v2085
      %2201 = vmatpush.msra.mxu0 %v2083
      %2202 = vmatmul.f32.gmra.mxu0 %v2117
      %v2203 = vpop.f32.mrf.mxu0
      %v2204 = vadd.f32 %v2175, %v2203
      %2205 = vmatmul.f32.gmra.mxu0 %v2120
      %v2206 = vpop.f32.mrf.mxu0
      %v2207 = vadd.f32 %v2178, %v2206
      %2208 = vmatmul.f32.gmra.mxu0 %v2123
      %v2209 = vpop.f32.mrf.mxu0
      %v2210 = vadd.f32 %v2181, %v2209
      %2211 = vmatmul.f32.gmra.mxu0 %v2126
      %v2212 = vpop.f32.mrf.mxu0
      %v2213 = vadd.f32 %v2184, %v2212
      %2214 = vdwg.mxu0
      %2215 = vmatpush.msra.mxu0 %v2050
      %2216 = vmatpush.msra.mxu0 %v2048
      %2217 = vmatpush.msra.mxu0 %v2046
      %2218 = vmatpush.msra.mxu0 %v2044
      %2219 = vmatpush.msra.mxu0 %v2042
      %2220 = vmatpush.msra.mxu0 %v2040
      %2221 = vmatpush.msra.mxu0 %v2038
      %2222 = vmatpush.msra.mxu0 %v2036
      %2223 = vmatpush.msra.mxu0 %v2034
      %2224 = vmatpush.msra.mxu0 %v2032
      %2225 = vmatpush.msra.mxu0 %v2030
      %2226 = vmatpush.msra.mxu0 %v2028
      %2227 = vmatpush.msra.mxu0 %v2026
      %2228 = vmatpush.msra.mxu0 %v2024
      %2229 = vmatpush.msra.mxu0 %v2022
      %2230 = vmatpush.msra.mxu0 %v2020
      %2231 = vmatmul.f32.gmra.mxu0 %v2007
      %v2232 = vpop.f32.mrf.mxu0
      %v2233 = vadd.f32 %v2099, %v2232
      %2234 = vmatmul.f32.gmra.mxu0 %v2010
      %v2235 = vpop.f32.mrf.mxu0
      %v2236 = vadd.f32 %v2104, %v2235
      %2237 = vmatmul.f32.gmra.mxu0 %v2013
      %v2238 = vpop.f32.mrf.mxu0
      %v2239 = vadd.f32 %v2109, %v2238
      %2240 = vmatmul.f32.gmra.mxu0 %v2016
      %v2241 = vpop.f32.mrf.mxu0
      %v2242 = vadd.f32 %v2114, %v2241
      %2243 = vdwg.mxu0
      %2244 = vmatpush.msra.mxu0 %v2082
      %2245 = vmatpush.msra.mxu0 %v2080
      %2246 = vmatpush.msra.mxu0 %v2078
      %2247 = vmatpush.msra.mxu0 %v2076
      %2248 = vmatpush.msra.mxu0 %v2074
      %2249 = vmatpush.msra.mxu0 %v2072
      %2250 = vmatpush.msra.mxu0 %v2070
      %2251 = vmatpush.msra.mxu0 %v2068
      %2252 = vmatpush.msra.mxu0 %v2066
      %2253 = vmatpush.msra.mxu0 %v2064
      %2254 = vmatpush.msra.mxu0 %v2062
      %2255 = vmatpush.msra.mxu0 %v2060
      %2256 = vmatpush.msra.mxu0 %v2058
      %2257 = vmatpush.msra.mxu0 %v2056
      %2258 = vmatpush.msra.mxu0 %v2054
      %2259 = vmatpush.msra.mxu0 %v2052
      %2260 = vmatmul.f32.gmra.mxu0 %v2008
      %v2261 = vpop.f32.mrf.mxu0
      %v2262 = vadd.f32 %v2233, %v2261
      %2263 = vmatmul.f32.gmra.mxu0 %v2011
      %v2264 = vpop.f32.mrf.mxu0
      %v2265 = vadd.f32 %v2236, %v2264
      %2266 = vmatmul.f32.gmra.mxu0 %v2014
      %v2267 = vpop.f32.mrf.mxu0
      %v2268 = vadd.f32 %v2239, %v2267
      %2269 = vmatmul.f32.gmra.mxu0 %v2017
      %v2270 = vpop.f32.mrf.mxu0
      %v2271 = vadd.f32 %v2242, %v2270
      %2272 = vdwg.mxu0
      %2273 = vmatpush.msra.mxu0 0.0
      %2274 = vmatpush.msra.mxu0 0.0
      %2275 = vmatpush.msra.mxu0 0.0
      %2276 = vmatpush.msra.mxu0 0.0
      %2277 = vmatpush.msra.mxu0 0.0
      %2278 = vmatpush.msra.mxu0 0.0
      %2279 = vmatpush.msra.mxu0 0.0
      %2280 = vmatpush.msra.mxu0 0.0
      %2281 = vmatpush.msra.mxu0 0.0
      %2282 = vmatpush.msra.mxu0 0.0
      %2283 = vmatpush.msra.mxu0 0.0
      %2284 = vmatpush.msra.mxu0 0.0
      %2285 = vmatpush.msra.mxu0 %v2090
      %2286 = vmatpush.msra.mxu0 %v2088
      %2287 = vmatpush.msra.mxu0 %v2086
      %2288 = vmatpush.msra.mxu0 %v2084
      %2289 = vmatmul.f32.gmra.mxu0 %v2117
      %v2290 = vpop.f32.mrf.mxu0
      %v2291 = vadd.f32 %v2262, %v2290
      %2292 = vmatmul.f32.gmra.mxu0 %v2120
      %v2293 = vpop.f32.mrf.mxu0
      %v2294 = vadd.f32 %v2265, %v2293
      %2295 = vmatmul.f32.gmra.mxu0 %v2123
      %v2296 = vpop.f32.mrf.mxu0
      %v2297 = vadd.f32 %v2268, %v2296
      %2298 = vmatmul.f32.gmra.mxu0 %v2126
      %v2299 = vpop.f32.mrf.mxu0
      %v2300 = vadd.f32 %v2271, %v2299
      %2301 = vdwg.mxu0
      %v2302 = vmax.f32 %v2204, 0.0
      %v2303 = vmax.f32 %v2291, 0.0
      %v2304 = vmax.f32 %v2207, 0.0
      %v2305 = vmax.f32 %v2294, 0.0
      %v2306 = vmax.f32 %v2210, 0.0
      %v2307 = vmax.f32 %v2297, 0.0
      %v2308 = vmax.f32 %v2213, 0.0
      %v2309 = vmax.f32 %v2300, 0.0
      %2310 = vrot.lane.b32.xlu0 %v2302, 17
      %v2311 = vpop.permute.xlu0 %2310
      %2312 = vrot.lane.b32.xlu0 %v2304, 17
      %v2313 = vpop.permute.xlu0 %2312
      %2314 = vrot.lane.b32.xlu0 %v2306, 17
      %v2315 = vpop.permute.xlu0 %2314
      %2316 = vrot.lane.b32.xlu0 %v2308, 17
      %v2317 = vpop.permute.xlu0 %2316
      %2318 = vrot.lane.b32.xlu0 %v2303, 17
      %v2319 = vpop.permute.xlu0 %2318
      %2320 = vrot.lane.b32.xlu0 %v2305, 17
      %v2321 = vpop.permute.xlu0 %2320
      %2322 = vrot.lane.b32.xlu0 %v2307, 17
      %v2323 = vpop.permute.xlu0 %2322
      %2324 = vrot.lane.b32.xlu0 %v2309, 17
      %v2325 = vpop.permute.xlu0 %2324
      %v2326 = vsel %vm224, %v2311, %v2319
      %v2327 = vsel %vm224, %v2313, %v2321
      %v2328 = vsel %vm224, %v2315, %v2323
      %v2329 = vsel %vm224, %v2317, %v2325
      %v2330 = vsel %vm224, %v2319, %v2311
      %v2331 = vsel %vm224, %v2321, %v2313
      %v2332 = vsel %vm224, %v2323, %v2315
      %v2333 = vsel %vm224, %v2325, %v2317
      %v2334 = vld [vmem:[%s3] sm:$0xff]
      %v2335 = vld [vmem:[%s3 + $0x8] sm:$0xff]
      %v2336 = vld [vmem:[%s3 + $0x10] sm:$0xff]
      %v2337 = vld [vmem:[%s3 + $0x18] sm:$0xff]
      %v2338 = vld [vmem:[%s3 + $0x20] sm:$0xff]
      %v2339 = vld [vmem:[%s3 + $0x28] sm:$0xff]
      %v2340 = vld [vmem:[%s3 + $0x30] sm:$0xff]
      %v2341 = vld [vmem:[%s3 + $0x38] sm:$0xff]
      %v2342 = vmul.f32 %v2330, %v2334
      %v2343 = vmul.f32 %v2326, %v2335
      %v2344 = vmul.f32 %v2331, %v2336
      %v2345 = vmul.f32 %v2327, %v2337
      %v2346 = vmul.f32 %v2332, %v2338
      %v2347 = vmul.f32 %v2328, %v2339
      %v2348 = vmul.f32 %v2333, %v2340
      %v2349 = vmul.f32 %v2329, %v2341
      %2350 = vst [vmem:[#allocation2] sm:$0xff] %v2342
      %2351 = vst [vmem:[#allocation2 + $0x8] sm:$0xff] %v2343
      %2352 = vst [vmem:[#allocation2 + $0x10] sm:$0xff] %v2344
      %2353 = vst [vmem:[#allocation2 + $0x18] sm:$0xff] %v2345
      %2354 = vst [vmem:[#allocation2 + $0x20] sm:$0xff] %v2346
      %2355 = vst [vmem:[#allocation2 + $0x28] sm:$0xff] %v2347
      %2356 = vst [vmem:[#allocation2 + $0x30] sm:$0xff] %v2348
      %2357 = vst [vmem:[#allocation2 + $0x38] sm:$0xff] %v2349
      %2358 = vrot.lane.b32.xlu0 %v2302, 16
      %v2359 = vpop.permute.xlu0 %2358
      %2360 = vrot.lane.b32.xlu0 %v2304, 16
      %v2361 = vpop.permute.xlu0 %2360
      %2362 = vrot.lane.b32.xlu0 %v2306, 16
      %v2363 = vpop.permute.xlu0 %2362
      %2364 = vrot.lane.b32.xlu0 %v2308, 16
      %v2365 = vpop.permute.xlu0 %2364
      %2366 = vrot.lane.b32.xlu0 %v2303, 16
      %v2367 = vpop.permute.xlu0 %2366
      %2368 = vrot.lane.b32.xlu0 %v2305, 16
      %v2369 = vpop.permute.xlu0 %2368
      %2370 = vrot.lane.b32.xlu0 %v2307, 16
      %v2371 = vpop.permute.xlu0 %2370
      %2372 = vrot.lane.b32.xlu0 %v2309, 16
      %v2373 = vpop.permute.xlu0 %2372
      %v2374 = vsel %vm273, %v2359, %v2367
      %v2375 = vsel %vm273, %v2361, %v2369
      %v2376 = vsel %vm273, %v2363, %v2371
      %v2377 = vsel %vm273, %v2365, %v2373
      %v2378 = vsel %vm273, %v2367, %v2359
      %v2379 = vsel %vm273, %v2369, %v2361
      %v2380 = vsel %vm273, %v2371, %v2363
      %v2381 = vsel %vm273, %v2373, %v2365
      %v2382 = vld [vmem:[%s282] sm:$0xff]
      %v2383 = vld [vmem:[%s282 + $0x8] sm:$0xff]
      %v2384 = vld [vmem:[%s282 + $0x10] sm:$0xff]
      %v2385 = vld [vmem:[%s282 + $0x18] sm:$0xff]
      %v2386 = vld [vmem:[%s282 + $0x20] sm:$0xff]
      %v2387 = vld [vmem:[%s282 + $0x28] sm:$0xff]
      %v2388 = vld [vmem:[%s282 + $0x30] sm:$0xff]
      %v2389 = vld [vmem:[%s282 + $0x38] sm:$0xff]
      %v2390 = vmul.f32 %v2378, %v2382
      %v2391 = vmul.f32 %v2374, %v2383
      %v2392 = vmul.f32 %v2379, %v2384
      %v2393 = vmul.f32 %v2375, %v2385
      %v2394 = vmul.f32 %v2380, %v2386
      %v2395 = vmul.f32 %v2376, %v2387
      %v2396 = vmul.f32 %v2381, %v2388
      %v2397 = vmul.f32 %v2377, %v2389
      %2398 = vst [vmem:[#allocation2 + $0x40] sm:$0xff] %v2390
      %2399 = vst [vmem:[#allocation2 + $0x48] sm:$0xff] %v2391
      %2400 = vst [vmem:[#allocation2 + $0x50] sm:$0xff] %v2392
      %2401 = vst [vmem:[#allocation2 + $0x58] sm:$0xff] %v2393
      %2402 = vst [vmem:[#allocation2 + $0x60] sm:$0xff] %v2394
      %2403 = vst [vmem:[#allocation2 + $0x68] sm:$0xff] %v2395
      %2404 = vst [vmem:[#allocation2 + $0x70] sm:$0xff] %v2396
      %2405 = vst [vmem:[#allocation2 + $0x78] sm:$0xff] %v2397
      %2406 = vrot.lane.b32.xlu0 %v2302, 15
      %v2407 = vpop.permute.xlu0 %2406
      %2408 = vrot.lane.b32.xlu0 %v2304, 15
      %v2409 = vpop.permute.xlu0 %2408
      %2410 = vrot.lane.b32.xlu0 %v2306, 15
      %v2411 = vpop.permute.xlu0 %2410
      %2412 = vrot.lane.b32.xlu0 %v2308, 15
      %v2413 = vpop.permute.xlu0 %2412
      %2414 = vrot.lane.b32.xlu0 %v2303, 15
      %v2415 = vpop.permute.xlu0 %2414
      %2416 = vrot.lane.b32.xlu0 %v2305, 15
      %v2417 = vpop.permute.xlu0 %2416
      %2418 = vrot.lane.b32.xlu0 %v2307, 15
      %v2419 = vpop.permute.xlu0 %2418
      %2420 = vrot.lane.b32.xlu0 %v2309, 15
      %v2421 = vpop.permute.xlu0 %2420
      %v2422 = vsel %vm323, %v2407, %v2415
      %v2423 = vsel %vm323, %v2409, %v2417
      %v2424 = vsel %vm323, %v2411, %v2419
      %v2425 = vsel %vm323, %v2413, %v2421
      %v2426 = vsel %vm323, %v2415, %v2407
      %v2427 = vsel %vm323, %v2417, %v2409
      %v2428 = vsel %vm323, %v2419, %v2411
      %v2429 = vsel %vm323, %v2421, %v2413
      %v2430 = vld [vmem:[%s332] sm:$0xff]
      %v2431 = vld [vmem:[%s332 + $0x8] sm:$0xff]
      %v2432 = vld [vmem:[%s332 + $0x10] sm:$0xff]
      %v2433 = vld [vmem:[%s332 + $0x18] sm:$0xff]
      %v2434 = vld [vmem:[%s332 + $0x20] sm:$0xff]
      %v2435 = vld [vmem:[%s332 + $0x28] sm:$0xff]
      %v2436 = vld [vmem:[%s332 + $0x30] sm:$0xff]
      %v2437 = vld [vmem:[%s332 + $0x38] sm:$0xff]
      %v2438 = vmul.f32 %v2426, %v2430
      %v2439 = vmul.f32 %v2422, %v2431
      %v2440 = vmul.f32 %v2427, %v2432
      %v2441 = vmul.f32 %v2423, %v2433
      %v2442 = vmul.f32 %v2428, %v2434
      %v2443 = vmul.f32 %v2424, %v2435
      %v2444 = vmul.f32 %v2429, %v2436
      %v2445 = vmul.f32 %v2425, %v2437
      %2446 = vst [vmem:[#allocation2 + $0x80] sm:$0xff] %v2438
      %2447 = vst [vmem:[#allocation2 + $0x88] sm:$0xff] %v2439
      %2448 = vst [vmem:[#allocation2 + $0x90] sm:$0xff] %v2440
      %2449 = vst [vmem:[#allocation2 + $0x98] sm:$0xff] %v2441
      %2450 = vst [vmem:[#allocation2 + $0xa0] sm:$0xff] %v2442
      %2451 = vst [vmem:[#allocation2 + $0xa8] sm:$0xff] %v2443
      %2452 = vst [vmem:[#allocation2 + $0xb0] sm:$0xff] %v2444
      %2453 = vst [vmem:[#allocation2 + $0xb8] sm:$0xff] %v2445
      %2454 = vrot.lane.b32.xlu0 %v2302, 1
      %v2455 = vpop.permute.xlu0 %2454
      %2456 = vrot.lane.b32.xlu0 %v2304, 1
      %v2457 = vpop.permute.xlu0 %2456
      %2458 = vrot.lane.b32.xlu0 %v2306, 1
      %v2459 = vpop.permute.xlu0 %2458
      %2460 = vrot.lane.b32.xlu0 %v2308, 1
      %v2461 = vpop.permute.xlu0 %2460
      %2462 = vrot.lane.b32.xlu0 %v2303, 1
      %v2463 = vpop.permute.xlu0 %2462
      %2464 = vrot.lane.b32.xlu0 %v2305, 1
      %v2465 = vpop.permute.xlu0 %2464
      %2466 = vrot.lane.b32.xlu0 %v2307, 1
      %v2467 = vpop.permute.xlu0 %2466
      %2468 = vrot.lane.b32.xlu0 %v2309, 1
      %v2469 = vpop.permute.xlu0 %2468
      %v2470 = vsel %vm373, %v2455, %v2463
      %v2471 = vsel %vm373, %v2457, %v2465
      %v2472 = vsel %vm373, %v2459, %v2467
      %v2473 = vsel %vm373, %v2461, %v2469
      %v2474 = vsel %vm373, %v2463, %v2455
      %v2475 = vsel %vm373, %v2465, %v2457
      %v2476 = vsel %vm373, %v2467, %v2459
      %v2477 = vsel %vm373, %v2469, %v2461
      %v2478 = vld [vmem:[%s382] sm:$0xff]
      %v2479 = vld [vmem:[%s382 + $0x8] sm:$0xff]
      %v2480 = vld [vmem:[%s382 + $0x10] sm:$0xff]
      %v2481 = vld [vmem:[%s382 + $0x18] sm:$0xff]
      %v2482 = vld [vmem:[%s382 + $0x20] sm:$0xff]
      %v2483 = vld [vmem:[%s382 + $0x28] sm:$0xff]
      %v2484 = vld [vmem:[%s382 + $0x30] sm:$0xff]
      %v2485 = vld [vmem:[%s382 + $0x38] sm:$0xff]
      %v2486 = vmul.f32 %v2474, %v2478
      %v2487 = vmul.f32 %v2470, %v2479
      %v2488 = vmul.f32 %v2475, %v2480
      %v2489 = vmul.f32 %v2471, %v2481
      %v2490 = vmul.f32 %v2476, %v2482
      %v2491 = vmul.f32 %v2472, %v2483
      %v2492 = vmul.f32 %v2477, %v2484
      %v2493 = vmul.f32 %v2473, %v2485
      %2494 = vst [vmem:[#allocation2 + $0xc0] sm:$0xff] %v2486
      %2495 = vst [vmem:[#allocation2 + $0xc8] sm:$0xff] %v2487
      %2496 = vst [vmem:[#allocation2 + $0xd0] sm:$0xff] %v2488
      %2497 = vst [vmem:[#allocation2 + $0xd8] sm:$0xff] %v2489
      %2498 = vst [vmem:[#allocation2 + $0xe0] sm:$0xff] %v2490
      %2499 = vst [vmem:[#allocation2 + $0xe8] sm:$0xff] %v2491
      %2500 = vst [vmem:[#allocation2 + $0xf0] sm:$0xff] %v2492
      %2501 = vst [vmem:[#allocation2 + $0xf8] sm:$0xff] %v2493
      %2502 = vst [vmem:[#allocation2 + $0x100] sm:$0xff] %v2302
      %2503 = vst [vmem:[#allocation2 + $0x108] sm:$0xff] %v2303
      %2504 = vst [vmem:[#allocation2 + $0x110] sm:$0xff] %v2304
      %2505 = vst [vmem:[#allocation2 + $0x118] sm:$0xff] %v2305
      %2506 = vst [vmem:[#allocation2 + $0x120] sm:$0xff] %v2306
      %2507 = vst [vmem:[#allocation2 + $0x128] sm:$0xff] %v2307
      %2508 = vst [vmem:[#allocation2 + $0x130] sm:$0xff] %v2308
      %2509 = vst [vmem:[#allocation2 + $0x138] sm:$0xff] %v2309
      %2510 = vrot.lane.b32.xlu0 %v2302, 127
      %v2511 = vpop.permute.xlu0 %2510
      %2512 = vrot.lane.b32.xlu0 %v2304, 127
      %v2513 = vpop.permute.xlu0 %2512
      %2514 = vrot.lane.b32.xlu0 %v2306, 127
      %v2515 = vpop.permute.xlu0 %2514
      %2516 = vrot.lane.b32.xlu0 %v2308, 127
      %v2517 = vpop.permute.xlu0 %2516
      %2518 = vrot.lane.b32.xlu0 %v2303, 127
      %v2519 = vpop.permute.xlu0 %2518
      %2520 = vrot.lane.b32.xlu0 %v2305, 127
      %v2521 = vpop.permute.xlu0 %2520
      %2522 = vrot.lane.b32.xlu0 %v2307, 127
      %v2523 = vpop.permute.xlu0 %2522
      %2524 = vrot.lane.b32.xlu0 %v2309, 127
      %v2525 = vpop.permute.xlu0 %2524
      %v2526 = vsel %vm431, %v2511, %v2519
      %v2527 = vsel %vm431, %v2513, %v2521
      %v2528 = vsel %vm431, %v2515, %v2523
      %v2529 = vsel %vm431, %v2517, %v2525
      %v2530 = vsel %vm431, %v2519, %v2511
      %v2531 = vsel %vm431, %v2521, %v2513
      %v2532 = vsel %vm431, %v2523, %v2515
      %v2533 = vsel %vm431, %v2525, %v2517
      %v2534 = vld [vmem:[%s440] sm:$0xff]
      %v2535 = vld [vmem:[%s440 + $0x8] sm:$0xff]
      %v2536 = vld [vmem:[%s440 + $0x10] sm:$0xff]
      %v2537 = vld [vmem:[%s440 + $0x18] sm:$0xff]
      %v2538 = vld [vmem:[%s440 + $0x20] sm:$0xff]
      %v2539 = vld [vmem:[%s440 + $0x28] sm:$0xff]
      %v2540 = vld [vmem:[%s440 + $0x30] sm:$0xff]
      %v2541 = vld [vmem:[%s440 + $0x38] sm:$0xff]
      %v2542 = vmul.f32 %v2526, %v2534
      %v2543 = vmul.f32 %v2530, %v2535
      %v2544 = vmul.f32 %v2527, %v2536
      %v2545 = vmul.f32 %v2531, %v2537
      %v2546 = vmul.f32 %v2528, %v2538
      %v2547 = vmul.f32 %v2532, %v2539
      %v2548 = vmul.f32 %v2529, %v2540
      %v2549 = vmul.f32 %v2533, %v2541
      %2550 = vst [vmem:[#allocation2 + $0x140] sm:$0xff] %v2542
      %2551 = vst [vmem:[#allocation2 + $0x148] sm:$0xff] %v2543
      %2552 = vst [vmem:[#allocation2 + $0x150] sm:$0xff] %v2544
      %2553 = vst [vmem:[#allocation2 + $0x158] sm:$0xff] %v2545
      %2554 = vst [vmem:[#allocation2 + $0x160] sm:$0xff] %v2546
      %2555 = vst [vmem:[#allocation2 + $0x168] sm:$0xff] %v2547
      %2556 = vst [vmem:[#allocation2 + $0x170] sm:$0xff] %v2548
      %2557 = vst [vmem:[#allocation2 + $0x178] sm:$0xff] %v2549
      %2558 = vrot.lane.b32.xlu0 %v2302, 113
      %v2559 = vpop.permute.xlu0 %2558
      %2560 = vrot.lane.b32.xlu0 %v2304, 113
      %v2561 = vpop.permute.xlu0 %2560
      %2562 = vrot.lane.b32.xlu0 %v2306, 113
      %v2563 = vpop.permute.xlu0 %2562
      %2564 = vrot.lane.b32.xlu0 %v2308, 113
      %v2565 = vpop.permute.xlu0 %2564
      %2566 = vrot.lane.b32.xlu0 %v2303, 113
      %v2567 = vpop.permute.xlu0 %2566
      %2568 = vrot.lane.b32.xlu0 %v2305, 113
      %v2569 = vpop.permute.xlu0 %2568
      %2570 = vrot.lane.b32.xlu0 %v2307, 113
      %v2571 = vpop.permute.xlu0 %2570
      %2572 = vrot.lane.b32.xlu0 %v2309, 113
      %v2573 = vpop.permute.xlu0 %2572
      %v2574 = vsel %vm481, %v2559, %v2567
      %v2575 = vsel %vm481, %v2561, %v2569
      %v2576 = vsel %vm481, %v2563, %v2571
      %v2577 = vsel %vm481, %v2565, %v2573
      %v2578 = vsel %vm481, %v2567, %v2559
      %v2579 = vsel %vm481, %v2569, %v2561
      %v2580 = vsel %vm481, %v2571, %v2563
      %v2581 = vsel %vm481, %v2573, %v2565
      %v2582 = vld [vmem:[%s490] sm:$0xff]
      %v2583 = vld [vmem:[%s490 + $0x8] sm:$0xff]
      %v2584 = vld [vmem:[%s490 + $0x10] sm:$0xff]
      %v2585 = vld [vmem:[%s490 + $0x18] sm:$0xff]
      %v2586 = vld [vmem:[%s490 + $0x20] sm:$0xff]
      %v2587 = vld [vmem:[%s490 + $0x28] sm:$0xff]
      %v2588 = vld [vmem:[%s490 + $0x30] sm:$0xff]
      %v2589 = vld [vmem:[%s490 + $0x38] sm:$0xff]
      %v2590 = vmul.f32 %v2574, %v2582
      %v2591 = vmul.f32 %v2578, %v2583
      %v2592 = vmul.f32 %v2575, %v2584
      %v2593 = vmul.f32 %v2579, %v2585
      %v2594 = vmul.f32 %v2576, %v2586
      %v2595 = vmul.f32 %v2580, %v2587
      %v2596 = vmul.f32 %v2577, %v2588
      %v2597 = vmul.f32 %v2581, %v2589
      %2598 = vst [vmem:[#allocation2 + $0x180] sm:$0xff] %v2590
      %2599 = vst [vmem:[#allocation2 + $0x188] sm:$0xff] %v2591
      %2600 = vst [vmem:[#allocation2 + $0x190] sm:$0xff] %v2592
      %2601 = vst [vmem:[#allocation2 + $0x198] sm:$0xff] %v2593
      %2602 = vst [vmem:[#allocation2 + $0x1a0] sm:$0xff] %v2594
      %2603 = vst [vmem:[#allocation2 + $0x1a8] sm:$0xff] %v2595
      %2604 = vst [vmem:[#allocation2 + $0x1b0] sm:$0xff] %v2596
      %2605 = vst [vmem:[#allocation2 + $0x1b8] sm:$0xff] %v2597
      %2606 = vrot.lane.b32.xlu0 %v2302, 112
      %v2607 = vpop.permute.xlu0 %2606
      %2608 = vrot.lane.b32.xlu0 %v2304, 112
      %v2609 = vpop.permute.xlu0 %2608
      %2610 = vrot.lane.b32.xlu0 %v2306, 112
      %v2611 = vpop.permute.xlu0 %2610
      %2612 = vrot.lane.b32.xlu0 %v2308, 112
      %v2613 = vpop.permute.xlu0 %2612
      %2614 = vrot.lane.b32.xlu0 %v2303, 112
      %v2615 = vpop.permute.xlu0 %2614
      %2616 = vrot.lane.b32.xlu0 %v2305, 112
      %v2617 = vpop.permute.xlu0 %2616
      %2618 = vrot.lane.b32.xlu0 %v2307, 112
      %v2619 = vpop.permute.xlu0 %2618
      %2620 = vrot.lane.b32.xlu0 %v2309, 112
      %v2621 = vpop.permute.xlu0 %2620
      %v2622 = vsel %vm531, %v2607, %v2615
      %v2623 = vsel %vm531, %v2609, %v2617
      %v2624 = vsel %vm531, %v2611, %v2619
      %v2625 = vsel %vm531, %v2613, %v2621
      %v2626 = vsel %vm531, %v2615, %v2607
      %v2627 = vsel %vm531, %v2617, %v2609
      %v2628 = vsel %vm531, %v2619, %v2611
      %v2629 = vsel %vm531, %v2621, %v2613
      %v2630 = vld [vmem:[%s540] sm:$0xff]
      %v2631 = vld [vmem:[%s540 + $0x8] sm:$0xff]
      %v2632 = vld [vmem:[%s540 + $0x10] sm:$0xff]
      %v2633 = vld [vmem:[%s540 + $0x18] sm:$0xff]
      %v2634 = vld [vmem:[%s540 + $0x20] sm:$0xff]
      %v2635 = vld [vmem:[%s540 + $0x28] sm:$0xff]
      %v2636 = vld [vmem:[%s540 + $0x30] sm:$0xff]
      %v2637 = vld [vmem:[%s540 + $0x38] sm:$0xff]
      %v2638 = vmul.f32 %v2622, %v2630
      %v2639 = vmul.f32 %v2626, %v2631
      %v2640 = vmul.f32 %v2623, %v2632
      %v2641 = vmul.f32 %v2627, %v2633
      %v2642 = vmul.f32 %v2624, %v2634
      %v2643 = vmul.f32 %v2628, %v2635
      %v2644 = vmul.f32 %v2625, %v2636
      %v2645 = vmul.f32 %v2629, %v2637
      %2646 = vst [vmem:[#allocation2 + $0x1c0] sm:$0xff] %v2638
      %2647 = vst [vmem:[#allocation2 + $0x1c8] sm:$0xff] %v2639
      %2648 = vst [vmem:[#allocation2 + $0x1d0] sm:$0xff] %v2640
      %2649 = vst [vmem:[#allocation2 + $0x1d8] sm:$0xff] %v2641
      %2650 = vst [vmem:[#allocation2 + $0x1e0] sm:$0xff] %v2642
      %2651 = vst [vmem:[#allocation2 + $0x1e8] sm:$0xff] %v2643
      %2652 = vst [vmem:[#allocation2 + $0x1f0] sm:$0xff] %v2644
      %2653 = vst [vmem:[#allocation2 + $0x1f8] sm:$0xff] %v2645
      %2654 = vrot.lane.b32.xlu0 %v2302, 111
      %v2655 = vpop.permute.xlu0 %2654
      %2656 = vrot.lane.b32.xlu0 %v2304, 111
      %v2657 = vpop.permute.xlu0 %2656
      %2658 = vrot.lane.b32.xlu0 %v2306, 111
      %v2659 = vpop.permute.xlu0 %2658
      %2660 = vrot.lane.b32.xlu0 %v2308, 111
      %v2661 = vpop.permute.xlu0 %2660
      %2662 = vrot.lane.b32.xlu0 %v2303, 111
      %v2663 = vpop.permute.xlu0 %2662
      %2664 = vrot.lane.b32.xlu0 %v2305, 111
      %v2665 = vpop.permute.xlu0 %2664
      %2666 = vrot.lane.b32.xlu0 %v2307, 111
      %v2667 = vpop.permute.xlu0 %2666
      %2668 = vrot.lane.b32.xlu0 %v2309, 111
      %v2669 = vpop.permute.xlu0 %2668
      %v2670 = vsel %vm581, %v2655, %v2663
      %v2671 = vsel %vm581, %v2657, %v2665
      %v2672 = vsel %vm581, %v2659, %v2667
      %v2673 = vsel %vm581, %v2661, %v2669
      %v2674 = vsel %vm581, %v2663, %v2655
      %v2675 = vsel %vm581, %v2665, %v2657
      %v2676 = vsel %vm581, %v2667, %v2659
      %v2677 = vsel %vm581, %v2669, %v2661
      %v2678 = vld [vmem:[%s590] sm:$0xff]
      %v2679 = vld [vmem:[%s590 + $0x8] sm:$0xff]
      %v2680 = vld [vmem:[%s590 + $0x10] sm:$0xff]
      %v2681 = vld [vmem:[%s590 + $0x18] sm:$0xff]
      %v2682 = vld [vmem:[%s590 + $0x20] sm:$0xff]
      %v2683 = vld [vmem:[%s590 + $0x28] sm:$0xff]
      %v2684 = vld [vmem:[%s590 + $0x30] sm:$0xff]
      %v2685 = vld [vmem:[%s590 + $0x38] sm:$0xff]
      %v2686 = vmul.f32 %v2670, %v2678
      %v2687 = vmul.f32 %v2674, %v2679
      %v2688 = vmul.f32 %v2671, %v2680
      %v2689 = vmul.f32 %v2675, %v2681
      %v2690 = vmul.f32 %v2672, %v2682
      %v2691 = vmul.f32 %v2676, %v2683
      %v2692 = vmul.f32 %v2673, %v2684
      %v2693 = vmul.f32 %v2677, %v2685
      %2694 = vst [vmem:[#allocation2 + $0x200] sm:$0xff] %v2686
      %2695 = vst [vmem:[#allocation2 + $0x208] sm:$0xff] %v2687
      %2696 = vst [vmem:[#allocation2 + $0x210] sm:$0xff] %v2688
      %2697 = vst [vmem:[#allocation2 + $0x218] sm:$0xff] %v2689
      %2698 = vst [vmem:[#allocation2 + $0x220] sm:$0xff] %v2690
      %2699 = vst [vmem:[#allocation2 + $0x228] sm:$0xff] %v2691
      %2700 = vst [vmem:[#allocation2 + $0x230] sm:$0xff] %v2692
      %2701 = vst [vmem:[#allocation2 + $0x238] sm:$0xff] %v2693
      %s2702 = scalar_lea.vmem %s1, 288
      %v2703 = vld [vmem:[%s2702] sm:$0xff]
      %v2704 = vld [vmem:[%s2702 + $0x8] sm:$0xff]
      %v2705 = vld [vmem:[%s2702 + $0x10] sm:$0xff]
      %v2706 = vld [vmem:[%s2702 + $0x18] sm:$0xff]
      %v2707 = vld [vmem:[%s2702 + $0x20] sm:$0xff]
      %v2708 = vld [vmem:[%s2702 + $0x28] sm:$0xff]
      %v2709 = vld [vmem:[%s2702 + $0x30] sm:$0xff]
      %v2710 = vld [vmem:[%s2702 + $0x38] sm:$0xff]
      %v2711 = vld [vmem:[%s2702 + $0x40] sm:$0xff]
      %v2712 = vld [vmem:[%s2702 + $0x48] sm:$0xff]
      %v2713 = vld [vmem:[%s2702 + $0x50] sm:$0xff]
      %v2714 = vld [vmem:[%s2702 + $0x58] sm:$0xff]
      %v2715 = vld [vmem:[#allocation2] sm:$0xff]
      %v2716 = vld [vmem:[#allocation2 + $0x8] sm:$0xff]
      %v2717 = vld [vmem:[#allocation2 + $0x10] sm:$0xff]
      %v2718 = vld [vmem:[#allocation2 + $0x18] sm:$0xff]
      %v2719 = vld [vmem:[#allocation2 + $0x20] sm:$0xff]
      %v2720 = vld [vmem:[#allocation2 + $0x28] sm:$0xff]
      %v2721 = vld [vmem:[#allocation2 + $0x30] sm:$0xff]
      %v2722 = vld [vmem:[#allocation2 + $0x38] sm:$0xff]
      %v2723 = vld [vmem:[#allocation2 + $0x40] sm:$0xff]
      %v2724 = vld [vmem:[#allocation2 + $0x48] sm:$0xff]
      %v2725 = vld [vmem:[#allocation2 + $0x50] sm:$0xff]
      %v2726 = vld [vmem:[#allocation2 + $0x58] sm:$0xff]
      %v2727 = vld [vmem:[#allocation2 + $0x60] sm:$0xff]
      %v2728 = vld [vmem:[#allocation2 + $0x68] sm:$0xff]
      %v2729 = vld [vmem:[#allocation2 + $0x70] sm:$0xff]
      %v2730 = vld [vmem:[#allocation2 + $0x78] sm:$0xff]
      %v2731 = vld [vmem:[#allocation2 + $0x80] sm:$0xff]
      %v2732 = vld [vmem:[#allocation2 + $0x88] sm:$0xff]
      %v2733 = vld [vmem:[#allocation2 + $0x90] sm:$0xff]
      %v2734 = vld [vmem:[#allocation2 + $0x98] sm:$0xff]
      %v2735 = vld [vmem:[#allocation2 + $0xa0] sm:$0xff]
      %v2736 = vld [vmem:[#allocation2 + $0xa8] sm:$0xff]
      %v2737 = vld [vmem:[#allocation2 + $0xb0] sm:$0xff]
      %v2738 = vld [vmem:[#allocation2 + $0xb8] sm:$0xff]
      %v2739 = vld [vmem:[#allocation2 + $0xc0] sm:$0xff]
      %v2740 = vld [vmem:[#allocation2 + $0xc8] sm:$0xff]
      %v2741 = vld [vmem:[#allocation2 + $0xd0] sm:$0xff]
      %v2742 = vld [vmem:[#allocation2 + $0xd8] sm:$0xff]
      %v2743 = vld [vmem:[#allocation2 + $0xe0] sm:$0xff]
      %v2744 = vld [vmem:[#allocation2 + $0xe8] sm:$0xff]
      %v2745 = vld [vmem:[#allocation2 + $0xf0] sm:$0xff]
      %v2746 = vld [vmem:[#allocation2 + $0xf8] sm:$0xff]
      %v2747 = vld [vmem:[#allocation2 + $0x100] sm:$0xff]
      %v2748 = vld [vmem:[#allocation2 + $0x108] sm:$0xff]
      %v2749 = vld [vmem:[#allocation2 + $0x110] sm:$0xff]
      %v2750 = vld [vmem:[#allocation2 + $0x118] sm:$0xff]
      %v2751 = vld [vmem:[#allocation2 + $0x120] sm:$0xff]
      %v2752 = vld [vmem:[#allocation2 + $0x128] sm:$0xff]
      %v2753 = vld [vmem:[#allocation2 + $0x130] sm:$0xff]
      %v2754 = vld [vmem:[#allocation2 + $0x138] sm:$0xff]
      %v2755 = vld [vmem:[#allocation2 + $0x140] sm:$0xff]
      %v2756 = vld [vmem:[#allocation2 + $0x148] sm:$0xff]
      %v2757 = vld [vmem:[#allocation2 + $0x150] sm:$0xff]
      %v2758 = vld [vmem:[#allocation2 + $0x158] sm:$0xff]
      %v2759 = vld [vmem:[#allocation2 + $0x160] sm:$0xff]
      %v2760 = vld [vmem:[#allocation2 + $0x168] sm:$0xff]
      %v2761 = vld [vmem:[#allocation2 + $0x170] sm:$0xff]
      %v2762 = vld [vmem:[#allocation2 + $0x178] sm:$0xff]
      %v2763 = vld [vmem:[#allocation2 + $0x180] sm:$0xff]
      %v2764 = vld [vmem:[#allocation2 + $0x188] sm:$0xff]
      %v2765 = vld [vmem:[#allocation2 + $0x190] sm:$0xff]
      %v2766 = vld [vmem:[#allocation2 + $0x198] sm:$0xff]
      %v2767 = vld [vmem:[#allocation2 + $0x1a0] sm:$0xff]
      %v2768 = vld [vmem:[#allocation2 + $0x1a8] sm:$0xff]
      %v2769 = vld [vmem:[#allocation2 + $0x1b0] sm:$0xff]
      %v2770 = vld [vmem:[#allocation2 + $0x1b8] sm:$0xff]
      %v2771 = vld [vmem:[#allocation2 + $0x1c0] sm:$0xff]
      %v2772 = vld [vmem:[#allocation2 + $0x1c8] sm:$0xff]
      %v2773 = vld [vmem:[#allocation2 + $0x1d0] sm:$0xff]
      %v2774 = vld [vmem:[#allocation2 + $0x1d8] sm:$0xff]
      %v2775 = vld [vmem:[#allocation2 + $0x1e0] sm:$0xff]
      %v2776 = vld [vmem:[#allocation2 + $0x1e8] sm:$0xff]
      %v2777 = vld [vmem:[#allocation2 + $0x1f0] sm:$0xff]
      %v2778 = vld [vmem:[#allocation2 + $0x1f8] sm:$0xff]
      %v2779 = vld [vmem:[#allocation2 + $0x200] sm:$0xff]
      %v2780 = vld [vmem:[#allocation2 + $0x208] sm:$0xff]
      %v2781 = vld [vmem:[#allocation2 + $0x210] sm:$0xff]
      %v2782 = vld [vmem:[#allocation2 + $0x218] sm:$0xff]
      %v2783 = vld [vmem:[#allocation2 + $0x220] sm:$0xff]
      %v2784 = vld [vmem:[#allocation2 + $0x228] sm:$0xff]
      %v2785 = vld [vmem:[#allocation2 + $0x230] sm:$0xff]
      %v2786 = vld [vmem:[#allocation2 + $0x238] sm:$0xff]
      %s2787 = scalar_lea.vmem %s2, 96
      %v2788 = vld [vmem:[%s2787] sm:$0xff]
      %v2789 = vld [vmem:[%s2787 + $0x8] sm:$0xff]
      %v2790 = vld [vmem:[%s2787 + $0x10] sm:$0xff]
      %v2791 = vld [vmem:[%s2787 + $0x18] sm:$0xff]
      %2793 = vset.pattern.permute.xlu0 0
      %2794 = vperm.xlu0 %2793, %v2788
      %v2795 = vpop.permute.xlu0 %2794
      %2798 = vset.pattern.permute.xlu0 0
      %2799 = vperm.xlu0 %2798, %v2789
      %v2800 = vpop.permute.xlu0 %2799
      %2803 = vset.pattern.permute.xlu0 0
      %2804 = vperm.xlu0 %2803, %v2790
      %v2805 = vpop.permute.xlu0 %2804
      %2808 = vset.pattern.permute.xlu0 0
      %2809 = vperm.xlu0 %2808, %v2791
      %v2810 = vpop.permute.xlu0 %2809
      %v2813 = vsel %vm723, %v2705, 0
      %v2816 = vsel %vm723, %v2708, 0
      %v2819 = vsel %vm723, %v2711, 0
      %v2822 = vsel %vm723, %v2714, 0
      %2824 = vmatpush.msra.mxu0 %v2745
      %2825 = vmatpush.msra.mxu0 %v2743
      %2826 = vmatpush.msra.mxu0 %v2741
      %2827 = vmatpush.msra.mxu0 %v2739
      %2828 = vmatpush.msra.mxu0 %v2737
      %2829 = vmatpush.msra.mxu0 %v2735
      %2830 = vmatpush.msra.mxu0 %v2733
      %2831 = vmatpush.msra.mxu0 %v2731
      %2832 = vmatpush.msra.mxu0 %v2729
      %2833 = vmatpush.msra.mxu0 %v2727
      %2834 = vmatpush.msra.mxu0 %v2725
      %2835 = vmatpush.msra.mxu0 %v2723
      %2836 = vmatpush.msra.mxu0 %v2721
      %2837 = vmatpush.msra.mxu0 %v2719
      %2838 = vmatpush.msra.mxu0 %v2717
      %2839 = vmatpush.msra.mxu0 %v2715
      %2840 = vmatmul.f32.gmra.mxu0 %v2703
      %v2841 = vpop.f32.mrf.mxu0
      %v2842 = vadd.f32 %v2795, %v2841
      %2843 = vmatmul.f32.gmra.mxu0 %v2706
      %v2844 = vpop.f32.mrf.mxu0
      %v2845 = vadd.f32 %v2800, %v2844
      %2846 = vmatmul.f32.gmra.mxu0 %v2709
      %v2847 = vpop.f32.mrf.mxu0
      %v2848 = vadd.f32 %v2805, %v2847
      %2849 = vmatmul.f32.gmra.mxu0 %v2712
      %v2850 = vpop.f32.mrf.mxu0
      %v2851 = vadd.f32 %v2810, %v2850
      %2852 = vdwg.mxu0
      %2853 = vmatpush.msra.mxu0 %v2777
      %2854 = vmatpush.msra.mxu0 %v2775
      %2855 = vmatpush.msra.mxu0 %v2773
      %2856 = vmatpush.msra.mxu0 %v2771
      %2857 = vmatpush.msra.mxu0 %v2769
      %2858 = vmatpush.msra.mxu0 %v2767
      %2859 = vmatpush.msra.mxu0 %v2765
      %2860 = vmatpush.msra.mxu0 %v2763
      %2861 = vmatpush.msra.mxu0 %v2761
      %2862 = vmatpush.msra.mxu0 %v2759
      %2863 = vmatpush.msra.mxu0 %v2757
      %2864 = vmatpush.msra.mxu0 %v2755
      %2865 = vmatpush.msra.mxu0 %v2753
      %2866 = vmatpush.msra.mxu0 %v2751
      %2867 = vmatpush.msra.mxu0 %v2749
      %2868 = vmatpush.msra.mxu0 %v2747
      %2869 = vmatmul.f32.gmra.mxu0 %v2704
      %v2870 = vpop.f32.mrf.mxu0
      %v2871 = vadd.f32 %v2842, %v2870
      %2872 = vmatmul.f32.gmra.mxu0 %v2707
      %v2873 = vpop.f32.mrf.mxu0
      %v2874 = vadd.f32 %v2845, %v2873
      %2875 = vmatmul.f32.gmra.mxu0 %v2710
      %v2876 = vpop.f32.mrf.mxu0
      %v2877 = vadd.f32 %v2848, %v2876
      %2878 = vmatmul.f32.gmra.mxu0 %v2713
      %v2879 = vpop.f32.mrf.mxu0
      %v2880 = vadd.f32 %v2851, %v2879
      %2881 = vdwg.mxu0
      %2882 = vmatpush.msra.mxu0 0.0
      %2883 = vmatpush.msra.mxu0 0.0
      %2884 = vmatpush.msra.mxu0 0.0
      %2885 = vmatpush.msra.mxu0 0.0
      %2886 = vmatpush.msra.mxu0 0.0
      %2887 = vmatpush.msra.mxu0 0.0
      %2888 = vmatpush.msra.mxu0 0.0
      %2889 = vmatpush.msra.mxu0 0.0
      %2890 = vmatpush.msra.mxu0 0.0
      %2891 = vmatpush.msra.mxu0 0.0
      %2892 = vmatpush.msra.mxu0 0.0
      %2893 = vmatpush.msra.mxu0 0.0
      %2894 = vmatpush.msra.mxu0 %v2785
      %2895 = vmatpush.msra.mxu0 %v2783
      %2896 = vmatpush.msra.mxu0 %v2781
      %2897 = vmatpush.msra.mxu0 %v2779
      %2898 = vmatmul.f32.gmra.mxu0 %v2813
      %v2899 = vpop.f32.mrf.mxu0
      %v2900 = vadd.f32 %v2871, %v2899
      %2901 = vmatmul.f32.gmra.mxu0 %v2816
      %v2902 = vpop.f32.mrf.mxu0
      %v2903 = vadd.f32 %v2874, %v2902
      %2904 = vmatmul.f32.gmra.mxu0 %v2819
      %v2905 = vpop.f32.mrf.mxu0
      %v2906 = vadd.f32 %v2877, %v2905
      %2907 = vmatmul.f32.gmra.mxu0 %v2822
      %v2908 = vpop.f32.mrf.mxu0
      %v2909 = vadd.f32 %v2880, %v2908
      %2910 = vdwg.mxu0
      %2911 = vmatpush.msra.mxu0 %v2746
      %2912 = vmatpush.msra.mxu0 %v2744
      %2913 = vmatpush.msra.mxu0 %v2742
      %2914 = vmatpush.msra.mxu0 %v2740
      %2915 = vmatpush.msra.mxu0 %v2738
      %2916 = vmatpush.msra.mxu0 %v2736
      %2917 = vmatpush.msra.mxu0 %v2734
      %2918 = vmatpush.msra.mxu0 %v2732
      %2919 = vmatpush.msra.mxu0 %v2730
      %2920 = vmatpush.msra.mxu0 %v2728
      %2921 = vmatpush.msra.mxu0 %v2726
      %2922 = vmatpush.msra.mxu0 %v2724
      %2923 = vmatpush.msra.mxu0 %v2722
      %2924 = vmatpush.msra.mxu0 %v2720
      %2925 = vmatpush.msra.mxu0 %v2718
      %2926 = vmatpush.msra.mxu0 %v2716
      %2927 = vmatmul.f32.gmra.mxu0 %v2703
      %v2928 = vpop.f32.mrf.mxu0
      %v2929 = vadd.f32 %v2795, %v2928
      %2930 = vmatmul.f32.gmra.mxu0 %v2706
      %v2931 = vpop.f32.mrf.mxu0
      %v2932 = vadd.f32 %v2800, %v2931
      %2933 = vmatmul.f32.gmra.mxu0 %v2709
      %v2934 = vpop.f32.mrf.mxu0
      %v2935 = vadd.f32 %v2805, %v2934
      %2936 = vmatmul.f32.gmra.mxu0 %v2712
      %v2937 = vpop.f32.mrf.mxu0
      %v2938 = vadd.f32 %v2810, %v2937
      %2939 = vdwg.mxu0
      %2940 = vmatpush.msra.mxu0 %v2778
      %2941 = vmatpush.msra.mxu0 %v2776
      %2942 = vmatpush.msra.mxu0 %v2774
      %2943 = vmatpush.msra.mxu0 %v2772
      %2944 = vmatpush.msra.mxu0 %v2770
      %2945 = vmatpush.msra.mxu0 %v2768
      %2946 = vmatpush.msra.mxu0 %v2766
      %2947 = vmatpush.msra.mxu0 %v2764
      %2948 = vmatpush.msra.mxu0 %v2762
      %2949 = vmatpush.msra.mxu0 %v2760
      %2950 = vmatpush.msra.mxu0 %v2758
      %2951 = vmatpush.msra.mxu0 %v2756
      %2952 = vmatpush.msra.mxu0 %v2754
      %2953 = vmatpush.msra.mxu0 %v2752
      %2954 = vmatpush.msra.mxu0 %v2750
      %2955 = vmatpush.msra.mxu0 %v2748
      %2956 = vmatmul.f32.gmra.mxu0 %v2704
      %v2957 = vpop.f32.mrf.mxu0
      %v2958 = vadd.f32 %v2929, %v2957
      %2959 = vmatmul.f32.gmra.mxu0 %v2707
      %v2960 = vpop.f32.mrf.mxu0
      %v2961 = vadd.f32 %v2932, %v2960
      %2962 = vmatmul.f32.gmra.mxu0 %v2710
      %v2963 = vpop.f32.mrf.mxu0
      %v2964 = vadd.f32 %v2935, %v2963
      %2965 = vmatmul.f32.gmra.mxu0 %v2713
      %v2966 = vpop.f32.mrf.mxu0
      %v2967 = vadd.f32 %v2938, %v2966
      %2968 = vdwg.mxu0
      %2969 = vmatpush.msra.mxu0 0.0
      %2970 = vmatpush.msra.mxu0 0.0
      %2971 = vmatpush.msra.mxu0 0.0
      %2972 = vmatpush.msra.mxu0 0.0
      %2973 = vmatpush.msra.mxu0 0.0
      %2974 = vmatpush.msra.mxu0 0.0
      %2975 = vmatpush.msra.mxu0 0.0
      %2976 = vmatpush.msra.mxu0 0.0
      %2977 = vmatpush.msra.mxu0 0.0
      %2978 = vmatpush.msra.mxu0 0.0
      %2979 = vmatpush.msra.mxu0 0.0
      %2980 = vmatpush.msra.mxu0 0.0
      %2981 = vmatpush.msra.mxu0 %v2786
      %2982 = vmatpush.msra.mxu0 %v2784
      %2983 = vmatpush.msra.mxu0 %v2782
      %2984 = vmatpush.msra.mxu0 %v2780
      %2985 = vmatmul.f32.gmra.mxu0 %v2813
      %v2986 = vpop.f32.mrf.mxu0
      %v2987 = vadd.f32 %v2958, %v2986
      %2988 = vmatmul.f32.gmra.mxu0 %v2816
      %v2989 = vpop.f32.mrf.mxu0
      %v2990 = vadd.f32 %v2961, %v2989
      %2991 = vmatmul.f32.gmra.mxu0 %v2819
      %v2992 = vpop.f32.mrf.mxu0
      %v2993 = vadd.f32 %v2964, %v2992
      %2994 = vmatmul.f32.gmra.mxu0 %v2822
      %v2995 = vpop.f32.mrf.mxu0
      %v2996 = vadd.f32 %v2967, %v2995
      %2997 = vdwg.mxu0
      %v2998 = vmax.f32 %v2900, 0.0
      %v2999 = vmax.f32 %v2987, 0.0
      %v3000 = vmax.f32 %v2903, 0.0
      %v3001 = vmax.f32 %v2990, 0.0
      %v3002 = vmax.f32 %v2906, 0.0
      %v3003 = vmax.f32 %v2993, 0.0
      %v3004 = vmax.f32 %v2909, 0.0
      %v3005 = vmax.f32 %v2996, 0.0
      %3006 = vrot.lane.b32.xlu0 %v2998, 17
      %v3007 = vpop.permute.xlu0 %3006
      %3008 = vrot.lane.b32.xlu0 %v3000, 17
      %v3009 = vpop.permute.xlu0 %3008
      %3010 = vrot.lane.b32.xlu0 %v3002, 17
      %v3011 = vpop.permute.xlu0 %3010
      %3012 = vrot.lane.b32.xlu0 %v3004, 17
      %v3013 = vpop.permute.xlu0 %3012
      %3014 = vrot.lane.b32.xlu0 %v2999, 17
      %v3015 = vpop.permute.xlu0 %3014
      %3016 = vrot.lane.b32.xlu0 %v3001, 17
      %v3017 = vpop.permute.xlu0 %3016
      %3018 = vrot.lane.b32.xlu0 %v3003, 17
      %v3019 = vpop.permute.xlu0 %3018
      %3020 = vrot.lane.b32.xlu0 %v3005, 17
      %v3021 = vpop.permute.xlu0 %3020
      %v3022 = vsel %vm224, %v3007, %v3015
      %v3023 = vsel %vm224, %v3009, %v3017
      %v3024 = vsel %vm224, %v3011, %v3019
      %v3025 = vsel %vm224, %v3013, %v3021
      %v3026 = vsel %vm224, %v3015, %v3007
      %v3027 = vsel %vm224, %v3017, %v3009
      %v3028 = vsel %vm224, %v3019, %v3011
      %v3029 = vsel %vm224, %v3021, %v3013
      %v3030 = vld [vmem:[%s3] sm:$0xff]
      %v3031 = vld [vmem:[%s3 + $0x8] sm:$0xff]
      %v3032 = vld [vmem:[%s3 + $0x10] sm:$0xff]
      %v3033 = vld [vmem:[%s3 + $0x18] sm:$0xff]
      %v3034 = vld [vmem:[%s3 + $0x20] sm:$0xff]
      %v3035 = vld [vmem:[%s3 + $0x28] sm:$0xff]
      %v3036 = vld [vmem:[%s3 + $0x30] sm:$0xff]
      %v3037 = vld [vmem:[%s3 + $0x38] sm:$0xff]
      %v3038 = vmul.f32 %v3026, %v3030
      %v3039 = vmul.f32 %v3022, %v3031
      %v3040 = vmul.f32 %v3027, %v3032
      %v3041 = vmul.f32 %v3023, %v3033
      %v3042 = vmul.f32 %v3028, %v3034
      %v3043 = vmul.f32 %v3024, %v3035
      %v3044 = vmul.f32 %v3029, %v3036
      %v3045 = vmul.f32 %v3025, %v3037
      %3046 = vst [vmem:[#allocation2] sm:$0xff] %v3038
      %3047 = vst [vmem:[#allocation2 + $0x8] sm:$0xff] %v3039
      %3048 = vst [vmem:[#allocation2 + $0x10] sm:$0xff] %v3040
      %3049 = vst [vmem:[#allocation2 + $0x18] sm:$0xff] %v3041
      %3050 = vst [vmem:[#allocation2 + $0x20] sm:$0xff] %v3042
      %3051 = vst [vmem:[#allocation2 + $0x28] sm:$0xff] %v3043
      %3052 = vst [vmem:[#allocation2 + $0x30] sm:$0xff] %v3044
      %3053 = vst [vmem:[#allocation2 + $0x38] sm:$0xff] %v3045
      %3054 = vrot.lane.b32.xlu0 %v2998, 16
      %v3055 = vpop.permute.xlu0 %3054
      %3056 = vrot.lane.b32.xlu0 %v3000, 16
      %v3057 = vpop.permute.xlu0 %3056
      %3058 = vrot.lane.b32.xlu0 %v3002, 16
      %v3059 = vpop.permute.xlu0 %3058
      %3060 = vrot.lane.b32.xlu0 %v3004, 16
      %v3061 = vpop.permute.xlu0 %3060
      %3062 = vrot.lane.b32.xlu0 %v2999, 16
      %v3063 = vpop.permute.xlu0 %3062
      %3064 = vrot.lane.b32.xlu0 %v3001, 16
      %v3065 = vpop.permute.xlu0 %3064
      %3066 = vrot.lane.b32.xlu0 %v3003, 16
      %v3067 = vpop.permute.xlu0 %3066
      %3068 = vrot.lane.b32.xlu0 %v3005, 16
      %v3069 = vpop.permute.xlu0 %3068
      %v3070 = vsel %vm273, %v3055, %v3063
      %v3071 = vsel %vm273, %v3057, %v3065
      %v3072 = vsel %vm273, %v3059, %v3067
      %v3073 = vsel %vm273, %v3061, %v3069
      %v3074 = vsel %vm273, %v3063, %v3055
      %v3075 = vsel %vm273, %v3065, %v3057
      %v3076 = vsel %vm273, %v3067, %v3059
      %v3077 = vsel %vm273, %v3069, %v3061
      %v3078 = vld [vmem:[%s282] sm:$0xff]
      %v3079 = vld [vmem:[%s282 + $0x8] sm:$0xff]
      %v3080 = vld [vmem:[%s282 + $0x10] sm:$0xff]
      %v3081 = vld [vmem:[%s282 + $0x18] sm:$0xff]
      %v3082 = vld [vmem:[%s282 + $0x20] sm:$0xff]
      %v3083 = vld [vmem:[%s282 + $0x28] sm:$0xff]
      %v3084 = vld [vmem:[%s282 + $0x30] sm:$0xff]
      %v3085 = vld [vmem:[%s282 + $0x38] sm:$0xff]
      %v3086 = vmul.f32 %v3074, %v3078
      %v3087 = vmul.f32 %v3070, %v3079
      %v3088 = vmul.f32 %v3075, %v3080
      %v3089 = vmul.f32 %v3071, %v3081
      %v3090 = vmul.f32 %v3076, %v3082
      %v3091 = vmul.f32 %v3072, %v3083
      %v3092 = vmul.f32 %v3077, %v3084
      %v3093 = vmul.f32 %v3073, %v3085
      %3094 = vst [vmem:[#allocation2 + $0x40] sm:$0xff] %v3086
      %3095 = vst [vmem:[#allocation2 + $0x48] sm:$0xff] %v3087
      %3096 = vst [vmem:[#allocation2 + $0x50] sm:$0xff] %v3088
      %3097 = vst [vmem:[#allocation2 + $0x58] sm:$0xff] %v3089
      %3098 = vst [vmem:[#allocation2 + $0x60] sm:$0xff] %v3090
      %3099 = vst [vmem:[#allocation2 + $0x68] sm:$0xff] %v3091
      %3100 = vst [vmem:[#allocation2 + $0x70] sm:$0xff] %v3092
      %3101 = vst [vmem:[#allocation2 + $0x78] sm:$0xff] %v3093
      %3102 = vrot.lane.b32.xlu0 %v2998, 15
      %v3103 = vpop.permute.xlu0 %3102
      %3104 = vrot.lane.b32.xlu0 %v3000, 15
      %v3105 = vpop.permute.xlu0 %3104
      %3106 = vrot.lane.b32.xlu0 %v3002, 15
      %v3107 = vpop.permute.xlu0 %3106
      %3108 = vrot.lane.b32.xlu0 %v3004, 15
      %v3109 = vpop.permute.xlu0 %3108
      %3110 = vrot.lane.b32.xlu0 %v2999, 15
      %v3111 = vpop.permute.xlu0 %3110
      %3112 = vrot.lane.b32.xlu0 %v3001, 15
      %v3113 = vpop.permute.xlu0 %3112
      %3114 = vrot.lane.b32.xlu0 %v3003, 15
      %v3115 = vpop.permute.xlu0 %3114
      %3116 = vrot.lane.b32.xlu0 %v3005, 15
      %v3117 = vpop.permute.xlu0 %3116
      %v3118 = vsel %vm323, %v3103, %v3111
      %v3119 = vsel %vm323, %v3105, %v3113
      %v3120 = vsel %vm323, %v3107, %v3115
      %v3121 = vsel %vm323, %v3109, %v3117
      %v3122 = vsel %vm323, %v3111, %v3103
      %v3123 = vsel %vm323, %v3113, %v3105
      %v3124 = vsel %vm323, %v3115, %v3107
      %v3125 = vsel %vm323, %v3117, %v3109
      %v3126 = vld [vmem:[%s332] sm:$0xff]
      %v3127 = vld [vmem:[%s332 + $0x8] sm:$0xff]
      %v3128 = vld [vmem:[%s332 + $0x10] sm:$0xff]
      %v3129 = vld [vmem:[%s332 + $0x18] sm:$0xff]
      %v3130 = vld [vmem:[%s332 + $0x20] sm:$0xff]
      %v3131 = vld [vmem:[%s332 + $0x28] sm:$0xff]
      %v3132 = vld [vmem:[%s332 + $0x30] sm:$0xff]
      %v3133 = vld [vmem:[%s332 + $0x38] sm:$0xff]
      %v3134 = vmul.f32 %v3122, %v3126
      %v3135 = vmul.f32 %v3118, %v3127
      %v3136 = vmul.f32 %v3123, %v3128
      %v3137 = vmul.f32 %v3119, %v3129
      %v3138 = vmul.f32 %v3124, %v3130
      %v3139 = vmul.f32 %v3120, %v3131
      %v3140 = vmul.f32 %v3125, %v3132
      %v3141 = vmul.f32 %v3121, %v3133
      %3142 = vst [vmem:[#allocation2 + $0x80] sm:$0xff] %v3134
      %3143 = vst [vmem:[#allocation2 + $0x88] sm:$0xff] %v3135
      %3144 = vst [vmem:[#allocation2 + $0x90] sm:$0xff] %v3136
      %3145 = vst [vmem:[#allocation2 + $0x98] sm:$0xff] %v3137
      %3146 = vst [vmem:[#allocation2 + $0xa0] sm:$0xff] %v3138
      %3147 = vst [vmem:[#allocation2 + $0xa8] sm:$0xff] %v3139
      %3148 = vst [vmem:[#allocation2 + $0xb0] sm:$0xff] %v3140
      %3149 = vst [vmem:[#allocation2 + $0xb8] sm:$0xff] %v3141
      %3150 = vrot.lane.b32.xlu0 %v2998, 1
      %v3151 = vpop.permute.xlu0 %3150
      %3152 = vrot.lane.b32.xlu0 %v3000, 1
      %v3153 = vpop.permute.xlu0 %3152
      %3154 = vrot.lane.b32.xlu0 %v3002, 1
      %v3155 = vpop.permute.xlu0 %3154
      %3156 = vrot.lane.b32.xlu0 %v3004, 1
      %v3157 = vpop.permute.xlu0 %3156
      %3158 = vrot.lane.b32.xlu0 %v2999, 1
      %v3159 = vpop.permute.xlu0 %3158
      %3160 = vrot.lane.b32.xlu0 %v3001, 1
      %v3161 = vpop.permute.xlu0 %3160
      %3162 = vrot.lane.b32.xlu0 %v3003, 1
      %v3163 = vpop.permute.xlu0 %3162
      %3164 = vrot.lane.b32.xlu0 %v3005, 1
      %v3165 = vpop.permute.xlu0 %3164
      %v3166 = vsel %vm373, %v3151, %v3159
      %v3167 = vsel %vm373, %v3153, %v3161
      %v3168 = vsel %vm373, %v3155, %v3163
      %v3169 = vsel %vm373, %v3157, %v3165
      %v3170 = vsel %vm373, %v3159, %v3151
      %v3171 = vsel %vm373, %v3161, %v3153
      %v3172 = vsel %vm373, %v3163, %v3155
      %v3173 = vsel %vm373, %v3165, %v3157
      %v3174 = vld [vmem:[%s382] sm:$0xff]
      %v3175 = vld [vmem:[%s382 + $0x8] sm:$0xff]
      %v3176 = vld [vmem:[%s382 + $0x10] sm:$0xff]
      %v3177 = vld [vmem:[%s382 + $0x18] sm:$0xff]
      %v3178 = vld [vmem:[%s382 + $0x20] sm:$0xff]
      %v3179 = vld [vmem:[%s382 + $0x28] sm:$0xff]
      %v3180 = vld [vmem:[%s382 + $0x30] sm:$0xff]
      %v3181 = vld [vmem:[%s382 + $0x38] sm:$0xff]
      %v3182 = vmul.f32 %v3170, %v3174
      %v3183 = vmul.f32 %v3166, %v3175
      %v3184 = vmul.f32 %v3171, %v3176
      %v3185 = vmul.f32 %v3167, %v3177
      %v3186 = vmul.f32 %v3172, %v3178
      %v3187 = vmul.f32 %v3168, %v3179
      %v3188 = vmul.f32 %v3173, %v3180
      %v3189 = vmul.f32 %v3169, %v3181
      %3190 = vst [vmem:[#allocation2 + $0xc0] sm:$0xff] %v3182
      %3191 = vst [vmem:[#allocation2 + $0xc8] sm:$0xff] %v3183
      %3192 = vst [vmem:[#allocation2 + $0xd0] sm:$0xff] %v3184
      %3193 = vst [vmem:[#allocation2 + $0xd8] sm:$0xff] %v3185
      %3194 = vst [vmem:[#allocation2 + $0xe0] sm:$0xff] %v3186
      %3195 = vst [vmem:[#allocation2 + $0xe8] sm:$0xff] %v3187
      %3196 = vst [vmem:[#allocation2 + $0xf0] sm:$0xff] %v3188
      %3197 = vst [vmem:[#allocation2 + $0xf8] sm:$0xff] %v3189
      %3198 = vst [vmem:[#allocation2 + $0x100] sm:$0xff] %v2998
      %3199 = vst [vmem:[#allocation2 + $0x108] sm:$0xff] %v2999
      %3200 = vst [vmem:[#allocation2 + $0x110] sm:$0xff] %v3000
      %3201 = vst [vmem:[#allocation2 + $0x118] sm:$0xff] %v3001
      %3202 = vst [vmem:[#allocation2 + $0x120] sm:$0xff] %v3002
      %3203 = vst [vmem:[#allocation2 + $0x128] sm:$0xff] %v3003
      %3204 = vst [vmem:[#allocation2 + $0x130] sm:$0xff] %v3004
      %3205 = vst [vmem:[#allocation2 + $0x138] sm:$0xff] %v3005
      %3206 = vrot.lane.b32.xlu0 %v2998, 127
      %v3207 = vpop.permute.xlu0 %3206
      %3208 = vrot.lane.b32.xlu0 %v3000, 127
      %v3209 = vpop.permute.xlu0 %3208
      %3210 = vrot.lane.b32.xlu0 %v3002, 127
      %v3211 = vpop.permute.xlu0 %3210
      %3212 = vrot.lane.b32.xlu0 %v3004, 127
      %v3213 = vpop.permute.xlu0 %3212
      %3214 = vrot.lane.b32.xlu0 %v2999, 127
      %v3215 = vpop.permute.xlu0 %3214
      %3216 = vrot.lane.b32.xlu0 %v3001, 127
      %v3217 = vpop.permute.xlu0 %3216
      %3218 = vrot.lane.b32.xlu0 %v3003, 127
      %v3219 = vpop.permute.xlu0 %3218
      %3220 = vrot.lane.b32.xlu0 %v3005, 127
      %v3221 = vpop.permute.xlu0 %3220
      %v3222 = vsel %vm431, %v3207, %v3215
      %v3223 = vsel %vm431, %v3209, %v3217
      %v3224 = vsel %vm431, %v3211, %v3219
      %v3225 = vsel %vm431, %v3213, %v3221
      %v3226 = vsel %vm431, %v3215, %v3207
      %v3227 = vsel %vm431, %v3217, %v3209
      %v3228 = vsel %vm431, %v3219, %v3211
      %v3229 = vsel %vm431, %v3221, %v3213
      %v3230 = vld [vmem:[%s440] sm:$0xff]
      %v3231 = vld [vmem:[%s440 + $0x8] sm:$0xff]
      %v3232 = vld [vmem:[%s440 + $0x10] sm:$0xff]
      %v3233 = vld [vmem:[%s440 + $0x18] sm:$0xff]
      %v3234 = vld [vmem:[%s440 + $0x20] sm:$0xff]
      %v3235 = vld [vmem:[%s440 + $0x28] sm:$0xff]
      %v3236 = vld [vmem:[%s440 + $0x30] sm:$0xff]
      %v3237 = vld [vmem:[%s440 + $0x38] sm:$0xff]
      %v3238 = vmul.f32 %v3222, %v3230
      %v3239 = vmul.f32 %v3226, %v3231
      %v3240 = vmul.f32 %v3223, %v3232
      %v3241 = vmul.f32 %v3227, %v3233
      %v3242 = vmul.f32 %v3224, %v3234
      %v3243 = vmul.f32 %v3228, %v3235
      %v3244 = vmul.f32 %v3225, %v3236
      %v3245 = vmul.f32 %v3229, %v3237
      %3246 = vst [vmem:[#allocation2 + $0x140] sm:$0xff] %v3238
      %3247 = vst [vmem:[#allocation2 + $0x148] sm:$0xff] %v3239
      %3248 = vst [vmem:[#allocation2 + $0x150] sm:$0xff] %v3240
      %3249 = vst [vmem:[#allocation2 + $0x158] sm:$0xff] %v3241
      %3250 = vst [vmem:[#allocation2 + $0x160] sm:$0xff] %v3242
      %3251 = vst [vmem:[#allocation2 + $0x168] sm:$0xff] %v3243
      %3252 = vst [vmem:[#allocation2 + $0x170] sm:$0xff] %v3244
      %3253 = vst [vmem:[#allocation2 + $0x178] sm:$0xff] %v3245
      %3254 = vrot.lane.b32.xlu0 %v2998, 113
      %v3255 = vpop.permute.xlu0 %3254
      %3256 = vrot.lane.b32.xlu0 %v3000, 113
      %v3257 = vpop.permute.xlu0 %3256
      %3258 = vrot.lane.b32.xlu0 %v3002, 113
      %v3259 = vpop.permute.xlu0 %3258
      %3260 = vrot.lane.b32.xlu0 %v3004, 113
      %v3261 = vpop.permute.xlu0 %3260
      %3262 = vrot.lane.b32.xlu0 %v2999, 113
      %v3263 = vpop.permute.xlu0 %3262
      %3264 = vrot.lane.b32.xlu0 %v3001, 113
      %v3265 = vpop.permute.xlu0 %3264
      %3266 = vrot.lane.b32.xlu0 %v3003, 113
      %v3267 = vpop.permute.xlu0 %3266
      %3268 = vrot.lane.b32.xlu0 %v3005, 113
      %v3269 = vpop.permute.xlu0 %3268
      %v3270 = vsel %vm481, %v3255, %v3263
      %v3271 = vsel %vm481, %v3257, %v3265
      %v3272 = vsel %vm481, %v3259, %v3267
      %v3273 = vsel %vm481, %v3261, %v3269
      %v3274 = vsel %vm481, %v3263, %v3255
      %v3275 = vsel %vm481, %v3265, %v3257
      %v3276 = vsel %vm481, %v3267, %v3259
      %v3277 = vsel %vm481, %v3269, %v3261
      %v3278 = vld [vmem:[%s490] sm:$0xff]
      %v3279 = vld [vmem:[%s490 + $0x8] sm:$0xff]
      %v3280 = vld [vmem:[%s490 + $0x10] sm:$0xff]
      %v3281 = vld [vmem:[%s490 + $0x18] sm:$0xff]
      %v3282 = vld [vmem:[%s490 + $0x20] sm:$0xff]
      %v3283 = vld [vmem:[%s490 + $0x28] sm:$0xff]
      %v3284 = vld [vmem:[%s490 + $0x30] sm:$0xff]
      %v3285 = vld [vmem:[%s490 + $0x38] sm:$0xff]
      %v3286 = vmul.f32 %v3270, %v3278
      %v3287 = vmul.f32 %v3274, %v3279
      %v3288 = vmul.f32 %v3271, %v3280
      %v3289 = vmul.f32 %v3275, %v3281
      %v3290 = vmul.f32 %v3272, %v3282
      %v3291 = vmul.f32 %v3276, %v3283
      %v3292 = vmul.f32 %v3273, %v3284
      %v3293 = vmul.f32 %v3277, %v3285
      %3294 = vst [vmem:[#allocation2 + $0x180] sm:$0xff] %v3286
      %3295 = vst [vmem:[#allocation2 + $0x188] sm:$0xff] %v3287
      %3296 = vst [vmem:[#allocation2 + $0x190] sm:$0xff] %v3288
      %3297 = vst [vmem:[#allocation2 + $0x198] sm:$0xff] %v3289
      %3298 = vst [vmem:[#allocation2 + $0x1a0] sm:$0xff] %v3290
      %3299 = vst [vmem:[#allocation2 + $0x1a8] sm:$0xff] %v3291
      %3300 = vst [vmem:[#allocation2 + $0x1b0] sm:$0xff] %v3292
      %3301 = vst [vmem:[#allocation2 + $0x1b8] sm:$0xff] %v3293
      %3302 = vrot.lane.b32.xlu0 %v2998, 112
      %v3303 = vpop.permute.xlu0 %3302
      %3304 = vrot.lane.b32.xlu0 %v3000, 112
      %v3305 = vpop.permute.xlu0 %3304
      %3306 = vrot.lane.b32.xlu0 %v3002, 112
      %v3307 = vpop.permute.xlu0 %3306
      %3308 = vrot.lane.b32.xlu0 %v3004, 112
      %v3309 = vpop.permute.xlu0 %3308
      %3310 = vrot.lane.b32.xlu0 %v2999, 112
      %v3311 = vpop.permute.xlu0 %3310
      %3312 = vrot.lane.b32.xlu0 %v3001, 112
      %v3313 = vpop.permute.xlu0 %3312
      %3314 = vrot.lane.b32.xlu0 %v3003, 112
      %v3315 = vpop.permute.xlu0 %3314
      %3316 = vrot.lane.b32.xlu0 %v3005, 112
      %v3317 = vpop.permute.xlu0 %3316
      %v3318 = vsel %vm531, %v3303, %v3311
      %v3319 = vsel %vm531, %v3305, %v3313
      %v3320 = vsel %vm531, %v3307, %v3315
      %v3321 = vsel %vm531, %v3309, %v3317
      %v3322 = vsel %vm531, %v3311, %v3303
      %v3323 = vsel %vm531, %v3313, %v3305
      %v3324 = vsel %vm531, %v3315, %v3307
      %v3325 = vsel %vm531, %v3317, %v3309
      %v3326 = vld [vmem:[%s540] sm:$0xff]
      %v3327 = vld [vmem:[%s540 + $0x8] sm:$0xff]
      %v3328 = vld [vmem:[%s540 + $0x10] sm:$0xff]
      %v3329 = vld [vmem:[%s540 + $0x18] sm:$0xff]
      %v3330 = vld [vmem:[%s540 + $0x20] sm:$0xff]
      %v3331 = vld [vmem:[%s540 + $0x28] sm:$0xff]
      %v3332 = vld [vmem:[%s540 + $0x30] sm:$0xff]
      %v3333 = vld [vmem:[%s540 + $0x38] sm:$0xff]
      %v3334 = vmul.f32 %v3318, %v3326
      %v3335 = vmul.f32 %v3322, %v3327
      %v3336 = vmul.f32 %v3319, %v3328
      %v3337 = vmul.f32 %v3323, %v3329
      %v3338 = vmul.f32 %v3320, %v3330
      %v3339 = vmul.f32 %v3324, %v3331
      %v3340 = vmul.f32 %v3321, %v3332
      %v3341 = vmul.f32 %v3325, %v3333
      %3342 = vst [vmem:[#allocation2 + $0x1c0] sm:$0xff] %v3334
      %3343 = vst [vmem:[#allocation2 + $0x1c8] sm:$0xff] %v3335
      %3344 = vst [vmem:[#allocation2 + $0x1d0] sm:$0xff] %v3336
      %3345 = vst [vmem:[#allocation2 + $0x1d8] sm:$0xff] %v3337
      %3346 = vst [vmem:[#allocation2 + $0x1e0] sm:$0xff] %v3338
      %3347 = vst [vmem:[#allocation2 + $0x1e8] sm:$0xff] %v3339
      %3348 = vst [vmem:[#allocation2 + $0x1f0] sm:$0xff] %v3340
      %3349 = vst [vmem:[#allocation2 + $0x1f8] sm:$0xff] %v3341
      %3350 = vrot.lane.b32.xlu0 %v2998, 111
      %v3351 = vpop.permute.xlu0 %3350
      %3352 = vrot.lane.b32.xlu0 %v3000, 111
      %v3353 = vpop.permute.xlu0 %3352
      %3354 = vrot.lane.b32.xlu0 %v3002, 111
      %v3355 = vpop.permute.xlu0 %3354
      %3356 = vrot.lane.b32.xlu0 %v3004, 111
      %v3357 = vpop.permute.xlu0 %3356
      %3358 = vrot.lane.b32.xlu0 %v2999, 111
      %v3359 = vpop.permute.xlu0 %3358
      %3360 = vrot.lane.b32.xlu0 %v3001, 111
      %v3361 = vpop.permute.xlu0 %3360
      %3362 = vrot.lane.b32.xlu0 %v3003, 111
      %v3363 = vpop.permute.xlu0 %3362
      %3364 = vrot.lane.b32.xlu0 %v3005, 111
      %v3365 = vpop.permute.xlu0 %3364
      %v3366 = vsel %vm581, %v3351, %v3359
      %v3367 = vsel %vm581, %v3353, %v3361
      %v3368 = vsel %vm581, %v3355, %v3363
      %v3369 = vsel %vm581, %v3357, %v3365
      %v3370 = vsel %vm581, %v3359, %v3351
      %v3371 = vsel %vm581, %v3361, %v3353
      %v3372 = vsel %vm581, %v3363, %v3355
      %v3373 = vsel %vm581, %v3365, %v3357
      %v3374 = vld [vmem:[%s590] sm:$0xff]
      %v3375 = vld [vmem:[%s590 + $0x8] sm:$0xff]
      %v3376 = vld [vmem:[%s590 + $0x10] sm:$0xff]
      %v3377 = vld [vmem:[%s590 + $0x18] sm:$0xff]
      %v3378 = vld [vmem:[%s590 + $0x20] sm:$0xff]
      %v3379 = vld [vmem:[%s590 + $0x28] sm:$0xff]
      %v3380 = vld [vmem:[%s590 + $0x30] sm:$0xff]
      %v3381 = vld [vmem:[%s590 + $0x38] sm:$0xff]
      %v3382 = vmul.f32 %v3366, %v3374
      %v3383 = vmul.f32 %v3370, %v3375
      %v3384 = vmul.f32 %v3367, %v3376
      %v3385 = vmul.f32 %v3371, %v3377
      %v3386 = vmul.f32 %v3368, %v3378
      %v3387 = vmul.f32 %v3372, %v3379
      %v3388 = vmul.f32 %v3369, %v3380
      %v3389 = vmul.f32 %v3373, %v3381
      %3390 = vst [vmem:[#allocation2 + $0x200] sm:$0xff] %v3382
      %3391 = vst [vmem:[#allocation2 + $0x208] sm:$0xff] %v3383
      %3392 = vst [vmem:[#allocation2 + $0x210] sm:$0xff] %v3384
      %3393 = vst [vmem:[#allocation2 + $0x218] sm:$0xff] %v3385
      %3394 = vst [vmem:[#allocation2 + $0x220] sm:$0xff] %v3386
      %3395 = vst [vmem:[#allocation2 + $0x228] sm:$0xff] %v3387
      %3396 = vst [vmem:[#allocation2 + $0x230] sm:$0xff] %v3388
      %3397 = vst [vmem:[#allocation2 + $0x238] sm:$0xff] %v3389
      %s3398 = scalar_lea.vmem %s1, 384
      %v3399 = vld [vmem:[%s3398] sm:$0xff]
      %v3400 = vld [vmem:[%s3398 + $0x8] sm:$0xff]
      %v3401 = vld [vmem:[%s3398 + $0x10] sm:$0xff]
      %v3402 = vld [vmem:[%s3398 + $0x18] sm:$0xff]
      %v3403 = vld [vmem:[%s3398 + $0x20] sm:$0xff]
      %v3404 = vld [vmem:[%s3398 + $0x28] sm:$0xff]
      %v3405 = vld [vmem:[%s3398 + $0x30] sm:$0xff]
      %v3406 = vld [vmem:[%s3398 + $0x38] sm:$0xff]
      %v3407 = vld [vmem:[%s3398 + $0x40] sm:$0xff]
      %v3408 = vld [vmem:[%s3398 + $0x48] sm:$0xff]
      %v3409 = vld [vmem:[%s3398 + $0x50] sm:$0xff]
      %v3410 = vld [vmem:[%s3398 + $0x58] sm:$0xff]
      %v3411 = vld [vmem:[#allocation2] sm:$0xff]
      %v3412 = vld [vmem:[#allocation2 + $0x8] sm:$0xff]
      %v3413 = vld [vmem:[#allocation2 + $0x10] sm:$0xff]
      %v3414 = vld [vmem:[#allocation2 + $0x18] sm:$0xff]
      %v3415 = vld [vmem:[#allocation2 + $0x20] sm:$0xff]
      %v3416 = vld [vmem:[#allocation2 + $0x28] sm:$0xff]
      %v3417 = vld [vmem:[#allocation2 + $0x30] sm:$0xff]
      %v3418 = vld [vmem:[#allocation2 + $0x38] sm:$0xff]
      %v3419 = vld [vmem:[#allocation2 + $0x40] sm:$0xff]
      %v3420 = vld [vmem:[#allocation2 + $0x48] sm:$0xff]
      %v3421 = vld [vmem:[#allocation2 + $0x50] sm:$0xff]
      %v3422 = vld [vmem:[#allocation2 + $0x58] sm:$0xff]
      %v3423 = vld [vmem:[#allocation2 + $0x60] sm:$0xff]
      %v3424 = vld [vmem:[#allocation2 + $0x68] sm:$0xff]
      %v3425 = vld [vmem:[#allocation2 + $0x70] sm:$0xff]
      %v3426 = vld [vmem:[#allocation2 + $0x78] sm:$0xff]
      %v3427 = vld [vmem:[#allocation2 + $0x80] sm:$0xff]
      %v3428 = vld [vmem:[#allocation2 + $0x88] sm:$0xff]
      %v3429 = vld [vmem:[#allocation2 + $0x90] sm:$0xff]
      %v3430 = vld [vmem:[#allocation2 + $0x98] sm:$0xff]
      %v3431 = vld [vmem:[#allocation2 + $0xa0] sm:$0xff]
      %v3432 = vld [vmem:[#allocation2 + $0xa8] sm:$0xff]
      %v3433 = vld [vmem:[#allocation2 + $0xb0] sm:$0xff]
      %v3434 = vld [vmem:[#allocation2 + $0xb8] sm:$0xff]
      %v3435 = vld [vmem:[#allocation2 + $0xc0] sm:$0xff]
      %v3436 = vld [vmem:[#allocation2 + $0xc8] sm:$0xff]
      %v3437 = vld [vmem:[#allocation2 + $0xd0] sm:$0xff]
      %v3438 = vld [vmem:[#allocation2 + $0xd8] sm:$0xff]
      %v3439 = vld [vmem:[#allocation2 + $0xe0] sm:$0xff]
      %v3440 = vld [vmem:[#allocation2 + $0xe8] sm:$0xff]
      %v3441 = vld [vmem:[#allocation2 + $0xf0] sm:$0xff]
      %v3442 = vld [vmem:[#allocation2 + $0xf8] sm:$0xff]
      %v3443 = vld [vmem:[#allocation2 + $0x100] sm:$0xff]
      %v3444 = vld [vmem:[#allocation2 + $0x108] sm:$0xff]
      %v3445 = vld [vmem:[#allocation2 + $0x110] sm:$0xff]
      %v3446 = vld [vmem:[#allocation2 + $0x118] sm:$0xff]
      %v3447 = vld [vmem:[#allocation2 + $0x120] sm:$0xff]
      %v3448 = vld [vmem:[#allocation2 + $0x128] sm:$0xff]
      %v3449 = vld [vmem:[#allocation2 + $0x130] sm:$0xff]
      %v3450 = vld [vmem:[#allocation2 + $0x138] sm:$0xff]
      %v3451 = vld [vmem:[#allocation2 + $0x140] sm:$0xff]
      %v3452 = vld [vmem:[#allocation2 + $0x148] sm:$0xff]
      %v3453 = vld [vmem:[#allocation2 + $0x150] sm:$0xff]
      %v3454 = vld [vmem:[#allocation2 + $0x158] sm:$0xff]
      %v3455 = vld [vmem:[#allocation2 + $0x160] sm:$0xff]
      %v3456 = vld [vmem:[#allocation2 + $0x168] sm:$0xff]
      %v3457 = vld [vmem:[#allocation2 + $0x170] sm:$0xff]
      %v3458 = vld [vmem:[#allocation2 + $0x178] sm:$0xff]
      %v3459 = vld [vmem:[#allocation2 + $0x180] sm:$0xff]
      %v3460 = vld [vmem:[#allocation2 + $0x188] sm:$0xff]
      %v3461 = vld [vmem:[#allocation2 + $0x190] sm:$0xff]
      %v3462 = vld [vmem:[#allocation2 + $0x198] sm:$0xff]
      %v3463 = vld [vmem:[#allocation2 + $0x1a0] sm:$0xff]
      %v3464 = vld [vmem:[#allocation2 + $0x1a8] sm:$0xff]
      %v3465 = vld [vmem:[#allocation2 + $0x1b0] sm:$0xff]
      %v3466 = vld [vmem:[#allocation2 + $0x1b8] sm:$0xff]
      %v3467 = vld [vmem:[#allocation2 + $0x1c0] sm:$0xff]
      %v3468 = vld [vmem:[#allocation2 + $0x1c8] sm:$0xff]
      %v3469 = vld [vmem:[#allocation2 + $0x1d0] sm:$0xff]
      %v3470 = vld [vmem:[#allocation2 + $0x1d8] sm:$0xff]
      %v3471 = vld [vmem:[#allocation2 + $0x1e0] sm:$0xff]
      %v3472 = vld [vmem:[#allocation2 + $0x1e8] sm:$0xff]
      %v3473 = vld [vmem:[#allocation2 + $0x1f0] sm:$0xff]
      %v3474 = vld [vmem:[#allocation2 + $0x1f8] sm:$0xff]
      %v3475 = vld [vmem:[#allocation2 + $0x200] sm:$0xff]
      %v3476 = vld [vmem:[#allocation2 + $0x208] sm:$0xff]
      %v3477 = vld [vmem:[#allocation2 + $0x210] sm:$0xff]
      %v3478 = vld [vmem:[#allocation2 + $0x218] sm:$0xff]
      %v3479 = vld [vmem:[#allocation2 + $0x220] sm:$0xff]
      %v3480 = vld [vmem:[#allocation2 + $0x228] sm:$0xff]
      %v3481 = vld [vmem:[#allocation2 + $0x230] sm:$0xff]
      %v3482 = vld [vmem:[#allocation2 + $0x238] sm:$0xff]
      %s3483 = scalar_lea.vmem %s2, 128
      %v3484 = vld [vmem:[%s3483] sm:$0xff]
      %v3485 = vld [vmem:[%s3483 + $0x8] sm:$0xff]
      %v3486 = vld [vmem:[%s3483 + $0x10] sm:$0xff]
      %v3487 = vld [vmem:[%s3483 + $0x18] sm:$0xff]
      %3489 = vset.pattern.permute.xlu0 0
      %3490 = vperm.xlu0 %3489, %v3484
      %v3491 = vpop.permute.xlu0 %3490
      %3494 = vset.pattern.permute.xlu0 0
      %3495 = vperm.xlu0 %3494, %v3485
      %v3496 = vpop.permute.xlu0 %3495
      %3499 = vset.pattern.permute.xlu0 0
      %3500 = vperm.xlu0 %3499, %v3486
      %v3501 = vpop.permute.xlu0 %3500
      %3504 = vset.pattern.permute.xlu0 0
      %3505 = vperm.xlu0 %3504, %v3487
      %v3506 = vpop.permute.xlu0 %3505
      %v3509 = vsel %vm723, %v3401, 0
      %v3512 = vsel %vm723, %v3404, 0
      %v3515 = vsel %vm723, %v3407, 0
      %v3518 = vsel %vm723, %v3410, 0
      %3520 = vmatpush.msra.mxu0 %v3441
      %3521 = vmatpush.msra.mxu0 %v3439
      %3522 = vmatpush.msra.mxu0 %v3437
      %3523 = vmatpush.msra.mxu0 %v3435
      %3524 = vmatpush.msra.mxu0 %v3433
      %3525 = vmatpush.msra.mxu0 %v3431
      %3526 = vmatpush.msra.mxu0 %v3429
      %3527 = vmatpush.msra.mxu0 %v3427
      %3528 = vmatpush.msra.mxu0 %v3425
      %3529 = vmatpush.msra.mxu0 %v3423
      %3530 = vmatpush.msra.mxu0 %v3421
      %3531 = vmatpush.msra.mxu0 %v3419
      %3532 = vmatpush.msra.mxu0 %v3417
      %3533 = vmatpush.msra.mxu0 %v3415
      %3534 = vmatpush.msra.mxu0 %v3413
      %3535 = vmatpush.msra.mxu0 %v3411
      %3536 = vmatmul.f32.gmra.mxu0 %v3399
      %v3537 = vpop.f32.mrf.mxu0
      %v3538 = vadd.f32 %v3491, %v3537
      %3539 = vmatmul.f32.gmra.mxu0 %v3402
      %v3540 = vpop.f32.mrf.mxu0
      %v3541 = vadd.f32 %v3496, %v3540
      %3542 = vmatmul.f32.gmra.mxu0 %v3405
      %v3543 = vpop.f32.mrf.mxu0
      %v3544 = vadd.f32 %v3501, %v3543
      %3545 = vmatmul.f32.gmra.mxu0 %v3408
      %v3546 = vpop.f32.mrf.mxu0
      %v3547 = vadd.f32 %v3506, %v3546
      %3548 = vdwg.mxu0
      %3549 = vmatpush.msra.mxu0 %v3473
      %3550 = vmatpush.msra.mxu0 %v3471
      %3551 = vmatpush.msra.mxu0 %v3469
      %3552 = vmatpush.msra.mxu0 %v3467
      %3553 = vmatpush.msra.mxu0 %v3465
      %3554 = vmatpush.msra.mxu0 %v3463
      %3555 = vmatpush.msra.mxu0 %v3461
      %3556 = vmatpush.msra.mxu0 %v3459
      %3557 = vmatpush.msra.mxu0 %v3457
      %3558 = vmatpush.msra.mxu0 %v3455
      %3559 = vmatpush.msra.mxu0 %v3453
      %3560 = vmatpush.msra.mxu0 %v3451
      %3561 = vmatpush.msra.mxu0 %v3449
      %3562 = vmatpush.msra.mxu0 %v3447
      %3563 = vmatpush.msra.mxu0 %v3445
      %3564 = vmatpush.msra.mxu0 %v3443
      %3565 = vmatmul.f32.gmra.mxu0 %v3400
      %v3566 = vpop.f32.mrf.mxu0
      %v3567 = vadd.f32 %v3538, %v3566
      %3568 = vmatmul.f32.gmra.mxu0 %v3403
      %v3569 = vpop.f32.mrf.mxu0
      %v3570 = vadd.f32 %v3541, %v3569
      %3571 = vmatmul.f32.gmra.mxu0 %v3406
      %v3572 = vpop.f32.mrf.mxu0
      %v3573 = vadd.f32 %v3544, %v3572
      %3574 = vmatmul.f32.gmra.mxu0 %v3409
      %v3575 = vpop.f32.mrf.mxu0
      %v3576 = vadd.f32 %v3547, %v3575
      %3577 = vdwg.mxu0
      %3578 = vmatpush.msra.mxu0 0.0
      %3579 = vmatpush.msra.mxu0 0.0
      %3580 = vmatpush.msra.mxu0 0.0
      %3581 = vmatpush.msra.mxu0 0.0
      %3582 = vmatpush.msra.mxu0 0.0
      %3583 = vmatpush.msra.mxu0 0.0
      %3584 = vmatpush.msra.mxu0 0.0
      %3585 = vmatpush.msra.mxu0 0.0
      %3586 = vmatpush.msra.mxu0 0.0
      %3587 = vmatpush.msra.mxu0 0.0
      %3588 = vmatpush.msra.mxu0 0.0
      %3589 = vmatpush.msra.mxu0 0.0
      %3590 = vmatpush.msra.mxu0 %v3481
      %3591 = vmatpush.msra.mxu0 %v3479
      %3592 = vmatpush.msra.mxu0 %v3477
      %3593 = vmatpush.msra.mxu0 %v3475
      %3594 = vmatmul.f32.gmra.mxu0 %v3509
      %v3595 = vpop.f32.mrf.mxu0
      %v3596 = vadd.f32 %v3567, %v3595
      %3597 = vmatmul.f32.gmra.mxu0 %v3512
      %v3598 = vpop.f32.mrf.mxu0
      %v3599 = vadd.f32 %v3570, %v3598
      %3600 = vmatmul.f32.gmra.mxu0 %v3515
      %v3601 = vpop.f32.mrf.mxu0
      %v3602 = vadd.f32 %v3573, %v3601
      %3603 = vmatmul.f32.gmra.mxu0 %v3518
      %v3604 = vpop.f32.mrf.mxu0
      %v3605 = vadd.f32 %v3576, %v3604
      %3606 = vdwg.mxu0
      %3607 = vmatpush.msra.mxu0 %v3442
      %3608 = vmatpush.msra.mxu0 %v3440
      %3609 = vmatpush.msra.mxu0 %v3438
      %3610 = vmatpush.msra.mxu0 %v3436
      %3611 = vmatpush.msra.mxu0 %v3434
      %3612 = vmatpush.msra.mxu0 %v3432
      %3613 = vmatpush.msra.mxu0 %v3430
      %3614 = vmatpush.msra.mxu0 %v3428
      %3615 = vmatpush.msra.mxu0 %v3426
      %3616 = vmatpush.msra.mxu0 %v3424
      %3617 = vmatpush.msra.mxu0 %v3422
      %3618 = vmatpush.msra.mxu0 %v3420
      %3619 = vmatpush.msra.mxu0 %v3418
      %3620 = vmatpush.msra.mxu0 %v3416
      %3621 = vmatpush.msra.mxu0 %v3414
      %3622 = vmatpush.msra.mxu0 %v3412
      %3623 = vmatmul.f32.gmra.mxu0 %v3399
      %v3624 = vpop.f32.mrf.mxu0
      %v3625 = vadd.f32 %v3491, %v3624
      %3626 = vmatmul.f32.gmra.mxu0 %v3402
      %v3627 = vpop.f32.mrf.mxu0
      %v3628 = vadd.f32 %v3496, %v3627
      %3629 = vmatmul.f32.gmra.mxu0 %v3405
      %v3630 = vpop.f32.mrf.mxu0
      %v3631 = vadd.f32 %v3501, %v3630
      %3632 = vmatmul.f32.gmra.mxu0 %v3408
      %v3633 = vpop.f32.mrf.mxu0
      %v3634 = vadd.f32 %v3506, %v3633
      %3635 = vdwg.mxu0
      %3636 = vmatpush.msra.mxu0 %v3474
      %3637 = vmatpush.msra.mxu0 %v3472
      %3638 = vmatpush.msra.mxu0 %v3470
      %3639 = vmatpush.msra.mxu0 %v3468
      %3640 = vmatpush.msra.mxu0 %v3466
      %3641 = vmatpush.msra.mxu0 %v3464
      %3642 = vmatpush.msra.mxu0 %v3462
      %3643 = vmatpush.msra.mxu0 %v3460
      %3644 = vmatpush.msra.mxu0 %v3458
      %3645 = vmatpush.msra.mxu0 %v3456
      %3646 = vmatpush.msra.mxu0 %v3454
      %3647 = vmatpush.msra.mxu0 %v3452
      %3648 = vmatpush.msra.mxu0 %v3450
      %3649 = vmatpush.msra.mxu0 %v3448
      %3650 = vmatpush.msra.mxu0 %v3446
      %3651 = vmatpush.msra.mxu0 %v3444
      %3652 = vmatmul.f32.gmra.mxu0 %v3400
      %v3653 = vpop.f32.mrf.mxu0
      %v3654 = vadd.f32 %v3625, %v3653
      %3655 = vmatmul.f32.gmra.mxu0 %v3403
      %v3656 = vpop.f32.mrf.mxu0
      %v3657 = vadd.f32 %v3628, %v3656
      %3658 = vmatmul.f32.gmra.mxu0 %v3406
      %v3659 = vpop.f32.mrf.mxu0
      %v3660 = vadd.f32 %v3631, %v3659
      %3661 = vmatmul.f32.gmra.mxu0 %v3409
      %v3662 = vpop.f32.mrf.mxu0
      %v3663 = vadd.f32 %v3634, %v3662
      %3664 = vdwg.mxu0
      %3665 = vmatpush.msra.mxu0 0.0
      %3666 = vmatpush.msra.mxu0 0.0
      %3667 = vmatpush.msra.mxu0 0.0
      %3668 = vmatpush.msra.mxu0 0.0
      %3669 = vmatpush.msra.mxu0 0.0
      %3670 = vmatpush.msra.mxu0 0.0
      %3671 = vmatpush.msra.mxu0 0.0
      %3672 = vmatpush.msra.mxu0 0.0
      %3673 = vmatpush.msra.mxu0 0.0
      %3674 = vmatpush.msra.mxu0 0.0
      %3675 = vmatpush.msra.mxu0 0.0
      %3676 = vmatpush.msra.mxu0 0.0
      %3677 = vmatpush.msra.mxu0 %v3482
      %3678 = vmatpush.msra.mxu0 %v3480
      %3679 = vmatpush.msra.mxu0 %v3478
      %3680 = vmatpush.msra.mxu0 %v3476
      %3681 = vmatmul.f32.gmra.mxu0 %v3509
      %v3682 = vpop.f32.mrf.mxu0
      %v3683 = vadd.f32 %v3654, %v3682
      %3684 = vmatmul.f32.gmra.mxu0 %v3512
      %v3685 = vpop.f32.mrf.mxu0
      %v3686 = vadd.f32 %v3657, %v3685
      %3687 = vmatmul.f32.gmra.mxu0 %v3515
      %v3688 = vpop.f32.mrf.mxu0
      %v3689 = vadd.f32 %v3660, %v3688
      %3690 = vmatmul.f32.gmra.mxu0 %v3518
      %v3691 = vpop.f32.mrf.mxu0
      %v3692 = vadd.f32 %v3663, %v3691
      %3693 = vdwg.mxu0
      %v3694 = vmax.f32 %v3596, 0.0
      %v3695 = vmax.f32 %v3683, 0.0
      %v3696 = vmax.f32 %v3599, 0.0
      %v3697 = vmax.f32 %v3686, 0.0
      %v3698 = vmax.f32 %v3602, 0.0
      %v3699 = vmax.f32 %v3689, 0.0
      %v3700 = vmax.f32 %v3605, 0.0
      %v3701 = vmax.f32 %v3692, 0.0
      %3702 = vrot.lane.b32.xlu0 %v3694, 17
      %v3703 = vpop.permute.xlu0 %3702
      %3704 = vrot.lane.b32.xlu0 %v3696, 17
      %v3705 = vpop.permute.xlu0 %3704
      %3706 = vrot.lane.b32.xlu0 %v3698, 17
      %v3707 = vpop.permute.xlu0 %3706
      %3708 = vrot.lane.b32.xlu0 %v3700, 17
      %v3709 = vpop.permute.xlu0 %3708
      %3710 = vrot.lane.b32.xlu0 %v3695, 17
      %v3711 = vpop.permute.xlu0 %3710
      %3712 = vrot.lane.b32.xlu0 %v3697, 17
      %v3713 = vpop.permute.xlu0 %3712
      %3714 = vrot.lane.b32.xlu0 %v3699, 17
      %v3715 = vpop.permute.xlu0 %3714
      %3716 = vrot.lane.b32.xlu0 %v3701, 17
      %v3717 = vpop.permute.xlu0 %3716
      %v3718 = vsel %vm224, %v3703, %v3711
      %v3719 = vsel %vm224, %v3705, %v3713
      %v3720 = vsel %vm224, %v3707, %v3715
      %v3721 = vsel %vm224, %v3709, %v3717
      %v3722 = vsel %vm224, %v3711, %v3703
      %v3723 = vsel %vm224, %v3713, %v3705
      %v3724 = vsel %vm224, %v3715, %v3707
      %v3725 = vsel %vm224, %v3717, %v3709
      %v3726 = vld [vmem:[%s3] sm:$0xff]
      %v3727 = vld [vmem:[%s3 + $0x8] sm:$0xff]
      %v3728 = vld [vmem:[%s3 + $0x10] sm:$0xff]
      %v3729 = vld [vmem:[%s3 + $0x18] sm:$0xff]
      %v3730 = vld [vmem:[%s3 + $0x20] sm:$0xff]
      %v3731 = vld [vmem:[%s3 + $0x28] sm:$0xff]
      %v3732 = vld [vmem:[%s3 + $0x30] sm:$0xff]
      %v3733 = vld [vmem:[%s3 + $0x38] sm:$0xff]
      %v3734 = vmul.f32 %v3722, %v3726
      %v3735 = vmul.f32 %v3718, %v3727
      %v3736 = vmul.f32 %v3723, %v3728
      %v3737 = vmul.f32 %v3719, %v3729
      %v3738 = vmul.f32 %v3724, %v3730
      %v3739 = vmul.f32 %v3720, %v3731
      %v3740 = vmul.f32 %v3725, %v3732
      %v3741 = vmul.f32 %v3721, %v3733
      %3742 = vst [vmem:[#allocation2] sm:$0xff] %v3734
      %3743 = vst [vmem:[#allocation2 + $0x8] sm:$0xff] %v3735
      %3744 = vst [vmem:[#allocation2 + $0x10] sm:$0xff] %v3736
      %3745 = vst [vmem:[#allocation2 + $0x18] sm:$0xff] %v3737
      %3746 = vst [vmem:[#allocation2 + $0x20] sm:$0xff] %v3738
      %3747 = vst [vmem:[#allocation2 + $0x28] sm:$0xff] %v3739
      %3748 = vst [vmem:[#allocation2 + $0x30] sm:$0xff] %v3740
      %3749 = vst [vmem:[#allocation2 + $0x38] sm:$0xff] %v3741
      %3750 = vrot.lane.b32.xlu0 %v3694, 16
      %v3751 = vpop.permute.xlu0 %3750
      %3752 = vrot.lane.b32.xlu0 %v3696, 16
      %v3753 = vpop.permute.xlu0 %3752
      %3754 = vrot.lane.b32.xlu0 %v3698, 16
      %v3755 = vpop.permute.xlu0 %3754
      %3756 = vrot.lane.b32.xlu0 %v3700, 16
      %v3757 = vpop.permute.xlu0 %3756
      %3758 = vrot.lane.b32.xlu0 %v3695, 16
      %v3759 = vpop.permute.xlu0 %3758
      %3760 = vrot.lane.b32.xlu0 %v3697, 16
      %v3761 = vpop.permute.xlu0 %3760
      %3762 = vrot.lane.b32.xlu0 %v3699, 16
      %v3763 = vpop.permute.xlu0 %3762
      %3764 = vrot.lane.b32.xlu0 %v3701, 16
      %v3765 = vpop.permute.xlu0 %3764
      %v3766 = vsel %vm273, %v3751, %v3759
      %v3767 = vsel %vm273, %v3753, %v3761
      %v3768 = vsel %vm273, %v3755, %v3763
      %v3769 = vsel %vm273, %v3757, %v3765
      %v3770 = vsel %vm273, %v3759, %v3751
      %v3771 = vsel %vm273, %v3761, %v3753
      %v3772 = vsel %vm273, %v3763, %v3755
      %v3773 = vsel %vm273, %v3765, %v3757
      %v3774 = vld [vmem:[%s282] sm:$0xff]
      %v3775 = vld [vmem:[%s282 + $0x8] sm:$0xff]
      %v3776 = vld [vmem:[%s282 + $0x10] sm:$0xff]
      %v3777 = vld [vmem:[%s282 + $0x18] sm:$0xff]
      %v3778 = vld [vmem:[%s282 + $0x20] sm:$0xff]
      %v3779 = vld [vmem:[%s282 + $0x28] sm:$0xff]
      %v3780 = vld [vmem:[%s282 + $0x30] sm:$0xff]
      %v3781 = vld [vmem:[%s282 + $0x38] sm:$0xff]
      %v3782 = vmul.f32 %v3770, %v3774
      %v3783 = vmul.f32 %v3766, %v3775
      %v3784 = vmul.f32 %v3771, %v3776
      %v3785 = vmul.f32 %v3767, %v3777
      %v3786 = vmul.f32 %v3772, %v3778
      %v3787 = vmul.f32 %v3768, %v3779
      %v3788 = vmul.f32 %v3773, %v3780
      %v3789 = vmul.f32 %v3769, %v3781
      %3790 = vst [vmem:[#allocation2 + $0x40] sm:$0xff] %v3782
      %3791 = vst [vmem:[#allocation2 + $0x48] sm:$0xff] %v3783
      %3792 = vst [vmem:[#allocation2 + $0x50] sm:$0xff] %v3784
      %3793 = vst [vmem:[#allocation2 + $0x58] sm:$0xff] %v3785
      %3794 = vst [vmem:[#allocation2 + $0x60] sm:$0xff] %v3786
      %3795 = vst [vmem:[#allocation2 + $0x68] sm:$0xff] %v3787
      %3796 = vst [vmem:[#allocation2 + $0x70] sm:$0xff] %v3788
      %3797 = vst [vmem:[#allocation2 + $0x78] sm:$0xff] %v3789
      %3798 = vrot.lane.b32.xlu0 %v3694, 15
      %v3799 = vpop.permute.xlu0 %3798
      %3800 = vrot.lane.b32.xlu0 %v3696, 15
      %v3801 = vpop.permute.xlu0 %3800
      %3802 = vrot.lane.b32.xlu0 %v3698, 15
      %v3803 = vpop.permute.xlu0 %3802
      %3804 = vrot.lane.b32.xlu0 %v3700, 15
      %v3805 = vpop.permute.xlu0 %3804
      %3806 = vrot.lane.b32.xlu0 %v3695, 15
      %v3807 = vpop.permute.xlu0 %3806
      %3808 = vrot.lane.b32.xlu0 %v3697, 15
      %v3809 = vpop.permute.xlu0 %3808
      %3810 = vrot.lane.b32.xlu0 %v3699, 15
      %v3811 = vpop.permute.xlu0 %3810
      %3812 = vrot.lane.b32.xlu0 %v3701, 15
      %v3813 = vpop.permute.xlu0 %3812
      %v3814 = vsel %vm323, %v3799, %v3807
      %v3815 = vsel %vm323, %v3801, %v3809
      %v3816 = vsel %vm323, %v3803, %v3811
      %v3817 = vsel %vm323, %v3805, %v3813
      %v3818 = vsel %vm323, %v3807, %v3799
      %v3819 = vsel %vm323, %v3809, %v3801
      %v3820 = vsel %vm323, %v3811, %v3803
      %v3821 = vsel %vm323, %v3813, %v3805
      %v3822 = vld [vmem:[%s332] sm:$0xff]
      %v3823 = vld [vmem:[%s332 + $0x8] sm:$0xff]
      %v3824 = vld [vmem:[%s332 + $0x10] sm:$0xff]
      %v3825 = vld [vmem:[%s332 + $0x18] sm:$0xff]
      %v3826 = vld [vmem:[%s332 + $0x20] sm:$0xff]
      %v3827 = vld [vmem:[%s332 + $0x28] sm:$0xff]
      %v3828 = vld [vmem:[%s332 + $0x30] sm:$0xff]
      %v3829 = vld [vmem:[%s332 + $0x38] sm:$0xff]
      %v3830 = vmul.f32 %v3818, %v3822
      %v3831 = vmul.f32 %v3814, %v3823
      %v3832 = vmul.f32 %v3819, %v3824
      %v3833 = vmul.f32 %v3815, %v3825
      %v3834 = vmul.f32 %v3820, %v3826
      %v3835 = vmul.f32 %v3816, %v3827
      %v3836 = vmul.f32 %v3821, %v3828
      %v3837 = vmul.f32 %v3817, %v3829
      %3838 = vst [vmem:[#allocation2 + $0x80] sm:$0xff] %v3830
      %3839 = vst [vmem:[#allocation2 + $0x88] sm:$0xff] %v3831
      %3840 = vst [vmem:[#allocation2 + $0x90] sm:$0xff] %v3832
      %3841 = vst [vmem:[#allocation2 + $0x98] sm:$0xff] %v3833
      %3842 = vst [vmem:[#allocation2 + $0xa0] sm:$0xff] %v3834
      %3843 = vst [vmem:[#allocation2 + $0xa8] sm:$0xff] %v3835
      %3844 = vst [vmem:[#allocation2 + $0xb0] sm:$0xff] %v3836
      %3845 = vst [vmem:[#allocation2 + $0xb8] sm:$0xff] %v3837
      %3846 = vrot.lane.b32.xlu0 %v3694, 1
      %v3847 = vpop.permute.xlu0 %3846
      %3848 = vrot.lane.b32.xlu0 %v3696, 1
      %v3849 = vpop.permute.xlu0 %3848
      %3850 = vrot.lane.b32.xlu0 %v3698, 1
      %v3851 = vpop.permute.xlu0 %3850
      %3852 = vrot.lane.b32.xlu0 %v3700, 1
      %v3853 = vpop.permute.xlu0 %3852
      %3854 = vrot.lane.b32.xlu0 %v3695, 1
      %v3855 = vpop.permute.xlu0 %3854
      %3856 = vrot.lane.b32.xlu0 %v3697, 1
      %v3857 = vpop.permute.xlu0 %3856
      %3858 = vrot.lane.b32.xlu0 %v3699, 1
      %v3859 = vpop.permute.xlu0 %3858
      %3860 = vrot.lane.b32.xlu0 %v3701, 1
      %v3861 = vpop.permute.xlu0 %3860
      %v3862 = vsel %vm373, %v3847, %v3855
      %v3863 = vsel %vm373, %v3849, %v3857
      %v3864 = vsel %vm373, %v3851, %v3859
      %v3865 = vsel %vm373, %v3853, %v3861
      %v3866 = vsel %vm373, %v3855, %v3847
      %v3867 = vsel %vm373, %v3857, %v3849
      %v3868 = vsel %vm373, %v3859, %v3851
      %v3869 = vsel %vm373, %v3861, %v3853
      %v3870 = vld [vmem:[%s382] sm:$0xff]
      %v3871 = vld [vmem:[%s382 + $0x8] sm:$0xff]
      %v3872 = vld [vmem:[%s382 + $0x10] sm:$0xff]
      %v3873 = vld [vmem:[%s382 + $0x18] sm:$0xff]
      %v3874 = vld [vmem:[%s382 + $0x20] sm:$0xff]
      %v3875 = vld [vmem:[%s382 + $0x28] sm:$0xff]
      %v3876 = vld [vmem:[%s382 + $0x30] sm:$0xff]
      %v3877 = vld [vmem:[%s382 + $0x38] sm:$0xff]
      %v3878 = vmul.f32 %v3866, %v3870
      %v3879 = vmul.f32 %v3862, %v3871
      %v3880 = vmul.f32 %v3867, %v3872
      %v3881 = vmul.f32 %v3863, %v3873
      %v3882 = vmul.f32 %v3868, %v3874
      %v3883 = vmul.f32 %v3864, %v3875
      %v3884 = vmul.f32 %v3869, %v3876
      %v3885 = vmul.f32 %v3865, %v3877
      %3886 = vst [vmem:[#allocation2 + $0xc0] sm:$0xff] %v3878
      %3887 = vst [vmem:[#allocation2 + $0xc8] sm:$0xff] %v3879
      %3888 = vst [vmem:[#allocation2 + $0xd0] sm:$0xff] %v3880
      %3889 = vst [vmem:[#allocation2 + $0xd8] sm:$0xff] %v3881
      %3890 = vst [vmem:[#allocation2 + $0xe0] sm:$0xff] %v3882
      %3891 = vst [vmem:[#allocation2 + $0xe8] sm:$0xff] %v3883
      %3892 = vst [vmem:[#allocation2 + $0xf0] sm:$0xff] %v3884
      %3893 = vst [vmem:[#allocation2 + $0xf8] sm:$0xff] %v3885
      %3894 = vst [vmem:[#allocation2 + $0x100] sm:$0xff] %v3694
      %3895 = vst [vmem:[#allocation2 + $0x108] sm:$0xff] %v3695
      %3896 = vst [vmem:[#allocation2 + $0x110] sm:$0xff] %v3696
      %3897 = vst [vmem:[#allocation2 + $0x118] sm:$0xff] %v3697
      %3898 = vst [vmem:[#allocation2 + $0x120] sm:$0xff] %v3698
      %3899 = vst [vmem:[#allocation2 + $0x128] sm:$0xff] %v3699
      %3900 = vst [vmem:[#allocation2 + $0x130] sm:$0xff] %v3700
      %3901 = vst [vmem:[#allocation2 + $0x138] sm:$0xff] %v3701
      %3902 = vrot.lane.b32.xlu0 %v3694, 127
      %v3903 = vpop.permute.xlu0 %3902
      %3904 = vrot.lane.b32.xlu0 %v3696, 127
      %v3905 = vpop.permute.xlu0 %3904
      %3906 = vrot.lane.b32.xlu0 %v3698, 127
      %v3907 = vpop.permute.xlu0 %3906
      %3908 = vrot.lane.b32.xlu0 %v3700, 127
      %v3909 = vpop.permute.xlu0 %3908
      %3910 = vrot.lane.b32.xlu0 %v3695, 127
      %v3911 = vpop.permute.xlu0 %3910
      %3912 = vrot.lane.b32.xlu0 %v3697, 127
      %v3913 = vpop.permute.xlu0 %3912
      %3914 = vrot.lane.b32.xlu0 %v3699, 127
      %v3915 = vpop.permute.xlu0 %3914
      %3916 = vrot.lane.b32.xlu0 %v3701, 127
      %v3917 = vpop.permute.xlu0 %3916
      %v3918 = vsel %vm431, %v3903, %v3911
      %v3919 = vsel %vm431, %v3905, %v3913
      %v3920 = vsel %vm431, %v3907, %v3915
      %v3921 = vsel %vm431, %v3909, %v3917
      %v3922 = vsel %vm431, %v3911, %v3903
      %v3923 = vsel %vm431, %v3913, %v3905
      %v3924 = vsel %vm431, %v3915, %v3907
      %v3925 = vsel %vm431, %v3917, %v3909
      %v3926 = vld [vmem:[%s440] sm:$0xff]
      %v3927 = vld [vmem:[%s440 + $0x8] sm:$0xff]
      %v3928 = vld [vmem:[%s440 + $0x10] sm:$0xff]
      %v3929 = vld [vmem:[%s440 + $0x18] sm:$0xff]
      %v3930 = vld [vmem:[%s440 + $0x20] sm:$0xff]
      %v3931 = vld [vmem:[%s440 + $0x28] sm:$0xff]
      %v3932 = vld [vmem:[%s440 + $0x30] sm:$0xff]
      %v3933 = vld [vmem:[%s440 + $0x38] sm:$0xff]
      %v3934 = vmul.f32 %v3918, %v3926
      %v3935 = vmul.f32 %v3922, %v3927
      %v3936 = vmul.f32 %v3919, %v3928
      %v3937 = vmul.f32 %v3923, %v3929
      %v3938 = vmul.f32 %v3920, %v3930
      %v3939 = vmul.f32 %v3924, %v3931
      %v3940 = vmul.f32 %v3921, %v3932
      %v3941 = vmul.f32 %v3925, %v3933
      %3942 = vst [vmem:[#allocation2 + $0x140] sm:$0xff] %v3934
      %3943 = vst [vmem:[#allocation2 + $0x148] sm:$0xff] %v3935
      %3944 = vst [vmem:[#allocation2 + $0x150] sm:$0xff] %v3936
      %3945 = vst [vmem:[#allocation2 + $0x158] sm:$0xff] %v3937
      %3946 = vst [vmem:[#allocation2 + $0x160] sm:$0xff] %v3938
      %3947 = vst [vmem:[#allocation2 + $0x168] sm:$0xff] %v3939
      %3948 = vst [vmem:[#allocation2 + $0x170] sm:$0xff] %v3940
      %3949 = vst [vmem:[#allocation2 + $0x178] sm:$0xff] %v3941
      %3950 = vrot.lane.b32.xlu0 %v3694, 113
      %v3951 = vpop.permute.xlu0 %3950
      %3952 = vrot.lane.b32.xlu0 %v3696, 113
      %v3953 = vpop.permute.xlu0 %3952
      %3954 = vrot.lane.b32.xlu0 %v3698, 113
      %v3955 = vpop.permute.xlu0 %3954
      %3956 = vrot.lane.b32.xlu0 %v3700, 113
      %v3957 = vpop.permute.xlu0 %3956
      %3958 = vrot.lane.b32.xlu0 %v3695, 113
      %v3959 = vpop.permute.xlu0 %3958
      %3960 = vrot.lane.b32.xlu0 %v3697, 113
      %v3961 = vpop.permute.xlu0 %3960
      %3962 = vrot.lane.b32.xlu0 %v3699, 113
      %v3963 = vpop.permute.xlu0 %3962
      %3964 = vrot.lane.b32.xlu0 %v3701, 113
      %v3965 = vpop.permute.xlu0 %3964
      %v3966 = vsel %vm481, %v3951, %v3959
      %v3967 = vsel %vm481, %v3953, %v3961
      %v3968 = vsel %vm481, %v3955, %v3963
      %v3969 = vsel %vm481, %v3957, %v3965
      %v3970 = vsel %vm481, %v3959, %v3951
      %v3971 = vsel %vm481, %v3961, %v3953
      %v3972 = vsel %vm481, %v3963, %v3955
      %v3973 = vsel %vm481, %v3965, %v3957
      %v3974 = vld [vmem:[%s490] sm:$0xff]
      %v3975 = vld [vmem:[%s490 + $0x8] sm:$0xff]
      %v3976 = vld [vmem:[%s490 + $0x10] sm:$0xff]
      %v3977 = vld [vmem:[%s490 + $0x18] sm:$0xff]
      %v3978 = vld [vmem:[%s490 + $0x20] sm:$0xff]
      %v3979 = vld [vmem:[%s490 + $0x28] sm:$0xff]
      %v3980 = vld [vmem:[%s490 + $0x30] sm:$0xff]
      %v3981 = vld [vmem:[%s490 + $0x38] sm:$0xff]
      %v3982 = vmul.f32 %v3966, %v3974
      %v3983 = vmul.f32 %v3970, %v3975
      %v3984 = vmul.f32 %v3967, %v3976
      %v3985 = vmul.f32 %v3971, %v3977
      %v3986 = vmul.f32 %v3968, %v3978
      %v3987 = vmul.f32 %v3972, %v3979
      %v3988 = vmul.f32 %v3969, %v3980
      %v3989 = vmul.f32 %v3973, %v3981
      %3990 = vst [vmem:[#allocation2 + $0x180] sm:$0xff] %v3982
      %3991 = vst [vmem:[#allocation2 + $0x188] sm:$0xff] %v3983
      %3992 = vst [vmem:[#allocation2 + $0x190] sm:$0xff] %v3984
      %3993 = vst [vmem:[#allocation2 + $0x198] sm:$0xff] %v3985
      %3994 = vst [vmem:[#allocation2 + $0x1a0] sm:$0xff] %v3986
      %3995 = vst [vmem:[#allocation2 + $0x1a8] sm:$0xff] %v3987
      %3996 = vst [vmem:[#allocation2 + $0x1b0] sm:$0xff] %v3988
      %3997 = vst [vmem:[#allocation2 + $0x1b8] sm:$0xff] %v3989
      %3998 = vrot.lane.b32.xlu0 %v3694, 112
      %v3999 = vpop.permute.xlu0 %3998
      %4000 = vrot.lane.b32.xlu0 %v3696, 112
      %v4001 = vpop.permute.xlu0 %4000
      %4002 = vrot.lane.b32.xlu0 %v3698, 112
      %v4003 = vpop.permute.xlu0 %4002
      %4004 = vrot.lane.b32.xlu0 %v3700, 112
      %v4005 = vpop.permute.xlu0 %4004
      %4006 = vrot.lane.b32.xlu0 %v3695, 112
      %v4007 = vpop.permute.xlu0 %4006
      %4008 = vrot.lane.b32.xlu0 %v3697, 112
      %v4009 = vpop.permute.xlu0 %4008
      %4010 = vrot.lane.b32.xlu0 %v3699, 112
      %v4011 = vpop.permute.xlu0 %4010
      %4012 = vrot.lane.b32.xlu0 %v3701, 112
      %v4013 = vpop.permute.xlu0 %4012
      %v4014 = vsel %vm531, %v3999, %v4007
      %v4015 = vsel %vm531, %v4001, %v4009
      %v4016 = vsel %vm531, %v4003, %v4011
      %v4017 = vsel %vm531, %v4005, %v4013
      %v4018 = vsel %vm531, %v4007, %v3999
      %v4019 = vsel %vm531, %v4009, %v4001
      %v4020 = vsel %vm531, %v4011, %v4003
      %v4021 = vsel %vm531, %v4013, %v4005
      %v4022 = vld [vmem:[%s540] sm:$0xff]
      %v4023 = vld [vmem:[%s540 + $0x8] sm:$0xff]
      %v4024 = vld [vmem:[%s540 + $0x10] sm:$0xff]
      %v4025 = vld [vmem:[%s540 + $0x18] sm:$0xff]
      %v4026 = vld [vmem:[%s540 + $0x20] sm:$0xff]
      %v4027 = vld [vmem:[%s540 + $0x28] sm:$0xff]
      %v4028 = vld [vmem:[%s540 + $0x30] sm:$0xff]
      %v4029 = vld [vmem:[%s540 + $0x38] sm:$0xff]
      %v4030 = vmul.f32 %v4014, %v4022
      %v4031 = vmul.f32 %v4018, %v4023
      %v4032 = vmul.f32 %v4015, %v4024
      %v4033 = vmul.f32 %v4019, %v4025
      %v4034 = vmul.f32 %v4016, %v4026
      %v4035 = vmul.f32 %v4020, %v4027
      %v4036 = vmul.f32 %v4017, %v4028
      %v4037 = vmul.f32 %v4021, %v4029
      %4038 = vst [vmem:[#allocation2 + $0x1c0] sm:$0xff] %v4030
      %4039 = vst [vmem:[#allocation2 + $0x1c8] sm:$0xff] %v4031
      %4040 = vst [vmem:[#allocation2 + $0x1d0] sm:$0xff] %v4032
      %4041 = vst [vmem:[#allocation2 + $0x1d8] sm:$0xff] %v4033
      %4042 = vst [vmem:[#allocation2 + $0x1e0] sm:$0xff] %v4034
      %4043 = vst [vmem:[#allocation2 + $0x1e8] sm:$0xff] %v4035
      %4044 = vst [vmem:[#allocation2 + $0x1f0] sm:$0xff] %v4036
      %4045 = vst [vmem:[#allocation2 + $0x1f8] sm:$0xff] %v4037
      %4046 = vrot.lane.b32.xlu0 %v3694, 111
      %v4047 = vpop.permute.xlu0 %4046
      %4048 = vrot.lane.b32.xlu0 %v3696, 111
      %v4049 = vpop.permute.xlu0 %4048
      %4050 = vrot.lane.b32.xlu0 %v3698, 111
      %v4051 = vpop.permute.xlu0 %4050
      %4052 = vrot.lane.b32.xlu0 %v3700, 111
      %v4053 = vpop.permute.xlu0 %4052
      %4054 = vrot.lane.b32.xlu0 %v3695, 111
      %v4055 = vpop.permute.xlu0 %4054
      %4056 = vrot.lane.b32.xlu0 %v3697, 111
      %v4057 = vpop.permute.xlu0 %4056
      %4058 = vrot.lane.b32.xlu0 %v3699, 111
      %v4059 = vpop.permute.xlu0 %4058
      %4060 = vrot.lane.b32.xlu0 %v3701, 111
      %v4061 = vpop.permute.xlu0 %4060
      %v4062 = vsel %vm581, %v4047, %v4055
      %v4063 = vsel %vm581, %v4049, %v4057
      %v4064 = vsel %vm581, %v4051, %v4059
      %v4065 = vsel %vm581, %v4053, %v4061
      %v4066 = vsel %vm581, %v4055, %v4047
      %v4067 = vsel %vm581, %v4057, %v4049
      %v4068 = vsel %vm581, %v4059, %v4051
      %v4069 = vsel %vm581, %v4061, %v4053
      %v4070 = vld [vmem:[%s590] sm:$0xff]
      %v4071 = vld [vmem:[%s590 + $0x8] sm:$0xff]
      %v4072 = vld [vmem:[%s590 + $0x10] sm:$0xff]
      %v4073 = vld [vmem:[%s590 + $0x18] sm:$0xff]
      %v4074 = vld [vmem:[%s590 + $0x20] sm:$0xff]
      %v4075 = vld [vmem:[%s590 + $0x28] sm:$0xff]
      %v4076 = vld [vmem:[%s590 + $0x30] sm:$0xff]
      %v4077 = vld [vmem:[%s590 + $0x38] sm:$0xff]
      %v4078 = vmul.f32 %v4062, %v4070
      %v4079 = vmul.f32 %v4066, %v4071
      %v4080 = vmul.f32 %v4063, %v4072
      %v4081 = vmul.f32 %v4067, %v4073
      %v4082 = vmul.f32 %v4064, %v4074
      %v4083 = vmul.f32 %v4068, %v4075
      %v4084 = vmul.f32 %v4065, %v4076
      %v4085 = vmul.f32 %v4069, %v4077
      %4086 = vst [vmem:[#allocation2 + $0x200] sm:$0xff] %v4078
      %4087 = vst [vmem:[#allocation2 + $0x208] sm:$0xff] %v4079
      %4088 = vst [vmem:[#allocation2 + $0x210] sm:$0xff] %v4080
      %4089 = vst [vmem:[#allocation2 + $0x218] sm:$0xff] %v4081
      %4090 = vst [vmem:[#allocation2 + $0x220] sm:$0xff] %v4082
      %4091 = vst [vmem:[#allocation2 + $0x228] sm:$0xff] %v4083
      %4092 = vst [vmem:[#allocation2 + $0x230] sm:$0xff] %v4084
      %4093 = vst [vmem:[#allocation2 + $0x238] sm:$0xff] %v4085
      %s4094 = scalar_lea.vmem %s1, 480
      %v4095 = vld [vmem:[%s4094] sm:$0xff]
      %v4096 = vld [vmem:[%s4094 + $0x8] sm:$0xff]
      %v4097 = vld [vmem:[%s4094 + $0x10] sm:$0xff]
      %v4098 = vld [vmem:[%s4094 + $0x18] sm:$0xff]
      %v4099 = vld [vmem:[%s4094 + $0x20] sm:$0xff]
      %v4100 = vld [vmem:[%s4094 + $0x28] sm:$0xff]
      %v4101 = vld [vmem:[%s4094 + $0x30] sm:$0xff]
      %v4102 = vld [vmem:[%s4094 + $0x38] sm:$0xff]
      %v4103 = vld [vmem:[%s4094 + $0x40] sm:$0xff]
      %v4104 = vld [vmem:[%s4094 + $0x48] sm:$0xff]
      %v4105 = vld [vmem:[%s4094 + $0x50] sm:$0xff]
      %v4106 = vld [vmem:[%s4094 + $0x58] sm:$0xff]
      %v4107 = vld [vmem:[#allocation2] sm:$0xff]
      %v4108 = vld [vmem:[#allocation2 + $0x8] sm:$0xff]
      %v4109 = vld [vmem:[#allocation2 + $0x10] sm:$0xff]
      %v4110 = vld [vmem:[#allocation2 + $0x18] sm:$0xff]
      %v4111 = vld [vmem:[#allocation2 + $0x20] sm:$0xff]
      %v4112 = vld [vmem:[#allocation2 + $0x28] sm:$0xff]
      %v4113 = vld [vmem:[#allocation2 + $0x30] sm:$0xff]
      %v4114 = vld [vmem:[#allocation2 + $0x38] sm:$0xff]
      %v4115 = vld [vmem:[#allocation2 + $0x40] sm:$0xff]
      %v4116 = vld [vmem:[#allocation2 + $0x48] sm:$0xff]
      %v4117 = vld [vmem:[#allocation2 + $0x50] sm:$0xff]
      %v4118 = vld [vmem:[#allocation2 + $0x58] sm:$0xff]
      %v4119 = vld [vmem:[#allocation2 + $0x60] sm:$0xff]
      %v4120 = vld [vmem:[#allocation2 + $0x68] sm:$0xff]
      %v4121 = vld [vmem:[#allocation2 + $0x70] sm:$0xff]
      %v4122 = vld [vmem:[#allocation2 + $0x78] sm:$0xff]
      %v4123 = vld [vmem:[#allocation2 + $0x80] sm:$0xff]
      %v4124 = vld [vmem:[#allocation2 + $0x88] sm:$0xff]
      %v4125 = vld [vmem:[#allocation2 + $0x90] sm:$0xff]
      %v4126 = vld [vmem:[#allocation2 + $0x98] sm:$0xff]
      %v4127 = vld [vmem:[#allocation2 + $0xa0] sm:$0xff]
      %v4128 = vld [vmem:[#allocation2 + $0xa8] sm:$0xff]
      %v4129 = vld [vmem:[#allocation2 + $0xb0] sm:$0xff]
      %v4130 = vld [vmem:[#allocation2 + $0xb8] sm:$0xff]
      %v4131 = vld [vmem:[#allocation2 + $0xc0] sm:$0xff]
      %v4132 = vld [vmem:[#allocation2 + $0xc8] sm:$0xff]
      %v4133 = vld [vmem:[#allocation2 + $0xd0] sm:$0xff]
      %v4134 = vld [vmem:[#allocation2 + $0xd8] sm:$0xff]
      %v4135 = vld [vmem:[#allocation2 + $0xe0] sm:$0xff]
      %v4136 = vld [vmem:[#allocation2 + $0xe8] sm:$0xff]
      %v4137 = vld [vmem:[#allocation2 + $0xf0] sm:$0xff]
      %v4138 = vld [vmem:[#allocation2 + $0xf8] sm:$0xff]
      %v4139 = vld [vmem:[#allocation2 + $0x100] sm:$0xff]
      %v4140 = vld [vmem:[#allocation2 + $0x108] sm:$0xff]
      %v4141 = vld [vmem:[#allocation2 + $0x110] sm:$0xff]
      %v4142 = vld [vmem:[#allocation2 + $0x118] sm:$0xff]
      %v4143 = vld [vmem:[#allocation2 + $0x120] sm:$0xff]
      %v4144 = vld [vmem:[#allocation2 + $0x128] sm:$0xff]
      %v4145 = vld [vmem:[#allocation2 + $0x130] sm:$0xff]
      %v4146 = vld [vmem:[#allocation2 + $0x138] sm:$0xff]
      %v4147 = vld [vmem:[#allocation2 + $0x140] sm:$0xff]
      %v4148 = vld [vmem:[#allocation2 + $0x148] sm:$0xff]
      %v4149 = vld [vmem:[#allocation2 + $0x150] sm:$0xff]
      %v4150 = vld [vmem:[#allocation2 + $0x158] sm:$0xff]
      %v4151 = vld [vmem:[#allocation2 + $0x160] sm:$0xff]
      %v4152 = vld [vmem:[#allocation2 + $0x168] sm:$0xff]
      %v4153 = vld [vmem:[#allocation2 + $0x170] sm:$0xff]
      %v4154 = vld [vmem:[#allocation2 + $0x178] sm:$0xff]
      %v4155 = vld [vmem:[#allocation2 + $0x180] sm:$0xff]
      %v4156 = vld [vmem:[#allocation2 + $0x188] sm:$0xff]
      %v4157 = vld [vmem:[#allocation2 + $0x190] sm:$0xff]
      %v4158 = vld [vmem:[#allocation2 + $0x198] sm:$0xff]
      %v4159 = vld [vmem:[#allocation2 + $0x1a0] sm:$0xff]
      %v4160 = vld [vmem:[#allocation2 + $0x1a8] sm:$0xff]
      %v4161 = vld [vmem:[#allocation2 + $0x1b0] sm:$0xff]
      %v4162 = vld [vmem:[#allocation2 + $0x1b8] sm:$0xff]
      %v4163 = vld [vmem:[#allocation2 + $0x1c0] sm:$0xff]
      %v4164 = vld [vmem:[#allocation2 + $0x1c8] sm:$0xff]
      %v4165 = vld [vmem:[#allocation2 + $0x1d0] sm:$0xff]
      %v4166 = vld [vmem:[#allocation2 + $0x1d8] sm:$0xff]
      %v4167 = vld [vmem:[#allocation2 + $0x1e0] sm:$0xff]
      %v4168 = vld [vmem:[#allocation2 + $0x1e8] sm:$0xff]
      %v4169 = vld [vmem:[#allocation2 + $0x1f0] sm:$0xff]
      %v4170 = vld [vmem:[#allocation2 + $0x1f8] sm:$0xff]
      %v4171 = vld [vmem:[#allocation2 + $0x200] sm:$0xff]
      %v4172 = vld [vmem:[#allocation2 + $0x208] sm:$0xff]
      %v4173 = vld [vmem:[#allocation2 + $0x210] sm:$0xff]
      %v4174 = vld [vmem:[#allocation2 + $0x218] sm:$0xff]
      %v4175 = vld [vmem:[#allocation2 + $0x220] sm:$0xff]
      %v4176 = vld [vmem:[#allocation2 + $0x228] sm:$0xff]
      %v4177 = vld [vmem:[#allocation2 + $0x230] sm:$0xff]
      %v4178 = vld [vmem:[#allocation2 + $0x238] sm:$0xff]
      %s4179 = scalar_lea.vmem %s2, 160
      %v4180 = vld [vmem:[%s4179] sm:$0xff]
      %v4181 = vld [vmem:[%s4179 + $0x8] sm:$0xff]
      %v4182 = vld [vmem:[%s4179 + $0x10] sm:$0xff]
      %v4183 = vld [vmem:[%s4179 + $0x18] sm:$0xff]
      %4185 = vset.pattern.permute.xlu0 0
      %4186 = vperm.xlu0 %4185, %v4180
      %v4187 = vpop.permute.xlu0 %4186
      %4190 = vset.pattern.permute.xlu0 0
      %4191 = vperm.xlu0 %4190, %v4181
      %v4192 = vpop.permute.xlu0 %4191
      %4195 = vset.pattern.permute.xlu0 0
      %4196 = vperm.xlu0 %4195, %v4182
      %v4197 = vpop.permute.xlu0 %4196
      %4200 = vset.pattern.permute.xlu0 0
      %4201 = vperm.xlu0 %4200, %v4183
      %v4202 = vpop.permute.xlu0 %4201
      %v4205 = vsel %vm723, %v4097, 0
      %v4208 = vsel %vm723, %v4100, 0
      %v4211 = vsel %vm723, %v4103, 0
      %v4214 = vsel %vm723, %v4106, 0
      %4216 = vmatpush.msra.mxu0 %v4137
      %4217 = vmatpush.msra.mxu0 %v4135
      %4218 = vmatpush.msra.mxu0 %v4133
      %4219 = vmatpush.msra.mxu0 %v4131
      %4220 = vmatpush.msra.mxu0 %v4129
      %4221 = vmatpush.msra.mxu0 %v4127
      %4222 = vmatpush.msra.mxu0 %v4125
      %4223 = vmatpush.msra.mxu0 %v4123
      %4224 = vmatpush.msra.mxu0 %v4121
      %4225 = vmatpush.msra.mxu0 %v4119
      %4226 = vmatpush.msra.mxu0 %v4117
      %4227 = vmatpush.msra.mxu0 %v4115
      %4228 = vmatpush.msra.mxu0 %v4113
      %4229 = vmatpush.msra.mxu0 %v4111
      %4230 = vmatpush.msra.mxu0 %v4109
      %4231 = vmatpush.msra.mxu0 %v4107
      %4232 = vmatmul.f32.gmra.mxu0 %v4095
      %v4233 = vpop.f32.mrf.mxu0
      %v4234 = vadd.f32 %v4187, %v4233
      %4235 = vmatmul.f32.gmra.mxu0 %v4098
      %v4236 = vpop.f32.mrf.mxu0
      %v4237 = vadd.f32 %v4192, %v4236
      %4238 = vmatmul.f32.gmra.mxu0 %v4101
      %v4239 = vpop.f32.mrf.mxu0
      %v4240 = vadd.f32 %v4197, %v4239
      %4241 = vmatmul.f32.gmra.mxu0 %v4104
      %v4242 = vpop.f32.mrf.mxu0
      %v4243 = vadd.f32 %v4202, %v4242
      %4244 = vdwg.mxu0
      %4245 = vmatpush.msra.mxu0 %v4169
      %4246 = vmatpush.msra.mxu0 %v4167
      %4247 = vmatpush.msra.mxu0 %v4165
      %4248 = vmatpush.msra.mxu0 %v4163
      %4249 = vmatpush.msra.mxu0 %v4161
      %4250 = vmatpush.msra.mxu0 %v4159
      %4251 = vmatpush.msra.mxu0 %v4157
      %4252 = vmatpush.msra.mxu0 %v4155
      %4253 = vmatpush.msra.mxu0 %v4153
      %4254 = vmatpush.msra.mxu0 %v4151
      %4255 = vmatpush.msra.mxu0 %v4149
      %4256 = vmatpush.msra.mxu0 %v4147
      %4257 = vmatpush.msra.mxu0 %v4145
      %4258 = vmatpush.msra.mxu0 %v4143
      %4259 = vmatpush.msra.mxu0 %v4141
      %4260 = vmatpush.msra.mxu0 %v4139
      %4261 = vmatmul.f32.gmra.mxu0 %v4096
      %v4262 = vpop.f32.mrf.mxu0
      %v4263 = vadd.f32 %v4234, %v4262
      %4264 = vmatmul.f32.gmra.mxu0 %v4099
      %v4265 = vpop.f32.mrf.mxu0
      %v4266 = vadd.f32 %v4237, %v4265
      %4267 = vmatmul.f32.gmra.mxu0 %v4102
      %v4268 = vpop.f32.mrf.mxu0
      %v4269 = vadd.f32 %v4240, %v4268
      %4270 = vmatmul.f32.gmra.mxu0 %v4105
      %v4271 = vpop.f32.mrf.mxu0
      %v4272 = vadd.f32 %v4243, %v4271
      %4273 = vdwg.mxu0
      %4274 = vmatpush.msra.mxu0 0.0
      %4275 = vmatpush.msra.mxu0 0.0
      %4276 = vmatpush.msra.mxu0 0.0
      %4277 = vmatpush.msra.mxu0 0.0
      %4278 = vmatpush.msra.mxu0 0.0
      %4279 = vmatpush.msra.mxu0 0.0
      %4280 = vmatpush.msra.mxu0 0.0
      %4281 = vmatpush.msra.mxu0 0.0
      %4282 = vmatpush.msra.mxu0 0.0
      %4283 = vmatpush.msra.mxu0 0.0
      %4284 = vmatpush.msra.mxu0 0.0
      %4285 = vmatpush.msra.mxu0 0.0
      %4286 = vmatpush.msra.mxu0 %v4177
      %4287 = vmatpush.msra.mxu0 %v4175
      %4288 = vmatpush.msra.mxu0 %v4173
      %4289 = vmatpush.msra.mxu0 %v4171
      %4290 = vmatmul.f32.gmra.mxu0 %v4205
      %v4291 = vpop.f32.mrf.mxu0
      %v4292 = vadd.f32 %v4263, %v4291
      %4293 = vmatmul.f32.gmra.mxu0 %v4208
      %v4294 = vpop.f32.mrf.mxu0
      %v4295 = vadd.f32 %v4266, %v4294
      %4296 = vmatmul.f32.gmra.mxu0 %v4211
      %v4297 = vpop.f32.mrf.mxu0
      %v4298 = vadd.f32 %v4269, %v4297
      %4299 = vmatmul.f32.gmra.mxu0 %v4214
      %v4300 = vpop.f32.mrf.mxu0
      %v4301 = vadd.f32 %v4272, %v4300
      %4302 = vdwg.mxu0
      %4303 = vmatpush.msra.mxu0 %v4138
      %4304 = vmatpush.msra.mxu0 %v4136
      %4305 = vmatpush.msra.mxu0 %v4134
      %4306 = vmatpush.msra.mxu0 %v4132
      %4307 = vmatpush.msra.mxu0 %v4130
      %4308 = vmatpush.msra.mxu0 %v4128
      %4309 = vmatpush.msra.mxu0 %v4126
      %4310 = vmatpush.msra.mxu0 %v4124
      %4311 = vmatpush.msra.mxu0 %v4122
      %4312 = vmatpush.msra.mxu0 %v4120
      %4313 = vmatpush.msra.mxu0 %v4118
      %4314 = vmatpush.msra.mxu0 %v4116
      %4315 = vmatpush.msra.mxu0 %v4114
      %4316 = vmatpush.msra.mxu0 %v4112
      %4317 = vmatpush.msra.mxu0 %v4110
      %4318 = vmatpush.msra.mxu0 %v4108
      %4319 = vmatmul.f32.gmra.mxu0 %v4095
      %v4320 = vpop.f32.mrf.mxu0
      %v4321 = vadd.f32 %v4187, %v4320
      %4322 = vmatmul.f32.gmra.mxu0 %v4098
      %v4323 = vpop.f32.mrf.mxu0
      %v4324 = vadd.f32 %v4192, %v4323
      %4325 = vmatmul.f32.gmra.mxu0 %v4101
      %v4326 = vpop.f32.mrf.mxu0
      %v4327 = vadd.f32 %v4197, %v4326
      %4328 = vmatmul.f32.gmra.mxu0 %v4104
      %v4329 = vpop.f32.mrf.mxu0
      %v4330 = vadd.f32 %v4202, %v4329
      %4331 = vdwg.mxu0
      %4332 = vmatpush.msra.mxu0 %v4170
      %4333 = vmatpush.msra.mxu0 %v4168
      %4334 = vmatpush.msra.mxu0 %v4166
      %4335 = vmatpush.msra.mxu0 %v4164
      %4336 = vmatpush.msra.mxu0 %v4162
      %4337 = vmatpush.msra.mxu0 %v4160
      %4338 = vmatpush.msra.mxu0 %v4158
      %4339 = vmatpush.msra.mxu0 %v4156
      %4340 = vmatpush.msra.mxu0 %v4154
      %4341 = vmatpush.msra.mxu0 %v4152
      %4342 = vmatpush.msra.mxu0 %v4150
      %4343 = vmatpush.msra.mxu0 %v4148
      %4344 = vmatpush.msra.mxu0 %v4146
      %4345 = vmatpush.msra.mxu0 %v4144
      %4346 = vmatpush.msra.mxu0 %v4142
      %4347 = vmatpush.msra.mxu0 %v4140
      %4348 = vmatmul.f32.gmra.mxu0 %v4096
      %v4349 = vpop.f32.mrf.mxu0
      %v4350 = vadd.f32 %v4321, %v4349
      %4351 = vmatmul.f32.gmra.mxu0 %v4099
      %v4352 = vpop.f32.mrf.mxu0
      %v4353 = vadd.f32 %v4324, %v4352
      %4354 = vmatmul.f32.gmra.mxu0 %v4102
      %v4355 = vpop.f32.mrf.mxu0
      %v4356 = vadd.f32 %v4327, %v4355
      %4357 = vmatmul.f32.gmra.mxu0 %v4105
      %v4358 = vpop.f32.mrf.mxu0
      %v4359 = vadd.f32 %v4330, %v4358
      %4360 = vdwg.mxu0
      %4361 = vmatpush.msra.mxu0 0.0
      %4362 = vmatpush.msra.mxu0 0.0
      %4363 = vmatpush.msra.mxu0 0.0
      %4364 = vmatpush.msra.mxu0 0.0
      %4365 = vmatpush.msra.mxu0 0.0
      %4366 = vmatpush.msra.mxu0 0.0
      %4367 = vmatpush.msra.mxu0 0.0
      %4368 = vmatpush.msra.mxu0 0.0
      %4369 = vmatpush.msra.mxu0 0.0
      %4370 = vmatpush.msra.mxu0 0.0
      %4371 = vmatpush.msra.mxu0 0.0
      %4372 = vmatpush.msra.mxu0 0.0
      %4373 = vmatpush.msra.mxu0 %v4178
      %4374 = vmatpush.msra.mxu0 %v4176
      %4375 = vmatpush.msra.mxu0 %v4174
      %4376 = vmatpush.msra.mxu0 %v4172
      %4377 = vmatmul.f32.gmra.mxu0 %v4205
      %v4378 = vpop.f32.mrf.mxu0
      %v4379 = vadd.f32 %v4350, %v4378
      %4380 = vmatmul.f32.gmra.mxu0 %v4208
      %v4381 = vpop.f32.mrf.mxu0
      %v4382 = vadd.f32 %v4353, %v4381
      %4383 = vmatmul.f32.gmra.mxu0 %v4211
      %v4384 = vpop.f32.mrf.mxu0
      %v4385 = vadd.f32 %v4356, %v4384
      %4386 = vmatmul.f32.gmra.mxu0 %v4214
      %v4387 = vpop.f32.mrf.mxu0
      %v4388 = vadd.f32 %v4359, %v4387
      %4389 = vdwg.mxu0
      %v4390 = vmax.f32 %v4292, 0.0
      %v4391 = vmax.f32 %v4379, 0.0
      %v4392 = vmax.f32 %v4295, 0.0
      %v4393 = vmax.f32 %v4382, 0.0
      %v4394 = vmax.f32 %v4298, 0.0
      %v4395 = vmax.f32 %v4385, 0.0
      %v4396 = vmax.f32 %v4301, 0.0
      %v4397 = vmax.f32 %v4388, 0.0
      %4398 = vrot.lane.b32.xlu0 %v4390, 17
      %v4399 = vpop.permute.xlu0 %4398
      %4400 = vrot.lane.b32.xlu0 %v4392, 17
      %v4401 = vpop.permute.xlu0 %4400
      %4402 = vrot.lane.b32.xlu0 %v4394, 17
      %v4403 = vpop.permute.xlu0 %4402
      %4404 = vrot.lane.b32.xlu0 %v4396, 17
      %v4405 = vpop.permute.xlu0 %4404
      %4406 = vrot.lane.b32.xlu0 %v4391, 17
      %v4407 = vpop.permute.xlu0 %4406
      %4408 = vrot.lane.b32.xlu0 %v4393, 17
      %v4409 = vpop.permute.xlu0 %4408
      %4410 = vrot.lane.b32.xlu0 %v4395, 17
      %v4411 = vpop.permute.xlu0 %4410
      %4412 = vrot.lane.b32.xlu0 %v4397, 17
      %v4413 = vpop.permute.xlu0 %4412
      %v4414 = vsel %vm224, %v4399, %v4407
      %v4415 = vsel %vm224, %v4401, %v4409
      %v4416 = vsel %vm224, %v4403, %v4411
      %v4417 = vsel %vm224, %v4405, %v4413
      %v4418 = vsel %vm224, %v4407, %v4399
      %v4419 = vsel %vm224, %v4409, %v4401
      %v4420 = vsel %vm224, %v4411, %v4403
      %v4421 = vsel %vm224, %v4413, %v4405
      %v4422 = vld [vmem:[%s3] sm:$0xff]
      %v4423 = vld [vmem:[%s3 + $0x8] sm:$0xff]
      %v4424 = vld [vmem:[%s3 + $0x10] sm:$0xff]
      %v4425 = vld [vmem:[%s3 + $0x18] sm:$0xff]
      %v4426 = vld [vmem:[%s3 + $0x20] sm:$0xff]
      %v4427 = vld [vmem:[%s3 + $0x28] sm:$0xff]
      %v4428 = vld [vmem:[%s3 + $0x30] sm:$0xff]
      %v4429 = vld [vmem:[%s3 + $0x38] sm:$0xff]
      %v4430 = vmul.f32 %v4418, %v4422
      %v4431 = vmul.f32 %v4414, %v4423
      %v4432 = vmul.f32 %v4419, %v4424
      %v4433 = vmul.f32 %v4415, %v4425
      %v4434 = vmul.f32 %v4420, %v4426
      %v4435 = vmul.f32 %v4416, %v4427
      %v4436 = vmul.f32 %v4421, %v4428
      %v4437 = vmul.f32 %v4417, %v4429
      %4438 = vst [vmem:[#allocation2] sm:$0xff] %v4430
      %4439 = vst [vmem:[#allocation2 + $0x8] sm:$0xff] %v4431
      %4440 = vst [vmem:[#allocation2 + $0x10] sm:$0xff] %v4432
      %4441 = vst [vmem:[#allocation2 + $0x18] sm:$0xff] %v4433
      %4442 = vst [vmem:[#allocation2 + $0x20] sm:$0xff] %v4434
      %4443 = vst [vmem:[#allocation2 + $0x28] sm:$0xff] %v4435
      %4444 = vst [vmem:[#allocation2 + $0x30] sm:$0xff] %v4436
      %4445 = vst [vmem:[#allocation2 + $0x38] sm:$0xff] %v4437
      %4446 = vrot.lane.b32.xlu0 %v4390, 16
      %v4447 = vpop.permute.xlu0 %4446
      %4448 = vrot.lane.b32.xlu0 %v4392, 16
      %v4449 = vpop.permute.xlu0 %4448
      %4450 = vrot.lane.b32.xlu0 %v4394, 16
      %v4451 = vpop.permute.xlu0 %4450
      %4452 = vrot.lane.b32.xlu0 %v4396, 16
      %v4453 = vpop.permute.xlu0 %4452
      %4454 = vrot.lane.b32.xlu0 %v4391, 16
      %v4455 = vpop.permute.xlu0 %4454
      %4456 = vrot.lane.b32.xlu0 %v4393, 16
      %v4457 = vpop.permute.xlu0 %4456
      %4458 = vrot.lane.b32.xlu0 %v4395, 16
      %v4459 = vpop.permute.xlu0 %4458
      %4460 = vrot.lane.b32.xlu0 %v4397, 16
      %v4461 = vpop.permute.xlu0 %4460
      %v4462 = vsel %vm273, %v4447, %v4455
      %v4463 = vsel %vm273, %v4449, %v4457
      %v4464 = vsel %vm273, %v4451, %v4459
      %v4465 = vsel %vm273, %v4453, %v4461
      %v4466 = vsel %vm273, %v4455, %v4447
      %v4467 = vsel %vm273, %v4457, %v4449
      %v4468 = vsel %vm273, %v4459, %v4451
      %v4469 = vsel %vm273, %v4461, %v4453
      %v4470 = vld [vmem:[%s282] sm:$0xff]
      %v4471 = vld [vmem:[%s282 + $0x8] sm:$0xff]
      %v4472 = vld [vmem:[%s282 + $0x10] sm:$0xff]
      %v4473 = vld [vmem:[%s282 + $0x18] sm:$0xff]
      %v4474 = vld [vmem:[%s282 + $0x20] sm:$0xff]
      %v4475 = vld [vmem:[%s282 + $0x28] sm:$0xff]
      %v4476 = vld [vmem:[%s282 + $0x30] sm:$0xff]
      %v4477 = vld [vmem:[%s282 + $0x38] sm:$0xff]
      %v4478 = vmul.f32 %v4466, %v4470
      %v4479 = vmul.f32 %v4462, %v4471
      %v4480 = vmul.f32 %v4467, %v4472
      %v4481 = vmul.f32 %v4463, %v4473
      %v4482 = vmul.f32 %v4468, %v4474
      %v4483 = vmul.f32 %v4464, %v4475
      %v4484 = vmul.f32 %v4469, %v4476
      %v4485 = vmul.f32 %v4465, %v4477
      %4486 = vst [vmem:[#allocation2 + $0x40] sm:$0xff] %v4478
      %4487 = vst [vmem:[#allocation2 + $0x48] sm:$0xff] %v4479
      %4488 = vst [vmem:[#allocation2 + $0x50] sm:$0xff] %v4480
      %4489 = vst [vmem:[#allocation2 + $0x58] sm:$0xff] %v4481
      %4490 = vst [vmem:[#allocation2 + $0x60] sm:$0xff] %v4482
      %4491 = vst [vmem:[#allocation2 + $0x68] sm:$0xff] %v4483
      %4492 = vst [vmem:[#allocation2 + $0x70] sm:$0xff] %v4484
      %4493 = vst [vmem:[#allocation2 + $0x78] sm:$0xff] %v4485
      %4494 = vrot.lane.b32.xlu0 %v4390, 15
      %v4495 = vpop.permute.xlu0 %4494
      %4496 = vrot.lane.b32.xlu0 %v4392, 15
      %v4497 = vpop.permute.xlu0 %4496
      %4498 = vrot.lane.b32.xlu0 %v4394, 15
      %v4499 = vpop.permute.xlu0 %4498
      %4500 = vrot.lane.b32.xlu0 %v4396, 15
      %v4501 = vpop.permute.xlu0 %4500
      %4502 = vrot.lane.b32.xlu0 %v4391, 15
      %v4503 = vpop.permute.xlu0 %4502
      %4504 = vrot.lane.b32.xlu0 %v4393, 15
      %v4505 = vpop.permute.xlu0 %4504
      %4506 = vrot.lane.b32.xlu0 %v4395, 15
      %v4507 = vpop.permute.xlu0 %4506
      %4508 = vrot.lane.b32.xlu0 %v4397, 15
      %v4509 = vpop.permute.xlu0 %4508
      %v4510 = vsel %vm323, %v4495, %v4503
      %v4511 = vsel %vm323, %v4497, %v4505
      %v4512 = vsel %vm323, %v4499, %v4507
      %v4513 = vsel %vm323, %v4501, %v4509
      %v4514 = vsel %vm323, %v4503, %v4495
      %v4515 = vsel %vm323, %v4505, %v4497
      %v4516 = vsel %vm323, %v4507, %v4499
      %v4517 = vsel %vm323, %v4509, %v4501
      %v4518 = vld [vmem:[%s332] sm:$0xff]
      %v4519 = vld [vmem:[%s332 + $0x8] sm:$0xff]
      %v4520 = vld [vmem:[%s332 + $0x10] sm:$0xff]
      %v4521 = vld [vmem:[%s332 + $0x18] sm:$0xff]
      %v4522 = vld [vmem:[%s332 + $0x20] sm:$0xff]
      %v4523 = vld [vmem:[%s332 + $0x28] sm:$0xff]
      %v4524 = vld [vmem:[%s332 + $0x30] sm:$0xff]
      %v4525 = vld [vmem:[%s332 + $0x38] sm:$0xff]
      %v4526 = vmul.f32 %v4514, %v4518
      %v4527 = vmul.f32 %v4510, %v4519
      %v4528 = vmul.f32 %v4515, %v4520
      %v4529 = vmul.f32 %v4511, %v4521
      %v4530 = vmul.f32 %v4516, %v4522
      %v4531 = vmul.f32 %v4512, %v4523
      %v4532 = vmul.f32 %v4517, %v4524
      %v4533 = vmul.f32 %v4513, %v4525
      %4534 = vst [vmem:[#allocation2 + $0x80] sm:$0xff] %v4526
      %4535 = vst [vmem:[#allocation2 + $0x88] sm:$0xff] %v4527
      %4536 = vst [vmem:[#allocation2 + $0x90] sm:$0xff] %v4528
      %4537 = vst [vmem:[#allocation2 + $0x98] sm:$0xff] %v4529
      %4538 = vst [vmem:[#allocation2 + $0xa0] sm:$0xff] %v4530
      %4539 = vst [vmem:[#allocation2 + $0xa8] sm:$0xff] %v4531
      %4540 = vst [vmem:[#allocation2 + $0xb0] sm:$0xff] %v4532
      %4541 = vst [vmem:[#allocation2 + $0xb8] sm:$0xff] %v4533
      %4542 = vrot.lane.b32.xlu0 %v4390, 1
      %v4543 = vpop.permute.xlu0 %4542
      %4544 = vrot.lane.b32.xlu0 %v4392, 1
      %v4545 = vpop.permute.xlu0 %4544
      %4546 = vrot.lane.b32.xlu0 %v4394, 1
      %v4547 = vpop.permute.xlu0 %4546
      %4548 = vrot.lane.b32.xlu0 %v4396, 1
      %v4549 = vpop.permute.xlu0 %4548
      %4550 = vrot.lane.b32.xlu0 %v4391, 1
      %v4551 = vpop.permute.xlu0 %4550
      %4552 = vrot.lane.b32.xlu0 %v4393, 1
      %v4553 = vpop.permute.xlu0 %4552
      %4554 = vrot.lane.b32.xlu0 %v4395, 1
      %v4555 = vpop.permute.xlu0 %4554
      %4556 = vrot.lane.b32.xlu0 %v4397, 1
      %v4557 = vpop.permute.xlu0 %4556
      %v4558 = vsel %vm373, %v4543, %v4551
      %v4559 = vsel %vm373, %v4545, %v4553
      %v4560 = vsel %vm373, %v4547, %v4555
      %v4561 = vsel %vm373, %v4549, %v4557
      %v4562 = vsel %vm373, %v4551, %v4543
      %v4563 = vsel %vm373, %v4553, %v4545
      %v4564 = vsel %vm373, %v4555, %v4547
      %v4565 = vsel %vm373, %v4557, %v4549
      %v4566 = vld [vmem:[%s382] sm:$0xff]
      %v4567 = vld [vmem:[%s382 + $0x8] sm:$0xff]
      %v4568 = vld [vmem:[%s382 + $0x10] sm:$0xff]
      %v4569 = vld [vmem:[%s382 + $0x18] sm:$0xff]
      %v4570 = vld [vmem:[%s382 + $0x20] sm:$0xff]
      %v4571 = vld [vmem:[%s382 + $0x28] sm:$0xff]
      %v4572 = vld [vmem:[%s382 + $0x30] sm:$0xff]
      %v4573 = vld [vmem:[%s382 + $0x38] sm:$0xff]
      %v4574 = vmul.f32 %v4562, %v4566
      %v4575 = vmul.f32 %v4558, %v4567
      %v4576 = vmul.f32 %v4563, %v4568
      %v4577 = vmul.f32 %v4559, %v4569
      %v4578 = vmul.f32 %v4564, %v4570
      %v4579 = vmul.f32 %v4560, %v4571
      %v4580 = vmul.f32 %v4565, %v4572
      %v4581 = vmul.f32 %v4561, %v4573
      %4582 = vst [vmem:[#allocation2 + $0xc0] sm:$0xff] %v4574
      %4583 = vst [vmem:[#allocation2 + $0xc8] sm:$0xff] %v4575
      %4584 = vst [vmem:[#allocation2 + $0xd0] sm:$0xff] %v4576
      %4585 = vst [vmem:[#allocation2 + $0xd8] sm:$0xff] %v4577
      %4586 = vst [vmem:[#allocation2 + $0xe0] sm:$0xff] %v4578
      %4587 = vst [vmem:[#allocation2 + $0xe8] sm:$0xff] %v4579
      %4588 = vst [vmem:[#allocation2 + $0xf0] sm:$0xff] %v4580
      %4589 = vst [vmem:[#allocation2 + $0xf8] sm:$0xff] %v4581
      %4590 = vst [vmem:[#allocation2 + $0x100] sm:$0xff] %v4390
      %4591 = vst [vmem:[#allocation2 + $0x108] sm:$0xff] %v4391
      %4592 = vst [vmem:[#allocation2 + $0x110] sm:$0xff] %v4392
      %4593 = vst [vmem:[#allocation2 + $0x118] sm:$0xff] %v4393
      %4594 = vst [vmem:[#allocation2 + $0x120] sm:$0xff] %v4394
      %4595 = vst [vmem:[#allocation2 + $0x128] sm:$0xff] %v4395
      %4596 = vst [vmem:[#allocation2 + $0x130] sm:$0xff] %v4396
      %4597 = vst [vmem:[#allocation2 + $0x138] sm:$0xff] %v4397
      %4598 = vrot.lane.b32.xlu0 %v4390, 127
      %v4599 = vpop.permute.xlu0 %4598
      %4600 = vrot.lane.b32.xlu0 %v4392, 127
      %v4601 = vpop.permute.xlu0 %4600
      %4602 = vrot.lane.b32.xlu0 %v4394, 127
      %v4603 = vpop.permute.xlu0 %4602
      %4604 = vrot.lane.b32.xlu0 %v4396, 127
      %v4605 = vpop.permute.xlu0 %4604
      %4606 = vrot.lane.b32.xlu0 %v4391, 127
      %v4607 = vpop.permute.xlu0 %4606
      %4608 = vrot.lane.b32.xlu0 %v4393, 127
      %v4609 = vpop.permute.xlu0 %4608
      %4610 = vrot.lane.b32.xlu0 %v4395, 127
      %v4611 = vpop.permute.xlu0 %4610
      %4612 = vrot.lane.b32.xlu0 %v4397, 127
      %v4613 = vpop.permute.xlu0 %4612
      %v4614 = vsel %vm431, %v4599, %v4607
      %v4615 = vsel %vm431, %v4601, %v4609
      %v4616 = vsel %vm431, %v4603, %v4611
      %v4617 = vsel %vm431, %v4605, %v4613
      %v4618 = vsel %vm431, %v4607, %v4599
      %v4619 = vsel %vm431, %v4609, %v4601
      %v4620 = vsel %vm431, %v4611, %v4603
      %v4621 = vsel %vm431, %v4613, %v4605
      %v4622 = vld [vmem:[%s440] sm:$0xff]
      %v4623 = vld [vmem:[%s440 + $0x8] sm:$0xff]
      %v4624 = vld [vmem:[%s440 + $0x10] sm:$0xff]
      %v4625 = vld [vmem:[%s440 + $0x18] sm:$0xff]
      %v4626 = vld [vmem:[%s440 + $0x20] sm:$0xff]
      %v4627 = vld [vmem:[%s440 + $0x28] sm:$0xff]
      %v4628 = vld [vmem:[%s440 + $0x30] sm:$0xff]
      %v4629 = vld [vmem:[%s440 + $0x38] sm:$0xff]
      %v4630 = vmul.f32 %v4614, %v4622
      %v4631 = vmul.f32 %v4618, %v4623
      %v4632 = vmul.f32 %v4615, %v4624
      %v4633 = vmul.f32 %v4619, %v4625
      %v4634 = vmul.f32 %v4616, %v4626
      %v4635 = vmul.f32 %v4620, %v4627
      %v4636 = vmul.f32 %v4617, %v4628
      %v4637 = vmul.f32 %v4621, %v4629
      %4638 = vst [vmem:[#allocation2 + $0x140] sm:$0xff] %v4630
      %4639 = vst [vmem:[#allocation2 + $0x148] sm:$0xff] %v4631
      %4640 = vst [vmem:[#allocation2 + $0x150] sm:$0xff] %v4632
      %4641 = vst [vmem:[#allocation2 + $0x158] sm:$0xff] %v4633
      %4642 = vst [vmem:[#allocation2 + $0x160] sm:$0xff] %v4634
      %4643 = vst [vmem:[#allocation2 + $0x168] sm:$0xff] %v4635
      %4644 = vst [vmem:[#allocation2 + $0x170] sm:$0xff] %v4636
      %4645 = vst [vmem:[#allocation2 + $0x178] sm:$0xff] %v4637
      %4646 = vrot.lane.b32.xlu0 %v4390, 113
      %v4647 = vpop.permute.xlu0 %4646
      %4648 = vrot.lane.b32.xlu0 %v4392, 113
      %v4649 = vpop.permute.xlu0 %4648
      %4650 = vrot.lane.b32.xlu0 %v4394, 113
      %v4651 = vpop.permute.xlu0 %4650
      %4652 = vrot.lane.b32.xlu0 %v4396, 113
      %v4653 = vpop.permute.xlu0 %4652
      %4654 = vrot.lane.b32.xlu0 %v4391, 113
      %v4655 = vpop.permute.xlu0 %4654
      %4656 = vrot.lane.b32.xlu0 %v4393, 113
      %v4657 = vpop.permute.xlu0 %4656
      %4658 = vrot.lane.b32.xlu0 %v4395, 113
      %v4659 = vpop.permute.xlu0 %4658
      %4660 = vrot.lane.b32.xlu0 %v4397, 113
      %v4661 = vpop.permute.xlu0 %4660
      %v4662 = vsel %vm481, %v4647, %v4655
      %v4663 = vsel %vm481, %v4649, %v4657
      %v4664 = vsel %vm481, %v4651, %v4659
      %v4665 = vsel %vm481, %v4653, %v4661
      %v4666 = vsel %vm481, %v4655, %v4647
      %v4667 = vsel %vm481, %v4657, %v4649
      %v4668 = vsel %vm481, %v4659, %v4651
      %v4669 = vsel %vm481, %v4661, %v4653
      %v4670 = vld [vmem:[%s490] sm:$0xff]
      %v4671 = vld [vmem:[%s490 + $0x8] sm:$0xff]
      %v4672 = vld [vmem:[%s490 + $0x10] sm:$0xff]
      %v4673 = vld [vmem:[%s490 + $0x18] sm:$0xff]
      %v4674 = vld [vmem:[%s490 + $0x20] sm:$0xff]
      %v4675 = vld [vmem:[%s490 + $0x28] sm:$0xff]
      %v4676 = vld [vmem:[%s490 + $0x30] sm:$0xff]
      %v4677 = vld [vmem:[%s490 + $0x38] sm:$0xff]
      %v4678 = vmul.f32 %v4662, %v4670
      %v4679 = vmul.f32 %v4666, %v4671
      %v4680 = vmul.f32 %v4663, %v4672
      %v4681 = vmul.f32 %v4667, %v4673
      %v4682 = vmul.f32 %v4664, %v4674
      %v4683 = vmul.f32 %v4668, %v4675
      %v4684 = vmul.f32 %v4665, %v4676
      %v4685 = vmul.f32 %v4669, %v4677
      %4686 = vst [vmem:[#allocation2 + $0x180] sm:$0xff] %v4678
      %4687 = vst [vmem:[#allocation2 + $0x188] sm:$0xff] %v4679
      %4688 = vst [vmem:[#allocation2 + $0x190] sm:$0xff] %v4680
      %4689 = vst [vmem:[#allocation2 + $0x198] sm:$0xff] %v4681
      %4690 = vst [vmem:[#allocation2 + $0x1a0] sm:$0xff] %v4682
      %4691 = vst [vmem:[#allocation2 + $0x1a8] sm:$0xff] %v4683
      %4692 = vst [vmem:[#allocation2 + $0x1b0] sm:$0xff] %v4684
      %4693 = vst [vmem:[#allocation2 + $0x1b8] sm:$0xff] %v4685
      %4694 = vrot.lane.b32.xlu0 %v4390, 112
      %v4695 = vpop.permute.xlu0 %4694
      %4696 = vrot.lane.b32.xlu0 %v4392, 112
      %v4697 = vpop.permute.xlu0 %4696
      %4698 = vrot.lane.b32.xlu0 %v4394, 112
      %v4699 = vpop.permute.xlu0 %4698
      %4700 = vrot.lane.b32.xlu0 %v4396, 112
      %v4701 = vpop.permute.xlu0 %4700
      %4702 = vrot.lane.b32.xlu0 %v4391, 112
      %v4703 = vpop.permute.xlu0 %4702
      %4704 = vrot.lane.b32.xlu0 %v4393, 112
      %v4705 = vpop.permute.xlu0 %4704
      %4706 = vrot.lane.b32.xlu0 %v4395, 112
      %v4707 = vpop.permute.xlu0 %4706
      %4708 = vrot.lane.b32.xlu0 %v4397, 112
      %v4709 = vpop.permute.xlu0 %4708
      %v4710 = vsel %vm531, %v4695, %v4703
      %v4711 = vsel %vm531, %v4697, %v4705
      %v4712 = vsel %vm531, %v4699, %v4707
      %v4713 = vsel %vm531, %v4701, %v4709
      %v4714 = vsel %vm531, %v4703, %v4695
      %v4715 = vsel %vm531, %v4705, %v4697
      %v4716 = vsel %vm531, %v4707, %v4699
      %v4717 = vsel %vm531, %v4709, %v4701
      %v4718 = vld [vmem:[%s540] sm:$0xff]
      %v4719 = vld [vmem:[%s540 + $0x8] sm:$0xff]
      %v4720 = vld [vmem:[%s540 + $0x10] sm:$0xff]
      %v4721 = vld [vmem:[%s540 + $0x18] sm:$0xff]
      %v4722 = vld [vmem:[%s540 + $0x20] sm:$0xff]
      %v4723 = vld [vmem:[%s540 + $0x28] sm:$0xff]
      %v4724 = vld [vmem:[%s540 + $0x30] sm:$0xff]
      %v4725 = vld [vmem:[%s540 + $0x38] sm:$0xff]
      %v4726 = vmul.f32 %v4710, %v4718
      %v4727 = vmul.f32 %v4714, %v4719
      %v4728 = vmul.f32 %v4711, %v4720
      %v4729 = vmul.f32 %v4715, %v4721
      %v4730 = vmul.f32 %v4712, %v4722
      %v4731 = vmul.f32 %v4716, %v4723
      %v4732 = vmul.f32 %v4713, %v4724
      %v4733 = vmul.f32 %v4717, %v4725
      %4734 = vst [vmem:[#allocation2 + $0x1c0] sm:$0xff] %v4726
      %4735 = vst [vmem:[#allocation2 + $0x1c8] sm:$0xff] %v4727
      %4736 = vst [vmem:[#allocation2 + $0x1d0] sm:$0xff] %v4728
      %4737 = vst [vmem:[#allocation2 + $0x1d8] sm:$0xff] %v4729
      %4738 = vst [vmem:[#allocation2 + $0x1e0] sm:$0xff] %v4730
      %4739 = vst [vmem:[#allocation2 + $0x1e8] sm:$0xff] %v4731
      %4740 = vst [vmem:[#allocation2 + $0x1f0] sm:$0xff] %v4732
      %4741 = vst [vmem:[#allocation2 + $0x1f8] sm:$0xff] %v4733
      %4742 = vrot.lane.b32.xlu0 %v4390, 111
      %v4743 = vpop.permute.xlu0 %4742
      %4744 = vrot.lane.b32.xlu0 %v4392, 111
      %v4745 = vpop.permute.xlu0 %4744
      %4746 = vrot.lane.b32.xlu0 %v4394, 111
      %v4747 = vpop.permute.xlu0 %4746
      %4748 = vrot.lane.b32.xlu0 %v4396, 111
      %v4749 = vpop.permute.xlu0 %4748
      %4750 = vrot.lane.b32.xlu0 %v4391, 111
      %v4751 = vpop.permute.xlu0 %4750
      %4752 = vrot.lane.b32.xlu0 %v4393, 111
      %v4753 = vpop.permute.xlu0 %4752
      %4754 = vrot.lane.b32.xlu0 %v4395, 111
      %v4755 = vpop.permute.xlu0 %4754
      %4756 = vrot.lane.b32.xlu0 %v4397, 111
      %v4757 = vpop.permute.xlu0 %4756
      %v4758 = vsel %vm581, %v4743, %v4751
      %v4759 = vsel %vm581, %v4745, %v4753
      %v4760 = vsel %vm581, %v4747, %v4755
      %v4761 = vsel %vm581, %v4749, %v4757
      %v4762 = vsel %vm581, %v4751, %v4743
      %v4763 = vsel %vm581, %v4753, %v4745
      %v4764 = vsel %vm581, %v4755, %v4747
      %v4765 = vsel %vm581, %v4757, %v4749
      %v4766 = vld [vmem:[%s590] sm:$0xff]
      %v4767 = vld [vmem:[%s590 + $0x8] sm:$0xff]
      %v4768 = vld [vmem:[%s590 + $0x10] sm:$0xff]
      %v4769 = vld [vmem:[%s590 + $0x18] sm:$0xff]
      %v4770 = vld [vmem:[%s590 + $0x20] sm:$0xff]
      %v4771 = vld [vmem:[%s590 + $0x28] sm:$0xff]
      %v4772 = vld [vmem:[%s590 + $0x30] sm:$0xff]
      %v4773 = vld [vmem:[%s590 + $0x38] sm:$0xff]
      %v4774 = vmul.f32 %v4758, %v4766
      %v4775 = vmul.f32 %v4762, %v4767
      %v4776 = vmul.f32 %v4759, %v4768
      %v4777 = vmul.f32 %v4763, %v4769
      %v4778 = vmul.f32 %v4760, %v4770
      %v4779 = vmul.f32 %v4764, %v4771
      %v4780 = vmul.f32 %v4761, %v4772
      %v4781 = vmul.f32 %v4765, %v4773
      %4782 = vst [vmem:[#allocation2 + $0x200] sm:$0xff] %v4774
      %4783 = vst [vmem:[#allocation2 + $0x208] sm:$0xff] %v4775
      %4784 = vst [vmem:[#allocation2 + $0x210] sm:$0xff] %v4776
      %4785 = vst [vmem:[#allocation2 + $0x218] sm:$0xff] %v4777
      %4786 = vst [vmem:[#allocation2 + $0x220] sm:$0xff] %v4778
      %4787 = vst [vmem:[#allocation2 + $0x228] sm:$0xff] %v4779
      %4788 = vst [vmem:[#allocation2 + $0x230] sm:$0xff] %v4780
      %4789 = vst [vmem:[#allocation2 + $0x238] sm:$0xff] %v4781
      %s4790 = scalar_lea.vmem %s1, 576
      %v4791 = vld [vmem:[%s4790] sm:$0xff]
      %v4792 = vld [vmem:[%s4790 + $0x8] sm:$0xff]
      %v4793 = vld [vmem:[%s4790 + $0x10] sm:$0xff]
      %v4794 = vld [vmem:[%s4790 + $0x18] sm:$0xff]
      %v4795 = vld [vmem:[%s4790 + $0x20] sm:$0xff]
      %v4796 = vld [vmem:[%s4790 + $0x28] sm:$0xff]
      %v4797 = vld [vmem:[%s4790 + $0x30] sm:$0xff]
      %v4798 = vld [vmem:[%s4790 + $0x38] sm:$0xff]
      %v4799 = vld [vmem:[%s4790 + $0x40] sm:$0xff]
      %v4800 = vld [vmem:[%s4790 + $0x48] sm:$0xff]
      %v4801 = vld [vmem:[%s4790 + $0x50] sm:$0xff]
      %v4802 = vld [vmem:[%s4790 + $0x58] sm:$0xff]
      %v4803 = vld [vmem:[#allocation2] sm:$0xff]
      %v4804 = vld [vmem:[#allocation2 + $0x8] sm:$0xff]
      %v4805 = vld [vmem:[#allocation2 + $0x10] sm:$0xff]
      %v4806 = vld [vmem:[#allocation2 + $0x18] sm:$0xff]
      %v4807 = vld [vmem:[#allocation2 + $0x20] sm:$0xff]
      %v4808 = vld [vmem:[#allocation2 + $0x28] sm:$0xff]
      %v4809 = vld [vmem:[#allocation2 + $0x30] sm:$0xff]
      %v4810 = vld [vmem:[#allocation2 + $0x38] sm:$0xff]
      %v4811 = vld [vmem:[#allocation2 + $0x40] sm:$0xff]
      %v4812 = vld [vmem:[#allocation2 + $0x48] sm:$0xff]
      %v4813 = vld [vmem:[#allocation2 + $0x50] sm:$0xff]
      %v4814 = vld [vmem:[#allocation2 + $0x58] sm:$0xff]
      %v4815 = vld [vmem:[#allocation2 + $0x60] sm:$0xff]
      %v4816 = vld [vmem:[#allocation2 + $0x68] sm:$0xff]
      %v4817 = vld [vmem:[#allocation2 + $0x70] sm:$0xff]
      %v4818 = vld [vmem:[#allocation2 + $0x78] sm:$0xff]
      %v4819 = vld [vmem:[#allocation2 + $0x80] sm:$0xff]
      %v4820 = vld [vmem:[#allocation2 + $0x88] sm:$0xff]
      %v4821 = vld [vmem:[#allocation2 + $0x90] sm:$0xff]
      %v4822 = vld [vmem:[#allocation2 + $0x98] sm:$0xff]
      %v4823 = vld [vmem:[#allocation2 + $0xa0] sm:$0xff]
      %v4824 = vld [vmem:[#allocation2 + $0xa8] sm:$0xff]
      %v4825 = vld [vmem:[#allocation2 + $0xb0] sm:$0xff]
      %v4826 = vld [vmem:[#allocation2 + $0xb8] sm:$0xff]
      %v4827 = vld [vmem:[#allocation2 + $0xc0] sm:$0xff]
      %v4828 = vld [vmem:[#allocation2 + $0xc8] sm:$0xff]
      %v4829 = vld [vmem:[#allocation2 + $0xd0] sm:$0xff]
      %v4830 = vld [vmem:[#allocation2 + $0xd8] sm:$0xff]
      %v4831 = vld [vmem:[#allocation2 + $0xe0] sm:$0xff]
      %v4832 = vld [vmem:[#allocation2 + $0xe8] sm:$0xff]
      %v4833 = vld [vmem:[#allocation2 + $0xf0] sm:$0xff]
      %v4834 = vld [vmem:[#allocation2 + $0xf8] sm:$0xff]
      %v4835 = vld [vmem:[#allocation2 + $0x100] sm:$0xff]
      %v4836 = vld [vmem:[#allocation2 + $0x108] sm:$0xff]
      %v4837 = vld [vmem:[#allocation2 + $0x110] sm:$0xff]
      %v4838 = vld [vmem:[#allocation2 + $0x118] sm:$0xff]
      %v4839 = vld [vmem:[#allocation2 + $0x120] sm:$0xff]
      %v4840 = vld [vmem:[#allocation2 + $0x128] sm:$0xff]
      %v4841 = vld [vmem:[#allocation2 + $0x130] sm:$0xff]
      %v4842 = vld [vmem:[#allocation2 + $0x138] sm:$0xff]
      %v4843 = vld [vmem:[#allocation2 + $0x140] sm:$0xff]
      %v4844 = vld [vmem:[#allocation2 + $0x148] sm:$0xff]
      %v4845 = vld [vmem:[#allocation2 + $0x150] sm:$0xff]
      %v4846 = vld [vmem:[#allocation2 + $0x158] sm:$0xff]
      %v4847 = vld [vmem:[#allocation2 + $0x160] sm:$0xff]
      %v4848 = vld [vmem:[#allocation2 + $0x168] sm:$0xff]
      %v4849 = vld [vmem:[#allocation2 + $0x170] sm:$0xff]
      %v4850 = vld [vmem:[#allocation2 + $0x178] sm:$0xff]
      %v4851 = vld [vmem:[#allocation2 + $0x180] sm:$0xff]
      %v4852 = vld [vmem:[#allocation2 + $0x188] sm:$0xff]
      %v4853 = vld [vmem:[#allocation2 + $0x190] sm:$0xff]
      %v4854 = vld [vmem:[#allocation2 + $0x198] sm:$0xff]
      %v4855 = vld [vmem:[#allocation2 + $0x1a0] sm:$0xff]
      %v4856 = vld [vmem:[#allocation2 + $0x1a8] sm:$0xff]
      %v4857 = vld [vmem:[#allocation2 + $0x1b0] sm:$0xff]
      %v4858 = vld [vmem:[#allocation2 + $0x1b8] sm:$0xff]
      %v4859 = vld [vmem:[#allocation2 + $0x1c0] sm:$0xff]
      %v4860 = vld [vmem:[#allocation2 + $0x1c8] sm:$0xff]
      %v4861 = vld [vmem:[#allocation2 + $0x1d0] sm:$0xff]
      %v4862 = vld [vmem:[#allocation2 + $0x1d8] sm:$0xff]
      %v4863 = vld [vmem:[#allocation2 + $0x1e0] sm:$0xff]
      %v4864 = vld [vmem:[#allocation2 + $0x1e8] sm:$0xff]
      %v4865 = vld [vmem:[#allocation2 + $0x1f0] sm:$0xff]
      %v4866 = vld [vmem:[#allocation2 + $0x1f8] sm:$0xff]
      %v4867 = vld [vmem:[#allocation2 + $0x200] sm:$0xff]
      %v4868 = vld [vmem:[#allocation2 + $0x208] sm:$0xff]
      %v4869 = vld [vmem:[#allocation2 + $0x210] sm:$0xff]
      %v4870 = vld [vmem:[#allocation2 + $0x218] sm:$0xff]
      %v4871 = vld [vmem:[#allocation2 + $0x220] sm:$0xff]
      %v4872 = vld [vmem:[#allocation2 + $0x228] sm:$0xff]
      %v4873 = vld [vmem:[#allocation2 + $0x230] sm:$0xff]
      %v4874 = vld [vmem:[#allocation2 + $0x238] sm:$0xff]
      %s4875 = scalar_lea.vmem %s2, 192
      %v4876 = vld [vmem:[%s4875] sm:$0xff]
      %v4877 = vld [vmem:[%s4875 + $0x8] sm:$0xff]
      %v4878 = vld [vmem:[%s4875 + $0x10] sm:$0xff]
      %v4879 = vld [vmem:[%s4875 + $0x18] sm:$0xff]
      %4881 = vset.pattern.permute.xlu0 0
      %4882 = vperm.xlu0 %4881, %v4876
      %v4883 = vpop.permute.xlu0 %4882
      %4886 = vset.pattern.permute.xlu0 0
      %4887 = vperm.xlu0 %4886, %v4877
      %v4888 = vpop.permute.xlu0 %4887
      %4891 = vset.pattern.permute.xlu0 0
      %4892 = vperm.xlu0 %4891, %v4878
      %v4893 = vpop.permute.xlu0 %4892
      %4896 = vset.pattern.permute.xlu0 0
      %4897 = vperm.xlu0 %4896, %v4879
      %v4898 = vpop.permute.xlu0 %4897
      %v4901 = vsel %vm723, %v4793, 0
      %v4904 = vsel %vm723, %v4796, 0
      %v4907 = vsel %vm723, %v4799, 0
      %v4910 = vsel %vm723, %v4802, 0
      %4912 = vmatpush.msra.mxu0 %v4833
      %4913 = vmatpush.msra.mxu0 %v4831
      %4914 = vmatpush.msra.mxu0 %v4829
      %4915 = vmatpush.msra.mxu0 %v4827
      %4916 = vmatpush.msra.mxu0 %v4825
      %4917 = vmatpush.msra.mxu0 %v4823
      %4918 = vmatpush.msra.mxu0 %v4821
      %4919 = vmatpush.msra.mxu0 %v4819
      %4920 = vmatpush.msra.mxu0 %v4817
      %4921 = vmatpush.msra.mxu0 %v4815
      %4922 = vmatpush.msra.mxu0 %v4813
      %4923 = vmatpush.msra.mxu0 %v4811
      %4924 = vmatpush.msra.mxu0 %v4809
      %4925 = vmatpush.msra.mxu0 %v4807
      %4926 = vmatpush.msra.mxu0 %v4805
      %4927 = vmatpush.msra.mxu0 %v4803
      %4928 = vmatmul.f32.gmra.mxu0 %v4791
      %v4929 = vpop.f32.mrf.mxu0
      %v4930 = vadd.f32 %v4883, %v4929
      %4931 = vmatmul.f32.gmra.mxu0 %v4794
      %v4932 = vpop.f32.mrf.mxu0
      %v4933 = vadd.f32 %v4888, %v4932
      %4934 = vmatmul.f32.gmra.mxu0 %v4797
      %v4935 = vpop.f32.mrf.mxu0
      %v4936 = vadd.f32 %v4893, %v4935
      %4937 = vmatmul.f32.gmra.mxu0 %v4800
      %v4938 = vpop.f32.mrf.mxu0
      %v4939 = vadd.f32 %v4898, %v4938
      %4940 = vdwg.mxu0
      %4941 = vmatpush.msra.mxu0 %v4865
      %4942 = vmatpush.msra.mxu0 %v4863
      %4943 = vmatpush.msra.mxu0 %v4861
      %4944 = vmatpush.msra.mxu0 %v4859
      %4945 = vmatpush.msra.mxu0 %v4857
      %4946 = vmatpush.msra.mxu0 %v4855
      %4947 = vmatpush.msra.mxu0 %v4853
      %4948 = vmatpush.msra.mxu0 %v4851
      %4949 = vmatpush.msra.mxu0 %v4849
      %4950 = vmatpush.msra.mxu0 %v4847
      %4951 = vmatpush.msra.mxu0 %v4845
      %4952 = vmatpush.msra.mxu0 %v4843
      %4953 = vmatpush.msra.mxu0 %v4841
      %4954 = vmatpush.msra.mxu0 %v4839
      %4955 = vmatpush.msra.mxu0 %v4837
      %4956 = vmatpush.msra.mxu0 %v4835
      %4957 = vmatmul.f32.gmra.mxu0 %v4792
      %v4958 = vpop.f32.mrf.mxu0
      %v4959 = vadd.f32 %v4930, %v4958
      %4960 = vmatmul.f32.gmra.mxu0 %v4795
      %v4961 = vpop.f32.mrf.mxu0
      %v4962 = vadd.f32 %v4933, %v4961
      %4963 = vmatmul.f32.gmra.mxu0 %v4798
      %v4964 = vpop.f32.mrf.mxu0
      %v4965 = vadd.f32 %v4936, %v4964
      %4966 = vmatmul.f32.gmra.mxu0 %v4801
      %v4967 = vpop.f32.mrf.mxu0
      %v4968 = vadd.f32 %v4939, %v4967
      %4969 = vdwg.mxu0
      %4970 = vmatpush.msra.mxu0 0.0
      %4971 = vmatpush.msra.mxu0 0.0
      %4972 = vmatpush.msra.mxu0 0.0
      %4973 = vmatpush.msra.mxu0 0.0
      %4974 = vmatpush.msra.mxu0 0.0
      %4975 = vmatpush.msra.mxu0 0.0
      %4976 = vmatpush.msra.mxu0 0.0
      %4977 = vmatpush.msra.mxu0 0.0
      %4978 = vmatpush.msra.mxu0 0.0
      %4979 = vmatpush.msra.mxu0 0.0
      %4980 = vmatpush.msra.mxu0 0.0
      %4981 = vmatpush.msra.mxu0 0.0
      %4982 = vmatpush.msra.mxu0 %v4873
      %4983 = vmatpush.msra.mxu0 %v4871
      %4984 = vmatpush.msra.mxu0 %v4869
      %4985 = vmatpush.msra.mxu0 %v4867
      %4986 = vmatmul.f32.gmra.mxu0 %v4901
      %v4987 = vpop.f32.mrf.mxu0
      %v4988 = vadd.f32 %v4959, %v4987
      %4989 = vmatmul.f32.gmra.mxu0 %v4904
      %v4990 = vpop.f32.mrf.mxu0
      %v4991 = vadd.f32 %v4962, %v4990
      %4992 = vmatmul.f32.gmra.mxu0 %v4907
      %v4993 = vpop.f32.mrf.mxu0
      %v4994 = vadd.f32 %v4965, %v4993
      %4995 = vmatmul.f32.gmra.mxu0 %v4910
      %v4996 = vpop.f32.mrf.mxu0
      %v4997 = vadd.f32 %v4968, %v4996
      %4998 = vdwg.mxu0
      %4999 = vmatpush.msra.mxu0 %v4834
      %5000 = vmatpush.msra.mxu0 %v4832
      %5001 = vmatpush.msra.mxu0 %v4830
      %5002 = vmatpush.msra.mxu0 %v4828
      %5003 = vmatpush.msra.mxu0 %v4826
      %5004 = vmatpush.msra.mxu0 %v4824
      %5005 = vmatpush.msra.mxu0 %v4822
      %5006 = vmatpush.msra.mxu0 %v4820
      %5007 = vmatpush.msra.mxu0 %v4818
      %5008 = vmatpush.msra.mxu0 %v4816
      %5009 = vmatpush.msra.mxu0 %v4814
      %5010 = vmatpush.msra.mxu0 %v4812
      %5011 = vmatpush.msra.mxu0 %v4810
      %5012 = vmatpush.msra.mxu0 %v4808
      %5013 = vmatpush.msra.mxu0 %v4806
      %5014 = vmatpush.msra.mxu0 %v4804
      %5015 = vmatmul.f32.gmra.mxu0 %v4791
      %v5016 = vpop.f32.mrf.mxu0
      %v5017 = vadd.f32 %v4883, %v5016
      %5018 = vmatmul.f32.gmra.mxu0 %v4794
      %v5019 = vpop.f32.mrf.mxu0
      %v5020 = vadd.f32 %v4888, %v5019
      %5021 = vmatmul.f32.gmra.mxu0 %v4797
      %v5022 = vpop.f32.mrf.mxu0
      %v5023 = vadd.f32 %v4893, %v5022
      %5024 = vmatmul.f32.gmra.mxu0 %v4800
      %v5025 = vpop.f32.mrf.mxu0
      %v5026 = vadd.f32 %v4898, %v5025
      %5027 = vdwg.mxu0
      %5028 = vmatpush.msra.mxu0 %v4866
      %5029 = vmatpush.msra.mxu0 %v4864
      %5030 = vmatpush.msra.mxu0 %v4862
      %5031 = vmatpush.msra.mxu0 %v4860
      %5032 = vmatpush.msra.mxu0 %v4858
      %5033 = vmatpush.msra.mxu0 %v4856
      %5034 = vmatpush.msra.mxu0 %v4854
      %5035 = vmatpush.msra.mxu0 %v4852
      %5036 = vmatpush.msra.mxu0 %v4850
      %5037 = vmatpush.msra.mxu0 %v4848
      %5038 = vmatpush.msra.mxu0 %v4846
      %5039 = vmatpush.msra.mxu0 %v4844
      %5040 = vmatpush.msra.mxu0 %v4842
      %5041 = vmatpush.msra.mxu0 %v4840
      %5042 = vmatpush.msra.mxu0 %v4838
      %5043 = vmatpush.msra.mxu0 %v4836
      %5044 = vmatmul.f32.gmra.mxu0 %v4792
      %v5045 = vpop.f32.mrf.mxu0
      %v5046 = vadd.f32 %v5017, %v5045
      %5047 = vmatmul.f32.gmra.mxu0 %v4795
      %v5048 = vpop.f32.mrf.mxu0
      %v5049 = vadd.f32 %v5020, %v5048
      %5050 = vmatmul.f32.gmra.mxu0 %v4798
      %v5051 = vpop.f32.mrf.mxu0
      %v5052 = vadd.f32 %v5023, %v5051
      %5053 = vmatmul.f32.gmra.mxu0 %v4801
      %v5054 = vpop.f32.mrf.mxu0
      %v5055 = vadd.f32 %v5026, %v5054
      %5056 = vdwg.mxu0
      %5057 = vmatpush.msra.mxu0 0.0
      %5058 = vmatpush.msra.mxu0 0.0
      %5059 = vmatpush.msra.mxu0 0.0
      %5060 = vmatpush.msra.mxu0 0.0
      %5061 = vmatpush.msra.mxu0 0.0
      %5062 = vmatpush.msra.mxu0 0.0
      %5063 = vmatpush.msra.mxu0 0.0
      %5064 = vmatpush.msra.mxu0 0.0
      %5065 = vmatpush.msra.mxu0 0.0
      %5066 = vmatpush.msra.mxu0 0.0
      %5067 = vmatpush.msra.mxu0 0.0
      %5068 = vmatpush.msra.mxu0 0.0
      %5069 = vmatpush.msra.mxu0 %v4874
      %5070 = vmatpush.msra.mxu0 %v4872
      %5071 = vmatpush.msra.mxu0 %v4870
      %5072 = vmatpush.msra.mxu0 %v4868
      %5073 = vmatmul.f32.gmra.mxu0 %v4901
      %v5074 = vpop.f32.mrf.mxu0
      %v5075 = vadd.f32 %v5046, %v5074
      %5076 = vmatmul.f32.gmra.mxu0 %v4904
      %v5077 = vpop.f32.mrf.mxu0
      %v5078 = vadd.f32 %v5049, %v5077
      %5079 = vmatmul.f32.gmra.mxu0 %v4907
      %v5080 = vpop.f32.mrf.mxu0
      %v5081 = vadd.f32 %v5052, %v5080
      %5082 = vmatmul.f32.gmra.mxu0 %v4910
      %v5083 = vpop.f32.mrf.mxu0
      %v5084 = vadd.f32 %v5055, %v5083
      %5085 = vdwg.mxu0
      %v5086 = vmax.f32 %v4988, 0.0
      %v5087 = vmax.f32 %v5075, 0.0
      %v5088 = vmax.f32 %v4991, 0.0
      %v5089 = vmax.f32 %v5078, 0.0
      %v5090 = vmax.f32 %v4994, 0.0
      %v5091 = vmax.f32 %v5081, 0.0
      %v5092 = vmax.f32 %v4997, 0.0
      %v5093 = vmax.f32 %v5084, 0.0
      %5094 = vrot.lane.b32.xlu0 %v5086, 17
      %v5095 = vpop.permute.xlu0 %5094
      %5096 = vrot.lane.b32.xlu0 %v5088, 17
      %v5097 = vpop.permute.xlu0 %5096
      %5098 = vrot.lane.b32.xlu0 %v5090, 17
      %v5099 = vpop.permute.xlu0 %5098
      %5100 = vrot.lane.b32.xlu0 %v5092, 17
      %v5101 = vpop.permute.xlu0 %5100
      %5102 = vrot.lane.b32.xlu0 %v5087, 17
      %v5103 = vpop.permute.xlu0 %5102
      %5104 = vrot.lane.b32.xlu0 %v5089, 17
      %v5105 = vpop.permute.xlu0 %5104
      %5106 = vrot.lane.b32.xlu0 %v5091, 17
      %v5107 = vpop.permute.xlu0 %5106
      %5108 = vrot.lane.b32.xlu0 %v5093, 17
      %v5109 = vpop.permute.xlu0 %5108
      %v5110 = vsel %vm224, %v5095, %v5103
      %v5111 = vsel %vm224, %v5097, %v5105
      %v5112 = vsel %vm224, %v5099, %v5107
      %v5113 = vsel %vm224, %v5101, %v5109
      %v5114 = vsel %vm224, %v5103, %v5095
      %v5115 = vsel %vm224, %v5105, %v5097
      %v5116 = vsel %vm224, %v5107, %v5099
      %v5117 = vsel %vm224, %v5109, %v5101
      %v5118 = vld [vmem:[%s3] sm:$0xff]
      %v5119 = vld [vmem:[%s3 + $0x8] sm:$0xff]
      %v5120 = vld [vmem:[%s3 + $0x10] sm:$0xff]
      %v5121 = vld [vmem:[%s3 + $0x18] sm:$0xff]
      %v5122 = vld [vmem:[%s3 + $0x20] sm:$0xff]
      %v5123 = vld [vmem:[%s3 + $0x28] sm:$0xff]
      %v5124 = vld [vmem:[%s3 + $0x30] sm:$0xff]
      %v5125 = vld [vmem:[%s3 + $0x38] sm:$0xff]
      %v5126 = vmul.f32 %v5114, %v5118
      %v5127 = vmul.f32 %v5110, %v5119
      %v5128 = vmul.f32 %v5115, %v5120
      %v5129 = vmul.f32 %v5111, %v5121
      %v5130 = vmul.f32 %v5116, %v5122
      %v5131 = vmul.f32 %v5112, %v5123
      %v5132 = vmul.f32 %v5117, %v5124
      %v5133 = vmul.f32 %v5113, %v5125
      %5134 = vst [vmem:[#allocation2] sm:$0xff] %v5126
      %5135 = vst [vmem:[#allocation2 + $0x8] sm:$0xff] %v5127
      %5136 = vst [vmem:[#allocation2 + $0x10] sm:$0xff] %v5128
      %5137 = vst [vmem:[#allocation2 + $0x18] sm:$0xff] %v5129
      %5138 = vst [vmem:[#allocation2 + $0x20] sm:$0xff] %v5130
      %5139 = vst [vmem:[#allocation2 + $0x28] sm:$0xff] %v5131
      %5140 = vst [vmem:[#allocation2 + $0x30] sm:$0xff] %v5132
      %5141 = vst [vmem:[#allocation2 + $0x38] sm:$0xff] %v5133
      %5142 = vrot.lane.b32.xlu0 %v5086, 16
      %v5143 = vpop.permute.xlu0 %5142
      %5144 = vrot.lane.b32.xlu0 %v5088, 16
      %v5145 = vpop.permute.xlu0 %5144
      %5146 = vrot.lane.b32.xlu0 %v5090, 16
      %v5147 = vpop.permute.xlu0 %5146
      %5148 = vrot.lane.b32.xlu0 %v5092, 16
      %v5149 = vpop.permute.xlu0 %5148
      %5150 = vrot.lane.b32.xlu0 %v5087, 16
      %v5151 = vpop.permute.xlu0 %5150
      %5152 = vrot.lane.b32.xlu0 %v5089, 16
      %v5153 = vpop.permute.xlu0 %5152
      %5154 = vrot.lane.b32.xlu0 %v5091, 16
      %v5155 = vpop.permute.xlu0 %5154
      %5156 = vrot.lane.b32.xlu0 %v5093, 16
      %v5157 = vpop.permute.xlu0 %5156
      %v5158 = vsel %vm273, %v5143, %v5151
      %v5159 = vsel %vm273, %v5145, %v5153
      %v5160 = vsel %vm273, %v5147, %v5155
      %v5161 = vsel %vm273, %v5149, %v5157
      %v5162 = vsel %vm273, %v5151, %v5143
      %v5163 = vsel %vm273, %v5153, %v5145
      %v5164 = vsel %vm273, %v5155, %v5147
      %v5165 = vsel %vm273, %v5157, %v5149
      %v5166 = vld [vmem:[%s282] sm:$0xff]
      %v5167 = vld [vmem:[%s282 + $0x8] sm:$0xff]
      %v5168 = vld [vmem:[%s282 + $0x10] sm:$0xff]
      %v5169 = vld [vmem:[%s282 + $0x18] sm:$0xff]
      %v5170 = vld [vmem:[%s282 + $0x20] sm:$0xff]
      %v5171 = vld [vmem:[%s282 + $0x28] sm:$0xff]
      %v5172 = vld [vmem:[%s282 + $0x30] sm:$0xff]
      %v5173 = vld [vmem:[%s282 + $0x38] sm:$0xff]
      %v5174 = vmul.f32 %v5162, %v5166
      %v5175 = vmul.f32 %v5158, %v5167
      %v5176 = vmul.f32 %v5163, %v5168
      %v5177 = vmul.f32 %v5159, %v5169
      %v5178 = vmul.f32 %v5164, %v5170
      %v5179 = vmul.f32 %v5160, %v5171
      %v5180 = vmul.f32 %v5165, %v5172
      %v5181 = vmul.f32 %v5161, %v5173
      %5182 = vst [vmem:[#allocation2 + $0x40] sm:$0xff] %v5174
      %5183 = vst [vmem:[#allocation2 + $0x48] sm:$0xff] %v5175
      %5184 = vst [vmem:[#allocation2 + $0x50] sm:$0xff] %v5176
      %5185 = vst [vmem:[#allocation2 + $0x58] sm:$0xff] %v5177
      %5186 = vst [vmem:[#allocation2 + $0x60] sm:$0xff] %v5178
      %5187 = vst [vmem:[#allocation2 + $0x68] sm:$0xff] %v5179
      %5188 = vst [vmem:[#allocation2 + $0x70] sm:$0xff] %v5180
      %5189 = vst [vmem:[#allocation2 + $0x78] sm:$0xff] %v5181
      %5190 = vrot.lane.b32.xlu0 %v5086, 15
      %v5191 = vpop.permute.xlu0 %5190
      %5192 = vrot.lane.b32.xlu0 %v5088, 15
      %v5193 = vpop.permute.xlu0 %5192
      %5194 = vrot.lane.b32.xlu0 %v5090, 15
      %v5195 = vpop.permute.xlu0 %5194
      %5196 = vrot.lane.b32.xlu0 %v5092, 15
      %v5197 = vpop.permute.xlu0 %5196
      %5198 = vrot.lane.b32.xlu0 %v5087, 15
      %v5199 = vpop.permute.xlu0 %5198
      %5200 = vrot.lane.b32.xlu0 %v5089, 15
      %v5201 = vpop.permute.xlu0 %5200
      %5202 = vrot.lane.b32.xlu0 %v5091, 15
      %v5203 = vpop.permute.xlu0 %5202
      %5204 = vrot.lane.b32.xlu0 %v5093, 15
      %v5205 = vpop.permute.xlu0 %5204
      %v5206 = vsel %vm323, %v5191, %v5199
      %v5207 = vsel %vm323, %v5193, %v5201
      %v5208 = vsel %vm323, %v5195, %v5203
      %v5209 = vsel %vm323, %v5197, %v5205
      %v5210 = vsel %vm323, %v5199, %v5191
      %v5211 = vsel %vm323, %v5201, %v5193
      %v5212 = vsel %vm323, %v5203, %v5195
      %v5213 = vsel %vm323, %v5205, %v5197
      %v5214 = vld [vmem:[%s332] sm:$0xff]
      %v5215 = vld [vmem:[%s332 + $0x8] sm:$0xff]
      %v5216 = vld [vmem:[%s332 + $0x10] sm:$0xff]
      %v5217 = vld [vmem:[%s332 + $0x18] sm:$0xff]
      %v5218 = vld [vmem:[%s332 + $0x20] sm:$0xff]
      %v5219 = vld [vmem:[%s332 + $0x28] sm:$0xff]
      %v5220 = vld [vmem:[%s332 + $0x30] sm:$0xff]
      %v5221 = vld [vmem:[%s332 + $0x38] sm:$0xff]
      %v5222 = vmul.f32 %v5210, %v5214
      %v5223 = vmul.f32 %v5206, %v5215
      %v5224 = vmul.f32 %v5211, %v5216
      %v5225 = vmul.f32 %v5207, %v5217
      %v5226 = vmul.f32 %v5212, %v5218
      %v5227 = vmul.f32 %v5208, %v5219
      %v5228 = vmul.f32 %v5213, %v5220
      %v5229 = vmul.f32 %v5209, %v5221
      %5230 = vst [vmem:[#allocation2 + $0x80] sm:$0xff] %v5222
      %5231 = vst [vmem:[#allocation2 + $0x88] sm:$0xff] %v5223
      %5232 = vst [vmem:[#allocation2 + $0x90] sm:$0xff] %v5224
      %5233 = vst [vmem:[#allocation2 + $0x98] sm:$0xff] %v5225
      %5234 = vst [vmem:[#allocation2 + $0xa0] sm:$0xff] %v5226
      %5235 = vst [vmem:[#allocation2 + $0xa8] sm:$0xff] %v5227
      %5236 = vst [vmem:[#allocation2 + $0xb0] sm:$0xff] %v5228
      %5237 = vst [vmem:[#allocation2 + $0xb8] sm:$0xff] %v5229
      %5238 = vrot.lane.b32.xlu0 %v5086, 1
      %v5239 = vpop.permute.xlu0 %5238
      %5240 = vrot.lane.b32.xlu0 %v5088, 1
      %v5241 = vpop.permute.xlu0 %5240
      %5242 = vrot.lane.b32.xlu0 %v5090, 1
      %v5243 = vpop.permute.xlu0 %5242
      %5244 = vrot.lane.b32.xlu0 %v5092, 1
      %v5245 = vpop.permute.xlu0 %5244
      %5246 = vrot.lane.b32.xlu0 %v5087, 1
      %v5247 = vpop.permute.xlu0 %5246
      %5248 = vrot.lane.b32.xlu0 %v5089, 1
      %v5249 = vpop.permute.xlu0 %5248
      %5250 = vrot.lane.b32.xlu0 %v5091, 1
      %v5251 = vpop.permute.xlu0 %5250
      %5252 = vrot.lane.b32.xlu0 %v5093, 1
      %v5253 = vpop.permute.xlu0 %5252
      %v5254 = vsel %vm373, %v5239, %v5247
      %v5255 = vsel %vm373, %v5241, %v5249
      %v5256 = vsel %vm373, %v5243, %v5251
      %v5257 = vsel %vm373, %v5245, %v5253
      %v5258 = vsel %vm373, %v5247, %v5239
      %v5259 = vsel %vm373, %v5249, %v5241
      %v5260 = vsel %vm373, %v5251, %v5243
      %v5261 = vsel %vm373, %v5253, %v5245
      %v5262 = vld [vmem:[%s382] sm:$0xff]
      %v5263 = vld [vmem:[%s382 + $0x8] sm:$0xff]
      %v5264 = vld [vmem:[%s382 + $0x10] sm:$0xff]
      %v5265 = vld [vmem:[%s382 + $0x18] sm:$0xff]
      %v5266 = vld [vmem:[%s382 + $0x20] sm:$0xff]
      %v5267 = vld [vmem:[%s382 + $0x28] sm:$0xff]
      %v5268 = vld [vmem:[%s382 + $0x30] sm:$0xff]
      %v5269 = vld [vmem:[%s382 + $0x38] sm:$0xff]
      %v5270 = vmul.f32 %v5258, %v5262
      %v5271 = vmul.f32 %v5254, %v5263
      %v5272 = vmul.f32 %v5259, %v5264
      %v5273 = vmul.f32 %v5255, %v5265
      %v5274 = vmul.f32 %v5260, %v5266
      %v5275 = vmul.f32 %v5256, %v5267
      %v5276 = vmul.f32 %v5261, %v5268
      %v5277 = vmul.f32 %v5257, %v5269
      %5278 = vst [vmem:[#allocation2 + $0xc0] sm:$0xff] %v5270
      %5279 = vst [vmem:[#allocation2 + $0xc8] sm:$0xff] %v5271
      %5280 = vst [vmem:[#allocation2 + $0xd0] sm:$0xff] %v5272
      %5281 = vst [vmem:[#allocation2 + $0xd8] sm:$0xff] %v5273
      %5282 = vst [vmem:[#allocation2 + $0xe0] sm:$0xff] %v5274
      %5283 = vst [vmem:[#allocation2 + $0xe8] sm:$0xff] %v5275
      %5284 = vst [vmem:[#allocation2 + $0xf0] sm:$0xff] %v5276
      %5285 = vst [vmem:[#allocation2 + $0xf8] sm:$0xff] %v5277
      %5286 = vst [vmem:[#allocation2 + $0x100] sm:$0xff] %v5086
      %5287 = vst [vmem:[#allocation2 + $0x108] sm:$0xff] %v5087
      %5288 = vst [vmem:[#allocation2 + $0x110] sm:$0xff] %v5088
      %5289 = vst [vmem:[#allocation2 + $0x118] sm:$0xff] %v5089
      %5290 = vst [vmem:[#allocation2 + $0x120] sm:$0xff] %v5090
      %5291 = vst [vmem:[#allocation2 + $0x128] sm:$0xff] %v5091
      %5292 = vst [vmem:[#allocation2 + $0x130] sm:$0xff] %v5092
      %5293 = vst [vmem:[#allocation2 + $0x138] sm:$0xff] %v5093
      %5294 = vrot.lane.b32.xlu0 %v5086, 127
      %v5295 = vpop.permute.xlu0 %5294
      %5296 = vrot.lane.b32.xlu0 %v5088, 127
      %v5297 = vpop.permute.xlu0 %5296
      %5298 = vrot.lane.b32.xlu0 %v5090, 127
      %v5299 = vpop.permute.xlu0 %5298
      %5300 = vrot.lane.b32.xlu0 %v5092, 127
      %v5301 = vpop.permute.xlu0 %5300
      %5302 = vrot.lane.b32.xlu0 %v5087, 127
      %v5303 = vpop.permute.xlu0 %5302
      %5304 = vrot.lane.b32.xlu0 %v5089, 127
      %v5305 = vpop.permute.xlu0 %5304
      %5306 = vrot.lane.b32.xlu0 %v5091, 127
      %v5307 = vpop.permute.xlu0 %5306
      %5308 = vrot.lane.b32.xlu0 %v5093, 127
      %v5309 = vpop.permute.xlu0 %5308
      %v5310 = vsel %vm431, %v5295, %v5303
      %v5311 = vsel %vm431, %v5297, %v5305
      %v5312 = vsel %vm431, %v5299, %v5307
      %v5313 = vsel %vm431, %v5301, %v5309
      %v5314 = vsel %vm431, %v5303, %v5295
      %v5315 = vsel %vm431, %v5305, %v5297
      %v5316 = vsel %vm431, %v5307, %v5299
      %v5317 = vsel %vm431, %v5309, %v5301
      %v5318 = vld [vmem:[%s440] sm:$0xff]
      %v5319 = vld [vmem:[%s440 + $0x8] sm:$0xff]
      %v5320 = vld [vmem:[%s440 + $0x10] sm:$0xff]
      %v5321 = vld [vmem:[%s440 + $0x18] sm:$0xff]
      %v5322 = vld [vmem:[%s440 + $0x20] sm:$0xff]
      %v5323 = vld [vmem:[%s440 + $0x28] sm:$0xff]
      %v5324 = vld [vmem:[%s440 + $0x30] sm:$0xff]
      %v5325 = vld [vmem:[%s440 + $0x38] sm:$0xff]
      %v5326 = vmul.f32 %v5310, %v5318
      %v5327 = vmul.f32 %v5314, %v5319
      %v5328 = vmul.f32 %v5311, %v5320
      %v5329 = vmul.f32 %v5315, %v5321
      %v5330 = vmul.f32 %v5312, %v5322
      %v5331 = vmul.f32 %v5316, %v5323
      %v5332 = vmul.f32 %v5313, %v5324
      %v5333 = vmul.f32 %v5317, %v5325
      %5334 = vst [vmem:[#allocation2 + $0x140] sm:$0xff] %v5326
      %5335 = vst [vmem:[#allocation2 + $0x148] sm:$0xff] %v5327
      %5336 = vst [vmem:[#allocation2 + $0x150] sm:$0xff] %v5328
      %5337 = vst [vmem:[#allocation2 + $0x158] sm:$0xff] %v5329
      %5338 = vst [vmem:[#allocation2 + $0x160] sm:$0xff] %v5330
      %5339 = vst [vmem:[#allocation2 + $0x168] sm:$0xff] %v5331
      %5340 = vst [vmem:[#allocation2 + $0x170] sm:$0xff] %v5332
      %5341 = vst [vmem:[#allocation2 + $0x178] sm:$0xff] %v5333
      %5342 = vrot.lane.b32.xlu0 %v5086, 113
      %v5343 = vpop.permute.xlu0 %5342
      %5344 = vrot.lane.b32.xlu0 %v5088, 113
      %v5345 = vpop.permute.xlu0 %5344
      %5346 = vrot.lane.b32.xlu0 %v5090, 113
      %v5347 = vpop.permute.xlu0 %5346
      %5348 = vrot.lane.b32.xlu0 %v5092, 113
      %v5349 = vpop.permute.xlu0 %5348
      %5350 = vrot.lane.b32.xlu0 %v5087, 113
      %v5351 = vpop.permute.xlu0 %5350
      %5352 = vrot.lane.b32.xlu0 %v5089, 113
      %v5353 = vpop.permute.xlu0 %5352
      %5354 = vrot.lane.b32.xlu0 %v5091, 113
      %v5355 = vpop.permute.xlu0 %5354
      %5356 = vrot.lane.b32.xlu0 %v5093, 113
      %v5357 = vpop.permute.xlu0 %5356
      %v5358 = vsel %vm481, %v5343, %v5351
      %v5359 = vsel %vm481, %v5345, %v5353
      %v5360 = vsel %vm481, %v5347, %v5355
      %v5361 = vsel %vm481, %v5349, %v5357
      %v5362 = vsel %vm481, %v5351, %v5343
      %v5363 = vsel %vm481, %v5353, %v5345
      %v5364 = vsel %vm481, %v5355, %v5347
      %v5365 = vsel %vm481, %v5357, %v5349
      %v5366 = vld [vmem:[%s490] sm:$0xff]
      %v5367 = vld [vmem:[%s490 + $0x8] sm:$0xff]
      %v5368 = vld [vmem:[%s490 + $0x10] sm:$0xff]
      %v5369 = vld [vmem:[%s490 + $0x18] sm:$0xff]
      %v5370 = vld [vmem:[%s490 + $0x20] sm:$0xff]
      %v5371 = vld [vmem:[%s490 + $0x28] sm:$0xff]
      %v5372 = vld [vmem:[%s490 + $0x30] sm:$0xff]
      %v5373 = vld [vmem:[%s490 + $0x38] sm:$0xff]
      %v5374 = vmul.f32 %v5358, %v5366
      %v5375 = vmul.f32 %v5362, %v5367
      %v5376 = vmul.f32 %v5359, %v5368
      %v5377 = vmul.f32 %v5363, %v5369
      %v5378 = vmul.f32 %v5360, %v5370
      %v5379 = vmul.f32 %v5364, %v5371
      %v5380 = vmul.f32 %v5361, %v5372
      %v5381 = vmul.f32 %v5365, %v5373
      %5382 = vst [vmem:[#allocation2 + $0x180] sm:$0xff] %v5374
      %5383 = vst [vmem:[#allocation2 + $0x188] sm:$0xff] %v5375
      %5384 = vst [vmem:[#allocation2 + $0x190] sm:$0xff] %v5376
      %5385 = vst [vmem:[#allocation2 + $0x198] sm:$0xff] %v5377
      %5386 = vst [vmem:[#allocation2 + $0x1a0] sm:$0xff] %v5378
      %5387 = vst [vmem:[#allocation2 + $0x1a8] sm:$0xff] %v5379
      %5388 = vst [vmem:[#allocation2 + $0x1b0] sm:$0xff] %v5380
      %5389 = vst [vmem:[#allocation2 + $0x1b8] sm:$0xff] %v5381
      %5390 = vrot.lane.b32.xlu0 %v5086, 112
      %v5391 = vpop.permute.xlu0 %5390
      %5392 = vrot.lane.b32.xlu0 %v5088, 112
      %v5393 = vpop.permute.xlu0 %5392
      %5394 = vrot.lane.b32.xlu0 %v5090, 112
      %v5395 = vpop.permute.xlu0 %5394
      %5396 = vrot.lane.b32.xlu0 %v5092, 112
      %v5397 = vpop.permute.xlu0 %5396
      %5398 = vrot.lane.b32.xlu0 %v5087, 112
      %v5399 = vpop.permute.xlu0 %5398
      %5400 = vrot.lane.b32.xlu0 %v5089, 112
      %v5401 = vpop.permute.xlu0 %5400
      %5402 = vrot.lane.b32.xlu0 %v5091, 112
      %v5403 = vpop.permute.xlu0 %5402
      %5404 = vrot.lane.b32.xlu0 %v5093, 112
      %v5405 = vpop.permute.xlu0 %5404
      %v5406 = vsel %vm531, %v5391, %v5399
      %v5407 = vsel %vm531, %v5393, %v5401
      %v5408 = vsel %vm531, %v5395, %v5403
      %v5409 = vsel %vm531, %v5397, %v5405
      %v5410 = vsel %vm531, %v5399, %v5391
      %v5411 = vsel %vm531, %v5401, %v5393
      %v5412 = vsel %vm531, %v5403, %v5395
      %v5413 = vsel %vm531, %v5405, %v5397
      %v5414 = vld [vmem:[%s540] sm:$0xff]
      %v5415 = vld [vmem:[%s540 + $0x8] sm:$0xff]
      %v5416 = vld [vmem:[%s540 + $0x10] sm:$0xff]
      %v5417 = vld [vmem:[%s540 + $0x18] sm:$0xff]
      %v5418 = vld [vmem:[%s540 + $0x20] sm:$0xff]
      %v5419 = vld [vmem:[%s540 + $0x28] sm:$0xff]
      %v5420 = vld [vmem:[%s540 + $0x30] sm:$0xff]
      %v5421 = vld [vmem:[%s540 + $0x38] sm:$0xff]
      %v5422 = vmul.f32 %v5406, %v5414
      %v5423 = vmul.f32 %v5410, %v5415
      %v5424 = vmul.f32 %v5407, %v5416
      %v5425 = vmul.f32 %v5411, %v5417
      %v5426 = vmul.f32 %v5408, %v5418
      %v5427 = vmul.f32 %v5412, %v5419
      %v5428 = vmul.f32 %v5409, %v5420
      %v5429 = vmul.f32 %v5413, %v5421
      %5430 = vst [vmem:[#allocation2 + $0x1c0] sm:$0xff] %v5422
      %5431 = vst [vmem:[#allocation2 + $0x1c8] sm:$0xff] %v5423
      %5432 = vst [vmem:[#allocation2 + $0x1d0] sm:$0xff] %v5424
      %5433 = vst [vmem:[#allocation2 + $0x1d8] sm:$0xff] %v5425
      %5434 = vst [vmem:[#allocation2 + $0x1e0] sm:$0xff] %v5426
      %5435 = vst [vmem:[#allocation2 + $0x1e8] sm:$0xff] %v5427
      %5436 = vst [vmem:[#allocation2 + $0x1f0] sm:$0xff] %v5428
      %5437 = vst [vmem:[#allocation2 + $0x1f8] sm:$0xff] %v5429
      %5438 = vrot.lane.b32.xlu0 %v5086, 111
      %v5439 = vpop.permute.xlu0 %5438
      %5440 = vrot.lane.b32.xlu0 %v5088, 111
      %v5441 = vpop.permute.xlu0 %5440
      %5442 = vrot.lane.b32.xlu0 %v5090, 111
      %v5443 = vpop.permute.xlu0 %5442
      %5444 = vrot.lane.b32.xlu0 %v5092, 111
      %v5445 = vpop.permute.xlu0 %5444
      %5446 = vrot.lane.b32.xlu0 %v5087, 111
      %v5447 = vpop.permute.xlu0 %5446
      %5448 = vrot.lane.b32.xlu0 %v5089, 111
      %v5449 = vpop.permute.xlu0 %5448
      %5450 = vrot.lane.b32.xlu0 %v5091, 111
      %v5451 = vpop.permute.xlu0 %5450
      %5452 = vrot.lane.b32.xlu0 %v5093, 111
      %v5453 = vpop.permute.xlu0 %5452
      %v5454 = vsel %vm581, %v5439, %v5447
      %v5455 = vsel %vm581, %v5441, %v5449
      %v5456 = vsel %vm581, %v5443, %v5451
      %v5457 = vsel %vm581, %v5445, %v5453
      %v5458 = vsel %vm581, %v5447, %v5439
      %v5459 = vsel %vm581, %v5449, %v5441
      %v5460 = vsel %vm581, %v5451, %v5443
      %v5461 = vsel %vm581, %v5453, %v5445
      %v5462 = vld [vmem:[%s590] sm:$0xff]
      %v5463 = vld [vmem:[%s590 + $0x8] sm:$0xff]
      %v5464 = vld [vmem:[%s590 + $0x10] sm:$0xff]
      %v5465 = vld [vmem:[%s590 + $0x18] sm:$0xff]
      %v5466 = vld [vmem:[%s590 + $0x20] sm:$0xff]
      %v5467 = vld [vmem:[%s590 + $0x28] sm:$0xff]
      %v5468 = vld [vmem:[%s590 + $0x30] sm:$0xff]
      %v5469 = vld [vmem:[%s590 + $0x38] sm:$0xff]
      %v5470 = vmul.f32 %v5454, %v5462
      %v5471 = vmul.f32 %v5458, %v5463
      %v5472 = vmul.f32 %v5455, %v5464
      %v5473 = vmul.f32 %v5459, %v5465
      %v5474 = vmul.f32 %v5456, %v5466
      %v5475 = vmul.f32 %v5460, %v5467
      %v5476 = vmul.f32 %v5457, %v5468
      %v5477 = vmul.f32 %v5461, %v5469
      %5478 = vst [vmem:[#allocation2 + $0x200] sm:$0xff] %v5470
      %5479 = vst [vmem:[#allocation2 + $0x208] sm:$0xff] %v5471
      %5480 = vst [vmem:[#allocation2 + $0x210] sm:$0xff] %v5472
      %5481 = vst [vmem:[#allocation2 + $0x218] sm:$0xff] %v5473
      %5482 = vst [vmem:[#allocation2 + $0x220] sm:$0xff] %v5474
      %5483 = vst [vmem:[#allocation2 + $0x228] sm:$0xff] %v5475
      %5484 = vst [vmem:[#allocation2 + $0x230] sm:$0xff] %v5476
      %5485 = vst [vmem:[#allocation2 + $0x238] sm:$0xff] %v5477
      %s5486 = scalar_lea.vmem %s1, 672
      %v5487 = vld [vmem:[%s5486] sm:$0xff]
      %v5488 = vld [vmem:[%s5486 + $0x8] sm:$0xff]
      %v5489 = vld [vmem:[%s5486 + $0x10] sm:$0xff]
      %v5490 = vld [vmem:[%s5486 + $0x18] sm:$0xff]
      %v5491 = vld [vmem:[%s5486 + $0x20] sm:$0xff]
      %v5492 = vld [vmem:[%s5486 + $0x28] sm:$0xff]
      %v5493 = vld [vmem:[%s5486 + $0x30] sm:$0xff]
      %v5494 = vld [vmem:[%s5486 + $0x38] sm:$0xff]
      %v5495 = vld [vmem:[%s5486 + $0x40] sm:$0xff]
      %v5496 = vld [vmem:[%s5486 + $0x48] sm:$0xff]
      %v5497 = vld [vmem:[%s5486 + $0x50] sm:$0xff]
      %v5498 = vld [vmem:[%s5486 + $0x58] sm:$0xff]
      %v5499 = vld [vmem:[#allocation2] sm:$0xff]
      %v5500 = vld [vmem:[#allocation2 + $0x8] sm:$0xff]
      %v5501 = vld [vmem:[#allocation2 + $0x10] sm:$0xff]
      %v5502 = vld [vmem:[#allocation2 + $0x18] sm:$0xff]
      %v5503 = vld [vmem:[#allocation2 + $0x20] sm:$0xff]
      %v5504 = vld [vmem:[#allocation2 + $0x28] sm:$0xff]
      %v5505 = vld [vmem:[#allocation2 + $0x30] sm:$0xff]
      %v5506 = vld [vmem:[#allocation2 + $0x38] sm:$0xff]
      %v5507 = vld [vmem:[#allocation2 + $0x40] sm:$0xff]
      %v5508 = vld [vmem:[#allocation2 + $0x48] sm:$0xff]
      %v5509 = vld [vmem:[#allocation2 + $0x50] sm:$0xff]
      %v5510 = vld [vmem:[#allocation2 + $0x58] sm:$0xff]
      %v5511 = vld [vmem:[#allocation2 + $0x60] sm:$0xff]
      %v5512 = vld [vmem:[#allocation2 + $0x68] sm:$0xff]
      %v5513 = vld [vmem:[#allocation2 + $0x70] sm:$0xff]
      %v5514 = vld [vmem:[#allocation2 + $0x78] sm:$0xff]
      %v5515 = vld [vmem:[#allocation2 + $0x80] sm:$0xff]
      %v5516 = vld [vmem:[#allocation2 + $0x88] sm:$0xff]
      %v5517 = vld [vmem:[#allocation2 + $0x90] sm:$0xff]
      %v5518 = vld [vmem:[#allocation2 + $0x98] sm:$0xff]
      %v5519 = vld [vmem:[#allocation2 + $0xa0] sm:$0xff]
      %v5520 = vld [vmem:[#allocation2 + $0xa8] sm:$0xff]
      %v5521 = vld [vmem:[#allocation2 + $0xb0] sm:$0xff]
      %v5522 = vld [vmem:[#allocation2 + $0xb8] sm:$0xff]
      %v5523 = vld [vmem:[#allocation2 + $0xc0] sm:$0xff]
      %v5524 = vld [vmem:[#allocation2 + $0xc8] sm:$0xff]
      %v5525 = vld [vmem:[#allocation2 + $0xd0] sm:$0xff]
      %v5526 = vld [vmem:[#allocation2 + $0xd8] sm:$0xff]
      %v5527 = vld [vmem:[#allocation2 + $0xe0] sm:$0xff]
      %v5528 = vld [vmem:[#allocation2 + $0xe8] sm:$0xff]
      %v5529 = vld [vmem:[#allocation2 + $0xf0] sm:$0xff]
      %v5530 = vld [vmem:[#allocation2 + $0xf8] sm:$0xff]
      %v5531 = vld [vmem:[#allocation2 + $0x100] sm:$0xff]
      %v5532 = vld [vmem:[#allocation2 + $0x108] sm:$0xff]
      %v5533 = vld [vmem:[#allocation2 + $0x110] sm:$0xff]
      %v5534 = vld [vmem:[#allocation2 + $0x118] sm:$0xff]
      %v5535 = vld [vmem:[#allocation2 + $0x120] sm:$0xff]
      %v5536 = vld [vmem:[#allocation2 + $0x128] sm:$0xff]
      %v5537 = vld [vmem:[#allocation2 + $0x130] sm:$0xff]
      %v5538 = vld [vmem:[#allocation2 + $0x138] sm:$0xff]
      %v5539 = vld [vmem:[#allocation2 + $0x140] sm:$0xff]
      %v5540 = vld [vmem:[#allocation2 + $0x148] sm:$0xff]
      %v5541 = vld [vmem:[#allocation2 + $0x150] sm:$0xff]
      %v5542 = vld [vmem:[#allocation2 + $0x158] sm:$0xff]
      %v5543 = vld [vmem:[#allocation2 + $0x160] sm:$0xff]
      %v5544 = vld [vmem:[#allocation2 + $0x168] sm:$0xff]
      %v5545 = vld [vmem:[#allocation2 + $0x170] sm:$0xff]
      %v5546 = vld [vmem:[#allocation2 + $0x178] sm:$0xff]
      %v5547 = vld [vmem:[#allocation2 + $0x180] sm:$0xff]
      %v5548 = vld [vmem:[#allocation2 + $0x188] sm:$0xff]
      %v5549 = vld [vmem:[#allocation2 + $0x190] sm:$0xff]
      %v5550 = vld [vmem:[#allocation2 + $0x198] sm:$0xff]
      %v5551 = vld [vmem:[#allocation2 + $0x1a0] sm:$0xff]
      %v5552 = vld [vmem:[#allocation2 + $0x1a8] sm:$0xff]
      %v5553 = vld [vmem:[#allocation2 + $0x1b0] sm:$0xff]
      %v5554 = vld [vmem:[#allocation2 + $0x1b8] sm:$0xff]
      %v5555 = vld [vmem:[#allocation2 + $0x1c0] sm:$0xff]
      %v5556 = vld [vmem:[#allocation2 + $0x1c8] sm:$0xff]
      %v5557 = vld [vmem:[#allocation2 + $0x1d0] sm:$0xff]
      %v5558 = vld [vmem:[#allocation2 + $0x1d8] sm:$0xff]
      %v5559 = vld [vmem:[#allocation2 + $0x1e0] sm:$0xff]
      %v5560 = vld [vmem:[#allocation2 + $0x1e8] sm:$0xff]
      %v5561 = vld [vmem:[#allocation2 + $0x1f0] sm:$0xff]
      %v5562 = vld [vmem:[#allocation2 + $0x1f8] sm:$0xff]
      %v5563 = vld [vmem:[#allocation2 + $0x200] sm:$0xff]
      %v5564 = vld [vmem:[#allocation2 + $0x208] sm:$0xff]
      %v5565 = vld [vmem:[#allocation2 + $0x210] sm:$0xff]
      %v5566 = vld [vmem:[#allocation2 + $0x218] sm:$0xff]
      %v5567 = vld [vmem:[#allocation2 + $0x220] sm:$0xff]
      %v5568 = vld [vmem:[#allocation2 + $0x228] sm:$0xff]
      %v5569 = vld [vmem:[#allocation2 + $0x230] sm:$0xff]
      %v5570 = vld [vmem:[#allocation2 + $0x238] sm:$0xff]
      %s5571 = scalar_lea.vmem %s2, 224
      %v5572 = vld [vmem:[%s5571] sm:$0xff]
      %v5573 = vld [vmem:[%s5571 + $0x8] sm:$0xff]
      %v5574 = vld [vmem:[%s5571 + $0x10] sm:$0xff]
      %v5575 = vld [vmem:[%s5571 + $0x18] sm:$0xff]
      %5577 = vset.pattern.permute.xlu0 0
      %5578 = vperm.xlu0 %5577, %v5572
      %v5579 = vpop.permute.xlu0 %5578
      %5582 = vset.pattern.permute.xlu0 0
      %5583 = vperm.xlu0 %5582, %v5573
      %v5584 = vpop.permute.xlu0 %5583
      %5587 = vset.pattern.permute.xlu0 0
      %5588 = vperm.xlu0 %5587, %v5574
      %v5589 = vpop.permute.xlu0 %5588
      %5592 = vset.pattern.permute.xlu0 0
      %5593 = vperm.xlu0 %5592, %v5575
      %v5594 = vpop.permute.xlu0 %5593
      %v5597 = vsel %vm723, %v5489, 0
      %v5600 = vsel %vm723, %v5492, 0
      %v5603 = vsel %vm723, %v5495, 0
      %v5606 = vsel %vm723, %v5498, 0
      %5608 = vmatpush.msra.mxu0 %v5529
      %5609 = vmatpush.msra.mxu0 %v5527
      %5610 = vmatpush.msra.mxu0 %v5525
      %5611 = vmatpush.msra.mxu0 %v5523
      %5612 = vmatpush.msra.mxu0 %v5521
      %5613 = vmatpush.msra.mxu0 %v5519
      %5614 = vmatpush.msra.mxu0 %v5517
      %5615 = vmatpush.msra.mxu0 %v5515
      %5616 = vmatpush.msra.mxu0 %v5513
      %5617 = vmatpush.msra.mxu0 %v5511
      %5618 = vmatpush.msra.mxu0 %v5509
      %5619 = vmatpush.msra.mxu0 %v5507
      %5620 = vmatpush.msra.mxu0 %v5505
      %5621 = vmatpush.msra.mxu0 %v5503
      %5622 = vmatpush.msra.mxu0 %v5501
      %5623 = vmatpush.msra.mxu0 %v5499
      %5624 = vmatmul.f32.gmra.mxu0 %v5487
      %v5625 = vpop.f32.mrf.mxu0
      %v5626 = vadd.f32 %v5579, %v5625
      %5627 = vmatmul.f32.gmra.mxu0 %v5490
      %v5628 = vpop.f32.mrf.mxu0
      %v5629 = vadd.f32 %v5584, %v5628
      %5630 = vmatmul.f32.gmra.mxu0 %v5493
      %v5631 = vpop.f32.mrf.mxu0
      %v5632 = vadd.f32 %v5589, %v5631
      %5633 = vmatmul.f32.gmra.mxu0 %v5496
      %v5634 = vpop.f32.mrf.mxu0
      %v5635 = vadd.f32 %v5594, %v5634
      %5636 = vdwg.mxu0
      %5637 = vmatpush.msra.mxu0 %v5561
      %5638 = vmatpush.msra.mxu0 %v5559
      %5639 = vmatpush.msra.mxu0 %v5557
      %5640 = vmatpush.msra.mxu0 %v5555
      %5641 = vmatpush.msra.mxu0 %v5553
      %5642 = vmatpush.msra.mxu0 %v5551
      %5643 = vmatpush.msra.mxu0 %v5549
      %5644 = vmatpush.msra.mxu0 %v5547
      %5645 = vmatpush.msra.mxu0 %v5545
      %5646 = vmatpush.msra.mxu0 %v5543
      %5647 = vmatpush.msra.mxu0 %v5541
      %5648 = vmatpush.msra.mxu0 %v5539
      %5649 = vmatpush.msra.mxu0 %v5537
      %5650 = vmatpush.msra.mxu0 %v5535
      %5651 = vmatpush.msra.mxu0 %v5533
      %5652 = vmatpush.msra.mxu0 %v5531
      %5653 = vmatmul.f32.gmra.mxu0 %v5488
      %v5654 = vpop.f32.mrf.mxu0
      %v5655 = vadd.f32 %v5626, %v5654
      %5656 = vmatmul.f32.gmra.mxu0 %v5491
      %v5657 = vpop.f32.mrf.mxu0
      %v5658 = vadd.f32 %v5629, %v5657
      %5659 = vmatmul.f32.gmra.mxu0 %v5494
      %v5660 = vpop.f32.mrf.mxu0
      %v5661 = vadd.f32 %v5632, %v5660
      %5662 = vmatmul.f32.gmra.mxu0 %v5497
      %v5663 = vpop.f32.mrf.mxu0
      %v5664 = vadd.f32 %v5635, %v5663
      %5665 = vdwg.mxu0
      %5666 = vmatpush.msra.mxu0 0.0
      %5667 = vmatpush.msra.mxu0 0.0
      %5668 = vmatpush.msra.mxu0 0.0
      %5669 = vmatpush.msra.mxu0 0.0
      %5670 = vmatpush.msra.mxu0 0.0
      %5671 = vmatpush.msra.mxu0 0.0
      %5672 = vmatpush.msra.mxu0 0.0
      %5673 = vmatpush.msra.mxu0 0.0
      %5674 = vmatpush.msra.mxu0 0.0
      %5675 = vmatpush.msra.mxu0 0.0
      %5676 = vmatpush.msra.mxu0 0.0
      %5677 = vmatpush.msra.mxu0 0.0
      %5678 = vmatpush.msra.mxu0 %v5569
      %5679 = vmatpush.msra.mxu0 %v5567
      %5680 = vmatpush.msra.mxu0 %v5565
      %5681 = vmatpush.msra.mxu0 %v5563
      %5682 = vmatmul.f32.gmra.mxu0 %v5597
      %v5683 = vpop.f32.mrf.mxu0
      %v5684 = vadd.f32 %v5655, %v5683
      %5685 = vmatmul.f32.gmra.mxu0 %v5600
      %v5686 = vpop.f32.mrf.mxu0
      %v5687 = vadd.f32 %v5658, %v5686
      %5688 = vmatmul.f32.gmra.mxu0 %v5603
      %v5689 = vpop.f32.mrf.mxu0
      %v5690 = vadd.f32 %v5661, %v5689
      %5691 = vmatmul.f32.gmra.mxu0 %v5606
      %v5692 = vpop.f32.mrf.mxu0
      %v5693 = vadd.f32 %v5664, %v5692
      %5694 = vdwg.mxu0
      %5695 = vmatpush.msra.mxu0 %v5530
      %5696 = vmatpush.msra.mxu0 %v5528
      %5697 = vmatpush.msra.mxu0 %v5526
      %5698 = vmatpush.msra.mxu0 %v5524
      %5699 = vmatpush.msra.mxu0 %v5522
      %5700 = vmatpush.msra.mxu0 %v5520
      %5701 = vmatpush.msra.mxu0 %v5518
      %5702 = vmatpush.msra.mxu0 %v5516
      %5703 = vmatpush.msra.mxu0 %v5514
      %5704 = vmatpush.msra.mxu0 %v5512
      %5705 = vmatpush.msra.mxu0 %v5510
      %5706 = vmatpush.msra.mxu0 %v5508
      %5707 = vmatpush.msra.mxu0 %v5506
      %5708 = vmatpush.msra.mxu0 %v5504
      %5709 = vmatpush.msra.mxu0 %v5502
      %5710 = vmatpush.msra.mxu0 %v5500
      %5711 = vmatmul.f32.gmra.mxu0 %v5487
      %v5712 = vpop.f32.mrf.mxu0
      %v5713 = vadd.f32 %v5579, %v5712
      %5714 = vmatmul.f32.gmra.mxu0 %v5490
      %v5715 = vpop.f32.mrf.mxu0
      %v5716 = vadd.f32 %v5584, %v5715
      %5717 = vmatmul.f32.gmra.mxu0 %v5493
      %v5718 = vpop.f32.mrf.mxu0
      %v5719 = vadd.f32 %v5589, %v5718
      %5720 = vmatmul.f32.gmra.mxu0 %v5496
      %v5721 = vpop.f32.mrf.mxu0
      %v5722 = vadd.f32 %v5594, %v5721
      %5723 = vdwg.mxu0
      %5724 = vmatpush.msra.mxu0 %v5562
      %5725 = vmatpush.msra.mxu0 %v5560
      %5726 = vmatpush.msra.mxu0 %v5558
      %5727 = vmatpush.msra.mxu0 %v5556
      %5728 = vmatpush.msra.mxu0 %v5554
      %5729 = vmatpush.msra.mxu0 %v5552
      %5730 = vmatpush.msra.mxu0 %v5550
      %5731 = vmatpush.msra.mxu0 %v5548
      %5732 = vmatpush.msra.mxu0 %v5546
      %5733 = vmatpush.msra.mxu0 %v5544
      %5734 = vmatpush.msra.mxu0 %v5542
      %5735 = vmatpush.msra.mxu0 %v5540
      %5736 = vmatpush.msra.mxu0 %v5538
      %5737 = vmatpush.msra.mxu0 %v5536
      %5738 = vmatpush.msra.mxu0 %v5534
      %5739 = vmatpush.msra.mxu0 %v5532
      %5740 = vmatmul.f32.gmra.mxu0 %v5488
      %v5741 = vpop.f32.mrf.mxu0
      %v5742 = vadd.f32 %v5713, %v5741
      %5743 = vmatmul.f32.gmra.mxu0 %v5491
      %v5744 = vpop.f32.mrf.mxu0
      %v5745 = vadd.f32 %v5716, %v5744
      %5746 = vmatmul.f32.gmra.mxu0 %v5494
      %v5747 = vpop.f32.mrf.mxu0
      %v5748 = vadd.f32 %v5719, %v5747
      %5749 = vmatmul.f32.gmra.mxu0 %v5497
      %v5750 = vpop.f32.mrf.mxu0
      %v5751 = vadd.f32 %v5722, %v5750
      %5752 = vdwg.mxu0
      %5753 = vmatpush.msra.mxu0 0.0
      %5754 = vmatpush.msra.mxu0 0.0
      %5755 = vmatpush.msra.mxu0 0.0
      %5756 = vmatpush.msra.mxu0 0.0
      %5757 = vmatpush.msra.mxu0 0.0
      %5758 = vmatpush.msra.mxu0 0.0
      %5759 = vmatpush.msra.mxu0 0.0
      %5760 = vmatpush.msra.mxu0 0.0
      %5761 = vmatpush.msra.mxu0 0.0
      %5762 = vmatpush.msra.mxu0 0.0
      %5763 = vmatpush.msra.mxu0 0.0
      %5764 = vmatpush.msra.mxu0 0.0
      %5765 = vmatpush.msra.mxu0 %v5570
      %5766 = vmatpush.msra.mxu0 %v5568
      %5767 = vmatpush.msra.mxu0 %v5566
      %5768 = vmatpush.msra.mxu0 %v5564
      %5769 = vmatmul.f32.gmra.mxu0 %v5597
      %v5770 = vpop.f32.mrf.mxu0
      %v5771 = vadd.f32 %v5742, %v5770
      %5772 = vmatmul.f32.gmra.mxu0 %v5600
      %v5773 = vpop.f32.mrf.mxu0
      %v5774 = vadd.f32 %v5745, %v5773
      %5775 = vmatmul.f32.gmra.mxu0 %v5603
      %v5776 = vpop.f32.mrf.mxu0
      %v5777 = vadd.f32 %v5748, %v5776
      %5778 = vmatmul.f32.gmra.mxu0 %v5606
      %v5779 = vpop.f32.mrf.mxu0
      %v5780 = vadd.f32 %v5751, %v5779
      %5781 = vdwg.mxu0
      %v5782 = vmax.f32 %v5684, 0.0
      %v5783 = vmax.f32 %v5771, 0.0
      %v5784 = vmax.f32 %v5687, 0.0
      %v5785 = vmax.f32 %v5774, 0.0
      %v5786 = vmax.f32 %v5690, 0.0
      %v5787 = vmax.f32 %v5777, 0.0
      %v5788 = vmax.f32 %v5693, 0.0
      %v5789 = vmax.f32 %v5780, 0.0
      %5790 = vrot.lane.b32.xlu0 %v5782, 17
      %v5791 = vpop.permute.xlu0 %5790
      %5792 = vrot.lane.b32.xlu0 %v5784, 17
      %v5793 = vpop.permute.xlu0 %5792
      %5794 = vrot.lane.b32.xlu0 %v5786, 17
      %v5795 = vpop.permute.xlu0 %5794
      %5796 = vrot.lane.b32.xlu0 %v5788, 17
      %v5797 = vpop.permute.xlu0 %5796
      %5798 = vrot.lane.b32.xlu0 %v5783, 17
      %v5799 = vpop.permute.xlu0 %5798
      %5800 = vrot.lane.b32.xlu0 %v5785, 17
      %v5801 = vpop.permute.xlu0 %5800
      %5802 = vrot.lane.b32.xlu0 %v5787, 17
      %v5803 = vpop.permute.xlu0 %5802
      %5804 = vrot.lane.b32.xlu0 %v5789, 17
      %v5805 = vpop.permute.xlu0 %5804
      %v5806 = vsel %vm224, %v5791, %v5799
      %v5807 = vsel %vm224, %v5793, %v5801
      %v5808 = vsel %vm224, %v5795, %v5803
      %v5809 = vsel %vm224, %v5797, %v5805
      %v5810 = vsel %vm224, %v5799, %v5791
      %v5811 = vsel %vm224, %v5801, %v5793
      %v5812 = vsel %vm224, %v5803, %v5795
      %v5813 = vsel %vm224, %v5805, %v5797
      %v5814 = vld [vmem:[%s3] sm:$0xff]
      %v5815 = vld [vmem:[%s3 + $0x8] sm:$0xff]
      %v5816 = vld [vmem:[%s3 + $0x10] sm:$0xff]
      %v5817 = vld [vmem:[%s3 + $0x18] sm:$0xff]
      %v5818 = vld [vmem:[%s3 + $0x20] sm:$0xff]
      %v5819 = vld [vmem:[%s3 + $0x28] sm:$0xff]
      %v5820 = vld [vmem:[%s3 + $0x30] sm:$0xff]
      %v5821 = vld [vmem:[%s3 + $0x38] sm:$0xff]
      %v5822 = vmul.f32 %v5810, %v5814
      %v5823 = vmul.f32 %v5806, %v5815
      %v5824 = vmul.f32 %v5811, %v5816
      %v5825 = vmul.f32 %v5807, %v5817
      %v5826 = vmul.f32 %v5812, %v5818
      %v5827 = vmul.f32 %v5808, %v5819
      %v5828 = vmul.f32 %v5813, %v5820
      %v5829 = vmul.f32 %v5809, %v5821
      %5830 = vst [vmem:[#allocation2] sm:$0xff] %v5822
      %5831 = vst [vmem:[#allocation2 + $0x8] sm:$0xff] %v5823
      %5832 = vst [vmem:[#allocation2 + $0x10] sm:$0xff] %v5824
      %5833 = vst [vmem:[#allocation2 + $0x18] sm:$0xff] %v5825
      %5834 = vst [vmem:[#allocation2 + $0x20] sm:$0xff] %v5826
      %5835 = vst [vmem:[#allocation2 + $0x28] sm:$0xff] %v5827
      %5836 = vst [vmem:[#allocation2 + $0x30] sm:$0xff] %v5828
      %5837 = vst [vmem:[#allocation2 + $0x38] sm:$0xff] %v5829
      %5838 = vrot.lane.b32.xlu0 %v5782, 16
      %v5839 = vpop.permute.xlu0 %5838
      %5840 = vrot.lane.b32.xlu0 %v5784, 16
      %v5841 = vpop.permute.xlu0 %5840
      %5842 = vrot.lane.b32.xlu0 %v5786, 16
      %v5843 = vpop.permute.xlu0 %5842
      %5844 = vrot.lane.b32.xlu0 %v5788, 16
      %v5845 = vpop.permute.xlu0 %5844
      %5846 = vrot.lane.b32.xlu0 %v5783, 16
      %v5847 = vpop.permute.xlu0 %5846
      %5848 = vrot.lane.b32.xlu0 %v5785, 16
      %v5849 = vpop.permute.xlu0 %5848
      %5850 = vrot.lane.b32.xlu0 %v5787, 16
      %v5851 = vpop.permute.xlu0 %5850
      %5852 = vrot.lane.b32.xlu0 %v5789, 16
      %v5853 = vpop.permute.xlu0 %5852
      %v5854 = vsel %vm273, %v5839, %v5847
      %v5855 = vsel %vm273, %v5841, %v5849
      %v5856 = vsel %vm273, %v5843, %v5851
      %v5857 = vsel %vm273, %v5845, %v5853
      %v5858 = vsel %vm273, %v5847, %v5839
      %v5859 = vsel %vm273, %v5849, %v5841
      %v5860 = vsel %vm273, %v5851, %v5843
      %v5861 = vsel %vm273, %v5853, %v5845
      %v5862 = vld [vmem:[%s282] sm:$0xff]
      %v5863 = vld [vmem:[%s282 + $0x8] sm:$0xff]
      %v5864 = vld [vmem:[%s282 + $0x10] sm:$0xff]
      %v5865 = vld [vmem:[%s282 + $0x18] sm:$0xff]
      %v5866 = vld [vmem:[%s282 + $0x20] sm:$0xff]
      %v5867 = vld [vmem:[%s282 + $0x28] sm:$0xff]
      %v5868 = vld [vmem:[%s282 + $0x30] sm:$0xff]
      %v5869 = vld [vmem:[%s282 + $0x38] sm:$0xff]
      %v5870 = vmul.f32 %v5858, %v5862
      %v5871 = vmul.f32 %v5854, %v5863
      %v5872 = vmul.f32 %v5859, %v5864
      %v5873 = vmul.f32 %v5855, %v5865
      %v5874 = vmul.f32 %v5860, %v5866
      %v5875 = vmul.f32 %v5856, %v5867
      %v5876 = vmul.f32 %v5861, %v5868
      %v5877 = vmul.f32 %v5857, %v5869
      %5878 = vst [vmem:[#allocation2 + $0x40] sm:$0xff] %v5870
      %5879 = vst [vmem:[#allocation2 + $0x48] sm:$0xff] %v5871
      %5880 = vst [vmem:[#allocation2 + $0x50] sm:$0xff] %v5872
      %5881 = vst [vmem:[#allocation2 + $0x58] sm:$0xff] %v5873
      %5882 = vst [vmem:[#allocation2 + $0x60] sm:$0xff] %v5874
      %5883 = vst [vmem:[#allocation2 + $0x68] sm:$0xff] %v5875
      %5884 = vst [vmem:[#allocation2 + $0x70] sm:$0xff] %v5876
      %5885 = vst [vmem:[#allocation2 + $0x78] sm:$0xff] %v5877
      %5886 = vrot.lane.b32.xlu0 %v5782, 15
      %v5887 = vpop.permute.xlu0 %5886
      %5888 = vrot.lane.b32.xlu0 %v5784, 15
      %v5889 = vpop.permute.xlu0 %5888
      %5890 = vrot.lane.b32.xlu0 %v5786, 15
      %v5891 = vpop.permute.xlu0 %5890
      %5892 = vrot.lane.b32.xlu0 %v5788, 15
      %v5893 = vpop.permute.xlu0 %5892
      %5894 = vrot.lane.b32.xlu0 %v5783, 15
      %v5895 = vpop.permute.xlu0 %5894
      %5896 = vrot.lane.b32.xlu0 %v5785, 15
      %v5897 = vpop.permute.xlu0 %5896
      %5898 = vrot.lane.b32.xlu0 %v5787, 15
      %v5899 = vpop.permute.xlu0 %5898
      %5900 = vrot.lane.b32.xlu0 %v5789, 15
      %v5901 = vpop.permute.xlu0 %5900
      %v5902 = vsel %vm323, %v5887, %v5895
      %v5903 = vsel %vm323, %v5889, %v5897
      %v5904 = vsel %vm323, %v5891, %v5899
      %v5905 = vsel %vm323, %v5893, %v5901
      %v5906 = vsel %vm323, %v5895, %v5887
      %v5907 = vsel %vm323, %v5897, %v5889
      %v5908 = vsel %vm323, %v5899, %v5891
      %v5909 = vsel %vm323, %v5901, %v5893
      %v5910 = vld [vmem:[%s332] sm:$0xff]
      %v5911 = vld [vmem:[%s332 + $0x8] sm:$0xff]
      %v5912 = vld [vmem:[%s332 + $0x10] sm:$0xff]
      %v5913 = vld [vmem:[%s332 + $0x18] sm:$0xff]
      %v5914 = vld [vmem:[%s332 + $0x20] sm:$0xff]
      %v5915 = vld [vmem:[%s332 + $0x28] sm:$0xff]
      %v5916 = vld [vmem:[%s332 + $0x30] sm:$0xff]
      %v5917 = vld [vmem:[%s332 + $0x38] sm:$0xff]
      %v5918 = vmul.f32 %v5906, %v5910
      %v5919 = vmul.f32 %v5902, %v5911
      %v5920 = vmul.f32 %v5907, %v5912
      %v5921 = vmul.f32 %v5903, %v5913
      %v5922 = vmul.f32 %v5908, %v5914
      %v5923 = vmul.f32 %v5904, %v5915
      %v5924 = vmul.f32 %v5909, %v5916
      %v5925 = vmul.f32 %v5905, %v5917
      %5926 = vst [vmem:[#allocation2 + $0x80] sm:$0xff] %v5918
      %5927 = vst [vmem:[#allocation2 + $0x88] sm:$0xff] %v5919
      %5928 = vst [vmem:[#allocation2 + $0x90] sm:$0xff] %v5920
      %5929 = vst [vmem:[#allocation2 + $0x98] sm:$0xff] %v5921
      %5930 = vst [vmem:[#allocation2 + $0xa0] sm:$0xff] %v5922
      %5931 = vst [vmem:[#allocation2 + $0xa8] sm:$0xff] %v5923
      %5932 = vst [vmem:[#allocation2 + $0xb0] sm:$0xff] %v5924
      %5933 = vst [vmem:[#allocation2 + $0xb8] sm:$0xff] %v5925
      %5934 = vrot.lane.b32.xlu0 %v5782, 1
      %v5935 = vpop.permute.xlu0 %5934
      %5936 = vrot.lane.b32.xlu0 %v5784, 1
      %v5937 = vpop.permute.xlu0 %5936
      %5938 = vrot.lane.b32.xlu0 %v5786, 1
      %v5939 = vpop.permute.xlu0 %5938
      %5940 = vrot.lane.b32.xlu0 %v5788, 1
      %v5941 = vpop.permute.xlu0 %5940
      %5942 = vrot.lane.b32.xlu0 %v5783, 1
      %v5943 = vpop.permute.xlu0 %5942
      %5944 = vrot.lane.b32.xlu0 %v5785, 1
      %v5945 = vpop.permute.xlu0 %5944
      %5946 = vrot.lane.b32.xlu0 %v5787, 1
      %v5947 = vpop.permute.xlu0 %5946
      %5948 = vrot.lane.b32.xlu0 %v5789, 1
      %v5949 = vpop.permute.xlu0 %5948
      %v5950 = vsel %vm373, %v5935, %v5943
      %v5951 = vsel %vm373, %v5937, %v5945
      %v5952 = vsel %vm373, %v5939, %v5947
      %v5953 = vsel %vm373, %v5941, %v5949
      %v5954 = vsel %vm373, %v5943, %v5935
      %v5955 = vsel %vm373, %v5945, %v5937
      %v5956 = vsel %vm373, %v5947, %v5939
      %v5957 = vsel %vm373, %v5949, %v5941
      %v5958 = vld [vmem:[%s382] sm:$0xff]
      %v5959 = vld [vmem:[%s382 + $0x8] sm:$0xff]
      %v5960 = vld [vmem:[%s382 + $0x10] sm:$0xff]
      %v5961 = vld [vmem:[%s382 + $0x18] sm:$0xff]
      %v5962 = vld [vmem:[%s382 + $0x20] sm:$0xff]
      %v5963 = vld [vmem:[%s382 + $0x28] sm:$0xff]
      %v5964 = vld [vmem:[%s382 + $0x30] sm:$0xff]
      %v5965 = vld [vmem:[%s382 + $0x38] sm:$0xff]
      %v5966 = vmul.f32 %v5954, %v5958
      %v5967 = vmul.f32 %v5950, %v5959
      %v5968 = vmul.f32 %v5955, %v5960
      %v5969 = vmul.f32 %v5951, %v5961
      %v5970 = vmul.f32 %v5956, %v5962
      %v5971 = vmul.f32 %v5952, %v5963
      %v5972 = vmul.f32 %v5957, %v5964
      %v5973 = vmul.f32 %v5953, %v5965
      %5974 = vst [vmem:[#allocation2 + $0xc0] sm:$0xff] %v5966
      %5975 = vst [vmem:[#allocation2 + $0xc8] sm:$0xff] %v5967
      %5976 = vst [vmem:[#allocation2 + $0xd0] sm:$0xff] %v5968
      %5977 = vst [vmem:[#allocation2 + $0xd8] sm:$0xff] %v5969
      %5978 = vst [vmem:[#allocation2 + $0xe0] sm:$0xff] %v5970
      %5979 = vst [vmem:[#allocation2 + $0xe8] sm:$0xff] %v5971
      %5980 = vst [vmem:[#allocation2 + $0xf0] sm:$0xff] %v5972
      %5981 = vst [vmem:[#allocation2 + $0xf8] sm:$0xff] %v5973
      %5982 = vst [vmem:[#allocation2 + $0x100] sm:$0xff] %v5782
      %5983 = vst [vmem:[#allocation2 + $0x108] sm:$0xff] %v5783
      %5984 = vst [vmem:[#allocation2 + $0x110] sm:$0xff] %v5784
      %5985 = vst [vmem:[#allocation2 + $0x118] sm:$0xff] %v5785
      %5986 = vst [vmem:[#allocation2 + $0x120] sm:$0xff] %v5786
      %5987 = vst [vmem:[#allocation2 + $0x128] sm:$0xff] %v5787
      %5988 = vst [vmem:[#allocation2 + $0x130] sm:$0xff] %v5788
      %5989 = vst [vmem:[#allocation2 + $0x138] sm:$0xff] %v5789
      %5990 = vrot.lane.b32.xlu0 %v5782, 127
      %v5991 = vpop.permute.xlu0 %5990
      %5992 = vrot.lane.b32.xlu0 %v5784, 127
      %v5993 = vpop.permute.xlu0 %5992
      %5994 = vrot.lane.b32.xlu0 %v5786, 127
      %v5995 = vpop.permute.xlu0 %5994
      %5996 = vrot.lane.b32.xlu0 %v5788, 127
      %v5997 = vpop.permute.xlu0 %5996
      %5998 = vrot.lane.b32.xlu0 %v5783, 127
      %v5999 = vpop.permute.xlu0 %5998
      %6000 = vrot.lane.b32.xlu0 %v5785, 127
      %v6001 = vpop.permute.xlu0 %6000
      %6002 = vrot.lane.b32.xlu0 %v5787, 127
      %v6003 = vpop.permute.xlu0 %6002
      %6004 = vrot.lane.b32.xlu0 %v5789, 127
      %v6005 = vpop.permute.xlu0 %6004
      %v6006 = vsel %vm431, %v5991, %v5999
      %v6007 = vsel %vm431, %v5993, %v6001
      %v6008 = vsel %vm431, %v5995, %v6003
      %v6009 = vsel %vm431, %v5997, %v6005
      %v6010 = vsel %vm431, %v5999, %v5991
      %v6011 = vsel %vm431, %v6001, %v5993
      %v6012 = vsel %vm431, %v6003, %v5995
      %v6013 = vsel %vm431, %v6005, %v5997
      %v6014 = vld [vmem:[%s440] sm:$0xff]
      %v6015 = vld [vmem:[%s440 + $0x8] sm:$0xff]
      %v6016 = vld [vmem:[%s440 + $0x10] sm:$0xff]
      %v6017 = vld [vmem:[%s440 + $0x18] sm:$0xff]
      %v6018 = vld [vmem:[%s440 + $0x20] sm:$0xff]
      %v6019 = vld [vmem:[%s440 + $0x28] sm:$0xff]
      %v6020 = vld [vmem:[%s440 + $0x30] sm:$0xff]
      %v6021 = vld [vmem:[%s440 + $0x38] sm:$0xff]
      %v6022 = vmul.f32 %v6006, %v6014
      %v6023 = vmul.f32 %v6010, %v6015
      %v6024 = vmul.f32 %v6007, %v6016
      %v6025 = vmul.f32 %v6011, %v6017
      %v6026 = vmul.f32 %v6008, %v6018
      %v6027 = vmul.f32 %v6012, %v6019
      %v6028 = vmul.f32 %v6009, %v6020
      %v6029 = vmul.f32 %v6013, %v6021
      %6030 = vst [vmem:[#allocation2 + $0x140] sm:$0xff] %v6022
      %6031 = vst [vmem:[#allocation2 + $0x148] sm:$0xff] %v6023
      %6032 = vst [vmem:[#allocation2 + $0x150] sm:$0xff] %v6024
      %6033 = vst [vmem:[#allocation2 + $0x158] sm:$0xff] %v6025
      %6034 = vst [vmem:[#allocation2 + $0x160] sm:$0xff] %v6026
      %6035 = vst [vmem:[#allocation2 + $0x168] sm:$0xff] %v6027
      %6036 = vst [vmem:[#allocation2 + $0x170] sm:$0xff] %v6028
      %6037 = vst [vmem:[#allocation2 + $0x178] sm:$0xff] %v6029
      %6038 = vrot.lane.b32.xlu0 %v5782, 113
      %v6039 = vpop.permute.xlu0 %6038
      %6040 = vrot.lane.b32.xlu0 %v5784, 113
      %v6041 = vpop.permute.xlu0 %6040
      %6042 = vrot.lane.b32.xlu0 %v5786, 113
      %v6043 = vpop.permute.xlu0 %6042
      %6044 = vrot.lane.b32.xlu0 %v5788, 113
      %v6045 = vpop.permute.xlu0 %6044
      %6046 = vrot.lane.b32.xlu0 %v5783, 113
      %v6047 = vpop.permute.xlu0 %6046
      %6048 = vrot.lane.b32.xlu0 %v5785, 113
      %v6049 = vpop.permute.xlu0 %6048
      %6050 = vrot.lane.b32.xlu0 %v5787, 113
      %v6051 = vpop.permute.xlu0 %6050
      %6052 = vrot.lane.b32.xlu0 %v5789, 113
      %v6053 = vpop.permute.xlu0 %6052
      %v6054 = vsel %vm481, %v6039, %v6047
      %v6055 = vsel %vm481, %v6041, %v6049
      %v6056 = vsel %vm481, %v6043, %v6051
      %v6057 = vsel %vm481, %v6045, %v6053
      %v6058 = vsel %vm481, %v6047, %v6039
      %v6059 = vsel %vm481, %v6049, %v6041
      %v6060 = vsel %vm481, %v6051, %v6043
      %v6061 = vsel %vm481, %v6053, %v6045
      %v6062 = vld [vmem:[%s490] sm:$0xff]
      %v6063 = vld [vmem:[%s490 + $0x8] sm:$0xff]
      %v6064 = vld [vmem:[%s490 + $0x10] sm:$0xff]
      %v6065 = vld [vmem:[%s490 + $0x18] sm:$0xff]
      %v6066 = vld [vmem:[%s490 + $0x20] sm:$0xff]
      %v6067 = vld [vmem:[%s490 + $0x28] sm:$0xff]
      %v6068 = vld [vmem:[%s490 + $0x30] sm:$0xff]
      %v6069 = vld [vmem:[%s490 + $0x38] sm:$0xff]
      %v6070 = vmul.f32 %v6054, %v6062
      %v6071 = vmul.f32 %v6058, %v6063
      %v6072 = vmul.f32 %v6055, %v6064
      %v6073 = vmul.f32 %v6059, %v6065
      %v6074 = vmul.f32 %v6056, %v6066
      %v6075 = vmul.f32 %v6060, %v6067
      %v6076 = vmul.f32 %v6057, %v6068
      %v6077 = vmul.f32 %v6061, %v6069
      %6078 = vst [vmem:[#allocation2 + $0x180] sm:$0xff] %v6070
      %6079 = vst [vmem:[#allocation2 + $0x188] sm:$0xff] %v6071
      %6080 = vst [vmem:[#allocation2 + $0x190] sm:$0xff] %v6072
      %6081 = vst [vmem:[#allocation2 + $0x198] sm:$0xff] %v6073
      %6082 = vst [vmem:[#allocation2 + $0x1a0] sm:$0xff] %v6074
      %6083 = vst [vmem:[#allocation2 + $0x1a8] sm:$0xff] %v6075
      %6084 = vst [vmem:[#allocation2 + $0x1b0] sm:$0xff] %v6076
      %6085 = vst [vmem:[#allocation2 + $0x1b8] sm:$0xff] %v6077
      %6086 = vrot.lane.b32.xlu0 %v5782, 112
      %v6087 = vpop.permute.xlu0 %6086
      %6088 = vrot.lane.b32.xlu0 %v5784, 112
      %v6089 = vpop.permute.xlu0 %6088
      %6090 = vrot.lane.b32.xlu0 %v5786, 112
      %v6091 = vpop.permute.xlu0 %6090
      %6092 = vrot.lane.b32.xlu0 %v5788, 112
      %v6093 = vpop.permute.xlu0 %6092
      %6094 = vrot.lane.b32.xlu0 %v5783, 112
      %v6095 = vpop.permute.xlu0 %6094
      %6096 = vrot.lane.b32.xlu0 %v5785, 112
      %v6097 = vpop.permute.xlu0 %6096
      %6098 = vrot.lane.b32.xlu0 %v5787, 112
      %v6099 = vpop.permute.xlu0 %6098
      %6100 = vrot.lane.b32.xlu0 %v5789, 112
      %v6101 = vpop.permute.xlu0 %6100
      %v6102 = vsel %vm531, %v6087, %v6095
      %v6103 = vsel %vm531, %v6089, %v6097
      %v6104 = vsel %vm531, %v6091, %v6099
      %v6105 = vsel %vm531, %v6093, %v6101
      %v6106 = vsel %vm531, %v6095, %v6087
      %v6107 = vsel %vm531, %v6097, %v6089
      %v6108 = vsel %vm531, %v6099, %v6091
      %v6109 = vsel %vm531, %v6101, %v6093
      %v6110 = vld [vmem:[%s540] sm:$0xff]
      %v6111 = vld [vmem:[%s540 + $0x8] sm:$0xff]
      %v6112 = vld [vmem:[%s540 + $0x10] sm:$0xff]
      %v6113 = vld [vmem:[%s540 + $0x18] sm:$0xff]
      %v6114 = vld [vmem:[%s540 + $0x20] sm:$0xff]
      %v6115 = vld [vmem:[%s540 + $0x28] sm:$0xff]
      %v6116 = vld [vmem:[%s540 + $0x30] sm:$0xff]
      %v6117 = vld [vmem:[%s540 + $0x38] sm:$0xff]
      %v6118 = vmul.f32 %v6102, %v6110
      %v6119 = vmul.f32 %v6106, %v6111
      %v6120 = vmul.f32 %v6103, %v6112
      %v6121 = vmul.f32 %v6107, %v6113
      %v6122 = vmul.f32 %v6104, %v6114
      %v6123 = vmul.f32 %v6108, %v6115
      %v6124 = vmul.f32 %v6105, %v6116
      %v6125 = vmul.f32 %v6109, %v6117
      %6126 = vst [vmem:[#allocation2 + $0x1c0] sm:$0xff] %v6118
      %6127 = vst [vmem:[#allocation2 + $0x1c8] sm:$0xff] %v6119
      %6128 = vst [vmem:[#allocation2 + $0x1d0] sm:$0xff] %v6120
      %6129 = vst [vmem:[#allocation2 + $0x1d8] sm:$0xff] %v6121
      %6130 = vst [vmem:[#allocation2 + $0x1e0] sm:$0xff] %v6122
      %6131 = vst [vmem:[#allocation2 + $0x1e8] sm:$0xff] %v6123
      %6132 = vst [vmem:[#allocation2 + $0x1f0] sm:$0xff] %v6124
      %6133 = vst [vmem:[#allocation2 + $0x1f8] sm:$0xff] %v6125
      %6134 = vrot.lane.b32.xlu0 %v5782, 111
      %v6135 = vpop.permute.xlu0 %6134
      %6136 = vrot.lane.b32.xlu0 %v5784, 111
      %v6137 = vpop.permute.xlu0 %6136
      %6138 = vrot.lane.b32.xlu0 %v5786, 111
      %v6139 = vpop.permute.xlu0 %6138
      %6140 = vrot.lane.b32.xlu0 %v5788, 111
      %v6141 = vpop.permute.xlu0 %6140
      %6142 = vrot.lane.b32.xlu0 %v5783, 111
      %v6143 = vpop.permute.xlu0 %6142
      %6144 = vrot.lane.b32.xlu0 %v5785, 111
      %v6145 = vpop.permute.xlu0 %6144
      %6146 = vrot.lane.b32.xlu0 %v5787, 111
      %v6147 = vpop.permute.xlu0 %6146
      %6148 = vrot.lane.b32.xlu0 %v5789, 111
      %v6149 = vpop.permute.xlu0 %6148
      %v6150 = vsel %vm581, %v6135, %v6143
      %v6151 = vsel %vm581, %v6137, %v6145
      %v6152 = vsel %vm581, %v6139, %v6147
      %v6153 = vsel %vm581, %v6141, %v6149
      %v6154 = vsel %vm581, %v6143, %v6135
      %v6155 = vsel %vm581, %v6145, %v6137
      %v6156 = vsel %vm581, %v6147, %v6139
      %v6157 = vsel %vm581, %v6149, %v6141
      %v6158 = vld [vmem:[%s590] sm:$0xff]
      %v6159 = vld [vmem:[%s590 + $0x8] sm:$0xff]
      %v6160 = vld [vmem:[%s590 + $0x10] sm:$0xff]
      %v6161 = vld [vmem:[%s590 + $0x18] sm:$0xff]
      %v6162 = vld [vmem:[%s590 + $0x20] sm:$0xff]
      %v6163 = vld [vmem:[%s590 + $0x28] sm:$0xff]
      %v6164 = vld [vmem:[%s590 + $0x30] sm:$0xff]
      %v6165 = vld [vmem:[%s590 + $0x38] sm:$0xff]
      %v6166 = vmul.f32 %v6150, %v6158
      %v6167 = vmul.f32 %v6154, %v6159
      %v6168 = vmul.f32 %v6151, %v6160
      %v6169 = vmul.f32 %v6155, %v6161
      %v6170 = vmul.f32 %v6152, %v6162
      %v6171 = vmul.f32 %v6156, %v6163
      %v6172 = vmul.f32 %v6153, %v6164
      %v6173 = vmul.f32 %v6157, %v6165
      %6174 = vst [vmem:[#allocation2 + $0x200] sm:$0xff] %v6166
      %6175 = vst [vmem:[#allocation2 + $0x208] sm:$0xff] %v6167
      %6176 = vst [vmem:[#allocation2 + $0x210] sm:$0xff] %v6168
      %6177 = vst [vmem:[#allocation2 + $0x218] sm:$0xff] %v6169
      %6178 = vst [vmem:[#allocation2 + $0x220] sm:$0xff] %v6170
      %6179 = vst [vmem:[#allocation2 + $0x228] sm:$0xff] %v6171
      %6180 = vst [vmem:[#allocation2 + $0x230] sm:$0xff] %v6172
      %6181 = vst [vmem:[#allocation2 + $0x238] sm:$0xff] %v6173
      %s6182 = scalar_lea.vmem %s1, 768
      %v6183 = vld [vmem:[%s6182] sm:$0xff]
      %v6184 = vld [vmem:[%s6182 + $0x8] sm:$0xff]
      %v6185 = vld [vmem:[%s6182 + $0x10] sm:$0xff]
      %v6186 = vld [vmem:[%s6182 + $0x18] sm:$0xff]
      %v6187 = vld [vmem:[%s6182 + $0x20] sm:$0xff]
      %v6188 = vld [vmem:[%s6182 + $0x28] sm:$0xff]
      %v6189 = vld [vmem:[%s6182 + $0x30] sm:$0xff]
      %v6190 = vld [vmem:[%s6182 + $0x38] sm:$0xff]
      %v6191 = vld [vmem:[%s6182 + $0x40] sm:$0xff]
      %v6192 = vld [vmem:[%s6182 + $0x48] sm:$0xff]
      %v6193 = vld [vmem:[%s6182 + $0x50] sm:$0xff]
      %v6194 = vld [vmem:[%s6182 + $0x58] sm:$0xff]
      %v6195 = vld [vmem:[#allocation2] sm:$0xff]
      %v6196 = vld [vmem:[#allocation2 + $0x8] sm:$0xff]
      %v6197 = vld [vmem:[#allocation2 + $0x10] sm:$0xff]
      %v6198 = vld [vmem:[#allocation2 + $0x18] sm:$0xff]
      %v6199 = vld [vmem:[#allocation2 + $0x20] sm:$0xff]
      %v6200 = vld [vmem:[#allocation2 + $0x28] sm:$0xff]
      %v6201 = vld [vmem:[#allocation2 + $0x30] sm:$0xff]
      %v6202 = vld [vmem:[#allocation2 + $0x38] sm:$0xff]
      %v6203 = vld [vmem:[#allocation2 + $0x40] sm:$0xff]
      %v6204 = vld [vmem:[#allocation2 + $0x48] sm:$0xff]
      %v6205 = vld [vmem:[#allocation2 + $0x50] sm:$0xff]
      %v6206 = vld [vmem:[#allocation2 + $0x58] sm:$0xff]
      %v6207 = vld [vmem:[#allocation2 + $0x60] sm:$0xff]
      %v6208 = vld [vmem:[#allocation2 + $0x68] sm:$0xff]
      %v6209 = vld [vmem:[#allocation2 + $0x70] sm:$0xff]
      %v6210 = vld [vmem:[#allocation2 + $0x78] sm:$0xff]
      %v6211 = vld [vmem:[#allocation2 + $0x80] sm:$0xff]
      %v6212 = vld [vmem:[#allocation2 + $0x88] sm:$0xff]
      %v6213 = vld [vmem:[#allocation2 + $0x90] sm:$0xff]
      %v6214 = vld [vmem:[#allocation2 + $0x98] sm:$0xff]
      %v6215 = vld [vmem:[#allocation2 + $0xa0] sm:$0xff]
      %v6216 = vld [vmem:[#allocation2 + $0xa8] sm:$0xff]
      %v6217 = vld [vmem:[#allocation2 + $0xb0] sm:$0xff]
      %v6218 = vld [vmem:[#allocation2 + $0xb8] sm:$0xff]
      %v6219 = vld [vmem:[#allocation2 + $0xc0] sm:$0xff]
      %v6220 = vld [vmem:[#allocation2 + $0xc8] sm:$0xff]
      %v6221 = vld [vmem:[#allocation2 + $0xd0] sm:$0xff]
      %v6222 = vld [vmem:[#allocation2 + $0xd8] sm:$0xff]
      %v6223 = vld [vmem:[#allocation2 + $0xe0] sm:$0xff]
      %v6224 = vld [vmem:[#allocation2 + $0xe8] sm:$0xff]
      %v6225 = vld [vmem:[#allocation2 + $0xf0] sm:$0xff]
      %v6226 = vld [vmem:[#allocation2 + $0xf8] sm:$0xff]
      %v6227 = vld [vmem:[#allocation2 + $0x100] sm:$0xff]
      %v6228 = vld [vmem:[#allocation2 + $0x108] sm:$0xff]
      %v6229 = vld [vmem:[#allocation2 + $0x110] sm:$0xff]
      %v6230 = vld [vmem:[#allocation2 + $0x118] sm:$0xff]
      %v6231 = vld [vmem:[#allocation2 + $0x120] sm:$0xff]
      %v6232 = vld [vmem:[#allocation2 + $0x128] sm:$0xff]
      %v6233 = vld [vmem:[#allocation2 + $0x130] sm:$0xff]
      %v6234 = vld [vmem:[#allocation2 + $0x138] sm:$0xff]
      %v6235 = vld [vmem:[#allocation2 + $0x140] sm:$0xff]
      %v6236 = vld [vmem:[#allocation2 + $0x148] sm:$0xff]
      %v6237 = vld [vmem:[#allocation2 + $0x150] sm:$0xff]
      %v6238 = vld [vmem:[#allocation2 + $0x158] sm:$0xff]
      %v6239 = vld [vmem:[#allocation2 + $0x160] sm:$0xff]
      %v6240 = vld [vmem:[#allocation2 + $0x168] sm:$0xff]
      %v6241 = vld [vmem:[#allocation2 + $0x170] sm:$0xff]
      %v6242 = vld [vmem:[#allocation2 + $0x178] sm:$0xff]
      %v6243 = vld [vmem:[#allocation2 + $0x180] sm:$0xff]
      %v6244 = vld [vmem:[#allocation2 + $0x188] sm:$0xff]
      %v6245 = vld [vmem:[#allocation2 + $0x190] sm:$0xff]
      %v6246 = vld [vmem:[#allocation2 + $0x198] sm:$0xff]
      %v6247 = vld [vmem:[#allocation2 + $0x1a0] sm:$0xff]
      %v6248 = vld [vmem:[#allocation2 + $0x1a8] sm:$0xff]
      %v6249 = vld [vmem:[#allocation2 + $0x1b0] sm:$0xff]
      %v6250 = vld [vmem:[#allocation2 + $0x1b8] sm:$0xff]
      %v6251 = vld [vmem:[#allocation2 + $0x1c0] sm:$0xff]
      %v6252 = vld [vmem:[#allocation2 + $0x1c8] sm:$0xff]
      %v6253 = vld [vmem:[#allocation2 + $0x1d0] sm:$0xff]
      %v6254 = vld [vmem:[#allocation2 + $0x1d8] sm:$0xff]
      %v6255 = vld [vmem:[#allocation2 + $0x1e0] sm:$0xff]
      %v6256 = vld [vmem:[#allocation2 + $0x1e8] sm:$0xff]
      %v6257 = vld [vmem:[#allocation2 + $0x1f0] sm:$0xff]
      %v6258 = vld [vmem:[#allocation2 + $0x1f8] sm:$0xff]
      %v6259 = vld [vmem:[#allocation2 + $0x200] sm:$0xff]
      %v6260 = vld [vmem:[#allocation2 + $0x208] sm:$0xff]
      %v6261 = vld [vmem:[#allocation2 + $0x210] sm:$0xff]
      %v6262 = vld [vmem:[#allocation2 + $0x218] sm:$0xff]
      %v6263 = vld [vmem:[#allocation2 + $0x220] sm:$0xff]
      %v6264 = vld [vmem:[#allocation2 + $0x228] sm:$0xff]
      %v6265 = vld [vmem:[#allocation2 + $0x230] sm:$0xff]
      %v6266 = vld [vmem:[#allocation2 + $0x238] sm:$0xff]
      %s6267 = scalar_lea.vmem %s2, 256
      %v6268 = vld [vmem:[%s6267] sm:$0xff]
      %v6269 = vld [vmem:[%s6267 + $0x8] sm:$0xff]
      %v6270 = vld [vmem:[%s6267 + $0x10] sm:$0xff]
      %v6271 = vld [vmem:[%s6267 + $0x18] sm:$0xff]
      %6273 = vset.pattern.permute.xlu0 0
      %6274 = vperm.xlu0 %6273, %v6268
      %v6275 = vpop.permute.xlu0 %6274
      %6278 = vset.pattern.permute.xlu0 0
      %6279 = vperm.xlu0 %6278, %v6269
      %v6280 = vpop.permute.xlu0 %6279
      %6283 = vset.pattern.permute.xlu0 0
      %6284 = vperm.xlu0 %6283, %v6270
      %v6285 = vpop.permute.xlu0 %6284
      %6288 = vset.pattern.permute.xlu0 0
      %6289 = vperm.xlu0 %6288, %v6271
      %v6290 = vpop.permute.xlu0 %6289
      %v6293 = vsel %vm723, %v6185, 0
      %v6296 = vsel %vm723, %v6188, 0
      %v6299 = vsel %vm723, %v6191, 0
      %v6302 = vsel %vm723, %v6194, 0
      %6304 = vmatpush.msra.mxu0 %v6225
      %6305 = vmatpush.msra.mxu0 %v6223
      %6306 = vmatpush.msra.mxu0 %v6221
      %6307 = vmatpush.msra.mxu0 %v6219
      %6308 = vmatpush.msra.mxu0 %v6217
      %6309 = vmatpush.msra.mxu0 %v6215
      %6310 = vmatpush.msra.mxu0 %v6213
      %6311 = vmatpush.msra.mxu0 %v6211
      %6312 = vmatpush.msra.mxu0 %v6209
      %6313 = vmatpush.msra.mxu0 %v6207
      %6314 = vmatpush.msra.mxu0 %v6205
      %6315 = vmatpush.msra.mxu0 %v6203
      %6316 = vmatpush.msra.mxu0 %v6201
      %6317 = vmatpush.msra.mxu0 %v6199
      %6318 = vmatpush.msra.mxu0 %v6197
      %6319 = vmatpush.msra.mxu0 %v6195
      %6320 = vmatmul.f32.gmra.mxu0 %v6183
      %v6321 = vpop.f32.mrf.mxu0
      %v6322 = vadd.f32 %v6275, %v6321
      %6323 = vmatmul.f32.gmra.mxu0 %v6186
      %v6324 = vpop.f32.mrf.mxu0
      %v6325 = vadd.f32 %v6280, %v6324
      %6326 = vmatmul.f32.gmra.mxu0 %v6189
      %v6327 = vpop.f32.mrf.mxu0
      %v6328 = vadd.f32 %v6285, %v6327
      %6329 = vmatmul.f32.gmra.mxu0 %v6192
      %v6330 = vpop.f32.mrf.mxu0
      %v6331 = vadd.f32 %v6290, %v6330
      %6332 = vdwg.mxu0
      %6333 = vmatpush.msra.mxu0 %v6257
      %6334 = vmatpush.msra.mxu0 %v6255
      %6335 = vmatpush.msra.mxu0 %v6253
      %6336 = vmatpush.msra.mxu0 %v6251
      %6337 = vmatpush.msra.mxu0 %v6249
      %6338 = vmatpush.msra.mxu0 %v6247
      %6339 = vmatpush.msra.mxu0 %v6245
      %6340 = vmatpush.msra.mxu0 %v6243
      %6341 = vmatpush.msra.mxu0 %v6241
      %6342 = vmatpush.msra.mxu0 %v6239
      %6343 = vmatpush.msra.mxu0 %v6237
      %6344 = vmatpush.msra.mxu0 %v6235
      %6345 = vmatpush.msra.mxu0 %v6233
      %6346 = vmatpush.msra.mxu0 %v6231
      %6347 = vmatpush.msra.mxu0 %v6229
      %6348 = vmatpush.msra.mxu0 %v6227
      %6349 = vmatmul.f32.gmra.mxu0 %v6184
      %v6350 = vpop.f32.mrf.mxu0
      %v6351 = vadd.f32 %v6322, %v6350
      %6352 = vmatmul.f32.gmra.mxu0 %v6187
      %v6353 = vpop.f32.mrf.mxu0
      %v6354 = vadd.f32 %v6325, %v6353
      %6355 = vmatmul.f32.gmra.mxu0 %v6190
      %v6356 = vpop.f32.mrf.mxu0
      %v6357 = vadd.f32 %v6328, %v6356
      %6358 = vmatmul.f32.gmra.mxu0 %v6193
      %v6359 = vpop.f32.mrf.mxu0
      %v6360 = vadd.f32 %v6331, %v6359
      %6361 = vdwg.mxu0
      %6362 = vmatpush.msra.mxu0 0.0
      %6363 = vmatpush.msra.mxu0 0.0
      %6364 = vmatpush.msra.mxu0 0.0
      %6365 = vmatpush.msra.mxu0 0.0
      %6366 = vmatpush.msra.mxu0 0.0
      %6367 = vmatpush.msra.mxu0 0.0
      %6368 = vmatpush.msra.mxu0 0.0
      %6369 = vmatpush.msra.mxu0 0.0
      %6370 = vmatpush.msra.mxu0 0.0
      %6371 = vmatpush.msra.mxu0 0.0
      %6372 = vmatpush.msra.mxu0 0.0
      %6373 = vmatpush.msra.mxu0 0.0
      %6374 = vmatpush.msra.mxu0 %v6265
      %6375 = vmatpush.msra.mxu0 %v6263
      %6376 = vmatpush.msra.mxu0 %v6261
      %6377 = vmatpush.msra.mxu0 %v6259
      %6378 = vmatmul.f32.gmra.mxu0 %v6293
      %v6379 = vpop.f32.mrf.mxu0
      %v6380 = vadd.f32 %v6351, %v6379
      %6381 = vmatmul.f32.gmra.mxu0 %v6296
      %v6382 = vpop.f32.mrf.mxu0
      %v6383 = vadd.f32 %v6354, %v6382
      %6384 = vmatmul.f32.gmra.mxu0 %v6299
      %v6385 = vpop.f32.mrf.mxu0
      %v6386 = vadd.f32 %v6357, %v6385
      %6387 = vmatmul.f32.gmra.mxu0 %v6302
      %v6388 = vpop.f32.mrf.mxu0
      %v6389 = vadd.f32 %v6360, %v6388
      %6390 = vdwg.mxu0
      %6391 = vmatpush.msra.mxu0 %v6226
      %6392 = vmatpush.msra.mxu0 %v6224
      %6393 = vmatpush.msra.mxu0 %v6222
      %6394 = vmatpush.msra.mxu0 %v6220
      %6395 = vmatpush.msra.mxu0 %v6218
      %6396 = vmatpush.msra.mxu0 %v6216
      %6397 = vmatpush.msra.mxu0 %v6214
      %6398 = vmatpush.msra.mxu0 %v6212
      %6399 = vmatpush.msra.mxu0 %v6210
      %6400 = vmatpush.msra.mxu0 %v6208
      %6401 = vmatpush.msra.mxu0 %v6206
      %6402 = vmatpush.msra.mxu0 %v6204
      %6403 = vmatpush.msra.mxu0 %v6202
      %6404 = vmatpush.msra.mxu0 %v6200
      %6405 = vmatpush.msra.mxu0 %v6198
      %6406 = vmatpush.msra.mxu0 %v6196
      %6407 = vmatmul.f32.gmra.mxu0 %v6183
      %v6408 = vpop.f32.mrf.mxu0
      %v6409 = vadd.f32 %v6275, %v6408
      %6410 = vmatmul.f32.gmra.mxu0 %v6186
      %v6411 = vpop.f32.mrf.mxu0
      %v6412 = vadd.f32 %v6280, %v6411
      %6413 = vmatmul.f32.gmra.mxu0 %v6189
      %v6414 = vpop.f32.mrf.mxu0
      %v6415 = vadd.f32 %v6285, %v6414
      %6416 = vmatmul.f32.gmra.mxu0 %v6192
      %v6417 = vpop.f32.mrf.mxu0
      %v6418 = vadd.f32 %v6290, %v6417
      %6419 = vdwg.mxu0
      %6420 = vmatpush.msra.mxu0 %v6258
      %6421 = vmatpush.msra.mxu0 %v6256
      %6422 = vmatpush.msra.mxu0 %v6254
      %6423 = vmatpush.msra.mxu0 %v6252
      %6424 = vmatpush.msra.mxu0 %v6250
      %6425 = vmatpush.msra.mxu0 %v6248
      %6426 = vmatpush.msra.mxu0 %v6246
      %6427 = vmatpush.msra.mxu0 %v6244
      %6428 = vmatpush.msra.mxu0 %v6242
      %6429 = vmatpush.msra.mxu0 %v6240
      %6430 = vmatpush.msra.mxu0 %v6238
      %6431 = vmatpush.msra.mxu0 %v6236
      %6432 = vmatpush.msra.mxu0 %v6234
      %6433 = vmatpush.msra.mxu0 %v6232
      %6434 = vmatpush.msra.mxu0 %v6230
      %6435 = vmatpush.msra.mxu0 %v6228
      %6436 = vmatmul.f32.gmra.mxu0 %v6184
      %v6437 = vpop.f32.mrf.mxu0
      %v6438 = vadd.f32 %v6409, %v6437
      %6439 = vmatmul.f32.gmra.mxu0 %v6187
      %v6440 = vpop.f32.mrf.mxu0
      %v6441 = vadd.f32 %v6412, %v6440
      %6442 = vmatmul.f32.gmra.mxu0 %v6190
      %v6443 = vpop.f32.mrf.mxu0
      %v6444 = vadd.f32 %v6415, %v6443
      %6445 = vmatmul.f32.gmra.mxu0 %v6193
      %v6446 = vpop.f32.mrf.mxu0
      %v6447 = vadd.f32 %v6418, %v6446
      %6448 = vdwg.mxu0
      %6449 = vmatpush.msra.mxu0 0.0
      %6450 = vmatpush.msra.mxu0 0.0
      %6451 = vmatpush.msra.mxu0 0.0
      %6452 = vmatpush.msra.mxu0 0.0
      %6453 = vmatpush.msra.mxu0 0.0
      %6454 = vmatpush.msra.mxu0 0.0
      %6455 = vmatpush.msra.mxu0 0.0
      %6456 = vmatpush.msra.mxu0 0.0
      %6457 = vmatpush.msra.mxu0 0.0
      %6458 = vmatpush.msra.mxu0 0.0
      %6459 = vmatpush.msra.mxu0 0.0
      %6460 = vmatpush.msra.mxu0 0.0
      %6461 = vmatpush.msra.mxu0 %v6266
      %6462 = vmatpush.msra.mxu0 %v6264
      %6463 = vmatpush.msra.mxu0 %v6262
      %6464 = vmatpush.msra.mxu0 %v6260
      %6465 = vmatmul.f32.gmra.mxu0 %v6293
      %v6466 = vpop.f32.mrf.mxu0
      %v6467 = vadd.f32 %v6438, %v6466
      %6468 = vmatmul.f32.gmra.mxu0 %v6296
      %v6469 = vpop.f32.mrf.mxu0
      %v6470 = vadd.f32 %v6441, %v6469
      %6471 = vmatmul.f32.gmra.mxu0 %v6299
      %v6472 = vpop.f32.mrf.mxu0
      %v6473 = vadd.f32 %v6444, %v6472
      %6474 = vmatmul.f32.gmra.mxu0 %v6302
      %v6475 = vpop.f32.mrf.mxu0
      %v6476 = vadd.f32 %v6447, %v6475
      %6477 = vdwg.mxu0
      %6478 = vrot.lane.b32.xlu0 %v6380, 17
      %v6479 = vpop.permute.xlu0 %6478
      %6480 = vrot.lane.b32.xlu0 %v6383, 17
      %v6481 = vpop.permute.xlu0 %6480
      %6482 = vrot.lane.b32.xlu0 %v6386, 17
      %v6483 = vpop.permute.xlu0 %6482
      %6484 = vrot.lane.b32.xlu0 %v6389, 17
      %v6485 = vpop.permute.xlu0 %6484
      %6486 = vrot.lane.b32.xlu0 %v6467, 17
      %v6487 = vpop.permute.xlu0 %6486
      %6488 = vrot.lane.b32.xlu0 %v6470, 17
      %v6489 = vpop.permute.xlu0 %6488
      %6490 = vrot.lane.b32.xlu0 %v6473, 17
      %v6491 = vpop.permute.xlu0 %6490
      %6492 = vrot.lane.b32.xlu0 %v6476, 17
      %v6493 = vpop.permute.xlu0 %6492
      %v6494 = vsel %vm224, %v6479, %v6487
      %v6495 = vsel %vm224, %v6481, %v6489
      %v6496 = vsel %vm224, %v6483, %v6491
      %v6497 = vsel %vm224, %v6485, %v6493
      %v6498 = vsel %vm224, %v6487, %v6479
      %v6499 = vsel %vm224, %v6489, %v6481
      %v6500 = vsel %vm224, %v6491, %v6483
      %v6501 = vsel %vm224, %v6493, %v6485
      %v6502 = vld [vmem:[%s3] sm:$0xff]
      %v6503 = vld [vmem:[%s3 + $0x8] sm:$0xff]
      %v6504 = vld [vmem:[%s3 + $0x10] sm:$0xff]
      %v6505 = vld [vmem:[%s3 + $0x18] sm:$0xff]
      %v6506 = vld [vmem:[%s3 + $0x20] sm:$0xff]
      %v6507 = vld [vmem:[%s3 + $0x28] sm:$0xff]
      %v6508 = vld [vmem:[%s3 + $0x30] sm:$0xff]
      %v6509 = vld [vmem:[%s3 + $0x38] sm:$0xff]
      %v6510 = vmul.f32 %v6498, %v6502
      %v6511 = vmul.f32 %v6494, %v6503
      %v6512 = vmul.f32 %v6499, %v6504
      %v6513 = vmul.f32 %v6495, %v6505
      %v6514 = vmul.f32 %v6500, %v6506
      %v6515 = vmul.f32 %v6496, %v6507
      %v6516 = vmul.f32 %v6501, %v6508
      %v6517 = vmul.f32 %v6497, %v6509
      %6518 = vst [vmem:[#allocation2] sm:$0xff] %v6510
      %6519 = vst [vmem:[#allocation2 + $0x8] sm:$0xff] %v6511
      %6520 = vst [vmem:[#allocation2 + $0x10] sm:$0xff] %v6512
      %6521 = vst [vmem:[#allocation2 + $0x18] sm:$0xff] %v6513
      %6522 = vst [vmem:[#allocation2 + $0x20] sm:$0xff] %v6514
      %6523 = vst [vmem:[#allocation2 + $0x28] sm:$0xff] %v6515
      %6524 = vst [vmem:[#allocation2 + $0x30] sm:$0xff] %v6516
      %6525 = vst [vmem:[#allocation2 + $0x38] sm:$0xff] %v6517
      %6526 = vrot.lane.b32.xlu0 %v6380, 16
      %v6527 = vpop.permute.xlu0 %6526
      %6528 = vrot.lane.b32.xlu0 %v6383, 16
      %v6529 = vpop.permute.xlu0 %6528
      %6530 = vrot.lane.b32.xlu0 %v6386, 16
      %v6531 = vpop.permute.xlu0 %6530
      %6532 = vrot.lane.b32.xlu0 %v6389, 16
      %v6533 = vpop.permute.xlu0 %6532
      %6534 = vrot.lane.b32.xlu0 %v6467, 16
      %v6535 = vpop.permute.xlu0 %6534
      %6536 = vrot.lane.b32.xlu0 %v6470, 16
      %v6537 = vpop.permute.xlu0 %6536
      %6538 = vrot.lane.b32.xlu0 %v6473, 16
      %v6539 = vpop.permute.xlu0 %6538
      %6540 = vrot.lane.b32.xlu0 %v6476, 16
      %v6541 = vpop.permute.xlu0 %6540
      %v6542 = vsel %vm273, %v6527, %v6535
      %v6543 = vsel %vm273, %v6529, %v6537
      %v6544 = vsel %vm273, %v6531, %v6539
      %v6545 = vsel %vm273, %v6533, %v6541
      %v6546 = vsel %vm273, %v6535, %v6527
      %v6547 = vsel %vm273, %v6537, %v6529
      %v6548 = vsel %vm273, %v6539, %v6531
      %v6549 = vsel %vm273, %v6541, %v6533
      %v6550 = vld [vmem:[%s282] sm:$0xff]
      %v6551 = vld [vmem:[%s282 + $0x8] sm:$0xff]
      %v6552 = vld [vmem:[%s282 + $0x10] sm:$0xff]
      %v6553 = vld [vmem:[%s282 + $0x18] sm:$0xff]
      %v6554 = vld [vmem:[%s282 + $0x20] sm:$0xff]
      %v6555 = vld [vmem:[%s282 + $0x28] sm:$0xff]
      %v6556 = vld [vmem:[%s282 + $0x30] sm:$0xff]
      %v6557 = vld [vmem:[%s282 + $0x38] sm:$0xff]
      %v6558 = vmul.f32 %v6546, %v6550
      %v6559 = vmul.f32 %v6542, %v6551
      %v6560 = vmul.f32 %v6547, %v6552
      %v6561 = vmul.f32 %v6543, %v6553
      %v6562 = vmul.f32 %v6548, %v6554
      %v6563 = vmul.f32 %v6544, %v6555
      %v6564 = vmul.f32 %v6549, %v6556
      %v6565 = vmul.f32 %v6545, %v6557
      %6566 = vst [vmem:[#allocation2 + $0x40] sm:$0xff] %v6558
      %6567 = vst [vmem:[#allocation2 + $0x48] sm:$0xff] %v6559
      %6568 = vst [vmem:[#allocation2 + $0x50] sm:$0xff] %v6560
      %6569 = vst [vmem:[#allocation2 + $0x58] sm:$0xff] %v6561
      %6570 = vst [vmem:[#allocation2 + $0x60] sm:$0xff] %v6562
      %6571 = vst [vmem:[#allocation2 + $0x68] sm:$0xff] %v6563
      %6572 = vst [vmem:[#allocation2 + $0x70] sm:$0xff] %v6564
      %6573 = vst [vmem:[#allocation2 + $0x78] sm:$0xff] %v6565
      %6574 = vrot.lane.b32.xlu0 %v6380, 15
      %v6575 = vpop.permute.xlu0 %6574
      %6576 = vrot.lane.b32.xlu0 %v6383, 15
      %v6577 = vpop.permute.xlu0 %6576
      %6578 = vrot.lane.b32.xlu0 %v6386, 15
      %v6579 = vpop.permute.xlu0 %6578
      %6580 = vrot.lane.b32.xlu0 %v6389, 15
      %v6581 = vpop.permute.xlu0 %6580
      %6582 = vrot.lane.b32.xlu0 %v6467, 15
      %v6583 = vpop.permute.xlu0 %6582
      %6584 = vrot.lane.b32.xlu0 %v6470, 15
      %v6585 = vpop.permute.xlu0 %6584
      %6586 = vrot.lane.b32.xlu0 %v6473, 15
      %v6587 = vpop.permute.xlu0 %6586
      %6588 = vrot.lane.b32.xlu0 %v6476, 15
      %v6589 = vpop.permute.xlu0 %6588
      %v6590 = vsel %vm323, %v6575, %v6583
      %v6591 = vsel %vm323, %v6577, %v6585
      %v6592 = vsel %vm323, %v6579, %v6587
      %v6593 = vsel %vm323, %v6581, %v6589
      %v6594 = vsel %vm323, %v6583, %v6575
      %v6595 = vsel %vm323, %v6585, %v6577
      %v6596 = vsel %vm323, %v6587, %v6579
      %v6597 = vsel %vm323, %v6589, %v6581
      %v6598 = vld [vmem:[%s332] sm:$0xff]
      %v6599 = vld [vmem:[%s332 + $0x8] sm:$0xff]
      %v6600 = vld [vmem:[%s332 + $0x10] sm:$0xff]
      %v6601 = vld [vmem:[%s332 + $0x18] sm:$0xff]
      %v6602 = vld [vmem:[%s332 + $0x20] sm:$0xff]
      %v6603 = vld [vmem:[%s332 + $0x28] sm:$0xff]
      %v6604 = vld [vmem:[%s332 + $0x30] sm:$0xff]
      %v6605 = vld [vmem:[%s332 + $0x38] sm:$0xff]
      %v6606 = vmul.f32 %v6594, %v6598
      %v6607 = vmul.f32 %v6590, %v6599
      %v6608 = vmul.f32 %v6595, %v6600
      %v6609 = vmul.f32 %v6591, %v6601
      %v6610 = vmul.f32 %v6596, %v6602
      %v6611 = vmul.f32 %v6592, %v6603
      %v6612 = vmul.f32 %v6597, %v6604
      %v6613 = vmul.f32 %v6593, %v6605
      %6614 = vst [vmem:[#allocation2 + $0x80] sm:$0xff] %v6606
      %6615 = vst [vmem:[#allocation2 + $0x88] sm:$0xff] %v6607
      %6616 = vst [vmem:[#allocation2 + $0x90] sm:$0xff] %v6608
      %6617 = vst [vmem:[#allocation2 + $0x98] sm:$0xff] %v6609
      %6618 = vst [vmem:[#allocation2 + $0xa0] sm:$0xff] %v6610
      %6619 = vst [vmem:[#allocation2 + $0xa8] sm:$0xff] %v6611
      %6620 = vst [vmem:[#allocation2 + $0xb0] sm:$0xff] %v6612
      %6621 = vst [vmem:[#allocation2 + $0xb8] sm:$0xff] %v6613
      %6622 = vrot.lane.b32.xlu0 %v6380, 1
      %v6623 = vpop.permute.xlu0 %6622
      %6624 = vrot.lane.b32.xlu0 %v6383, 1
      %v6625 = vpop.permute.xlu0 %6624
      %6626 = vrot.lane.b32.xlu0 %v6386, 1
      %v6627 = vpop.permute.xlu0 %6626
      %6628 = vrot.lane.b32.xlu0 %v6389, 1
      %v6629 = vpop.permute.xlu0 %6628
      %6630 = vrot.lane.b32.xlu0 %v6467, 1
      %v6631 = vpop.permute.xlu0 %6630
      %6632 = vrot.lane.b32.xlu0 %v6470, 1
      %v6633 = vpop.permute.xlu0 %6632
      %6634 = vrot.lane.b32.xlu0 %v6473, 1
      %v6635 = vpop.permute.xlu0 %6634
      %6636 = vrot.lane.b32.xlu0 %v6476, 1
      %v6637 = vpop.permute.xlu0 %6636
      %v6638 = vsel %vm373, %v6623, %v6631
      %v6639 = vsel %vm373, %v6625, %v6633
      %v6640 = vsel %vm373, %v6627, %v6635
      %v6641 = vsel %vm373, %v6629, %v6637
      %v6642 = vsel %vm373, %v6631, %v6623
      %v6643 = vsel %vm373, %v6633, %v6625
      %v6644 = vsel %vm373, %v6635, %v6627
      %v6645 = vsel %vm373, %v6637, %v6629
      %v6646 = vld [vmem:[%s382] sm:$0xff]
      %v6647 = vld [vmem:[%s382 + $0x8] sm:$0xff]
      %v6648 = vld [vmem:[%s382 + $0x10] sm:$0xff]
      %v6649 = vld [vmem:[%s382 + $0x18] sm:$0xff]
      %v6650 = vld [vmem:[%s382 + $0x20] sm:$0xff]
      %v6651 = vld [vmem:[%s382 + $0x28] sm:$0xff]
      %v6652 = vld [vmem:[%s382 + $0x30] sm:$0xff]
      %v6653 = vld [vmem:[%s382 + $0x38] sm:$0xff]
      %v6654 = vmul.f32 %v6642, %v6646
      %v6655 = vmul.f32 %v6638, %v6647
      %v6656 = vmul.f32 %v6643, %v6648
      %v6657 = vmul.f32 %v6639, %v6649
      %v6658 = vmul.f32 %v6644, %v6650
      %v6659 = vmul.f32 %v6640, %v6651
      %v6660 = vmul.f32 %v6645, %v6652
      %v6661 = vmul.f32 %v6641, %v6653
      %6662 = vst [vmem:[#allocation2 + $0xc0] sm:$0xff] %v6654
      %6663 = vst [vmem:[#allocation2 + $0xc8] sm:$0xff] %v6655
      %6664 = vst [vmem:[#allocation2 + $0xd0] sm:$0xff] %v6656
      %6665 = vst [vmem:[#allocation2 + $0xd8] sm:$0xff] %v6657
      %6666 = vst [vmem:[#allocation2 + $0xe0] sm:$0xff] %v6658
      %6667 = vst [vmem:[#allocation2 + $0xe8] sm:$0xff] %v6659
      %6668 = vst [vmem:[#allocation2 + $0xf0] sm:$0xff] %v6660
      %6669 = vst [vmem:[#allocation2 + $0xf8] sm:$0xff] %v6661
      %6670 = vst [vmem:[#allocation2 + $0x100] sm:$0xff] %v6380
      %6671 = vst [vmem:[#allocation2 + $0x108] sm:$0xff] %v6467
      %6672 = vst [vmem:[#allocation2 + $0x110] sm:$0xff] %v6383
      %6673 = vst [vmem:[#allocation2 + $0x118] sm:$0xff] %v6470
      %6674 = vst [vmem:[#allocation2 + $0x120] sm:$0xff] %v6386
      %6675 = vst [vmem:[#allocation2 + $0x128] sm:$0xff] %v6473
      %6676 = vst [vmem:[#allocation2 + $0x130] sm:$0xff] %v6389
      %6677 = vst [vmem:[#allocation2 + $0x138] sm:$0xff] %v6476
      %6678 = vrot.lane.b32.xlu0 %v6380, 127
      %v6679 = vpop.permute.xlu0 %6678
      %6680 = vrot.lane.b32.xlu0 %v6383, 127
      %v6681 = vpop.permute.xlu0 %6680
      %6682 = vrot.lane.b32.xlu0 %v6386, 127
      %v6683 = vpop.permute.xlu0 %6682
      %6684 = vrot.lane.b32.xlu0 %v6389, 127
      %v6685 = vpop.permute.xlu0 %6684
      %6686 = vrot.lane.b32.xlu0 %v6467, 127
      %v6687 = vpop.permute.xlu0 %6686
      %6688 = vrot.lane.b32.xlu0 %v6470, 127
      %v6689 = vpop.permute.xlu0 %6688
      %6690 = vrot.lane.b32.xlu0 %v6473, 127
      %v6691 = vpop.permute.xlu0 %6690
      %6692 = vrot.lane.b32.xlu0 %v6476, 127
      %v6693 = vpop.permute.xlu0 %6692
      %v6694 = vsel %vm431, %v6679, %v6687
      %v6695 = vsel %vm431, %v6681, %v6689
      %v6696 = vsel %vm431, %v6683, %v6691
      %v6697 = vsel %vm431, %v6685, %v6693
      %v6698 = vsel %vm431, %v6687, %v6679
      %v6699 = vsel %vm431, %v6689, %v6681
      %v6700 = vsel %vm431, %v6691, %v6683
      %v6701 = vsel %vm431, %v6693, %v6685
      %v6702 = vld [vmem:[%s440] sm:$0xff]
      %v6703 = vld [vmem:[%s440 + $0x8] sm:$0xff]
      %v6704 = vld [vmem:[%s440 + $0x10] sm:$0xff]
      %v6705 = vld [vmem:[%s440 + $0x18] sm:$0xff]
      %v6706 = vld [vmem:[%s440 + $0x20] sm:$0xff]
      %v6707 = vld [vmem:[%s440 + $0x28] sm:$0xff]
      %v6708 = vld [vmem:[%s440 + $0x30] sm:$0xff]
      %v6709 = vld [vmem:[%s440 + $0x38] sm:$0xff]
      %v6710 = vmul.f32 %v6694, %v6702
      %v6711 = vmul.f32 %v6698, %v6703
      %v6712 = vmul.f32 %v6695, %v6704
      %v6713 = vmul.f32 %v6699, %v6705
      %v6714 = vmul.f32 %v6696, %v6706
      %v6715 = vmul.f32 %v6700, %v6707
      %v6716 = vmul.f32 %v6697, %v6708
      %v6717 = vmul.f32 %v6701, %v6709
      %6718 = vst [vmem:[#allocation2 + $0x140] sm:$0xff] %v6710
      %6719 = vst [vmem:[#allocation2 + $0x148] sm:$0xff] %v6711
      %6720 = vst [vmem:[#allocation2 + $0x150] sm:$0xff] %v6712
      %6721 = vst [vmem:[#allocation2 + $0x158] sm:$0xff] %v6713
      %6722 = vst [vmem:[#allocation2 + $0x160] sm:$0xff] %v6714
      %6723 = vst [vmem:[#allocation2 + $0x168] sm:$0xff] %v6715
      %6724 = vst [vmem:[#allocation2 + $0x170] sm:$0xff] %v6716
      %6725 = vst [vmem:[#allocation2 + $0x178] sm:$0xff] %v6717
      %6726 = vrot.lane.b32.xlu0 %v6380, 113
      %v6727 = vpop.permute.xlu0 %6726
      %6728 = vrot.lane.b32.xlu0 %v6383, 113
      %v6729 = vpop.permute.xlu0 %6728
      %6730 = vrot.lane.b32.xlu0 %v6386, 113
      %v6731 = vpop.permute.xlu0 %6730
      %6732 = vrot.lane.b32.xlu0 %v6389, 113
      %v6733 = vpop.permute.xlu0 %6732
      %6734 = vrot.lane.b32.xlu0 %v6467, 113
      %v6735 = vpop.permute.xlu0 %6734
      %6736 = vrot.lane.b32.xlu0 %v6470, 113
      %v6737 = vpop.permute.xlu0 %6736
      %6738 = vrot.lane.b32.xlu0 %v6473, 113
      %v6739 = vpop.permute.xlu0 %6738
      %6740 = vrot.lane.b32.xlu0 %v6476, 113
      %v6741 = vpop.permute.xlu0 %6740
      %v6742 = vsel %vm481, %v6727, %v6735
      %v6743 = vsel %vm481, %v6729, %v6737
      %v6744 = vsel %vm481, %v6731, %v6739
      %v6745 = vsel %vm481, %v6733, %v6741
      %v6746 = vsel %vm481, %v6735, %v6727
      %v6747 = vsel %vm481, %v6737, %v6729
      %v6748 = vsel %vm481, %v6739, %v6731
      %v6749 = vsel %vm481, %v6741, %v6733
      %v6750 = vld [vmem:[%s490] sm:$0xff]
      %v6751 = vld [vmem:[%s490 + $0x8] sm:$0xff]
      %v6752 = vld [vmem:[%s490 + $0x10] sm:$0xff]
      %v6753 = vld [vmem:[%s490 + $0x18] sm:$0xff]
      %v6754 = vld [vmem:[%s490 + $0x20] sm:$0xff]
      %v6755 = vld [vmem:[%s490 + $0x28] sm:$0xff]
      %v6756 = vld [vmem:[%s490 + $0x30] sm:$0xff]
      %v6757 = vld [vmem:[%s490 + $0x38] sm:$0xff]
      %v6758 = vmul.f32 %v6742, %v6750
      %v6759 = vmul.f32 %v6746, %v6751
      %v6760 = vmul.f32 %v6743, %v6752
      %v6761 = vmul.f32 %v6747, %v6753
      %v6762 = vmul.f32 %v6744, %v6754
      %v6763 = vmul.f32 %v6748, %v6755
      %v6764 = vmul.f32 %v6745, %v6756
      %v6765 = vmul.f32 %v6749, %v6757
      %6766 = vst [vmem:[#allocation2 + $0x180] sm:$0xff] %v6758
      %6767 = vst [vmem:[#allocation2 + $0x188] sm:$0xff] %v6759
      %6768 = vst [vmem:[#allocation2 + $0x190] sm:$0xff] %v6760
      %6769 = vst [vmem:[#allocation2 + $0x198] sm:$0xff] %v6761
      %6770 = vst [vmem:[#allocation2 + $0x1a0] sm:$0xff] %v6762
      %6771 = vst [vmem:[#allocation2 + $0x1a8] sm:$0xff] %v6763
      %6772 = vst [vmem:[#allocation2 + $0x1b0] sm:$0xff] %v6764
      %6773 = vst [vmem:[#allocation2 + $0x1b8] sm:$0xff] %v6765
      %6774 = vrot.lane.b32.xlu0 %v6380, 112
      %v6775 = vpop.permute.xlu0 %6774
      %6776 = vrot.lane.b32.xlu0 %v6383, 112
      %v6777 = vpop.permute.xlu0 %6776
      %6778 = vrot.lane.b32.xlu0 %v6386, 112
      %v6779 = vpop.permute.xlu0 %6778
      %6780 = vrot.lane.b32.xlu0 %v6389, 112
      %v6781 = vpop.permute.xlu0 %6780
      %6782 = vrot.lane.b32.xlu0 %v6467, 112
      %v6783 = vpop.permute.xlu0 %6782
      %6784 = vrot.lane.b32.xlu0 %v6470, 112
      %v6785 = vpop.permute.xlu0 %6784
      %6786 = vrot.lane.b32.xlu0 %v6473, 112
      %v6787 = vpop.permute.xlu0 %6786
      %6788 = vrot.lane.b32.xlu0 %v6476, 112
      %v6789 = vpop.permute.xlu0 %6788
      %v6790 = vsel %vm531, %v6775, %v6783
      %v6791 = vsel %vm531, %v6777, %v6785
      %v6792 = vsel %vm531, %v6779, %v6787
      %v6793 = vsel %vm531, %v6781, %v6789
      %v6794 = vsel %vm531, %v6783, %v6775
      %v6795 = vsel %vm531, %v6785, %v6777
      %v6796 = vsel %vm531, %v6787, %v6779
      %v6797 = vsel %vm531, %v6789, %v6781
      %v6798 = vld [vmem:[%s540] sm:$0xff]
      %v6799 = vld [vmem:[%s540 + $0x8] sm:$0xff]
      %v6800 = vld [vmem:[%s540 + $0x10] sm:$0xff]
      %v6801 = vld [vmem:[%s540 + $0x18] sm:$0xff]
      %v6802 = vld [vmem:[%s540 + $0x20] sm:$0xff]
      %v6803 = vld [vmem:[%s540 + $0x28] sm:$0xff]
      %v6804 = vld [vmem:[%s540 + $0x30] sm:$0xff]
      %v6805 = vld [vmem:[%s540 + $0x38] sm:$0xff]
      %v6806 = vmul.f32 %v6790, %v6798
      %v6807 = vmul.f32 %v6794, %v6799
      %v6808 = vmul.f32 %v6791, %v6800
      %v6809 = vmul.f32 %v6795, %v6801
      %v6810 = vmul.f32 %v6792, %v6802
      %v6811 = vmul.f32 %v6796, %v6803
      %v6812 = vmul.f32 %v6793, %v6804
      %v6813 = vmul.f32 %v6797, %v6805
      %6814 = vst [vmem:[#allocation2 + $0x1c0] sm:$0xff] %v6806
      %6815 = vst [vmem:[#allocation2 + $0x1c8] sm:$0xff] %v6807
      %6816 = vst [vmem:[#allocation2 + $0x1d0] sm:$0xff] %v6808
      %6817 = vst [vmem:[#allocation2 + $0x1d8] sm:$0xff] %v6809
      %6818 = vst [vmem:[#allocation2 + $0x1e0] sm:$0xff] %v6810
      %6819 = vst [vmem:[#allocation2 + $0x1e8] sm:$0xff] %v6811
      %6820 = vst [vmem:[#allocation2 + $0x1f0] sm:$0xff] %v6812
      %6821 = vst [vmem:[#allocation2 + $0x1f8] sm:$0xff] %v6813
      %6822 = vrot.lane.b32.xlu0 %v6380, 111
      %v6823 = vpop.permute.xlu0 %6822
      %6824 = vrot.lane.b32.xlu0 %v6383, 111
      %v6825 = vpop.permute.xlu0 %6824
      %6826 = vrot.lane.b32.xlu0 %v6386, 111
      %v6827 = vpop.permute.xlu0 %6826
      %6828 = vrot.lane.b32.xlu0 %v6389, 111
      %v6829 = vpop.permute.xlu0 %6828
      %6830 = vrot.lane.b32.xlu0 %v6467, 111
      %v6831 = vpop.permute.xlu0 %6830
      %6832 = vrot.lane.b32.xlu0 %v6470, 111
      %v6833 = vpop.permute.xlu0 %6832
      %6834 = vrot.lane.b32.xlu0 %v6473, 111
      %v6835 = vpop.permute.xlu0 %6834
      %6836 = vrot.lane.b32.xlu0 %v6476, 111
      %v6837 = vpop.permute.xlu0 %6836
      %v6838 = vsel %vm581, %v6823, %v6831
      %v6839 = vsel %vm581, %v6825, %v6833
      %v6840 = vsel %vm581, %v6827, %v6835
      %v6841 = vsel %vm581, %v6829, %v6837
      %v6842 = vsel %vm581, %v6831, %v6823
      %v6843 = vsel %vm581, %v6833, %v6825
      %v6844 = vsel %vm581, %v6835, %v6827
      %v6845 = vsel %vm581, %v6837, %v6829
      %v6846 = vld [vmem:[%s590] sm:$0xff]
      %v6847 = vld [vmem:[%s590 + $0x8] sm:$0xff]
      %v6848 = vld [vmem:[%s590 + $0x10] sm:$0xff]
      %v6849 = vld [vmem:[%s590 + $0x18] sm:$0xff]
      %v6850 = vld [vmem:[%s590 + $0x20] sm:$0xff]
      %v6851 = vld [vmem:[%s590 + $0x28] sm:$0xff]
      %v6852 = vld [vmem:[%s590 + $0x30] sm:$0xff]
      %v6853 = vld [vmem:[%s590 + $0x38] sm:$0xff]
      %v6854 = vmul.f32 %v6838, %v6846
      %v6855 = vmul.f32 %v6842, %v6847
      %v6856 = vmul.f32 %v6839, %v6848
      %v6857 = vmul.f32 %v6843, %v6849
      %v6858 = vmul.f32 %v6840, %v6850
      %v6859 = vmul.f32 %v6844, %v6851
      %v6860 = vmul.f32 %v6841, %v6852
      %v6861 = vmul.f32 %v6845, %v6853
      %6862 = vst [vmem:[#allocation2 + $0x200] sm:$0xff] %v6854
      %6863 = vst [vmem:[#allocation2 + $0x208] sm:$0xff] %v6855
      %6864 = vst [vmem:[#allocation2 + $0x210] sm:$0xff] %v6856
      %6865 = vst [vmem:[#allocation2 + $0x218] sm:$0xff] %v6857
      %6866 = vst [vmem:[#allocation2 + $0x220] sm:$0xff] %v6858
      %6867 = vst [vmem:[#allocation2 + $0x228] sm:$0xff] %v6859
      %6868 = vst [vmem:[#allocation2 + $0x230] sm:$0xff] %v6860
      %6869 = vst [vmem:[#allocation2 + $0x238] sm:$0xff] %v6861
      %s6870 = scalar_lea.vmem %s1, 864
      %v6871 = vld [vmem:[%s6870] sm:$0xff]
      %v6872 = vld [vmem:[%s6870 + $0x8] sm:$0xff]
      %v6873 = vld [vmem:[%s6870 + $0x10] sm:$0xff]
      %v6874 = vld [vmem:[%s6870 + $0x18] sm:$0xff]
      %v6875 = vld [vmem:[%s6870 + $0x20] sm:$0xff]
      %v6876 = vld [vmem:[%s6870 + $0x28] sm:$0xff]
      %v6877 = vld [vmem:[%s6870 + $0x30] sm:$0xff]
      %v6878 = vld [vmem:[%s6870 + $0x38] sm:$0xff]
      %v6879 = vld [vmem:[%s6870 + $0x40] sm:$0xff]
      %v6880 = vld [vmem:[%s6870 + $0x48] sm:$0xff]
      %v6881 = vld [vmem:[%s6870 + $0x50] sm:$0xff]
      %v6882 = vld [vmem:[%s6870 + $0x58] sm:$0xff]
      %v6883 = vld [vmem:[#allocation2] sm:$0xff]
      %v6884 = vld [vmem:[#allocation2 + $0x8] sm:$0xff]
      %v6885 = vld [vmem:[#allocation2 + $0x10] sm:$0xff]
      %v6886 = vld [vmem:[#allocation2 + $0x18] sm:$0xff]
      %v6887 = vld [vmem:[#allocation2 + $0x20] sm:$0xff]
      %v6888 = vld [vmem:[#allocation2 + $0x28] sm:$0xff]
      %v6889 = vld [vmem:[#allocation2 + $0x30] sm:$0xff]
      %v6890 = vld [vmem:[#allocation2 + $0x38] sm:$0xff]
      %v6891 = vld [vmem:[#allocation2 + $0x40] sm:$0xff]
      %v6892 = vld [vmem:[#allocation2 + $0x48] sm:$0xff]
      %v6893 = vld [vmem:[#allocation2 + $0x50] sm:$0xff]
      %v6894 = vld [vmem:[#allocation2 + $0x58] sm:$0xff]
      %v6895 = vld [vmem:[#allocation2 + $0x60] sm:$0xff]
      %v6896 = vld [vmem:[#allocation2 + $0x68] sm:$0xff]
      %v6897 = vld [vmem:[#allocation2 + $0x70] sm:$0xff]
      %v6898 = vld [vmem:[#allocation2 + $0x78] sm:$0xff]
      %v6899 = vld [vmem:[#allocation2 + $0x80] sm:$0xff]
      %v6900 = vld [vmem:[#allocation2 + $0x88] sm:$0xff]
      %v6901 = vld [vmem:[#allocation2 + $0x90] sm:$0xff]
      %v6902 = vld [vmem:[#allocation2 + $0x98] sm:$0xff]
      %v6903 = vld [vmem:[#allocation2 + $0xa0] sm:$0xff]
      %v6904 = vld [vmem:[#allocation2 + $0xa8] sm:$0xff]
      %v6905 = vld [vmem:[#allocation2 + $0xb0] sm:$0xff]
      %v6906 = vld [vmem:[#allocation2 + $0xb8] sm:$0xff]
      %v6907 = vld [vmem:[#allocation2 + $0xc0] sm:$0xff]
      %v6908 = vld [vmem:[#allocation2 + $0xc8] sm:$0xff]
      %v6909 = vld [vmem:[#allocation2 + $0xd0] sm:$0xff]
      %v6910 = vld [vmem:[#allocation2 + $0xd8] sm:$0xff]
      %v6911 = vld [vmem:[#allocation2 + $0xe0] sm:$0xff]
      %v6912 = vld [vmem:[#allocation2 + $0xe8] sm:$0xff]
      %v6913 = vld [vmem:[#allocation2 + $0xf0] sm:$0xff]
      %v6914 = vld [vmem:[#allocation2 + $0xf8] sm:$0xff]
      %v6915 = vld [vmem:[#allocation2 + $0x100] sm:$0xff]
      %v6916 = vld [vmem:[#allocation2 + $0x108] sm:$0xff]
      %v6917 = vld [vmem:[#allocation2 + $0x110] sm:$0xff]
      %v6918 = vld [vmem:[#allocation2 + $0x118] sm:$0xff]
      %v6919 = vld [vmem:[#allocation2 + $0x120] sm:$0xff]
      %v6920 = vld [vmem:[#allocation2 + $0x128] sm:$0xff]
      %v6921 = vld [vmem:[#allocation2 + $0x130] sm:$0xff]
      %v6922 = vld [vmem:[#allocation2 + $0x138] sm:$0xff]
      %v6923 = vld [vmem:[#allocation2 + $0x140] sm:$0xff]
      %v6924 = vld [vmem:[#allocation2 + $0x148] sm:$0xff]
      %v6925 = vld [vmem:[#allocation2 + $0x150] sm:$0xff]
      %v6926 = vld [vmem:[#allocation2 + $0x158] sm:$0xff]
      %v6927 = vld [vmem:[#allocation2 + $0x160] sm:$0xff]
      %v6928 = vld [vmem:[#allocation2 + $0x168] sm:$0xff]
      %v6929 = vld [vmem:[#allocation2 + $0x170] sm:$0xff]
      %v6930 = vld [vmem:[#allocation2 + $0x178] sm:$0xff]
      %v6931 = vld [vmem:[#allocation2 + $0x180] sm:$0xff]
      %v6932 = vld [vmem:[#allocation2 + $0x188] sm:$0xff]
      %v6933 = vld [vmem:[#allocation2 + $0x190] sm:$0xff]
      %v6934 = vld [vmem:[#allocation2 + $0x198] sm:$0xff]
      %v6935 = vld [vmem:[#allocation2 + $0x1a0] sm:$0xff]
      %v6936 = vld [vmem:[#allocation2 + $0x1a8] sm:$0xff]
      %v6937 = vld [vmem:[#allocation2 + $0x1b0] sm:$0xff]
      %v6938 = vld [vmem:[#allocation2 + $0x1b8] sm:$0xff]
      %v6939 = vld [vmem:[#allocation2 + $0x1c0] sm:$0xff]
      %v6940 = vld [vmem:[#allocation2 + $0x1c8] sm:$0xff]
      %v6941 = vld [vmem:[#allocation2 + $0x1d0] sm:$0xff]
      %v6942 = vld [vmem:[#allocation2 + $0x1d8] sm:$0xff]
      %v6943 = vld [vmem:[#allocation2 + $0x1e0] sm:$0xff]
      %v6944 = vld [vmem:[#allocation2 + $0x1e8] sm:$0xff]
      %v6945 = vld [vmem:[#allocation2 + $0x1f0] sm:$0xff]
      %v6946 = vld [vmem:[#allocation2 + $0x1f8] sm:$0xff]
      %v6947 = vld [vmem:[#allocation2 + $0x200] sm:$0xff]
      %v6948 = vld [vmem:[#allocation2 + $0x208] sm:$0xff]
      %v6949 = vld [vmem:[#allocation2 + $0x210] sm:$0xff]
      %v6950 = vld [vmem:[#allocation2 + $0x218] sm:$0xff]
      %v6951 = vld [vmem:[#allocation2 + $0x220] sm:$0xff]
      %v6952 = vld [vmem:[#allocation2 + $0x228] sm:$0xff]
      %v6953 = vld [vmem:[#allocation2 + $0x230] sm:$0xff]
      %v6954 = vld [vmem:[#allocation2 + $0x238] sm:$0xff]
      %s6955 = scalar_lea.vmem %s2, 288
      %v6956 = vld [vmem:[%s6955] sm:$0xff]
      %v6957 = vld [vmem:[%s6955 + $0x8] sm:$0xff]
      %v6958 = vld [vmem:[%s6955 + $0x10] sm:$0xff]
      %v6959 = vld [vmem:[%s6955 + $0x18] sm:$0xff]
      %6961 = vset.pattern.permute.xlu0 0
      %6962 = vperm.xlu0 %6961, %v6956
      %v6963 = vpop.permute.xlu0 %6962
      %6966 = vset.pattern.permute.xlu0 0
      %6967 = vperm.xlu0 %6966, %v6957
      %v6968 = vpop.permute.xlu0 %6967
      %6971 = vset.pattern.permute.xlu0 0
      %6972 = vperm.xlu0 %6971, %v6958
      %v6973 = vpop.permute.xlu0 %6972
      %6976 = vset.pattern.permute.xlu0 0
      %6977 = vperm.xlu0 %6976, %v6959
      %v6978 = vpop.permute.xlu0 %6977
      %v6981 = vsel %vm723, %v6873, 0
      %v6984 = vsel %vm723, %v6876, 0
      %v6987 = vsel %vm723, %v6879, 0
      %v6990 = vsel %vm723, %v6882, 0
      %6992 = vmatpush.msra.mxu0 %v6913
      %6993 = vmatpush.msra.mxu0 %v6911
      %6994 = vmatpush.msra.mxu0 %v6909
      %6995 = vmatpush.msra.mxu0 %v6907
      %6996 = vmatpush.msra.mxu0 %v6905
      %6997 = vmatpush.msra.mxu0 %v6903
      %6998 = vmatpush.msra.mxu0 %v6901
      %6999 = vmatpush.msra.mxu0 %v6899
      %7000 = vmatpush.msra.mxu0 %v6897
      %7001 = vmatpush.msra.mxu0 %v6895
      %7002 = vmatpush.msra.mxu0 %v6893
      %7003 = vmatpush.msra.mxu0 %v6891
      %7004 = vmatpush.msra.mxu0 %v6889
      %7005 = vmatpush.msra.mxu0 %v6887
      %7006 = vmatpush.msra.mxu0 %v6885
      %7007 = vmatpush.msra.mxu0 %v6883
      %7008 = vmatmul.f32.gmra.mxu0 %v6871
      %v7009 = vpop.f32.mrf.mxu0
      %v7010 = vadd.f32 %v6963, %v7009
      %7011 = vmatmul.f32.gmra.mxu0 %v6874
      %v7012 = vpop.f32.mrf.mxu0
      %v7013 = vadd.f32 %v6968, %v7012
      %7014 = vmatmul.f32.gmra.mxu0 %v6877
      %v7015 = vpop.f32.mrf.mxu0
      %v7016 = vadd.f32 %v6973, %v7015
      %7017 = vmatmul.f32.gmra.mxu0 %v6880
      %v7018 = vpop.f32.mrf.mxu0
      %v7019 = vadd.f32 %v6978, %v7018
      %7020 = vdwg.mxu0
      %7021 = vmatpush.msra.mxu0 %v6945
      %7022 = vmatpush.msra.mxu0 %v6943
      %7023 = vmatpush.msra.mxu0 %v6941
      %7024 = vmatpush.msra.mxu0 %v6939
      %7025 = vmatpush.msra.mxu0 %v6937
      %7026 = vmatpush.msra.mxu0 %v6935
      %7027 = vmatpush.msra.mxu0 %v6933
      %7028 = vmatpush.msra.mxu0 %v6931
      %7029 = vmatpush.msra.mxu0 %v6929
      %7030 = vmatpush.msra.mxu0 %v6927
      %7031 = vmatpush.msra.mxu0 %v6925
      %7032 = vmatpush.msra.mxu0 %v6923
      %7033 = vmatpush.msra.mxu0 %v6921
      %7034 = vmatpush.msra.mxu0 %v6919
      %7035 = vmatpush.msra.mxu0 %v6917
      %7036 = vmatpush.msra.mxu0 %v6915
      %7037 = vmatmul.f32.gmra.mxu0 %v6872
      %v7038 = vpop.f32.mrf.mxu0
      %v7039 = vadd.f32 %v7010, %v7038
      %7040 = vmatmul.f32.gmra.mxu0 %v6875
      %v7041 = vpop.f32.mrf.mxu0
      %v7042 = vadd.f32 %v7013, %v7041
      %7043 = vmatmul.f32.gmra.mxu0 %v6878
      %v7044 = vpop.f32.mrf.mxu0
      %v7045 = vadd.f32 %v7016, %v7044
      %7046 = vmatmul.f32.gmra.mxu0 %v6881
      %v7047 = vpop.f32.mrf.mxu0
      %v7048 = vadd.f32 %v7019, %v7047
      %7049 = vdwg.mxu0
      %7050 = vmatpush.msra.mxu0 0.0
      %7051 = vmatpush.msra.mxu0 0.0
      %7052 = vmatpush.msra.mxu0 0.0
      %7053 = vmatpush.msra.mxu0 0.0
      %7054 = vmatpush.msra.mxu0 0.0
      %7055 = vmatpush.msra.mxu0 0.0
      %7056 = vmatpush.msra.mxu0 0.0
      %7057 = vmatpush.msra.mxu0 0.0
      %7058 = vmatpush.msra.mxu0 0.0
      %7059 = vmatpush.msra.mxu0 0.0
      %7060 = vmatpush.msra.mxu0 0.0
      %7061 = vmatpush.msra.mxu0 0.0
      %7062 = vmatpush.msra.mxu0 %v6953
      %7063 = vmatpush.msra.mxu0 %v6951
      %7064 = vmatpush.msra.mxu0 %v6949
      %7065 = vmatpush.msra.mxu0 %v6947
      %7066 = vmatmul.f32.gmra.mxu0 %v6981
      %v7067 = vpop.f32.mrf.mxu0
      %v7068 = vadd.f32 %v7039, %v7067
      %7069 = vmatmul.f32.gmra.mxu0 %v6984
      %v7070 = vpop.f32.mrf.mxu0
      %v7071 = vadd.f32 %v7042, %v7070
      %7072 = vmatmul.f32.gmra.mxu0 %v6987
      %v7073 = vpop.f32.mrf.mxu0
      %v7074 = vadd.f32 %v7045, %v7073
      %7075 = vmatmul.f32.gmra.mxu0 %v6990
      %v7076 = vpop.f32.mrf.mxu0
      %v7077 = vadd.f32 %v7048, %v7076
      %7078 = vdwg.mxu0
      %7079 = vmatpush.msra.mxu0 %v6914
      %7080 = vmatpush.msra.mxu0 %v6912
      %7081 = vmatpush.msra.mxu0 %v6910
      %7082 = vmatpush.msra.mxu0 %v6908
      %7083 = vmatpush.msra.mxu0 %v6906
      %7084 = vmatpush.msra.mxu0 %v6904
      %7085 = vmatpush.msra.mxu0 %v6902
      %7086 = vmatpush.msra.mxu0 %v6900
      %7087 = vmatpush.msra.mxu0 %v6898
      %7088 = vmatpush.msra.mxu0 %v6896
      %7089 = vmatpush.msra.mxu0 %v6894
      %7090 = vmatpush.msra.mxu0 %v6892
      %7091 = vmatpush.msra.mxu0 %v6890
      %7092 = vmatpush.msra.mxu0 %v6888
      %7093 = vmatpush.msra.mxu0 %v6886
      %7094 = vmatpush.msra.mxu0 %v6884
      %7095 = vmatmul.f32.gmra.mxu0 %v6871
      %v7096 = vpop.f32.mrf.mxu0
      %v7097 = vadd.f32 %v6963, %v7096
      %7098 = vmatmul.f32.gmra.mxu0 %v6874
      %v7099 = vpop.f32.mrf.mxu0
      %v7100 = vadd.f32 %v6968, %v7099
      %7101 = vmatmul.f32.gmra.mxu0 %v6877
      %v7102 = vpop.f32.mrf.mxu0
      %v7103 = vadd.f32 %v6973, %v7102
      %7104 = vmatmul.f32.gmra.mxu0 %v6880
      %v7105 = vpop.f32.mrf.mxu0
      %v7106 = vadd.f32 %v6978, %v7105
      %7107 = vdwg.mxu0
      %7108 = vmatpush.msra.mxu0 %v6946
      %7109 = vmatpush.msra.mxu0 %v6944
      %7110 = vmatpush.msra.mxu0 %v6942
      %7111 = vmatpush.msra.mxu0 %v6940
      %7112 = vmatpush.msra.mxu0 %v6938
      %7113 = vmatpush.msra.mxu0 %v6936
      %7114 = vmatpush.msra.mxu0 %v6934
      %7115 = vmatpush.msra.mxu0 %v6932
      %7116 = vmatpush.msra.mxu0 %v6930
      %7117 = vmatpush.msra.mxu0 %v6928
      %7118 = vmatpush.msra.mxu0 %v6926
      %7119 = vmatpush.msra.mxu0 %v6924
      %7120 = vmatpush.msra.mxu0 %v6922
      %7121 = vmatpush.msra.mxu0 %v6920
      %7122 = vmatpush.msra.mxu0 %v6918
      %7123 = vmatpush.msra.mxu0 %v6916
      %7124 = vmatmul.f32.gmra.mxu0 %v6872
      %v7125 = vpop.f32.mrf.mxu0
      %v7126 = vadd.f32 %v7097, %v7125
      %7127 = vmatmul.f32.gmra.mxu0 %v6875
      %v7128 = vpop.f32.mrf.mxu0
      %v7129 = vadd.f32 %v7100, %v7128
      %7130 = vmatmul.f32.gmra.mxu0 %v6878
      %v7131 = vpop.f32.mrf.mxu0
      %v7132 = vadd.f32 %v7103, %v7131
      %7133 = vmatmul.f32.gmra.mxu0 %v6881
      %v7134 = vpop.f32.mrf.mxu0
      %v7135 = vadd.f32 %v7106, %v7134
      %7136 = vdwg.mxu0
      %7137 = vmatpush.msra.mxu0 0.0
      %7138 = vmatpush.msra.mxu0 0.0
      %7139 = vmatpush.msra.mxu0 0.0
      %7140 = vmatpush.msra.mxu0 0.0
      %7141 = vmatpush.msra.mxu0 0.0
      %7142 = vmatpush.msra.mxu0 0.0
      %7143 = vmatpush.msra.mxu0 0.0
      %7144 = vmatpush.msra.mxu0 0.0
      %7145 = vmatpush.msra.mxu0 0.0
      %7146 = vmatpush.msra.mxu0 0.0
      %7147 = vmatpush.msra.mxu0 0.0
      %7148 = vmatpush.msra.mxu0 0.0
      %7149 = vmatpush.msra.mxu0 %v6954
      %7150 = vmatpush.msra.mxu0 %v6952
      %7151 = vmatpush.msra.mxu0 %v6950
      %7152 = vmatpush.msra.mxu0 %v6948
      %7153 = vmatmul.f32.gmra.mxu0 %v6981
      %v7154 = vpop.f32.mrf.mxu0
      %v7155 = vadd.f32 %v7126, %v7154
      %7156 = vmatmul.f32.gmra.mxu0 %v6984
      %v7157 = vpop.f32.mrf.mxu0
      %v7158 = vadd.f32 %v7129, %v7157
      %7159 = vmatmul.f32.gmra.mxu0 %v6987
      %v7160 = vpop.f32.mrf.mxu0
      %v7161 = vadd.f32 %v7132, %v7160
      %7162 = vmatmul.f32.gmra.mxu0 %v6990
      %v7163 = vpop.f32.mrf.mxu0
      %v7164 = vadd.f32 %v7135, %v7163
      %7165 = vdwg.mxu0
      %v7166 = vmax.f32 %v7068, 0.0
      %v7167 = vmax.f32 %v7155, 0.0
      %v7168 = vmax.f32 %v7071, 0.0
      %v7169 = vmax.f32 %v7158, 0.0
      %v7170 = vmax.f32 %v7074, 0.0
      %v7171 = vmax.f32 %v7161, 0.0
      %v7172 = vmax.f32 %v7077, 0.0
      %v7173 = vmax.f32 %v7164, 0.0
      %7174 = vrot.lane.b32.xlu0 %v7166, 17
      %v7175 = vpop.permute.xlu0 %7174
      %7176 = vrot.lane.b32.xlu0 %v7168, 17
      %v7177 = vpop.permute.xlu0 %7176
      %7178 = vrot.lane.b32.xlu0 %v7170, 17
      %v7179 = vpop.permute.xlu0 %7178
      %7180 = vrot.lane.b32.xlu0 %v7172, 17
      %v7181 = vpop.permute.xlu0 %7180
      %7182 = vrot.lane.b32.xlu0 %v7167, 17
      %v7183 = vpop.permute.xlu0 %7182
      %7184 = vrot.lane.b32.xlu0 %v7169, 17
      %v7185 = vpop.permute.xlu0 %7184
      %7186 = vrot.lane.b32.xlu0 %v7171, 17
      %v7187 = vpop.permute.xlu0 %7186
      %7188 = vrot.lane.b32.xlu0 %v7173, 17
      %v7189 = vpop.permute.xlu0 %7188
      %v7190 = vsel %vm224, %v7175, %v7183
      %v7191 = vsel %vm224, %v7177, %v7185
      %v7192 = vsel %vm224, %v7179, %v7187
      %v7193 = vsel %vm224, %v7181, %v7189
      %v7194 = vsel %vm224, %v7183, %v7175
      %v7195 = vsel %vm224, %v7185, %v7177
      %v7196 = vsel %vm224, %v7187, %v7179
      %v7197 = vsel %vm224, %v7189, %v7181
      %v7198 = vld [vmem:[%s3] sm:$0xff]
      %v7199 = vld [vmem:[%s3 + $0x8] sm:$0xff]
      %v7200 = vld [vmem:[%s3 + $0x10] sm:$0xff]
      %v7201 = vld [vmem:[%s3 + $0x18] sm:$0xff]
      %v7202 = vld [vmem:[%s3 + $0x20] sm:$0xff]
      %v7203 = vld [vmem:[%s3 + $0x28] sm:$0xff]
      %v7204 = vld [vmem:[%s3 + $0x30] sm:$0xff]
      %v7205 = vld [vmem:[%s3 + $0x38] sm:$0xff]
      %v7206 = vmul.f32 %v7194, %v7198
      %v7207 = vmul.f32 %v7190, %v7199
      %v7208 = vmul.f32 %v7195, %v7200
      %v7209 = vmul.f32 %v7191, %v7201
      %v7210 = vmul.f32 %v7196, %v7202
      %v7211 = vmul.f32 %v7192, %v7203
      %v7212 = vmul.f32 %v7197, %v7204
      %v7213 = vmul.f32 %v7193, %v7205
      %7214 = vst [vmem:[#allocation2] sm:$0xff] %v7206
      %7215 = vst [vmem:[#allocation2 + $0x8] sm:$0xff] %v7207
      %7216 = vst [vmem:[#allocation2 + $0x10] sm:$0xff] %v7208
      %7217 = vst [vmem:[#allocation2 + $0x18] sm:$0xff] %v7209
      %7218 = vst [vmem:[#allocation2 + $0x20] sm:$0xff] %v7210
      %7219 = vst [vmem:[#allocation2 + $0x28] sm:$0xff] %v7211
      %7220 = vst [vmem:[#allocation2 + $0x30] sm:$0xff] %v7212
      %7221 = vst [vmem:[#allocation2 + $0x38] sm:$0xff] %v7213
      %7222 = vrot.lane.b32.xlu0 %v7166, 16
      %v7223 = vpop.permute.xlu0 %7222
      %7224 = vrot.lane.b32.xlu0 %v7168, 16
      %v7225 = vpop.permute.xlu0 %7224
      %7226 = vrot.lane.b32.xlu0 %v7170, 16
      %v7227 = vpop.permute.xlu0 %7226
      %7228 = vrot.lane.b32.xlu0 %v7172, 16
      %v7229 = vpop.permute.xlu0 %7228
      %7230 = vrot.lane.b32.xlu0 %v7167, 16
      %v7231 = vpop.permute.xlu0 %7230
      %7232 = vrot.lane.b32.xlu0 %v7169, 16
      %v7233 = vpop.permute.xlu0 %7232
      %7234 = vrot.lane.b32.xlu0 %v7171, 16
      %v7235 = vpop.permute.xlu0 %7234
      %7236 = vrot.lane.b32.xlu0 %v7173, 16
      %v7237 = vpop.permute.xlu0 %7236
      %v7238 = vsel %vm273, %v7223, %v7231
      %v7239 = vsel %vm273, %v7225, %v7233
      %v7240 = vsel %vm273, %v7227, %v7235
      %v7241 = vsel %vm273, %v7229, %v7237
      %v7242 = vsel %vm273, %v7231, %v7223
      %v7243 = vsel %vm273, %v7233, %v7225
      %v7244 = vsel %vm273, %v7235, %v7227
      %v7245 = vsel %vm273, %v7237, %v7229
      %v7246 = vld [vmem:[%s282] sm:$0xff]
      %v7247 = vld [vmem:[%s282 + $0x8] sm:$0xff]
      %v7248 = vld [vmem:[%s282 + $0x10] sm:$0xff]
      %v7249 = vld [vmem:[%s282 + $0x18] sm:$0xff]
      %v7250 = vld [vmem:[%s282 + $0x20] sm:$0xff]
      %v7251 = vld [vmem:[%s282 + $0x28] sm:$0xff]
      %v7252 = vld [vmem:[%s282 + $0x30] sm:$0xff]
      %v7253 = vld [vmem:[%s282 + $0x38] sm:$0xff]
      %v7254 = vmul.f32 %v7242, %v7246
      %v7255 = vmul.f32 %v7238, %v7247
      %v7256 = vmul.f32 %v7243, %v7248
      %v7257 = vmul.f32 %v7239, %v7249
      %v7258 = vmul.f32 %v7244, %v7250
      %v7259 = vmul.f32 %v7240, %v7251
      %v7260 = vmul.f32 %v7245, %v7252
      %v7261 = vmul.f32 %v7241, %v7253
      %7262 = vst [vmem:[#allocation2 + $0x40] sm:$0xff] %v7254
      %7263 = vst [vmem:[#allocation2 + $0x48] sm:$0xff] %v7255
      %7264 = vst [vmem:[#allocation2 + $0x50] sm:$0xff] %v7256
      %7265 = vst [vmem:[#allocation2 + $0x58] sm:$0xff] %v7257
      %7266 = vst [vmem:[#allocation2 + $0x60] sm:$0xff] %v7258
      %7267 = vst [vmem:[#allocation2 + $0x68] sm:$0xff] %v7259
      %7268 = vst [vmem:[#allocation2 + $0x70] sm:$0xff] %v7260
      %7269 = vst [vmem:[#allocation2 + $0x78] sm:$0xff] %v7261
      %7270 = vrot.lane.b32.xlu0 %v7166, 15
      %v7271 = vpop.permute.xlu0 %7270
      %7272 = vrot.lane.b32.xlu0 %v7168, 15
      %v7273 = vpop.permute.xlu0 %7272
      %7274 = vrot.lane.b32.xlu0 %v7170, 15
      %v7275 = vpop.permute.xlu0 %7274
      %7276 = vrot.lane.b32.xlu0 %v7172, 15
      %v7277 = vpop.permute.xlu0 %7276
      %7278 = vrot.lane.b32.xlu0 %v7167, 15
      %v7279 = vpop.permute.xlu0 %7278
      %7280 = vrot.lane.b32.xlu0 %v7169, 15
      %v7281 = vpop.permute.xlu0 %7280
      %7282 = vrot.lane.b32.xlu0 %v7171, 15
      %v7283 = vpop.permute.xlu0 %7282
      %7284 = vrot.lane.b32.xlu0 %v7173, 15
      %v7285 = vpop.permute.xlu0 %7284
      %v7286 = vsel %vm323, %v7271, %v7279
      %v7287 = vsel %vm323, %v7273, %v7281
      %v7288 = vsel %vm323, %v7275, %v7283
      %v7289 = vsel %vm323, %v7277, %v7285
      %v7290 = vsel %vm323, %v7279, %v7271
      %v7291 = vsel %vm323, %v7281, %v7273
      %v7292 = vsel %vm323, %v7283, %v7275
      %v7293 = vsel %vm323, %v7285, %v7277
      %v7294 = vld [vmem:[%s332] sm:$0xff]
      %v7295 = vld [vmem:[%s332 + $0x8] sm:$0xff]
      %v7296 = vld [vmem:[%s332 + $0x10] sm:$0xff]
      %v7297 = vld [vmem:[%s332 + $0x18] sm:$0xff]
      %v7298 = vld [vmem:[%s332 + $0x20] sm:$0xff]
      %v7299 = vld [vmem:[%s332 + $0x28] sm:$0xff]
      %v7300 = vld [vmem:[%s332 + $0x30] sm:$0xff]
      %v7301 = vld [vmem:[%s332 + $0x38] sm:$0xff]
      %v7302 = vmul.f32 %v7290, %v7294
      %v7303 = vmul.f32 %v7286, %v7295
      %v7304 = vmul.f32 %v7291, %v7296
      %v7305 = vmul.f32 %v7287, %v7297
      %v7306 = vmul.f32 %v7292, %v7298
      %v7307 = vmul.f32 %v7288, %v7299
      %v7308 = vmul.f32 %v7293, %v7300
      %v7309 = vmul.f32 %v7289, %v7301
      %7310 = vst [vmem:[#allocation2 + $0x80] sm:$0xff] %v7302
      %7311 = vst [vmem:[#allocation2 + $0x88] sm:$0xff] %v7303
      %7312 = vst [vmem:[#allocation2 + $0x90] sm:$0xff] %v7304
      %7313 = vst [vmem:[#allocation2 + $0x98] sm:$0xff] %v7305
      %7314 = vst [vmem:[#allocation2 + $0xa0] sm:$0xff] %v7306
      %7315 = vst [vmem:[#allocation2 + $0xa8] sm:$0xff] %v7307
      %7316 = vst [vmem:[#allocation2 + $0xb0] sm:$0xff] %v7308
      %7317 = vst [vmem:[#allocation2 + $0xb8] sm:$0xff] %v7309
      %7318 = vrot.lane.b32.xlu0 %v7166, 1
      %v7319 = vpop.permute.xlu0 %7318
      %7320 = vrot.lane.b32.xlu0 %v7168, 1
      %v7321 = vpop.permute.xlu0 %7320
      %7322 = vrot.lane.b32.xlu0 %v7170, 1
      %v7323 = vpop.permute.xlu0 %7322
      %7324 = vrot.lane.b32.xlu0 %v7172, 1
      %v7325 = vpop.permute.xlu0 %7324
      %7326 = vrot.lane.b32.xlu0 %v7167, 1
      %v7327 = vpop.permute.xlu0 %7326
      %7328 = vrot.lane.b32.xlu0 %v7169, 1
      %v7329 = vpop.permute.xlu0 %7328
      %7330 = vrot.lane.b32.xlu0 %v7171, 1
      %v7331 = vpop.permute.xlu0 %7330
      %7332 = vrot.lane.b32.xlu0 %v7173, 1
      %v7333 = vpop.permute.xlu0 %7332
      %v7334 = vsel %vm373, %v7319, %v7327
      %v7335 = vsel %vm373, %v7321, %v7329
      %v7336 = vsel %vm373, %v7323, %v7331
      %v7337 = vsel %vm373, %v7325, %v7333
      %v7338 = vsel %vm373, %v7327, %v7319
      %v7339 = vsel %vm373, %v7329, %v7321
      %v7340 = vsel %vm373, %v7331, %v7323
      %v7341 = vsel %vm373, %v7333, %v7325
      %v7342 = vld [vmem:[%s382] sm:$0xff]
      %v7343 = vld [vmem:[%s382 + $0x8] sm:$0xff]
      %v7344 = vld [vmem:[%s382 + $0x10] sm:$0xff]
      %v7345 = vld [vmem:[%s382 + $0x18] sm:$0xff]
      %v7346 = vld [vmem:[%s382 + $0x20] sm:$0xff]
      %v7347 = vld [vmem:[%s382 + $0x28] sm:$0xff]
      %v7348 = vld [vmem:[%s382 + $0x30] sm:$0xff]
      %v7349 = vld [vmem:[%s382 + $0x38] sm:$0xff]
      %v7350 = vmul.f32 %v7338, %v7342
      %v7351 = vmul.f32 %v7334, %v7343
      %v7352 = vmul.f32 %v7339, %v7344
      %v7353 = vmul.f32 %v7335, %v7345
      %v7354 = vmul.f32 %v7340, %v7346
      %v7355 = vmul.f32 %v7336, %v7347
      %v7356 = vmul.f32 %v7341, %v7348
      %v7357 = vmul.f32 %v7337, %v7349
      %7358 = vst [vmem:[#allocation2 + $0xc0] sm:$0xff] %v7350
      %7359 = vst [vmem:[#allocation2 + $0xc8] sm:$0xff] %v7351
      %7360 = vst [vmem:[#allocation2 + $0xd0] sm:$0xff] %v7352
      %7361 = vst [vmem:[#allocation2 + $0xd8] sm:$0xff] %v7353
      %7362 = vst [vmem:[#allocation2 + $0xe0] sm:$0xff] %v7354
      %7363 = vst [vmem:[#allocation2 + $0xe8] sm:$0xff] %v7355
      %7364 = vst [vmem:[#allocation2 + $0xf0] sm:$0xff] %v7356
      %7365 = vst [vmem:[#allocation2 + $0xf8] sm:$0xff] %v7357
      %7366 = vst [vmem:[#allocation2 + $0x100] sm:$0xff] %v7166
      %7367 = vst [vmem:[#allocation2 + $0x108] sm:$0xff] %v7167
      %7368 = vst [vmem:[#allocation2 + $0x110] sm:$0xff] %v7168
      %7369 = vst [vmem:[#allocation2 + $0x118] sm:$0xff] %v7169
      %7370 = vst [vmem:[#allocation2 + $0x120] sm:$0xff] %v7170
      %7371 = vst [vmem:[#allocation2 + $0x128] sm:$0xff] %v7171
      %7372 = vst [vmem:[#allocation2 + $0x130] sm:$0xff] %v7172
      %7373 = vst [vmem:[#allocation2 + $0x138] sm:$0xff] %v7173
      %7374 = vrot.lane.b32.xlu0 %v7166, 127
      %v7375 = vpop.permute.xlu0 %7374
      %7376 = vrot.lane.b32.xlu0 %v7168, 127
      %v7377 = vpop.permute.xlu0 %7376
      %7378 = vrot.lane.b32.xlu0 %v7170, 127
      %v7379 = vpop.permute.xlu0 %7378
      %7380 = vrot.lane.b32.xlu0 %v7172, 127
      %v7381 = vpop.permute.xlu0 %7380
      %7382 = vrot.lane.b32.xlu0 %v7167, 127
      %v7383 = vpop.permute.xlu0 %7382
      %7384 = vrot.lane.b32.xlu0 %v7169, 127
      %v7385 = vpop.permute.xlu0 %7384
      %7386 = vrot.lane.b32.xlu0 %v7171, 127
      %v7387 = vpop.permute.xlu0 %7386
      %7388 = vrot.lane.b32.xlu0 %v7173, 127
      %v7389 = vpop.permute.xlu0 %7388
      %v7390 = vsel %vm431, %v7375, %v7383
      %v7391 = vsel %vm431, %v7377, %v7385
      %v7392 = vsel %vm431, %v7379, %v7387
      %v7393 = vsel %vm431, %v7381, %v7389
      %v7394 = vsel %vm431, %v7383, %v7375
      %v7395 = vsel %vm431, %v7385, %v7377
      %v7396 = vsel %vm431, %v7387, %v7379
      %v7397 = vsel %vm431, %v7389, %v7381
      %v7398 = vld [vmem:[%s440] sm:$0xff]
      %v7399 = vld [vmem:[%s440 + $0x8] sm:$0xff]
      %v7400 = vld [vmem:[%s440 + $0x10] sm:$0xff]
      %v7401 = vld [vmem:[%s440 + $0x18] sm:$0xff]
      %v7402 = vld [vmem:[%s440 + $0x20] sm:$0xff]
      %v7403 = vld [vmem:[%s440 + $0x28] sm:$0xff]
      %v7404 = vld [vmem:[%s440 + $0x30] sm:$0xff]
      %v7405 = vld [vmem:[%s440 + $0x38] sm:$0xff]
      %v7406 = vmul.f32 %v7390, %v7398
      %v7407 = vmul.f32 %v7394, %v7399
      %v7408 = vmul.f32 %v7391, %v7400
      %v7409 = vmul.f32 %v7395, %v7401
      %v7410 = vmul.f32 %v7392, %v7402
      %v7411 = vmul.f32 %v7396, %v7403
      %v7412 = vmul.f32 %v7393, %v7404
      %v7413 = vmul.f32 %v7397, %v7405
      %7414 = vst [vmem:[#allocation2 + $0x140] sm:$0xff] %v7406
      %7415 = vst [vmem:[#allocation2 + $0x148] sm:$0xff] %v7407
      %7416 = vst [vmem:[#allocation2 + $0x150] sm:$0xff] %v7408
      %7417 = vst [vmem:[#allocation2 + $0x158] sm:$0xff] %v7409
      %7418 = vst [vmem:[#allocation2 + $0x160] sm:$0xff] %v7410
      %7419 = vst [vmem:[#allocation2 + $0x168] sm:$0xff] %v7411
      %7420 = vst [vmem:[#allocation2 + $0x170] sm:$0xff] %v7412
      %7421 = vst [vmem:[#allocation2 + $0x178] sm:$0xff] %v7413
      %7422 = vrot.lane.b32.xlu0 %v7166, 113
      %v7423 = vpop.permute.xlu0 %7422
      %7424 = vrot.lane.b32.xlu0 %v7168, 113
      %v7425 = vpop.permute.xlu0 %7424
      %7426 = vrot.lane.b32.xlu0 %v7170, 113
      %v7427 = vpop.permute.xlu0 %7426
      %7428 = vrot.lane.b32.xlu0 %v7172, 113
      %v7429 = vpop.permute.xlu0 %7428
      %7430 = vrot.lane.b32.xlu0 %v7167, 113
      %v7431 = vpop.permute.xlu0 %7430
      %7432 = vrot.lane.b32.xlu0 %v7169, 113
      %v7433 = vpop.permute.xlu0 %7432
      %7434 = vrot.lane.b32.xlu0 %v7171, 113
      %v7435 = vpop.permute.xlu0 %7434
      %7436 = vrot.lane.b32.xlu0 %v7173, 113
      %v7437 = vpop.permute.xlu0 %7436
      %v7438 = vsel %vm481, %v7423, %v7431
      %v7439 = vsel %vm481, %v7425, %v7433
      %v7440 = vsel %vm481, %v7427, %v7435
      %v7441 = vsel %vm481, %v7429, %v7437
      %v7442 = vsel %vm481, %v7431, %v7423
      %v7443 = vsel %vm481, %v7433, %v7425
      %v7444 = vsel %vm481, %v7435, %v7427
      %v7445 = vsel %vm481, %v7437, %v7429
      %v7446 = vld [vmem:[%s490] sm:$0xff]
      %v7447 = vld [vmem:[%s490 + $0x8] sm:$0xff]
      %v7448 = vld [vmem:[%s490 + $0x10] sm:$0xff]
      %v7449 = vld [vmem:[%s490 + $0x18] sm:$0xff]
      %v7450 = vld [vmem:[%s490 + $0x20] sm:$0xff]
      %v7451 = vld [vmem:[%s490 + $0x28] sm:$0xff]
      %v7452 = vld [vmem:[%s490 + $0x30] sm:$0xff]
      %v7453 = vld [vmem:[%s490 + $0x38] sm:$0xff]
      %v7454 = vmul.f32 %v7438, %v7446
      %v7455 = vmul.f32 %v7442, %v7447
      %v7456 = vmul.f32 %v7439, %v7448
      %v7457 = vmul.f32 %v7443, %v7449
      %v7458 = vmul.f32 %v7440, %v7450
      %v7459 = vmul.f32 %v7444, %v7451
      %v7460 = vmul.f32 %v7441, %v7452
      %v7461 = vmul.f32 %v7445, %v7453
      %7462 = vst [vmem:[#allocation2 + $0x180] sm:$0xff] %v7454
      %7463 = vst [vmem:[#allocation2 + $0x188] sm:$0xff] %v7455
      %7464 = vst [vmem:[#allocation2 + $0x190] sm:$0xff] %v7456
      %7465 = vst [vmem:[#allocation2 + $0x198] sm:$0xff] %v7457
      %7466 = vst [vmem:[#allocation2 + $0x1a0] sm:$0xff] %v7458
      %7467 = vst [vmem:[#allocation2 + $0x1a8] sm:$0xff] %v7459
      %7468 = vst [vmem:[#allocation2 + $0x1b0] sm:$0xff] %v7460
      %7469 = vst [vmem:[#allocation2 + $0x1b8] sm:$0xff] %v7461
      %7470 = vrot.lane.b32.xlu0 %v7166, 112
      %v7471 = vpop.permute.xlu0 %7470
      %7472 = vrot.lane.b32.xlu0 %v7168, 112
      %v7473 = vpop.permute.xlu0 %7472
      %7474 = vrot.lane.b32.xlu0 %v7170, 112
      %v7475 = vpop.permute.xlu0 %7474
      %7476 = vrot.lane.b32.xlu0 %v7172, 112
      %v7477 = vpop.permute.xlu0 %7476
      %7478 = vrot.lane.b32.xlu0 %v7167, 112
      %v7479 = vpop.permute.xlu0 %7478
      %7480 = vrot.lane.b32.xlu0 %v7169, 112
      %v7481 = vpop.permute.xlu0 %7480
      %7482 = vrot.lane.b32.xlu0 %v7171, 112
      %v7483 = vpop.permute.xlu0 %7482
      %7484 = vrot.lane.b32.xlu0 %v7173, 112
      %v7485 = vpop.permute.xlu0 %7484
      %v7486 = vsel %vm531, %v7471, %v7479
      %v7487 = vsel %vm531, %v7473, %v7481
      %v7488 = vsel %vm531, %v7475, %v7483
      %v7489 = vsel %vm531, %v7477, %v7485
      %v7490 = vsel %vm531, %v7479, %v7471
      %v7491 = vsel %vm531, %v7481, %v7473
      %v7492 = vsel %vm531, %v7483, %v7475
      %v7493 = vsel %vm531, %v7485, %v7477
      %v7494 = vld [vmem:[%s540] sm:$0xff]
      %v7495 = vld [vmem:[%s540 + $0x8] sm:$0xff]
      %v7496 = vld [vmem:[%s540 + $0x10] sm:$0xff]
      %v7497 = vld [vmem:[%s540 + $0x18] sm:$0xff]
      %v7498 = vld [vmem:[%s540 + $0x20] sm:$0xff]
      %v7499 = vld [vmem:[%s540 + $0x28] sm:$0xff]
      %v7500 = vld [vmem:[%s540 + $0x30] sm:$0xff]
      %v7501 = vld [vmem:[%s540 + $0x38] sm:$0xff]
      %v7502 = vmul.f32 %v7486, %v7494
      %v7503 = vmul.f32 %v7490, %v7495
      %v7504 = vmul.f32 %v7487, %v7496
      %v7505 = vmul.f32 %v7491, %v7497
      %v7506 = vmul.f32 %v7488, %v7498
      %v7507 = vmul.f32 %v7492, %v7499
      %v7508 = vmul.f32 %v7489, %v7500
      %v7509 = vmul.f32 %v7493, %v7501
      %7510 = vst [vmem:[#allocation2 + $0x1c0] sm:$0xff] %v7502
      %7511 = vst [vmem:[#allocation2 + $0x1c8] sm:$0xff] %v7503
      %7512 = vst [vmem:[#allocation2 + $0x1d0] sm:$0xff] %v7504
      %7513 = vst [vmem:[#allocation2 + $0x1d8] sm:$0xff] %v7505
      %7514 = vst [vmem:[#allocation2 + $0x1e0] sm:$0xff] %v7506
      %7515 = vst [vmem:[#allocation2 + $0x1e8] sm:$0xff] %v7507
      %7516 = vst [vmem:[#allocation2 + $0x1f0] sm:$0xff] %v7508
      %7517 = vst [vmem:[#allocation2 + $0x1f8] sm:$0xff] %v7509
      %7518 = vrot.lane.b32.xlu0 %v7166, 111
      %v7519 = vpop.permute.xlu0 %7518
      %7520 = vrot.lane.b32.xlu0 %v7168, 111
      %v7521 = vpop.permute.xlu0 %7520
      %7522 = vrot.lane.b32.xlu0 %v7170, 111
      %v7523 = vpop.permute.xlu0 %7522
      %7524 = vrot.lane.b32.xlu0 %v7172, 111
      %v7525 = vpop.permute.xlu0 %7524
      %7526 = vrot.lane.b32.xlu0 %v7167, 111
      %v7527 = vpop.permute.xlu0 %7526
      %7528 = vrot.lane.b32.xlu0 %v7169, 111
      %v7529 = vpop.permute.xlu0 %7528
      %7530 = vrot.lane.b32.xlu0 %v7171, 111
      %v7531 = vpop.permute.xlu0 %7530
      %7532 = vrot.lane.b32.xlu0 %v7173, 111
      %v7533 = vpop.permute.xlu0 %7532
      %v7534 = vsel %vm581, %v7519, %v7527
      %v7535 = vsel %vm581, %v7521, %v7529
      %v7536 = vsel %vm581, %v7523, %v7531
      %v7537 = vsel %vm581, %v7525, %v7533
      %v7538 = vsel %vm581, %v7527, %v7519
      %v7539 = vsel %vm581, %v7529, %v7521
      %v7540 = vsel %vm581, %v7531, %v7523
      %v7541 = vsel %vm581, %v7533, %v7525
      %v7542 = vld [vmem:[%s590] sm:$0xff]
      %v7543 = vld [vmem:[%s590 + $0x8] sm:$0xff]
      %v7544 = vld [vmem:[%s590 + $0x10] sm:$0xff]
      %v7545 = vld [vmem:[%s590 + $0x18] sm:$0xff]
      %v7546 = vld [vmem:[%s590 + $0x20] sm:$0xff]
      %v7547 = vld [vmem:[%s590 + $0x28] sm:$0xff]
      %v7548 = vld [vmem:[%s590 + $0x30] sm:$0xff]
      %v7549 = vld [vmem:[%s590 + $0x38] sm:$0xff]
      %v7550 = vmul.f32 %v7534, %v7542
      %v7551 = vmul.f32 %v7538, %v7543
      %v7552 = vmul.f32 %v7535, %v7544
      %v7553 = vmul.f32 %v7539, %v7545
      %v7554 = vmul.f32 %v7536, %v7546
      %v7555 = vmul.f32 %v7540, %v7547
      %v7556 = vmul.f32 %v7537, %v7548
      %v7557 = vmul.f32 %v7541, %v7549
      %7558 = vst [vmem:[#allocation2 + $0x200] sm:$0xff] %v7550
      %7559 = vst [vmem:[#allocation2 + $0x208] sm:$0xff] %v7551
      %7560 = vst [vmem:[#allocation2 + $0x210] sm:$0xff] %v7552
      %7561 = vst [vmem:[#allocation2 + $0x218] sm:$0xff] %v7553
      %7562 = vst [vmem:[#allocation2 + $0x220] sm:$0xff] %v7554
      %7563 = vst [vmem:[#allocation2 + $0x228] sm:$0xff] %v7555
      %7564 = vst [vmem:[#allocation2 + $0x230] sm:$0xff] %v7556
      %7565 = vst [vmem:[#allocation2 + $0x238] sm:$0xff] %v7557
      %s7566 = scalar_lea.vmem %s1, 960
      %v7567 = vld [vmem:[%s7566] sm:$0xff]
      %v7568 = vld [vmem:[%s7566 + $0x8] sm:$0xff]
      %v7569 = vld [vmem:[%s7566 + $0x10] sm:$0xff]
      %v7570 = vld [vmem:[%s7566 + $0x18] sm:$0xff]
      %v7571 = vld [vmem:[%s7566 + $0x20] sm:$0xff]
      %v7572 = vld [vmem:[%s7566 + $0x28] sm:$0xff]
      %v7573 = vld [vmem:[%s7566 + $0x30] sm:$0xff]
      %v7574 = vld [vmem:[%s7566 + $0x38] sm:$0xff]
      %v7575 = vld [vmem:[%s7566 + $0x40] sm:$0xff]
      %v7576 = vld [vmem:[%s7566 + $0x48] sm:$0xff]
      %v7577 = vld [vmem:[%s7566 + $0x50] sm:$0xff]
      %v7578 = vld [vmem:[%s7566 + $0x58] sm:$0xff]
      %v7579 = vld [vmem:[#allocation2] sm:$0xff]
      %v7580 = vld [vmem:[#allocation2 + $0x8] sm:$0xff]
      %v7581 = vld [vmem:[#allocation2 + $0x10] sm:$0xff]
      %v7582 = vld [vmem:[#allocation2 + $0x18] sm:$0xff]
      %v7583 = vld [vmem:[#allocation2 + $0x20] sm:$0xff]
      %v7584 = vld [vmem:[#allocation2 + $0x28] sm:$0xff]
      %v7585 = vld [vmem:[#allocation2 + $0x30] sm:$0xff]
      %v7586 = vld [vmem:[#allocation2 + $0x38] sm:$0xff]
      %v7587 = vld [vmem:[#allocation2 + $0x40] sm:$0xff]
      %v7588 = vld [vmem:[#allocation2 + $0x48] sm:$0xff]
      %v7589 = vld [vmem:[#allocation2 + $0x50] sm:$0xff]
      %v7590 = vld [vmem:[#allocation2 + $0x58] sm:$0xff]
      %v7591 = vld [vmem:[#allocation2 + $0x60] sm:$0xff]
      %v7592 = vld [vmem:[#allocation2 + $0x68] sm:$0xff]
      %v7593 = vld [vmem:[#allocation2 + $0x70] sm:$0xff]
      %v7594 = vld [vmem:[#allocation2 + $0x78] sm:$0xff]
      %v7595 = vld [vmem:[#allocation2 + $0x80] sm:$0xff]
      %v7596 = vld [vmem:[#allocation2 + $0x88] sm:$0xff]
      %v7597 = vld [vmem:[#allocation2 + $0x90] sm:$0xff]
      %v7598 = vld [vmem:[#allocation2 + $0x98] sm:$0xff]
      %v7599 = vld [vmem:[#allocation2 + $0xa0] sm:$0xff]
      %v7600 = vld [vmem:[#allocation2 + $0xa8] sm:$0xff]
      %v7601 = vld [vmem:[#allocation2 + $0xb0] sm:$0xff]
      %v7602 = vld [vmem:[#allocation2 + $0xb8] sm:$0xff]
      %v7603 = vld [vmem:[#allocation2 + $0xc0] sm:$0xff]
      %v7604 = vld [vmem:[#allocation2 + $0xc8] sm:$0xff]
      %v7605 = vld [vmem:[#allocation2 + $0xd0] sm:$0xff]
      %v7606 = vld [vmem:[#allocation2 + $0xd8] sm:$0xff]
      %v7607 = vld [vmem:[#allocation2 + $0xe0] sm:$0xff]
      %v7608 = vld [vmem:[#allocation2 + $0xe8] sm:$0xff]
      %v7609 = vld [vmem:[#allocation2 + $0xf0] sm:$0xff]
      %v7610 = vld [vmem:[#allocation2 + $0xf8] sm:$0xff]
      %v7611 = vld [vmem:[#allocation2 + $0x100] sm:$0xff]
      %v7612 = vld [vmem:[#allocation2 + $0x108] sm:$0xff]
      %v7613 = vld [vmem:[#allocation2 + $0x110] sm:$0xff]
      %v7614 = vld [vmem:[#allocation2 + $0x118] sm:$0xff]
      %v7615 = vld [vmem:[#allocation2 + $0x120] sm:$0xff]
      %v7616 = vld [vmem:[#allocation2 + $0x128] sm:$0xff]
      %v7617 = vld [vmem:[#allocation2 + $0x130] sm:$0xff]
      %v7618 = vld [vmem:[#allocation2 + $0x138] sm:$0xff]
      %v7619 = vld [vmem:[#allocation2 + $0x140] sm:$0xff]
      %v7620 = vld [vmem:[#allocation2 + $0x148] sm:$0xff]
      %v7621 = vld [vmem:[#allocation2 + $0x150] sm:$0xff]
      %v7622 = vld [vmem:[#allocation2 + $0x158] sm:$0xff]
      %v7623 = vld [vmem:[#allocation2 + $0x160] sm:$0xff]
      %v7624 = vld [vmem:[#allocation2 + $0x168] sm:$0xff]
      %v7625 = vld [vmem:[#allocation2 + $0x170] sm:$0xff]
      %v7626 = vld [vmem:[#allocation2 + $0x178] sm:$0xff]
      %v7627 = vld [vmem:[#allocation2 + $0x180] sm:$0xff]
      %v7628 = vld [vmem:[#allocation2 + $0x188] sm:$0xff]
      %v7629 = vld [vmem:[#allocation2 + $0x190] sm:$0xff]
      %v7630 = vld [vmem:[#allocation2 + $0x198] sm:$0xff]
      %v7631 = vld [vmem:[#allocation2 + $0x1a0] sm:$0xff]
      %v7632 = vld [vmem:[#allocation2 + $0x1a8] sm:$0xff]
      %v7633 = vld [vmem:[#allocation2 + $0x1b0] sm:$0xff]
      %v7634 = vld [vmem:[#allocation2 + $0x1b8] sm:$0xff]
      %v7635 = vld [vmem:[#allocation2 + $0x1c0] sm:$0xff]
      %v7636 = vld [vmem:[#allocation2 + $0x1c8] sm:$0xff]
      %v7637 = vld [vmem:[#allocation2 + $0x1d0] sm:$0xff]
      %v7638 = vld [vmem:[#allocation2 + $0x1d8] sm:$0xff]
      %v7639 = vld [vmem:[#allocation2 + $0x1e0] sm:$0xff]
      %v7640 = vld [vmem:[#allocation2 + $0x1e8] sm:$0xff]
      %v7641 = vld [vmem:[#allocation2 + $0x1f0] sm:$0xff]
      %v7642 = vld [vmem:[#allocation2 + $0x1f8] sm:$0xff]
      %v7643 = vld [vmem:[#allocation2 + $0x200] sm:$0xff]
      %v7644 = vld [vmem:[#allocation2 + $0x208] sm:$0xff]
      %v7645 = vld [vmem:[#allocation2 + $0x210] sm:$0xff]
      %v7646 = vld [vmem:[#allocation2 + $0x218] sm:$0xff]
      %v7647 = vld [vmem:[#allocation2 + $0x220] sm:$0xff]
      %v7648 = vld [vmem:[#allocation2 + $0x228] sm:$0xff]
      %v7649 = vld [vmem:[#allocation2 + $0x230] sm:$0xff]
      %v7650 = vld [vmem:[#allocation2 + $0x238] sm:$0xff]
      %s7651 = scalar_lea.vmem %s2, 320
      %v7652 = vld [vmem:[%s7651] sm:$0xff]
      %v7653 = vld [vmem:[%s7651 + $0x8] sm:$0xff]
      %v7654 = vld [vmem:[%s7651 + $0x10] sm:$0xff]
      %v7655 = vld [vmem:[%s7651 + $0x18] sm:$0xff]
      %7657 = vset.pattern.permute.xlu0 0
      %7658 = vperm.xlu0 %7657, %v7652
      %v7659 = vpop.permute.xlu0 %7658
      %7662 = vset.pattern.permute.xlu0 0
      %7663 = vperm.xlu0 %7662, %v7653
      %v7664 = vpop.permute.xlu0 %7663
      %7667 = vset.pattern.permute.xlu0 0
      %7668 = vperm.xlu0 %7667, %v7654
      %v7669 = vpop.permute.xlu0 %7668
      %7672 = vset.pattern.permute.xlu0 0
      %7673 = vperm.xlu0 %7672, %v7655
      %v7674 = vpop.permute.xlu0 %7673
      %v7677 = vsel %vm723, %v7569, 0
      %v7680 = vsel %vm723, %v7572, 0
      %v7683 = vsel %vm723, %v7575, 0
      %v7686 = vsel %vm723, %v7578, 0
      %7688 = vmatpush.msra.mxu0 %v7609
      %7689 = vmatpush.msra.mxu0 %v7607
      %7690 = vmatpush.msra.mxu0 %v7605
      %7691 = vmatpush.msra.mxu0 %v7603
      %7692 = vmatpush.msra.mxu0 %v7601
      %7693 = vmatpush.msra.mxu0 %v7599
      %7694 = vmatpush.msra.mxu0 %v7597
      %7695 = vmatpush.msra.mxu0 %v7595
      %7696 = vmatpush.msra.mxu0 %v7593
      %7697 = vmatpush.msra.mxu0 %v7591
      %7698 = vmatpush.msra.mxu0 %v7589
      %7699 = vmatpush.msra.mxu0 %v7587
      %7700 = vmatpush.msra.mxu0 %v7585
      %7701 = vmatpush.msra.mxu0 %v7583
      %7702 = vmatpush.msra.mxu0 %v7581
      %7703 = vmatpush.msra.mxu0 %v7579
      %7704 = vmatmul.f32.gmra.mxu0 %v7567
      %v7705 = vpop.f32.mrf.mxu0
      %v7706 = vadd.f32 %v7659, %v7705
      %7707 = vmatmul.f32.gmra.mxu0 %v7570
      %v7708 = vpop.f32.mrf.mxu0
      %v7709 = vadd.f32 %v7664, %v7708
      %7710 = vmatmul.f32.gmra.mxu0 %v7573
      %v7711 = vpop.f32.mrf.mxu0
      %v7712 = vadd.f32 %v7669, %v7711
      %7713 = vmatmul.f32.gmra.mxu0 %v7576
      %v7714 = vpop.f32.mrf.mxu0
      %v7715 = vadd.f32 %v7674, %v7714
      %7716 = vdwg.mxu0
      %7717 = vmatpush.msra.mxu0 %v7641
      %7718 = vmatpush.msra.mxu0 %v7639
      %7719 = vmatpush.msra.mxu0 %v7637
      %7720 = vmatpush.msra.mxu0 %v7635
      %7721 = vmatpush.msra.mxu0 %v7633
      %7722 = vmatpush.msra.mxu0 %v7631
      %7723 = vmatpush.msra.mxu0 %v7629
      %7724 = vmatpush.msra.mxu0 %v7627
      %7725 = vmatpush.msra.mxu0 %v7625
      %7726 = vmatpush.msra.mxu0 %v7623
      %7727 = vmatpush.msra.mxu0 %v7621
      %7728 = vmatpush.msra.mxu0 %v7619
      %7729 = vmatpush.msra.mxu0 %v7617
      %7730 = vmatpush.msra.mxu0 %v7615
      %7731 = vmatpush.msra.mxu0 %v7613
      %7732 = vmatpush.msra.mxu0 %v7611
      %7733 = vmatmul.f32.gmra.mxu0 %v7568
      %v7734 = vpop.f32.mrf.mxu0
      %v7735 = vadd.f32 %v7706, %v7734
      %7736 = vmatmul.f32.gmra.mxu0 %v7571
      %v7737 = vpop.f32.mrf.mxu0
      %v7738 = vadd.f32 %v7709, %v7737
      %7739 = vmatmul.f32.gmra.mxu0 %v7574
      %v7740 = vpop.f32.mrf.mxu0
      %v7741 = vadd.f32 %v7712, %v7740
      %7742 = vmatmul.f32.gmra.mxu0 %v7577
      %v7743 = vpop.f32.mrf.mxu0
      %v7744 = vadd.f32 %v7715, %v7743
      %7745 = vdwg.mxu0
      %7746 = vmatpush.msra.mxu0 0.0
      %7747 = vmatpush.msra.mxu0 0.0
      %7748 = vmatpush.msra.mxu0 0.0
      %7749 = vmatpush.msra.mxu0 0.0
      %7750 = vmatpush.msra.mxu0 0.0
      %7751 = vmatpush.msra.mxu0 0.0
      %7752 = vmatpush.msra.mxu0 0.0
      %7753 = vmatpush.msra.mxu0 0.0
      %7754 = vmatpush.msra.mxu0 0.0
      %7755 = vmatpush.msra.mxu0 0.0
      %7756 = vmatpush.msra.mxu0 0.0
      %7757 = vmatpush.msra.mxu0 0.0
      %7758 = vmatpush.msra.mxu0 %v7649
      %7759 = vmatpush.msra.mxu0 %v7647
      %7760 = vmatpush.msra.mxu0 %v7645
      %7761 = vmatpush.msra.mxu0 %v7643
      %7762 = vmatmul.f32.gmra.mxu0 %v7677
      %v7763 = vpop.f32.mrf.mxu0
      %v7764 = vadd.f32 %v7735, %v7763
      %7765 = vmatmul.f32.gmra.mxu0 %v7680
      %v7766 = vpop.f32.mrf.mxu0
      %v7767 = vadd.f32 %v7738, %v7766
      %7768 = vmatmul.f32.gmra.mxu0 %v7683
      %v7769 = vpop.f32.mrf.mxu0
      %v7770 = vadd.f32 %v7741, %v7769
      %7771 = vmatmul.f32.gmra.mxu0 %v7686
      %v7772 = vpop.f32.mrf.mxu0
      %v7773 = vadd.f32 %v7744, %v7772
      %7774 = vdwg.mxu0
      %7775 = vmatpush.msra.mxu0 %v7610
      %7776 = vmatpush.msra.mxu0 %v7608
      %7777 = vmatpush.msra.mxu0 %v7606
      %7778 = vmatpush.msra.mxu0 %v7604
      %7779 = vmatpush.msra.mxu0 %v7602
      %7780 = vmatpush.msra.mxu0 %v7600
      %7781 = vmatpush.msra.mxu0 %v7598
      %7782 = vmatpush.msra.mxu0 %v7596
      %7783 = vmatpush.msra.mxu0 %v7594
      %7784 = vmatpush.msra.mxu0 %v7592
      %7785 = vmatpush.msra.mxu0 %v7590
      %7786 = vmatpush.msra.mxu0 %v7588
      %7787 = vmatpush.msra.mxu0 %v7586
      %7788 = vmatpush.msra.mxu0 %v7584
      %7789 = vmatpush.msra.mxu0 %v7582
      %7790 = vmatpush.msra.mxu0 %v7580
      %7791 = vmatmul.f32.gmra.mxu0 %v7567
      %v7792 = vpop.f32.mrf.mxu0
      %v7793 = vadd.f32 %v7659, %v7792
      %7794 = vmatmul.f32.gmra.mxu0 %v7570
      %v7795 = vpop.f32.mrf.mxu0
      %v7796 = vadd.f32 %v7664, %v7795
      %7797 = vmatmul.f32.gmra.mxu0 %v7573
      %v7798 = vpop.f32.mrf.mxu0
      %v7799 = vadd.f32 %v7669, %v7798
      %7800 = vmatmul.f32.gmra.mxu0 %v7576
      %v7801 = vpop.f32.mrf.mxu0
      %v7802 = vadd.f32 %v7674, %v7801
      %7803 = vdwg.mxu0
      %7804 = vmatpush.msra.mxu0 %v7642
      %7805 = vmatpush.msra.mxu0 %v7640
      %7806 = vmatpush.msra.mxu0 %v7638
      %7807 = vmatpush.msra.mxu0 %v7636
      %7808 = vmatpush.msra.mxu0 %v7634
      %7809 = vmatpush.msra.mxu0 %v7632
      %7810 = vmatpush.msra.mxu0 %v7630
      %7811 = vmatpush.msra.mxu0 %v7628
      %7812 = vmatpush.msra.mxu0 %v7626
      %7813 = vmatpush.msra.mxu0 %v7624
      %7814 = vmatpush.msra.mxu0 %v7622
      %7815 = vmatpush.msra.mxu0 %v7620
      %7816 = vmatpush.msra.mxu0 %v7618
      %7817 = vmatpush.msra.mxu0 %v7616
      %7818 = vmatpush.msra.mxu0 %v7614
      %7819 = vmatpush.msra.mxu0 %v7612
      %7820 = vmatmul.f32.gmra.mxu0 %v7568
      %v7821 = vpop.f32.mrf.mxu0
      %v7822 = vadd.f32 %v7793, %v7821
      %7823 = vmatmul.f32.gmra.mxu0 %v7571
      %v7824 = vpop.f32.mrf.mxu0
      %v7825 = vadd.f32 %v7796, %v7824
      %7826 = vmatmul.f32.gmra.mxu0 %v7574
      %v7827 = vpop.f32.mrf.mxu0
      %v7828 = vadd.f32 %v7799, %v7827
      %7829 = vmatmul.f32.gmra.mxu0 %v7577
      %v7830 = vpop.f32.mrf.mxu0
      %v7831 = vadd.f32 %v7802, %v7830
      %7832 = vdwg.mxu0
      %7833 = vmatpush.msra.mxu0 0.0
      %7834 = vmatpush.msra.mxu0 0.0
      %7835 = vmatpush.msra.mxu0 0.0
      %7836 = vmatpush.msra.mxu0 0.0
      %7837 = vmatpush.msra.mxu0 0.0
      %7838 = vmatpush.msra.mxu0 0.0
      %7839 = vmatpush.msra.mxu0 0.0
      %7840 = vmatpush.msra.mxu0 0.0
      %7841 = vmatpush.msra.mxu0 0.0
      %7842 = vmatpush.msra.mxu0 0.0
      %7843 = vmatpush.msra.mxu0 0.0
      %7844 = vmatpush.msra.mxu0 0.0
      %7845 = vmatpush.msra.mxu0 %v7650
      %7846 = vmatpush.msra.mxu0 %v7648
      %7847 = vmatpush.msra.mxu0 %v7646
      %7848 = vmatpush.msra.mxu0 %v7644
      %7849 = vmatmul.f32.gmra.mxu0 %v7677
      %v7850 = vpop.f32.mrf.mxu0
      %v7851 = vadd.f32 %v7822, %v7850
      %7852 = vmatmul.f32.gmra.mxu0 %v7680
      %v7853 = vpop.f32.mrf.mxu0
      %v7854 = vadd.f32 %v7825, %v7853
      %7855 = vmatmul.f32.gmra.mxu0 %v7683
      %v7856 = vpop.f32.mrf.mxu0
      %v7857 = vadd.f32 %v7828, %v7856
      %7858 = vmatmul.f32.gmra.mxu0 %v7686
      %v7859 = vpop.f32.mrf.mxu0
      %v7860 = vadd.f32 %v7831, %v7859
      %7861 = vdwg.mxu0
      %v7862 = vxor.u32 %v7764, 2147483648
      %v7863 = vxor.u32 %v7851, 2147483648
      %v7864 = vxor.u32 %v7767, 2147483648
      %v7865 = vxor.u32 %v7854, 2147483648
      %v7866 = vxor.u32 %v7770, 2147483648
      %v7867 = vxor.u32 %v7857, 2147483648
      %v7868 = vxor.u32 %v7773, 2147483648
      %v7869 = vxor.u32 %v7860, 2147483648
      %v7870 = vmul.f32 %v7862, 1.442695
      %v7871 = vpow.pop %v7870
      %v7872 = vmul.f32 %v7863, 1.442695
      %v7873 = vpow.pop %v7872
      %v7874 = vmul.f32 %v7864, 1.442695
      %v7875 = vpow.pop %v7874
      %v7876 = vmul.f32 %v7865, 1.442695
      %v7877 = vpow.pop %v7876
      %v7878 = vmul.f32 %v7866, 1.442695
      %v7879 = vpow.pop %v7878
      %v7880 = vmul.f32 %v7867, 1.442695
      %v7881 = vpow.pop %v7880
      %v7882 = vmul.f32 %v7868, 1.442695
      %v7883 = vpow.pop %v7882
      %v7884 = vmul.f32 %v7869, 1.442695
      %v7885 = vpow.pop %v7884
      %v7886 = vadd.f32 %v7871, 1.0
      %v7887 = vadd.f32 %v7873, 1.0
      %v7888 = vadd.f32 %v7875, 1.0
      %v7889 = vadd.f32 %v7877, 1.0
      %v7890 = vadd.f32 %v7879, 1.0
      %v7891 = vadd.f32 %v7881, 1.0
      %v7892 = vadd.f32 %v7883, 1.0
      %v7893 = vadd.f32 %v7885, 1.0
      %v7894 = vrcp.pop %v7886
      %v7895 = vmul.f32 %v7886, %v7894
      %v7896 = vsub.f32 1.0, %v7895
      %v7897 = vmul.f32 %v7894, %v7896
      %v7898 = vadd.f32 %v7894, %v7897
      %vm7899 = vweird.f32 %v7886
      %vm7900 = vweird.f32 %v7894
      %vm7901 = vmor %vm7899, %vm7900
      %v7902 = vsel %vm7901, %v7894, %v7898
      %v7903 = vand.u32 2147483647, %v7886
      %vm7904 = vcmp.eq.f32.partialorder %v7903, 8.507059e+37
      %v7905 = vand.u32 %v7886, 2147483648
      %v7906 = vor.u32 1.1754944e-38, %v7905
      %v7907 = vsel %vm7904, %v7906, %v7902
      %v7908 = vmul.f32 1.0, %v7907
      %v7909 = vrcp.pop %v7887
      %v7910 = vmul.f32 %v7887, %v7909
      %v7911 = vsub.f32 1.0, %v7910
      %v7912 = vmul.f32 %v7909, %v7911
      %v7913 = vadd.f32 %v7909, %v7912
      %vm7914 = vweird.f32 %v7887
      %vm7915 = vweird.f32 %v7909
      %vm7916 = vmor %vm7914, %vm7915
      %v7917 = vsel %vm7916, %v7909, %v7913
      %v7918 = vand.u32 2147483647, %v7887
      %vm7919 = vcmp.eq.f32.partialorder %v7918, 8.507059e+37
      %v7920 = vand.u32 %v7887, 2147483648
      %v7921 = vor.u32 1.1754944e-38, %v7920
      %v7922 = vsel %vm7919, %v7921, %v7917
      %v7923 = vmul.f32 1.0, %v7922
      %v7924 = vrcp.pop %v7888
      %v7925 = vmul.f32 %v7888, %v7924
      %v7926 = vsub.f32 1.0, %v7925
      %v7927 = vmul.f32 %v7924, %v7926
      %v7928 = vadd.f32 %v7924, %v7927
      %vm7929 = vweird.f32 %v7888
      %vm7930 = vweird.f32 %v7924
      %vm7931 = vmor %vm7929, %vm7930
      %v7932 = vsel %vm7931, %v7924, %v7928
      %v7933 = vand.u32 2147483647, %v7888
      %vm7934 = vcmp.eq.f32.partialorder %v7933, 8.507059e+37
      %v7935 = vand.u32 %v7888, 2147483648
      %v7936 = vor.u32 1.1754944e-38, %v7935
      %v7937 = vsel %vm7934, %v7936, %v7932
      %v7938 = vmul.f32 1.0, %v7937
      %v7939 = vrcp.pop %v7889
      %v7940 = vmul.f32 %v7889, %v7939
      %v7941 = vsub.f32 1.0, %v7940
      %v7942 = vmul.f32 %v7939, %v7941
      %v7943 = vadd.f32 %v7939, %v7942
      %vm7944 = vweird.f32 %v7889
      %vm7945 = vweird.f32 %v7939
      %vm7946 = vmor %vm7944, %vm7945
      %v7947 = vsel %vm7946, %v7939, %v7943
      %v7948 = vand.u32 2147483647, %v7889
      %vm7949 = vcmp.eq.f32.partialorder %v7948, 8.507059e+37
      %v7950 = vand.u32 %v7889, 2147483648
      %v7951 = vor.u32 1.1754944e-38, %v7950
      %v7952 = vsel %vm7949, %v7951, %v7947
      %v7953 = vmul.f32 1.0, %v7952
      %v7954 = vrcp.pop %v7890
      %v7955 = vmul.f32 %v7890, %v7954
      %v7956 = vsub.f32 1.0, %v7955
      %v7957 = vmul.f32 %v7954, %v7956
      %v7958 = vadd.f32 %v7954, %v7957
      %vm7959 = vweird.f32 %v7890
      %vm7960 = vweird.f32 %v7954
      %vm7961 = vmor %vm7959, %vm7960
      %v7962 = vsel %vm7961, %v7954, %v7958
      %v7963 = vand.u32 2147483647, %v7890
      %vm7964 = vcmp.eq.f32.partialorder %v7963, 8.507059e+37
      %v7965 = vand.u32 %v7890, 2147483648
      %v7966 = vor.u32 1.1754944e-38, %v7965
      %v7967 = vsel %vm7964, %v7966, %v7962
      %v7968 = vmul.f32 1.0, %v7967
      %v7969 = vrcp.pop %v7891
      %v7970 = vmul.f32 %v7891, %v7969
      %v7971 = vsub.f32 1.0, %v7970
      %v7972 = vmul.f32 %v7969, %v7971
      %v7973 = vadd.f32 %v7969, %v7972
      %vm7974 = vweird.f32 %v7891
      %vm7975 = vweird.f32 %v7969
      %vm7976 = vmor %vm7974, %vm7975
      %v7977 = vsel %vm7976, %v7969, %v7973
      %v7978 = vand.u32 2147483647, %v7891
      %vm7979 = vcmp.eq.f32.partialorder %v7978, 8.507059e+37
      %v7980 = vand.u32 %v7891, 2147483648
      %v7981 = vor.u32 1.1754944e-38, %v7980
      %v7982 = vsel %vm7979, %v7981, %v7977
      %v7983 = vmul.f32 1.0, %v7982
      %v7984 = vrcp.pop %v7892
      %v7985 = vmul.f32 %v7892, %v7984
      %v7986 = vsub.f32 1.0, %v7985
      %v7987 = vmul.f32 %v7984, %v7986
      %v7988 = vadd.f32 %v7984, %v7987
      %vm7989 = vweird.f32 %v7892
      %vm7990 = vweird.f32 %v7984
      %vm7991 = vmor %vm7989, %vm7990
      %v7992 = vsel %vm7991, %v7984, %v7988
      %v7993 = vand.u32 2147483647, %v7892
      %vm7994 = vcmp.eq.f32.partialorder %v7993, 8.507059e+37
      %v7995 = vand.u32 %v7892, 2147483648
      %v7996 = vor.u32 1.1754944e-38, %v7995
      %v7997 = vsel %vm7994, %v7996, %v7992
      %v7998 = vmul.f32 1.0, %v7997
      %v7999 = vrcp.pop %v7893
      %v8000 = vmul.f32 %v7893, %v7999
      %v8001 = vsub.f32 1.0, %v8000
      %v8002 = vmul.f32 %v7999, %v8001
      %v8003 = vadd.f32 %v7999, %v8002
      %vm8004 = vweird.f32 %v7893
      %vm8005 = vweird.f32 %v7999
      %vm8006 = vmor %vm8004, %vm8005
      %v8007 = vsel %vm8006, %v7999, %v8003
      %v8008 = vand.u32 2147483647, %v7893
      %vm8009 = vcmp.eq.f32.partialorder %v8008, 8.507059e+37
      %v8010 = vand.u32 %v7893, 2147483648
      %v8011 = vor.u32 1.1754944e-38, %v8010
      %v8012 = vsel %vm8009, %v8011, %v8007
      %v8013 = vmul.f32 1.0, %v8012
      %8014 = vst [vmem:[%s197] sm:$0xff] %v7908
      %8015 = vst [vmem:[%s197 + $0x8] sm:$0xff] %v7923
      %8016 = vst [vmem:[%s197 + $0x10] sm:$0xff] %v7938
      %8017 = vst [vmem:[%s197 + $0x18] sm:$0xff] %v7953
      %8018 = vst [vmem:[%s197 + $0x20] sm:$0xff] %v7968
      %8019 = vst [vmem:[%s197 + $0x28] sm:$0xff] %v7983
      %8020 = vst [vmem:[%s197 + $0x30] sm:$0xff] %v7998
      %8021 = vst [vmem:[%s197 + $0x38] sm:$0xff] %v8013
      %p8022 = scmp.lt.s32.totalorder %s15, 1
      %s8023 = scalar_select %p8022, %s15, 1
      %s8024 = smul.addr %s8023, 8
      %s8025 = smul.addr %s8024, 8
      %s8026 = scalar_lea.vmem %s4, %s8025
      // Predicated region
      $region37: #{unet_small_forward.1} parent=35 // pred_check
        %p8027 = pneg %p122
      $region38: #{unet_small_forward.1} parent=35 // pred_check_branch
        %8029 = sbr.rel (%p8027) target = $region40
      $region39: #{unet_small_forward.1} parent=35 // pred_region
        _
      $region40: #{unet_small_forward.1} parent=35 // pred_fallthru
        _
    $region36: #{unet_small_forward.1} parent=5 // pred_fallthru
      _
    %p8030 = scmp.le.s32.totalorder 2, %s10
    // Predicated region
    $region41: #{unet_small_forward.1} parent=5 // pred_check
      %p8031 = pneg %p8030
    $region42: #{unet_small_forward.1} parent=5 // pred_check_branch
      %8033 = sbr.rel (%p8031) target = $region44
    $region43: #{unet_small_forward.1} parent=5 // pred_region
      %s8034 = ssub.s32 %s10, 2
      // Predicated region
      $region45: #{unet_small_forward.1} parent=43 // pred_check
        %p8035 = pneg %p128
      $region46: #{unet_small_forward.1} parent=43 // pred_check_branch
        %8037 = sbr.rel (%p8035) target = $region48
      $region47: #{unet_small_forward.1} parent=43 // pred_region
        %p8038 = scmp.lt.s32.totalorder %s16, 1
        %s8039 = scalar_select %p8038, %s16, 1
        %s8040 = smul.addr %s8039, 8
        %s8041 = smul.addr %s8040, 8
        %s8042 = scalar_lea.vmem %s4, %s8041
      $region48: #{unet_small_forward.1} parent=43 // pred_fallthru
        _
    $region44: #{unet_small_forward.1} parent=5 // pred_fallthru
      _
  $region6: #{unet_small_forward.1} parent=0 // loop_footer
    %s14 = sadd.s32 1, %s10
  $region7: #{unet_small_forward.1} parent=0 // loop_footer_branch
    %9 = sbr.rel target = $region3
  $region8: #{unet_small_forward.1} parent=0 // loop_exit
    _

</llo_original>
